<compile_context>
chip_gen: v6e
topology: v6e:2x2x1
jax: 0.10.0
libtpu: 0.0.40
codegen_flags: <defaults>
</compile_context>

<pallas_src>
import jax
import jax.numpy as jnp
from jax import lax
from jax.experimental import pallas as pl
from jax.experimental.pallas import tpu as pltpu


TILE_N = 4096  # bf16 weight tile = 512*4096*2 B = 4 MiB; 8 MiB double-buffered.


# ---------------------------------------------------------------------------
# Fused kernel: (Conv1d k=3 + global avg pool, recomputed per step) + FC tile.
# ---------------------------------------------------------------------------
def _convnet_kernel(x_ref, wc_ref, bc_ref, wfc_ref, bfc_ref, o_ref):
    # x_ref:   (B, C, L)        f32, VMEM-resident (constant index_map)
    # wc_ref:  (3, C, 512)      f32, conv weight taps, VMEM-resident
    # bc_ref:  (1, 512)         f32, conv bias, VMEM-resident
    # wfc_ref: (1, 512, TILE_N) bf16, streamed contiguous weight slab
    # bfc_ref: (1, TILE_N)      f32, FC bias tile
    # o_ref:   (B, TILE_N)      f32, output tile
    x = x_ref[...]
    t_out = x.shape[-1] - 2  # conv output length (kernel_size=3, valid padding)

    # Windowed temporal sums, one per kernel tap (tiny; hidden under weight DMA).
    s0 = jnp.sum(x[:, :, 0:t_out], axis=-1)          # (B, C)
    s1 = jnp.sum(x[:, :, 1:t_out + 1], axis=-1)      # (B, C)
    s2 = jnp.sum(x[:, :, 2:t_out + 2], axis=-1)      # (B, C)

    pooled = jnp.dot(s0, wc_ref[0], preferred_element_type=jnp.float32)
    pooled += jnp.dot(s1, wc_ref[1], preferred_element_type=jnp.float32)
    pooled += jnp.dot(s2, wc_ref[2], preferred_element_type=jnp.float32)
    pooled = pooled * (1.0 / t_out) + bc_ref[...]     # (B, 512) f32

    # FC tile: bf16 inputs, f32 accumulation on the MXU.
    acc = jnp.dot(pooled.astype(jnp.bfloat16), wfc_ref[0],
                  preferred_element_type=jnp.float32)  # (B, TILE_N) f32
    o_ref[...] = (acc + bfc_ref[...]).astype(o_ref.dtype)


def convnet_forward(x, prepared):
    """x: (B, C, L) f32; prepared: output of prepare_params() -> (B, 65536) f32."""
    B, C, L = x.shape
    w_taps = prepared["w_conv_taps"]     # (3, C, 512) f32
    b_conv = prepared["b_conv"]          # (1, 512)    f32
    w_fc_blk = prepared["w_fc_blk"]      # (NB, 512, TILE_N) bf16, contiguous slabs
    b_fc = prepared["b_fc"]              # (1, N)      f32
    nb, K, tn = w_fc_blk.shape
    N = nb * tn

    cost = pl.CostEstimate(
        flops=2 * B * K * N,
        transcendentals=0,
        bytes_accessed=K * N * 2 + B * N * 4,  # bf16 weight + f32 output dominate
    )

    return pl.pallas_call(
        _convnet_kernel,
        out_shape=jax.ShapeDtypeStruct((B, N), jnp.float32),
        grid=(nb,),
        in_specs=[
            # Tiny front-end operands: constant index maps -> DMA'd once,
            # VMEM-resident across every grid step.
            pl.BlockSpec((B, C, L), lambda j: (0, 0, 0)),
            pl.BlockSpec((3, C, K), lambda j: (0, 0, 0)),
            pl.BlockSpec((1, K), lambda j: (0, 0)),
            # 64 MiB (bf16) weight streamed as contiguous 4 MiB slabs,
            # auto double-buffered by the Pallas pipeline.
            pl.BlockSpec((1, K, tn), lambda j: (j, 0, 0)),
            pl.BlockSpec((1, tn), lambda j: (0, j)),
        ],
        out_specs=pl.BlockSpec((B, tn), lambda j: (0, j)),
        compiler_params=pltpu.CompilerParams(
            dimension_semantics=("parallel",),
        ),
        cost_estimate=cost,
    )(x, w_taps, b_conv, w_fc_blk, b_fc)


# ---------------------------------------------------------------------------
# Params (PyTorch-style layouts) + one-time prepare step.
# ---------------------------------------------------------------------------
def init_params(key, *, in_channels=4, conv_out=512, kernel_size=3, fc_out=65536):
    """Deterministic init mimicking PyTorch defaults (uniform +-1/sqrt(fan_in)).

    Layouts:
      w_conv: (conv_out, in_channels, kernel_size)   # PyTorch Conv1d layout
      b_conv: (1, conv_out)
      w_fc:   (conv_out, fc_out)                     # transposed vs PyTorch Linear
      b_fc:   (1, fc_out)
    """
    k1, k2, k3, k4 = jax.random.split(key, 4)
    cb = 1.0 / (in_channels * kernel_size) ** 0.5
    fb = 1.0 / conv_out ** 0.5
    return {
        "w_conv": jax.random.uniform(
            k1, (conv_out, in_channels, kernel_size), jnp.float32, -cb, cb),
        "b_conv": jax.random.uniform(k2, (1, conv_out), jnp.float32, -cb, cb),
        "w_fc": jax.random.uniform(k3, (conv_out, fc_out), jnp.float32, -fb, fb),
        "b_fc": jax.random.uniform(k4, (1, fc_out), jnp.float32, -fb, fb),
    }


def prepare_params(params, *, tile_n=TILE_N):
    """One-time weight massaging (cast / reblock); amortized across all calls.

    - Conv weight (O, C, 3) -> (3, C, O): each tap is a ready (C, O) matmul operand.
    - FC weight (K, N) f32  -> (N//tile_n, K, tile_n) bf16: each grid step's tile is
      one contiguous HBM slab and carries half the bytes of f32.
    """
    w_conv = params["w_conv"]
    w_fc = params["w_fc"]
    K, N = w_fc.shape
    assert N % tile_n == 0, (N, tile_n)
    nb = N // tile_n
    w_taps = jnp.transpose(w_conv, (2, 1, 0))                       # (3, C, O)
    w_fc_blk = jnp.transpose(
        w_fc.astype(jnp.bfloat16).reshape(K, nb, tile_n), (1, 0, 2))  # (NB, K, tn)
    return {
        "w_conv_taps": w_taps,
        "b_conv": params["b_conv"],
        "w_fc_blk": w_fc_blk,
        "b_fc": params["b_fc"],
    }


def reference_forward(x, params):
    """Pure-JAX f32 reference matching the PyTorch forward exactly."""
    y = lax.conv_general_dilated(
        x, params["w_conv"], window_strides=(1,), padding="VALID",
        dimension_numbers=("NCH", "OIH", "NCH"),
        precision=lax.Precision.HIGHEST)
    y = y + params["b_conv"][:, :, None]          # Conv1d bias
    pooled = jnp.mean(y, axis=-1)                 # AdaptiveAvgPool1d(1) + flatten
    return jnp.dot(pooled, params["w_fc"],
                   precision=lax.Precision.HIGHEST) + params["b_fc"]


if __name__ == "__main__":
    key = jax.random.PRNGKey(0)
    key, kx = jax.random.split(key)

    B, C_in, L = 2, 4, 16  # small shapes consistent with the module
    x = jax.random.normal(kx, (B, C_in, L), jnp.float32)
    params = init_params(key, in_channels=C_in)
    prepared = prepare_params(params)

    out = jax.block_until_ready(convnet_forward(x, prepared))
    ref = reference_forward(x, params)

    assert out.shape == (B, 65536), out.shape
    max_err = float(jnp.max(jnp.abs(out - ref)))
    # Tolerance loosened vs the pure-f32 path because the FC weight/activation
    # are streamed as bf16 (accumulation stays f32); expected error ~1e-3.
    assert jnp.allclose(out, ref, atol=1e-2, rtol=1e-2), f"mismatch, max_err={max_err}"

    print("KERNEL_OK")
</pallas_src>

<mosaic_0001>
module attributes {stable_mosaic.version = 11 : i64} {
  func.func @_convnet_kernel(%arg0: i32, %arg1: memref<2x4x16xf32, #tpu.memory_space<vmem>>, %arg2: memref<3x4x512xf32, #tpu.memory_space<vmem>>, %arg3: memref<1x512xf32, #tpu.memory_space<vmem>>, %arg4: memref<1x512x4096xbf16, #tpu.memory_space<vmem>>, %arg5: memref<1x4096xf32, #tpu.memory_space<vmem>>, %arg6: memref<2x4096xf32, #tpu.memory_space<vmem>>) attributes {dimension_semantics = [#tpu.dimension_semantics<parallel>], iteration_bounds = array<i64: 16>, scalar_prefetch = 0 : i64, scratch_operands = 0 : i64, tpu.core_type = #tpu.core_type<tc>, window_params = [{pipeline_mode = #tpu.pipeline_mode<synchronous>, transform_indices = @transform_0, window_bounds = array<i64: 2, 4, 16>}, {pipeline_mode = #tpu.pipeline_mode<synchronous>, transform_indices = @transform_1, window_bounds = array<i64: 3, 4, 512>}, {pipeline_mode = #tpu.pipeline_mode<synchronous>, transform_indices = @transform_2, window_bounds = array<i64: 1, 512>}, {transform_indices = @transform_3, window_bounds = array<i64: 1, 512, 4096>}, {transform_indices = @transform_4, window_bounds = array<i64: 1, 4096>}, {transform_indices = @transform_5, window_bounds = array<i64: 2, 4096>}]} {
    %c0 = arith.constant 0 : index
    %c0_0 = arith.constant 0 : index
    %c0_1 = arith.constant 0 : index
    %0 = vector.load %arg1[%c0, %c0_0, %c0_1] : memref<2x4x16xf32, #tpu.memory_space<vmem>>, vector<2x4x16xf32>
    %1 = vector.extract_strided_slice %0 {offsets = [0, 0, 0], sizes = [2, 4, 14], strides = [1, 1, 1]} : vector<2x4x16xf32> to vector<2x4x14xf32>
    %cst = arith.constant dense<0.000000e+00> : vector<2x4xf32>
    %2 = vector.multi_reduction <add>, %1, %cst [2] : vector<2x4x14xf32> to vector<2x4xf32>
    %3 = vector.extract_strided_slice %0 {offsets = [0, 0, 1], sizes = [2, 4, 14], strides = [1, 1, 1]} : vector<2x4x16xf32> to vector<2x4x14xf32>
    %cst_2 = arith.constant dense<0.000000e+00> : vector<2x4xf32>
    %4 = vector.multi_reduction <add>, %3, %cst_2 [2] : vector<2x4x14xf32> to vector<2x4xf32>
    %5 = vector.extract_strided_slice %0 {offsets = [0, 0, 2], sizes = [2, 4, 14], strides = [1, 1, 1]} : vector<2x4x16xf32> to vector<2x4x14xf32>
    %cst_3 = arith.constant dense<0.000000e+00> : vector<2x4xf32>
    %6 = vector.multi_reduction <add>, %5, %cst_3 [2] : vector<2x4x14xf32> to vector<2x4xf32>
    %c0_4 = arith.constant 0 : index
    %c0_5 = arith.constant 0 : index
    %c0_6 = arith.constant 0 : index
    %7 = vector.load %arg2[%c0_4, %c0_5, %c0_6] : memref<3x4x512xf32, #tpu.memory_space<vmem>>, vector<1x4x512xf32>
    %8 = vector.shape_cast %7 : vector<1x4x512xf32> to vector<4x512xf32>
    %cst_7 = arith.constant dense<0.000000e+00> : vector<2x512xf32>
    %9 = tpu.matmul %2, %8, %cst_7 {dimension_numbers = #tpu.dot_dimension_numbers<[1], [0], [0], [1], [0, 0, 1, 1], [], []>} : vector<2x4xf32>, vector<4x512xf32>, vector<2x512xf32> -> vector<2x512xf32>
    %c1 = arith.constant 1 : index
    %c0_8 = arith.constant 0 : index
    %c0_9 = arith.constant 0 : index
    %10 = vector.load %arg2[%c1, %c0_8, %c0_9] : memref<3x4x512xf32, #tpu.memory_space<vmem>>, vector<1x4x512xf32>
    %11 = vector.shape_cast %10 : vector<1x4x512xf32> to vector<4x512xf32>
    %cst_10 = arith.constant dense<0.000000e+00> : vector<2x512xf32>
    %12 = tpu.matmul %4, %11, %cst_10 {dimension_numbers = #tpu.dot_dimension_numbers<[1], [0], [0], [1], [0, 0, 1, 1], [], []>} : vector<2x4xf32>, vector<4x512xf32>, vector<2x512xf32> -> vector<2x512xf32>
    %13 = arith.addf %9, %12 : vector<2x512xf32>
    %c2 = arith.constant 2 : index
    %c0_11 = arith.constant 0 : index
    %c0_12 = arith.constant 0 : index
    %14 = vector.load %arg2[%c2, %c0_11, %c0_12] : memref<3x4x512xf32, #tpu.memory_space<vmem>>, vector<1x4x512xf32>
    %15 = vector.shape_cast %14 : vector<1x4x512xf32> to vector<4x512xf32>
    %cst_13 = arith.constant dense<0.000000e+00> : vector<2x512xf32>
    %16 = tpu.matmul %6, %15, %cst_13 {dimension_numbers = #tpu.dot_dimension_numbers<[1], [0], [0], [1], [0, 0, 1, 1], [], []>} : vector<2x4xf32>, vector<4x512xf32>, vector<2x512xf32> -> vector<2x512xf32>
    %17 = arith.addf %13, %16 : vector<2x512xf32>
    %cst_14 = arith.constant 0.0714285746 : f32
    %18 = vector.broadcast %cst_14 : f32 to vector<2x512xf32>
    %19 = arith.mulf %17, %18 : vector<2x512xf32>
    %c0_15 = arith.constant 0 : index
    %c0_16 = arith.constant 0 : index
    %20 = vector.load %arg3[%c0_15, %c0_16] : memref<1x512xf32, #tpu.memory_space<vmem>>, vector<1x512xf32>
    %21 = vector.broadcast %20 : vector<1x512xf32> to vector<2x512xf32>
    %22 = arith.addf %19, %21 : vector<2x512xf32>
    %23 = arith.truncf %22 : vector<2x512xf32> to vector<2x512xbf16>
    %c0_17 = arith.constant 0 : index
    %c0_18 = arith.constant 0 : index
    %c0_19 = arith.constant 0 : index
    %24 = vector.load %arg4[%c0_17, %c0_18, %c0_19] : memref<1x512x4096xbf16, #tpu.memory_space<vmem>>, vector<1x512x4096xbf16>
    %25 = vector.shape_cast %24 : vector<1x512x4096xbf16> to vector<512x4096xbf16>
    %cst_20 = arith.constant dense<0.000000e+00> : vector<2x4096xf32>
    %26 = tpu.matmul %23, %25, %cst_20 {dimension_numbers = #tpu.dot_dimension_numbers<[1], [0], [0], [1], [0, 0, 1, 1], [], []>} : vector<2x512xbf16>, vector<512x4096xbf16>, vector<2x4096xf32> -> vector<2x4096xf32>
    %c0_21 = arith.constant 0 : index
    %c0_22 = arith.constant 0 : index
    %27 = vector.load %arg5[%c0_21, %c0_22] : memref<1x4096xf32, #tpu.memory_space<vmem>>, vector<1x4096xf32>
    %28 = vector.broadcast %27 : vector<1x4096xf32> to vector<2x4096xf32>
    %29 = arith.addf %26, %28 : vector<2x4096xf32>
    %c0_23 = arith.constant 0 : index
    %c0_24 = arith.constant 0 : index
    %30 = vector.load %arg6[%c0_23, %c0_24] : memref<2x4096xf32, #tpu.memory_space<vmem>>, vector<2x4096xf32>
    tpu.vector_store %arg6[%c0_23, %c0_24], %29 {strides = array<i32>} : memref<2x4096xf32, #tpu.memory_space<vmem>>, vector<2x4096xf32>,
    return
  }
  func.func @transform_0(%arg0: i32) -> (i32, i32, i32) {
    %c0_i32 = arith.constant 0 : i32
    %c0_i32_0 = arith.constant 0 : i32
    %c0_i32_1 = arith.constant 0 : i32
    %c0_i32_2 = arith.constant 0 : i32
    return %c0_i32, %c0_i32_0, %c0_i32_1 : i32, i32, i32
  }
  func.func @transform_1(%arg0: i32) -> (i32, i32, i32) {
    %c0_i32 = arith.constant 0 : i32
    %c0_i32_0 = arith.constant 0 : i32
    %c0_i32_1 = arith.constant 0 : i32
    %c0_i32_2 = arith.constant 0 : i32
    return %c0_i32, %c0_i32_0, %c0_i32_1 : i32, i32, i32
  }
  func.func @transform_2(%arg0: i32) -> (i32, i32) {
    %c0_i32 = arith.constant 0 : i32
    %c0_i32_0 = arith.constant 0 : i32
    %c0_i32_1 = arith.constant 0 : i32
    return %c0_i32, %c0_i32_0 : i32, i32
  }
  func.func @transform_3(%arg0: i32) -> (i32, i32, i32) {
    %c0_i32 = arith.constant 0 : i32
    %c0_i32_0 = arith.constant 0 : i32
    %c0_i32_1 = arith.constant 0 : i32
    return %arg0, %c0_i32, %c0_i32_0 : i32, i32, i32
  }
  func.func @transform_4(%arg0: i32) -> (i32, i32) {
    %c0_i32 = arith.constant 0 : i32
    %c0_i32_0 = arith.constant 0 : i32
    return %c0_i32, %arg0 : i32, i32
  }
  func.func @transform_5(%arg0: i32) -> (i32, i32) {
    %c0_i32 = arith.constant 0 : i32
    %c0_i32_0 = arith.constant 0 : i32
    return %c0_i32, %arg0 : i32, i32
  }
}

</mosaic_0001>

<llo_original>
// kernel: tpu_custom_call.1
$region0: #{tpu_custom_call.1}
  #allocation0 [shape = 'u32[]', space=smem, size = 0x4, offset = 0x4, fixed_abs, tag = 'smem constant byte address 0x4 - core index']
  #allocation1 [shape = 'u32[144,128]{1,0:T(1,128)}', space=vmem, size = 0x12000, scoped, tag = 'internal scratch']
  %s0 = inlined_call_operand.hbm [shape: f32[2,4,16], index: 0, kind: input, shape index: {}]
  %s1 = inlined_call_operand.hbm [shape: f32[3,4,512], index: 1, kind: input, shape index: {}]
  %s2 = inlined_call_operand.hbm [shape: f32[1,512], index: 2, kind: input, shape index: {}]
  %s3 = inlined_call_operand.hbm [shape: bf16[16,512,4096], index: 3, kind: input, shape index: {}]
  %s4 = inlined_call_operand.hbm [shape: f32[1,65536], index: 4, kind: input, shape index: {}]
  %s5 = inlined_call_operand.hbm [shape: f32[2,65536], index: 5, kind: output, shape index: {}]
  %s6 = sld [smem:[#allocation0]]
  $region73: #{tpu_custom_call.1} parent=0
    _
  %s8 = ssub.s32 1, %s6
  %s9 = scalar_select 0, %s8, %s6
  $region1: #{tpu_custom_call.1} parent=0
    #allocation2 [shape = 'u8[4096]{0}', space=vmem, size = 0x1000, scoped, tag = 'input window, operand 0, single buffered']
    #allocation3 [shape = 's32[2]{0}', space=sflag, size = 0x8, scoped, tag = 'scoped memory for tpu_custom_call.1']
    #allocation4 [shape = 's32[2]{0}', space=sflag, size = 0x8, scoped, tag = 'scoped memory for tpu_custom_call.1']
    #allocation5 [shape = 'u8[24576]{0}', space=vmem, size = 0x6000, scoped, tag = 'input window, operand 1, single buffered']
    #allocation6 [shape = 's32[1]{0}', space=sflag, size = 0x4, scoped, tag = 'scoped memory for tpu_custom_call.1']
    #allocation7 [shape = 'u8[2048]{0}', space=vmem, size = 0x800, scoped, tag = 'input window, operand 2, single buffered']
    #allocation8 [shape = 'u8[8388608]{0}', space=vmem, size = 0x800000, scoped, tag = 'input window, operand 3']
    #allocation9 [shape = 's32[2]{0}', space=sflag, size = 0x8, scoped, tag = 'scoped memory for tpu_custom_call.1']
    #allocation10 [shape = 'u8[32768]{0}', space=vmem, size = 0x8000, scoped, tag = 'input window, operand 4']
    #allocation11 [shape = 'u8[65536]{0}', space=vmem, size = 0x10000, scoped, tag = 'output window, operand 0']
    %10 = vsyncpa [#allocation3], 0
    %11 = vsyncpa [#allocation6], 0
    %12 = vsyncpa [#allocation9], 0
    %s13 = scalar_lea.sflag [#allocation9], 1
    %14 = vsyncpa %s13, 0
    %15 = vsyncpa [#allocation4], 0
    %s16 = scalar_lea.sflag [#allocation4], 1
    %17 = vsyncpa %s16, 0
    loop: start=0, step=1, limit=18
    $region2: #{tpu_custom_call.1} parent=1 // loop_pre_header
      _
    $region3: #{tpu_custom_call.1} parent=1 // loop_header
      %s19 = sphi 0, %s23
      %p20 = scmp.ge.s32.totalorder %s19, 18
      %s27 = sphi 0, %s27
      %s29 = sphi 0, %s27
      %s30 = sphi 0, %s29
      %s44 = sphi 0, %s30
      %s48 = sphi 0, %s48
      %s50 = sphi 0, %s48
      %s51 = sphi 0, %s50
      %s65 = sphi 0, %s51
      %s69 = sphi 0, %s69
      %s71 = sphi 0, %s69
      %s72 = sphi 0, %s71
      %s86 = sphi 0, %s72
      %s92 = sphi 0, %s94
      %s95 = sphi 0, %s92
      %s96 = sphi 0, %s95
      %s112 = sphi 0, %s96
      %s118 = sphi 0, %s120
      %s121 = sphi 0, %s118
      %s122 = sphi 0, %s121
      %s138 = sphi 0, %s122
      %s144 = sphi 0, %s146
      %s147 = sphi 0, %s144
      %s148 = sphi 0, %s147
      %s164 = sphi 0, %s148
    $region4: #{tpu_custom_call.1} parent=1 // loop_header_branch
      %22 = sbr.rel (%p20) target = $region8
    $region5: #{tpu_custom_call.1} parent=1 // loop_body
      %s24 = ssub.s32 %s19, 1
      %s25 = ssub.s32 %s19, 2
      %s26 = sadd.s32 %s19, 1
      %s28 = sadd.s32 %s27, 1
      %p31 = scmp.eq.s32.totalorder %s19, 15
      %p32 = scmp.ne.s32.totalorder %s27, %s29
      %p33 = scmp.eq.s32.totalorder %s19, 0
      %p34 = por %p32, %p33
      %p35 = scmp.ne.s32.totalorder %s27, %s29
      %p36 = scmp.eq.s32.totalorder %s24, 15
      %p37 = por %p35, %p36
      %p38 = scmp.ne.s32.totalorder %s29, %s30
      %p39 = scmp.eq.s32.totalorder %s24, 0
      %p40 = por %p38, %p39
      %p41 = scmp.ne.s32.totalorder %s29, %s30
      %p42 = scmp.eq.s32.totalorder %s25, 15
      %p43 = por %p41, %p42
      %p45 = scmp.ne.s32.totalorder %s30, %s44
      %p46 = scmp.eq.s32.totalorder %s25, 0
      %p47 = por %p45, %p46
      %s49 = sadd.s32 %s48, 1
      %p52 = scmp.eq.s32.totalorder %s19, 15
      %p53 = scmp.ne.s32.totalorder %s48, %s50
      %p54 = scmp.eq.s32.totalorder %s19, 0
      %p55 = por %p53, %p54
      %p56 = scmp.ne.s32.totalorder %s48, %s50
      %p57 = scmp.eq.s32.totalorder %s24, 15
      %p58 = por %p56, %p57
      %p59 = scmp.ne.s32.totalorder %s50, %s51
      %p60 = scmp.eq.s32.totalorder %s24, 0
      %p61 = por %p59, %p60
      %p62 = scmp.ne.s32.totalorder %s50, %s51
      %p63 = scmp.eq.s32.totalorder %s25, 15
      %p64 = por %p62, %p63
      %p66 = scmp.ne.s32.totalorder %s51, %s65
      %p67 = scmp.eq.s32.totalorder %s25, 0
      %p68 = por %p66, %p67
      %s70 = sadd.s32 %s69, 1
      %p73 = scmp.eq.s32.totalorder %s19, 15
      %p74 = scmp.ne.s32.totalorder %s69, %s71
      %p75 = scmp.eq.s32.totalorder %s19, 0
      %p76 = por %p74, %p75
      %p77 = scmp.ne.s32.totalorder %s69, %s71
      %p78 = scmp.eq.s32.totalorder %s24, 15
      %p79 = por %p77, %p78
      %p80 = scmp.ne.s32.totalorder %s71, %s72
      %p81 = scmp.eq.s32.totalorder %s24, 0
      %p82 = por %p80, %p81
      %p83 = scmp.ne.s32.totalorder %s71, %s72
      %p84 = scmp.eq.s32.totalorder %s25, 15
      %p85 = por %p83, %p84
      %p87 = scmp.ne.s32.totalorder %s72, %s86
      %p88 = scmp.eq.s32.totalorder %s25, 0
      %p89 = por %p87, %p88
      %s90 = ssub.s32 %s19, %s26
      %p91 = scmp.eq.s32.totalorder %s90, 0
      %s93 = sadd.s32 %s92, 1
      %s94 = scalar_select %p91, %s92, %s93
      %p97 = pneg %p91
      %p98 = scmp.eq.s32.totalorder %s19, 15
      %p99 = por %p97, %p98
      %p100 = scmp.ne.s32.totalorder %s92, %s95
      %p101 = scmp.eq.s32.totalorder %s19, 0
      %p102 = por %p100, %p101
      %p103 = scmp.ne.s32.totalorder %s92, %s95
      %p104 = scmp.eq.s32.totalorder %s24, 15
      %p105 = por %p103, %p104
      %p106 = scmp.ne.s32.totalorder %s95, %s96
      %p107 = scmp.eq.s32.totalorder %s24, 0
      %p108 = por %p106, %p107
      %p109 = scmp.ne.s32.totalorder %s95, %s96
      %p110 = scmp.eq.s32.totalorder %s25, 15
      %p111 = por %p109, %p110
      %p113 = scmp.ne.s32.totalorder %s96, %s112
      %p114 = scmp.eq.s32.totalorder %s25, 0
      %p115 = por %p113, %p114
      %s116 = ssub.s32 %s19, %s26
      %p117 = scmp.eq.s32.totalorder %s116, 0
      %s119 = sadd.s32 %s118, 1
      %s120 = scalar_select %p117, %s118, %s119
      %p123 = pneg %p117
      %p124 = scmp.eq.s32.totalorder %s19, 15
      %p125 = por %p123, %p124
      %p126 = scmp.ne.s32.totalorder %s118, %s121
      %p127 = scmp.eq.s32.totalorder %s19, 0
      %p128 = por %p126, %p127
      %p129 = scmp.ne.s32.totalorder %s118, %s121
      %p130 = scmp.eq.s32.totalorder %s24, 15
      %p131 = por %p129, %p130
      %p132 = scmp.ne.s32.totalorder %s121, %s122
      %p133 = scmp.eq.s32.totalorder %s24, 0
      %p134 = por %p132, %p133
      %p135 = scmp.ne.s32.totalorder %s121, %s122
      %p136 = scmp.eq.s32.totalorder %s25, 15
      %p137 = por %p135, %p136
      %p139 = scmp.ne.s32.totalorder %s122, %s138
      %p140 = scmp.eq.s32.totalorder %s25, 0
      %p141 = por %p139, %p140
      %s142 = ssub.s32 %s19, %s26
      %p143 = scmp.eq.s32.totalorder %s142, 0
      %s145 = sadd.s32 %s144, 1
      %s146 = scalar_select %p143, %s144, %s145
      %p149 = pneg %p143
      %p150 = scmp.eq.s32.totalorder %s19, 15
      %p151 = por %p149, %p150
      %p152 = scmp.ne.s32.totalorder %s144, %s147
      %p153 = scmp.eq.s32.totalorder %s19, 0
      %p154 = por %p152, %p153
      %p155 = scmp.ne.s32.totalorder %s144, %s147
      %p156 = scmp.eq.s32.totalorder %s24, 15
      %p157 = por %p155, %p156
      %p158 = scmp.ne.s32.totalorder %s147, %s148
      %p159 = scmp.eq.s32.totalorder %s24, 0
      %p160 = por %p158, %p159
      %p161 = scmp.ne.s32.totalorder %s147, %s148
      %p162 = scmp.eq.s32.totalorder %s25, 15
      %p163 = por %p161, %p162
      %p165 = scmp.ne.s32.totalorder %s148, %s164
      %p166 = scmp.eq.s32.totalorder %s25, 0
      %p167 = por %p165, %p166
      %p168 = scmp.le.s32.totalorder 1, %s19
      %p169 = scmp.lt.s32.totalorder %s19, 17
      %p170 = pnand %p168, %p169
      %p171 = pneg %p170
      // Predicated region
      $region9: #{tpu_custom_call.1} parent=5 // pred_check
        _
      $region10: #{tpu_custom_call.1} parent=5 // pred_check_branch
        %173 = sbr.rel (%p170) target = $region12
      $region11: #{tpu_custom_call.1} parent=5 // pred_region
        %s174 = ssub.s32 %s19, 1
        // Predicated region
        $region13: #{tpu_custom_call.1} parent=11 // pred_check
          %p175 = pneg %p40
        $region14: #{tpu_custom_call.1} parent=11 // pred_check_branch
          %177 = sbr.rel (%p175) target = $region16
        $region15: #{tpu_custom_call.1} parent=11 // pred_region
          %s179 = ssub.s32 128, 128
          %180 = vsyncadd [#allocation3], %s179
          %s181 = sshll.u32 [#allocation2], 4
          %s182 = int_to_ptr.vmem [resolvable:$true] %s181
          %187 = dma.hbm_to_vmem [thread:$0]  %s0, 128, %s182, [#allocation3], 64, 64, 4
        $region16: #{tpu_custom_call.1} parent=11 // pred_fallthru
          _
        // Predicated region
        $region17: #{tpu_custom_call.1} parent=11 // pred_check
          %p188 = pneg %p61
        $region18: #{tpu_custom_call.1} parent=11 // pred_check_branch
          %190 = sbr.rel (%p188) target = $region20
        $region19: #{tpu_custom_call.1} parent=11 // pred_region
          %s192 = ssub.s32 768, 768
          %193 = vsyncadd [#allocation6], %s192
          %s194 = sshll.u32 [#allocation5], 4
          %s195 = int_to_ptr.vmem [resolvable:$true] %s194
          %200 = dma.hbm_to_vmem [thread:$0]  %s1, 768, %s195, [#allocation6], 256, 256, 16
        $region20: #{tpu_custom_call.1} parent=11 // pred_fallthru
          _
        // Predicated region
        $region21: #{tpu_custom_call.1} parent=11 // pred_check
          %p201 = pneg %p82
        $region22: #{tpu_custom_call.1} parent=11 // pred_check_branch
          %203 = sbr.rel (%p201) target = $region24
        $region23: #{tpu_custom_call.1} parent=11 // pred_region
          %s205 = ssub.s32 64, 64
          %206 = vsyncadd [#allocation6], %s205
          %s208 = sshll.u32 [#allocation7], 4
          %s209 = int_to_ptr.vmem [resolvable:$true] %s208
          %211 = dma.hbm_to_vmem [thread:$0]  %s2, 64, %s209, [#allocation6]
        $region24: #{tpu_custom_call.1} parent=11 // pred_fallthru
          _
      $region12: #{tpu_custom_call.1} parent=5 // pred_fallthru
        _
      %p212 = scmp.lt.s32.totalorder %s19, 16
      // Predicated region
      $region25: #{tpu_custom_call.1} parent=5 // pred_check
        %p213 = pneg %p212
      $region26: #{tpu_custom_call.1} parent=5 // pred_check_branch
        %215 = sbr.rel (%p213) target = $region28
      $region27: #{tpu_custom_call.1} parent=5 // pred_region
        // Predicated region
        $region29: #{tpu_custom_call.1} parent=27 // pred_check
          %p216 = pneg %p102
        $region30: #{tpu_custom_call.1} parent=27 // pred_check_branch
          %218 = sbr.rel (%p216) target = $region32
        $region31: #{tpu_custom_call.1} parent=27 // pred_region
          %s219 = sand.u32 %s19, 1
          %s220 = scalar_lea.sflag [#allocation9], %s219
          %s221 = sand.u32 %s92, 1
          %s222 = smul.addr %s221, 8192
          %s223 = scalar_lea.vmem [#allocation8], %s222
          %s225 = ssub.s32 131072, 131072
          %226 = vsyncadd %s220, %s225
          %s227 = smul.addr %s19, 2048
          %s228 = smul.addr %s227, 64
          %s229 = scalar_lea.hbm %s3, %s228
          %s230 = sshll.u32 %s223, 4
          %s231 = int_to_ptr.vmem [resolvable:$true] %s230
          %236 = dma.hbm_to_vmem [thread:$0]  %s229, 131072, %s231, %s220, 2048, 2048, 128
        $region32: #{tpu_custom_call.1} parent=27 // pred_fallthru
          _
        // Predicated region
        $region33: #{tpu_custom_call.1} parent=27 // pred_check
          %p237 = pneg %p128
        $region34: #{tpu_custom_call.1} parent=27 // pred_check_branch
          %239 = sbr.rel (%p237) target = $region36
        $region35: #{tpu_custom_call.1} parent=27 // pred_region
          %s240 = sand.u32 %s19, 1
          %s241 = scalar_lea.sflag [#allocation9], %s240
          %s242 = sand.u32 %s118, 1
          %s243 = smul.addr %s242, 32
          %s244 = scalar_lea.vmem [#allocation10], %s243
          %s245 = smul.u32 32, %s19
          %s247 = ssub.s32 512, 512
          %248 = vsyncadd %s241, %s247
          %s249 = smul.addr %s245, 16
          %s250 = scalar_lea.hbm %s4, %s249
          %s252 = sshll.u32 %s244, 4
          %s253 = int_to_ptr.vmem [resolvable:$true] %s252
          %255 = dma.hbm_to_vmem [thread:$0]  %s250, 512, %s253, %s241
        $region36: #{tpu_custom_call.1} parent=27 // pred_fallthru
          _
      $region28: #{tpu_custom_call.1} parent=5 // pred_fallthru
        _
      %p256 = scmp.le.s32.totalorder 1, %s19
      %p257 = scmp.lt.s32.totalorder %s19, 17
      %p258 = pnand %p256, %p257
      %p259 = pneg %p258
      // Predicated region
      $region37: #{tpu_custom_call.1} parent=5 // pred_check
        _
      $region38: #{tpu_custom_call.1} parent=5 // pred_check_branch
        %261 = sbr.rel (%p258) target = $region40
      $region39: #{tpu_custom_call.1} parent=5 // pred_region
        %s262 = ssub.s32 %s19, 1
        // Predicated region
        $region41: #{tpu_custom_call.1} parent=39 // pred_check
          %p263 = pneg %p40
        $region42: #{tpu_custom_call.1} parent=39 // pred_check_branch
          %265 = sbr.rel (%p263) target = $region44
        $region43: #{tpu_custom_call.1} parent=39 // pred_region
          %266 = dma.done [#allocation3], 128
        $region44: #{tpu_custom_call.1} parent=39 // pred_fallthru
          _
        // Predicated region
        $region45: #{tpu_custom_call.1} parent=39 // pred_check
          %p267 = pneg %p61
        $region46: #{tpu_custom_call.1} parent=39 // pred_check_branch
          %269 = sbr.rel (%p267) target = $region48
        $region47: #{tpu_custom_call.1} parent=39 // pred_region
          %270 = dma.done [#allocation6], 768
        $region48: #{tpu_custom_call.1} parent=39 // pred_fallthru
          _
        // Predicated region
        $region49: #{tpu_custom_call.1} parent=39 // pred_check
          %p271 = pneg %p82
        $region50: #{tpu_custom_call.1} parent=39 // pred_check_branch
          %273 = sbr.rel (%p271) target = $region52
        $region51: #{tpu_custom_call.1} parent=39 // pred_region
          %274 = dma.done [#allocation6], 64
        $region52: #{tpu_custom_call.1} parent=39 // pred_fallthru
          _
        %s275 = sand.u32 %s24, 1
        %s276 = scalar_lea.sflag [#allocation9], %s275
        %s277 = sand.u32 %s95, 1
        %s278 = smul.addr %s277, 8192
        %s279 = scalar_lea.vmem [#allocation8], %s278
        // Predicated region
        $region53: #{tpu_custom_call.1} parent=39 // pred_check
          %p280 = pneg %p108
        $region54: #{tpu_custom_call.1} parent=39 // pred_check_branch
          %282 = sbr.rel (%p280) target = $region56
        $region55: #{tpu_custom_call.1} parent=39 // pred_region
          %283 = dma.done %s276, 131072
        $region56: #{tpu_custom_call.1} parent=39 // pred_fallthru
          _
        %s284 = sand.u32 %s24, 1
        %s285 = scalar_lea.sflag [#allocation9], %s284
        %s286 = sand.u32 %s121, 1
        %s287 = smul.addr %s286, 32
        %s288 = scalar_lea.vmem [#allocation10], %s287
        // Predicated region
        $region57: #{tpu_custom_call.1} parent=39 // pred_check
          %p289 = pneg %p134
        $region58: #{tpu_custom_call.1} parent=39 // pred_check_branch
          %291 = sbr.rel (%p289) target = $region60
        $region59: #{tpu_custom_call.1} parent=39 // pred_region
          %292 = dma.done %s285, 512
        $region60: #{tpu_custom_call.1} parent=39 // pred_fallthru
          _
        %p293 = pneg %p40
        %p294 = pneg %p37
        %p295 = pneg %p61
        %p296 = pneg %p58
        %p297 = pneg %p82
        %p298 = pneg %p79
        %s299 = sand.u32 %s24, 1
        %s300 = scalar_lea.sflag [#allocation9], %s299
        %s301 = sand.u32 %s95, 1
        %s302 = smul.addr %s301, 8192
        %s303 = scalar_lea.vmem [#allocation8], %s302
        %p304 = pneg %p108
        %p305 = pneg %p105
        %s306 = sand.u32 %s24, 1
        %s307 = scalar_lea.sflag [#allocation9], %s306
        %s308 = sand.u32 %s121, 1
        %s309 = smul.addr %s308, 32
        %s310 = scalar_lea.vmem [#allocation10], %s309
        %p311 = pneg %p134
        %p312 = pneg %p131
        %p313 = pneg %p160
        %p314 = pneg %p157
        %s315 = sand.u32 %s147, 1
        %s316 = scalar_lea.sflag [#allocation4], %s315
        %s317 = sand.u32 %s147, 1
        %s318 = smul.addr %s317, 64
        %s319 = scalar_lea.vmem [#allocation11], %s318
        %s320 = smul.u32 32, %s24
        %s321 = smul.u32 32, %s24
        %v322 = vld [vmem:[#allocation2] sm:$0xf]
        %v323 = vld [vmem:[#allocation2 + $0x4] sm:$0xf]
        %vm324 = vcmask 109568
        %v325 = vsel %vm324, %v322, 0.0
        %326 = vadd.xlane.f32.xlu0 %v325
        %v327 = vpop.xlane.xlu0 %326
        %v328 = vsel %vm324, %v323, 0.0
        %329 = vadd.xlane.f32.xlu0 %v328
        %v330 = vpop.xlane.xlu0 %329
        %333 = vrot.lane.b32.xlu0 %v322, 127
        %v334 = vpop.permute.xlu0 %333
        %335 = vrot.lane.b32.xlu0 %v323, 127
        %v336 = vpop.permute.xlu0 %335
        %v339 = vsel %vm324, %v334, 0.0
        %340 = vadd.xlane.f32.xlu0 %v339
        %v341 = vpop.xlane.xlu0 %340
        %v342 = vsel %vm324, %v336, 0.0
        %343 = vadd.xlane.f32.xlu0 %v342
        %v344 = vpop.xlane.xlu0 %343
        %345 = vrot.lane.b32.xlu0 %v322, 126
        %v346 = vpop.permute.xlu0 %345
        %347 = vrot.lane.b32.xlu0 %v323, 126
        %v348 = vpop.permute.xlu0 %347
        %v351 = vsel %vm324, %v346, 0.0
        %352 = vadd.xlane.f32.xlu0 %v351
        %v353 = vpop.xlane.xlu0 %352
        %v354 = vsel %vm324, %v348, 0.0
        %355 = vadd.xlane.f32.xlu0 %v354
        %v356 = vpop.xlane.xlu0 %355
        %v357 = vld [vmem:[#allocation5] sm:$0xff]
        %v358 = vld [vmem:[#allocation5 + $0x8] sm:$0xff]
        %s359 = scalar_lea.vmem [#allocation5], 16
        %v360 = vld [vmem:[%s359] sm:$0xff]
        %v361 = vld [vmem:[%s359 + $0x8] sm:$0xff]
        %v364 = vlaneseq
        %v365 = vand.u32 %v364, 127
        %v366 = vlaneseq
        %v367 = vshrl.u32 %v366, 7
        %v368 = vsub.s32 %v365, %v367
        %v369 = vrot.slane %v341, %v368
        %v370 = vlaneseq
        %v371 = vshrl.u32 %v370, 7
        %v372 = vsub.s32 %v365, %v371
        %v373 = vrot.slane %v344, %v372
        %vm374 = vcmask 1041409
        %v375 = vsel %vm374, %v373, %v369
        %v378 = vcombine.high %v360, %v360
        %v379 = vcombine.high %v361, %v361
        %vm380 = vcmask 31744
        %v381 = vsel %vm380, %v375, 0
        %vm383 = vcmask 1043456
        %v384 = vsel %vm383, %v360, 0
        %v386 = vsel %vm383, %v378, 0
        %v388 = vsel %vm383, %v361, 0
        %v390 = vsel %vm383, %v379, 0
        %392 = vmatprep.subr.mxu0 0.0
        %393 = vmatpush1.msra.mxu0 0.0
        %394 = vmatprep.subr.mxu0 0.0
        %395 = vmatpush1.msra.mxu0 0.0
        %396 = vmatprep.subr.mxu0 0.0
        %397 = vmatpush1.msra.mxu0 0.0
        %398 = vmatprep.subr.mxu0 0.0
        %399 = vmatpush1.msra.mxu0 0.0
        %400 = vmatprep.subr.mxu0 0.0
        %401 = vmatpush1.msra.mxu0 0.0
        %402 = vmatprep.subr.mxu0 0.0
        %403 = vmatpush1.msra.mxu0 0.0
        %404 = vmatprep.subr.mxu0 0.0
        %405 = vmatpush1.msra.mxu0 0.0
        %406 = vmatprep.subr.mxu0 0.0
        %407 = vmatpush1.msra.mxu0 0.0
        %408 = vmatprep.subr.mxu0 0.0
        %409 = vmatpush1.msra.mxu0 0.0
        %410 = vmatprep.subr.mxu0 0.0
        %411 = vmatpush1.msra.mxu0 0.0
        %412 = vmatprep.subr.mxu0 0.0
        %413 = vmatpush1.msra.mxu0 0.0
        %414 = vmatprep.subr.mxu0 0.0
        %415 = vmatpush1.msra.mxu0 0.0
        %416 = vmatprep.subr.mxu0 0.0
        %417 = vmatpush1.msra.mxu0 0.0
        %418 = vmatprep.subr.mxu0 0.0
        %419 = vmatpush1.msra.mxu0 0.0
        %420 = vmatprep.subr.mxu0 0.0
        %421 = vmatpush1.msra.mxu0 0.0
        %422 = vmatprep.subr.mxu0 %v386
        %423 = vmatpush1.msra.mxu0 %v384
        %424 = vmatprep.subr.mxu0 0.0
        %425 = vmatpush2.msra.mxu0 0.0
        %426 = vmatprep.subr.mxu0 0.0
        %427 = vmatpush2.msra.mxu0 0.0
        %428 = vmatprep.subr.mxu0 0.0
        %429 = vmatpush2.msra.mxu0 0.0
        %430 = vmatprep.subr.mxu0 0.0
        %431 = vmatpush2.msra.mxu0 0.0
        %432 = vmatprep.subr.mxu0 0.0
        %433 = vmatpush2.msra.mxu0 0.0
        %434 = vmatprep.subr.mxu0 0.0
        %435 = vmatpush2.msra.mxu0 0.0
        %436 = vmatprep.subr.mxu0 0.0
        %437 = vmatpush2.msra.mxu0 0.0
        %438 = vmatprep.subr.mxu0 0.0
        %439 = vmatpush2.msra.mxu0 0.0
        %440 = vmatprep.subr.mxu0 0.0
        %441 = vmatpush2.msra.mxu0 0.0
        %442 = vmatprep.subr.mxu0 0.0
        %443 = vmatpush2.msra.mxu0 0.0
        %444 = vmatprep.subr.mxu0 0.0
        %445 = vmatpush2.msra.mxu0 0.0
        %446 = vmatprep.subr.mxu0 0.0
        %447 = vmatpush2.msra.mxu0 0.0
        %448 = vmatprep.subr.mxu0 0.0
        %449 = vmatpush2.msra.mxu0 0.0
        %450 = vmatprep.subr.mxu0 0.0
        %451 = vmatpush2.msra.mxu0 0.0
        %452 = vmatprep.subr.mxu0 0.0
        %453 = vmatpush2.msra.mxu0 0.0
        %454 = vmatprep.subr.mxu0 0.0
        %455 = vmatpush2.msra.mxu0 0.0
        %456 = vmatprep.mubr.f32.mxu0 0.0
        %457 = vmatmul.mubr.f32.gmra.mxu0 %v381
        %v458 = vpop.f32.mrf.mxu0
        %v459 = vadd.f32 0.0, %v458
        %v460 = vpop.f32.mrf.mxu0
        %v461 = vadd.f32 0.0, %v460
        %462 = vdwg.mxu0
        %463 = vmatprep.subr.mxu0 0.0
        %464 = vmatpush1.msra.mxu0 0.0
        %465 = vmatprep.subr.mxu0 0.0
        %466 = vmatpush1.msra.mxu0 0.0
        %467 = vmatprep.subr.mxu0 0.0
        %468 = vmatpush1.msra.mxu0 0.0
        %469 = vmatprep.subr.mxu0 0.0
        %470 = vmatpush1.msra.mxu0 0.0
        %471 = vmatprep.subr.mxu0 0.0
        %472 = vmatpush1.msra.mxu0 0.0
        %473 = vmatprep.subr.mxu0 0.0
        %474 = vmatpush1.msra.mxu0 0.0
        %475 = vmatprep.subr.mxu0 0.0
        %476 = vmatpush1.msra.mxu0 0.0
        %477 = vmatprep.subr.mxu0 0.0
        %478 = vmatpush1.msra.mxu0 0.0
        %479 = vmatprep.subr.mxu0 0.0
        %480 = vmatpush1.msra.mxu0 0.0
        %481 = vmatprep.subr.mxu0 0.0
        %482 = vmatpush1.msra.mxu0 0.0
        %483 = vmatprep.subr.mxu0 0.0
        %484 = vmatpush1.msra.mxu0 0.0
        %485 = vmatprep.subr.mxu0 0.0
        %486 = vmatpush1.msra.mxu0 0.0
        %487 = vmatprep.subr.mxu0 0.0
        %488 = vmatpush1.msra.mxu0 0.0
        %489 = vmatprep.subr.mxu0 0.0
        %490 = vmatpush1.msra.mxu0 0.0
        %491 = vmatprep.subr.mxu0 0.0
        %492 = vmatpush1.msra.mxu0 0.0
        %493 = vmatprep.subr.mxu0 %v390
        %494 = vmatpush1.msra.mxu0 %v388
        %495 = vmatprep.subr.mxu0 0.0
        %496 = vmatpush2.msra.mxu0 0.0
        %497 = vmatprep.subr.mxu0 0.0
        %498 = vmatpush2.msra.mxu0 0.0
        %499 = vmatprep.subr.mxu0 0.0
        %500 = vmatpush2.msra.mxu0 0.0
        %501 = vmatprep.subr.mxu0 0.0
        %502 = vmatpush2.msra.mxu0 0.0
        %503 = vmatprep.subr.mxu0 0.0
        %504 = vmatpush2.msra.mxu0 0.0
        %505 = vmatprep.subr.mxu0 0.0
        %506 = vmatpush2.msra.mxu0 0.0
        %507 = vmatprep.subr.mxu0 0.0
        %508 = vmatpush2.msra.mxu0 0.0
        %509 = vmatprep.subr.mxu0 0.0
        %510 = vmatpush2.msra.mxu0 0.0
        %511 = vmatprep.subr.mxu0 0.0
        %512 = vmatpush2.msra.mxu0 0.0
        %513 = vmatprep.subr.mxu0 0.0
        %514 = vmatpush2.msra.mxu0 0.0
        %515 = vmatprep.subr.mxu0 0.0
        %516 = vmatpush2.msra.mxu0 0.0
        %517 = vmatprep.subr.mxu0 0.0
        %518 = vmatpush2.msra.mxu0 0.0
        %519 = vmatprep.subr.mxu0 0.0
        %520 = vmatpush2.msra.mxu0 0.0
        %521 = vmatprep.subr.mxu0 0.0
        %522 = vmatpush2.msra.mxu0 0.0
        %523 = vmatprep.subr.mxu0 0.0
        %524 = vmatpush2.msra.mxu0 0.0
        %525 = vmatprep.subr.mxu0 0.0
        %526 = vmatpush2.msra.mxu0 0.0
        %527 = vmatprep.mubr.f32.mxu0 0.0
        %528 = vmatmul.mubr.f32.gmra.mxu0 %v381
        %v529 = vpop.f32.mrf.mxu0
        %v530 = vadd.f32 0.0, %v529
        %v531 = vpop.f32.mrf.mxu0
        %v532 = vadd.f32 0.0, %v531
        %533 = vdwg.mxu0
        %v536 = vlaneseq
        %v537 = vshrl.u32 %v536, 7
        %v538 = vsub.s32 %v365, %v537
        %v539 = vrot.slane %v327, %v538
        %v540 = vlaneseq
        %v541 = vshrl.u32 %v540, 7
        %v542 = vsub.s32 %v365, %v541
        %v543 = vrot.slane %v330, %v542
        %v544 = vsel %vm374, %v543, %v539
        %v547 = vcombine.high %v357, %v357
        %v548 = vcombine.high %v358, %v358
        %v549 = vsel %vm380, %v544, 0
        %v551 = vsel %vm383, %v357, 0
        %v553 = vsel %vm383, %v547, 0
        %v555 = vsel %vm383, %v358, 0
        %v557 = vsel %vm383, %v548, 0
        %559 = vmatprep.subr.mxu0 0.0
        %560 = vmatpush1.msra.mxu0 0.0
        %561 = vmatprep.subr.mxu0 0.0
        %562 = vmatpush1.msra.mxu0 0.0
        %563 = vmatprep.subr.mxu0 0.0
        %564 = vmatpush1.msra.mxu0 0.0
        %565 = vmatprep.subr.mxu0 0.0
        %566 = vmatpush1.msra.mxu0 0.0
        %567 = vmatprep.subr.mxu0 0.0
        %568 = vmatpush1.msra.mxu0 0.0
        %569 = vmatprep.subr.mxu0 0.0
        %570 = vmatpush1.msra.mxu0 0.0
        %571 = vmatprep.subr.mxu0 0.0
        %572 = vmatpush1.msra.mxu0 0.0
        %573 = vmatprep.subr.mxu0 0.0
        %574 = vmatpush1.msra.mxu0 0.0
        %575 = vmatprep.subr.mxu0 0.0
        %576 = vmatpush1.msra.mxu0 0.0
        %577 = vmatprep.subr.mxu0 0.0
        %578 = vmatpush1.msra.mxu0 0.0
        %579 = vmatprep.subr.mxu0 0.0
        %580 = vmatpush1.msra.mxu0 0.0
        %581 = vmatprep.subr.mxu0 0.0
        %582 = vmatpush1.msra.mxu0 0.0
        %583 = vmatprep.subr.mxu0 0.0
        %584 = vmatpush1.msra.mxu0 0.0
        %585 = vmatprep.subr.mxu0 0.0
        %586 = vmatpush1.msra.mxu0 0.0
        %587 = vmatprep.subr.mxu0 0.0
        %588 = vmatpush1.msra.mxu0 0.0
        %589 = vmatprep.subr.mxu0 %v553
        %590 = vmatpush1.msra.mxu0 %v551
        %591 = vmatprep.subr.mxu0 0.0
        %592 = vmatpush2.msra.mxu0 0.0
        %593 = vmatprep.subr.mxu0 0.0
        %594 = vmatpush2.msra.mxu0 0.0
        %595 = vmatprep.subr.mxu0 0.0
        %596 = vmatpush2.msra.mxu0 0.0
        %597 = vmatprep.subr.mxu0 0.0
        %598 = vmatpush2.msra.mxu0 0.0
        %599 = vmatprep.subr.mxu0 0.0
        %600 = vmatpush2.msra.mxu0 0.0
        %601 = vmatprep.subr.mxu0 0.0
        %602 = vmatpush2.msra.mxu0 0.0
        %603 = vmatprep.subr.mxu0 0.0
        %604 = vmatpush2.msra.mxu0 0.0
        %605 = vmatprep.subr.mxu0 0.0
        %606 = vmatpush2.msra.mxu0 0.0
        %607 = vmatprep.subr.mxu0 0.0
        %608 = vmatpush2.msra.mxu0 0.0
        %609 = vmatprep.subr.mxu0 0.0
        %610 = vmatpush2.msra.mxu0 0.0
        %611 = vmatprep.subr.mxu0 0.0
        %612 = vmatpush2.msra.mxu0 0.0
        %613 = vmatprep.subr.mxu0 0.0
        %614 = vmatpush2.msra.mxu0 0.0
        %615 = vmatprep.subr.mxu0 0.0
        %616 = vmatpush2.msra.mxu0 0.0
        %617 = vmatprep.subr.mxu0 0.0
        %618 = vmatpush2.msra.mxu0 0.0
        %619 = vmatprep.subr.mxu0 0.0
        %620 = vmatpush2.msra.mxu0 0.0
        %621 = vmatprep.subr.mxu0 0.0
        %622 = vmatpush2.msra.mxu0 0.0
        %623 = vmatprep.mubr.f32.mxu0 0.0
        %624 = vmatmul.mubr.f32.gmra.mxu0 %v549
        %v625 = vpop.f32.mrf.mxu0
        %v626 = vadd.f32 %v459, %v625
        %v627 = vpop.f32.mrf.mxu0
        %v628 = vadd.f32 %v461, %v627
        %629 = vdwg.mxu0
        %630 = vmatprep.subr.mxu0 0.0
        %631 = vmatpush1.msra.mxu0 0.0
        %632 = vmatprep.subr.mxu0 0.0
        %633 = vmatpush1.msra.mxu0 0.0
        %634 = vmatprep.subr.mxu0 0.0
        %635 = vmatpush1.msra.mxu0 0.0
        %636 = vmatprep.subr.mxu0 0.0
        %637 = vmatpush1.msra.mxu0 0.0
        %638 = vmatprep.subr.mxu0 0.0
        %639 = vmatpush1.msra.mxu0 0.0
        %640 = vmatprep.subr.mxu0 0.0
        %641 = vmatpush1.msra.mxu0 0.0
        %642 = vmatprep.subr.mxu0 0.0
        %643 = vmatpush1.msra.mxu0 0.0
        %644 = vmatprep.subr.mxu0 0.0
        %645 = vmatpush1.msra.mxu0 0.0
        %646 = vmatprep.subr.mxu0 0.0
        %647 = vmatpush1.msra.mxu0 0.0
        %648 = vmatprep.subr.mxu0 0.0
        %649 = vmatpush1.msra.mxu0 0.0
        %650 = vmatprep.subr.mxu0 0.0
        %651 = vmatpush1.msra.mxu0 0.0
        %652 = vmatprep.subr.mxu0 0.0
        %653 = vmatpush1.msra.mxu0 0.0
        %654 = vmatprep.subr.mxu0 0.0
        %655 = vmatpush1.msra.mxu0 0.0
        %656 = vmatprep.subr.mxu0 0.0
        %657 = vmatpush1.msra.mxu0 0.0
        %658 = vmatprep.subr.mxu0 0.0
        %659 = vmatpush1.msra.mxu0 0.0
        %660 = vmatprep.subr.mxu0 %v557
        %661 = vmatpush1.msra.mxu0 %v555
        %662 = vmatprep.subr.mxu0 0.0
        %663 = vmatpush2.msra.mxu0 0.0
        %664 = vmatprep.subr.mxu0 0.0
        %665 = vmatpush2.msra.mxu0 0.0
        %666 = vmatprep.subr.mxu0 0.0
        %667 = vmatpush2.msra.mxu0 0.0
        %668 = vmatprep.subr.mxu0 0.0
        %669 = vmatpush2.msra.mxu0 0.0
        %670 = vmatprep.subr.mxu0 0.0
        %671 = vmatpush2.msra.mxu0 0.0
        %672 = vmatprep.subr.mxu0 0.0
        %673 = vmatpush2.msra.mxu0 0.0
        %674 = vmatprep.subr.mxu0 0.0
        %675 = vmatpush2.msra.mxu0 0.0
        %676 = vmatprep.subr.mxu0 0.0
        %677 = vmatpush2.msra.mxu0 0.0
        %678 = vmatprep.subr.mxu0 0.0
        %679 = vmatpush2.msra.mxu0 0.0
        %680 = vmatprep.subr.mxu0 0.0
        %681 = vmatpush2.msra.mxu0 0.0
        %682 = vmatprep.subr.mxu0 0.0
        %683 = vmatpush2.msra.mxu0 0.0
        %684 = vmatprep.subr.mxu0 0.0
        %685 = vmatpush2.msra.mxu0 0.0
        %686 = vmatprep.subr.mxu0 0.0
        %687 = vmatpush2.msra.mxu0 0.0
        %688 = vmatprep.subr.mxu0 0.0
        %689 = vmatpush2.msra.mxu0 0.0
        %690 = vmatprep.subr.mxu0 0.0
        %691 = vmatpush2.msra.mxu0 0.0
        %692 = vmatprep.subr.mxu0 0.0
        %693 = vmatpush2.msra.mxu0 0.0
        %694 = vmatprep.mubr.f32.mxu0 0.0
        %695 = vmatmul.mubr.f32.gmra.mxu0 %v549
        %v696 = vpop.f32.mrf.mxu0
        %v697 = vadd.f32 %v530, %v696
        %v698 = vpop.f32.mrf.mxu0
        %v699 = vadd.f32 %v532, %v698
        %700 = vdwg.mxu0
        %s701 = scalar_lea.vmem [#allocation5], 32
        %v702 = vld [vmem:[%s701] sm:$0xff]
        %v703 = vld [vmem:[%s701 + $0x8] sm:$0xff]
        %v706 = vlaneseq
        %v707 = vshrl.u32 %v706, 7
        %v708 = vsub.s32 %v365, %v707
        %v709 = vrot.slane %v353, %v708
        %v710 = vlaneseq
        %v711 = vshrl.u32 %v710, 7
        %v712 = vsub.s32 %v365, %v711
        %v713 = vrot.slane %v356, %v712
        %v714 = vsel %vm374, %v713, %v709
        %v717 = vcombine.high %v702, %v702
        %v718 = vcombine.high %v703, %v703
        %v719 = vsel %vm380, %v714, 0
        %v721 = vsel %vm383, %v702, 0
        %v723 = vsel %vm383, %v717, 0
        %v725 = vsel %vm383, %v703, 0
        %v727 = vsel %vm383, %v718, 0
        %729 = vmatprep.subr.mxu0 0.0
        %730 = vmatpush1.msra.mxu0 0.0
        %731 = vmatprep.subr.mxu0 0.0
        %732 = vmatpush1.msra.mxu0 0.0
        %733 = vmatprep.subr.mxu0 0.0
        %734 = vmatpush1.msra.mxu0 0.0
        %735 = vmatprep.subr.mxu0 0.0
        %736 = vmatpush1.msra.mxu0 0.0
        %737 = vmatprep.subr.mxu0 0.0
        %738 = vmatpush1.msra.mxu0 0.0
        %739 = vmatprep.subr.mxu0 0.0
        %740 = vmatpush1.msra.mxu0 0.0
        %741 = vmatprep.subr.mxu0 0.0
        %742 = vmatpush1.msra.mxu0 0.0
        %743 = vmatprep.subr.mxu0 0.0
        %744 = vmatpush1.msra.mxu0 0.0
        %745 = vmatprep.subr.mxu0 0.0
        %746 = vmatpush1.msra.mxu0 0.0
        %747 = vmatprep.subr.mxu0 0.0
        %748 = vmatpush1.msra.mxu0 0.0
        %749 = vmatprep.subr.mxu0 0.0
        %750 = vmatpush1.msra.mxu0 0.0
        %751 = vmatprep.subr.mxu0 0.0
        %752 = vmatpush1.msra.mxu0 0.0
        %753 = vmatprep.subr.mxu0 0.0
        %754 = vmatpush1.msra.mxu0 0.0
        %755 = vmatprep.subr.mxu0 0.0
        %756 = vmatpush1.msra.mxu0 0.0
        %757 = vmatprep.subr.mxu0 0.0
        %758 = vmatpush1.msra.mxu0 0.0
        %759 = vmatprep.subr.mxu0 %v723
        %760 = vmatpush1.msra.mxu0 %v721
        %761 = vmatprep.subr.mxu0 0.0
        %762 = vmatpush2.msra.mxu0 0.0
        %763 = vmatprep.subr.mxu0 0.0
        %764 = vmatpush2.msra.mxu0 0.0
        %765 = vmatprep.subr.mxu0 0.0
        %766 = vmatpush2.msra.mxu0 0.0
        %767 = vmatprep.subr.mxu0 0.0
        %768 = vmatpush2.msra.mxu0 0.0
        %769 = vmatprep.subr.mxu0 0.0
        %770 = vmatpush2.msra.mxu0 0.0
        %771 = vmatprep.subr.mxu0 0.0
        %772 = vmatpush2.msra.mxu0 0.0
        %773 = vmatprep.subr.mxu0 0.0
        %774 = vmatpush2.msra.mxu0 0.0
        %775 = vmatprep.subr.mxu0 0.0
        %776 = vmatpush2.msra.mxu0 0.0
        %777 = vmatprep.subr.mxu0 0.0
        %778 = vmatpush2.msra.mxu0 0.0
        %779 = vmatprep.subr.mxu0 0.0
        %780 = vmatpush2.msra.mxu0 0.0
        %781 = vmatprep.subr.mxu0 0.0
        %782 = vmatpush2.msra.mxu0 0.0
        %783 = vmatprep.subr.mxu0 0.0
        %784 = vmatpush2.msra.mxu0 0.0
        %785 = vmatprep.subr.mxu0 0.0
        %786 = vmatpush2.msra.mxu0 0.0
        %787 = vmatprep.subr.mxu0 0.0
        %788 = vmatpush2.msra.mxu0 0.0
        %789 = vmatprep.subr.mxu0 0.0
        %790 = vmatpush2.msra.mxu0 0.0
        %791 = vmatprep.subr.mxu0 0.0
        %792 = vmatpush2.msra.mxu0 0.0
        %793 = vmatprep.mubr.f32.mxu0 0.0
        %794 = vmatmul.mubr.f32.gmra.mxu0 %v719
        %v795 = vpop.f32.mrf.mxu0
        %v796 = vadd.f32 0.0, %v795
        %v797 = vpop.f32.mrf.mxu0
        %v798 = vadd.f32 0.0, %v797
        %799 = vdwg.mxu0
        %800 = vmatprep.subr.mxu0 0.0
        %801 = vmatpush1.msra.mxu0 0.0
        %802 = vmatprep.subr.mxu0 0.0
        %803 = vmatpush1.msra.mxu0 0.0
        %804 = vmatprep.subr.mxu0 0.0
        %805 = vmatpush1.msra.mxu0 0.0
        %806 = vmatprep.subr.mxu0 0.0
        %807 = vmatpush1.msra.mxu0 0.0
        %808 = vmatprep.subr.mxu0 0.0
        %809 = vmatpush1.msra.mxu0 0.0
        %810 = vmatprep.subr.mxu0 0.0
        %811 = vmatpush1.msra.mxu0 0.0
        %812 = vmatprep.subr.mxu0 0.0
        %813 = vmatpush1.msra.mxu0 0.0
        %814 = vmatprep.subr.mxu0 0.0
        %815 = vmatpush1.msra.mxu0 0.0
        %816 = vmatprep.subr.mxu0 0.0
        %817 = vmatpush1.msra.mxu0 0.0
        %818 = vmatprep.subr.mxu0 0.0
        %819 = vmatpush1.msra.mxu0 0.0
        %820 = vmatprep.subr.mxu0 0.0
        %821 = vmatpush1.msra.mxu0 0.0
        %822 = vmatprep.subr.mxu0 0.0
        %823 = vmatpush1.msra.mxu0 0.0
        %824 = vmatprep.subr.mxu0 0.0
        %825 = vmatpush1.msra.mxu0 0.0
        %826 = vmatprep.subr.mxu0 0.0
        %827 = vmatpush1.msra.mxu0 0.0
        %828 = vmatprep.subr.mxu0 0.0
        %829 = vmatpush1.msra.mxu0 0.0
        %830 = vmatprep.subr.mxu0 %v727
        %831 = vmatpush1.msra.mxu0 %v725
        %832 = vmatprep.subr.mxu0 0.0
        %833 = vmatpush2.msra.mxu0 0.0
        %834 = vmatprep.subr.mxu0 0.0
        %835 = vmatpush2.msra.mxu0 0.0
        %836 = vmatprep.subr.mxu0 0.0
        %837 = vmatpush2.msra.mxu0 0.0
        %838 = vmatprep.subr.mxu0 0.0
        %839 = vmatpush2.msra.mxu0 0.0
        %840 = vmatprep.subr.mxu0 0.0
        %841 = vmatpush2.msra.mxu0 0.0
        %842 = vmatprep.subr.mxu0 0.0
        %843 = vmatpush2.msra.mxu0 0.0
        %844 = vmatprep.subr.mxu0 0.0
        %845 = vmatpush2.msra.mxu0 0.0
        %846 = vmatprep.subr.mxu0 0.0
        %847 = vmatpush2.msra.mxu0 0.0
        %848 = vmatprep.subr.mxu0 0.0
        %849 = vmatpush2.msra.mxu0 0.0
        %850 = vmatprep.subr.mxu0 0.0
        %851 = vmatpush2.msra.mxu0 0.0
        %852 = vmatprep.subr.mxu0 0.0
        %853 = vmatpush2.msra.mxu0 0.0
        %854 = vmatprep.subr.mxu0 0.0
        %855 = vmatpush2.msra.mxu0 0.0
        %856 = vmatprep.subr.mxu0 0.0
        %857 = vmatpush2.msra.mxu0 0.0
        %858 = vmatprep.subr.mxu0 0.0
        %859 = vmatpush2.msra.mxu0 0.0
        %860 = vmatprep.subr.mxu0 0.0
        %861 = vmatpush2.msra.mxu0 0.0
        %862 = vmatprep.subr.mxu0 0.0
        %863 = vmatpush2.msra.mxu0 0.0
        %864 = vmatprep.mubr.f32.mxu0 0.0
        %865 = vmatmul.mubr.f32.gmra.mxu0 %v719
        %v866 = vpop.f32.mrf.mxu0
        %v867 = vadd.f32 0.0, %v866
        %v868 = vpop.f32.mrf.mxu0
        %v869 = vadd.f32 0.0, %v868
        %870 = vdwg.mxu0
        %v871 = vadd.f32 %v626, %v796
        %v872 = vadd.f32 %v628, %v798
        %v873 = vadd.f32 %v697, %v867
        %v874 = vadd.f32 %v699, %v869
        %v875 = vmul.f32 %v871, 0.071428575
        %v876 = vmul.f32 %v872, 0.071428575
        %v877 = vmul.f32 %v873, 0.071428575
        %v878 = vmul.f32 %v874, 0.071428575
        %v879 = vld [vmem:[#allocation7] sm:$0xf]
        %v881 = vlaneseq
        %v882 = vshrl.u32 %v881, 7
        %v883 = vsub.s32 0, %v882
        %v884 = vrot.slane %v879, %v883
        %v885 = vlaneseq
        %v886 = vshrl.u32 %v885, 7
        %v887 = vsub.s32 1, %v886
        %v888 = vrot.slane %v879, %v887
        %v889 = vlaneseq
        %v890 = vshrl.u32 %v889, 7
        %v891 = vsub.s32 2, %v890
        %v892 = vrot.slane %v879, %v891
        %v893 = vlaneseq
        %v894 = vshrl.u32 %v893, 7
        %v895 = vsub.s32 3, %v894
        %v896 = vrot.slane %v879, %v895
        %v901 = vadd.f32 %v875, %v884
        %v902 = vadd.f32 %v876, %v888
        %v903 = vadd.f32 %v877, %v892
        %v904 = vadd.f32 %v878, %v896
        %v905 = vpack.c.bf16 %v901, %v901
        %v906 = vpack.c.bf16 %v902, %v902
        %v907 = vpack.c.bf16 %v903, %v903
        %v908 = vpack.c.bf16 %v904, %v904
        %v909 = vld [vmem:[%s279] sm:$0xff]
        %v910 = vld [vmem:[%s279 + $0x8] sm:$0xff]
        %v911 = vld [vmem:[%s279 + $0x10] sm:$0xff]
        %v912 = vld [vmem:[%s279 + $0x18] sm:$0xff]
        %v913 = vld [vmem:[%s279 + $0x20] sm:$0xff]
        %v914 = vld [vmem:[%s279 + $0x28] sm:$0xff]
        %v915 = vld [vmem:[%s279 + $0x30] sm:$0xff]
        %v916 = vld [vmem:[%s279 + $0x38] sm:$0xff]
        %v917 = vld [vmem:[%s279 + $0x40] sm:$0xff]
        %v918 = vld [vmem:[%s279 + $0x48] sm:$0xff]
        %v919 = vld [vmem:[%s279 + $0x50] sm:$0xff]
        %v920 = vld [vmem:[%s279 + $0x58] sm:$0xff]
        %v921 = vld [vmem:[%s279 + $0x60] sm:$0xff]
        %v922 = vld [vmem:[%s279 + $0x68] sm:$0xff]
        %v923 = vld [vmem:[%s279 + $0x70] sm:$0xff]
        %v924 = vld [vmem:[%s279 + $0x78] sm:$0xff]
        %v925 = vld [vmem:[%s279 + $0x80] sm:$0xff]
        %v926 = vld [vmem:[%s279 + $0x88] sm:$0xff]
        %v927 = vld [vmem:[%s279 + $0x90] sm:$0xff]
        %v928 = vld [vmem:[%s279 + $0x98] sm:$0xff]
        %v929 = vld [vmem:[%s279 + $0xa0] sm:$0xff]
        %v930 = vld [vmem:[%s279 + $0xa8] sm:$0xff]
        %v931 = vld [vmem:[%s279 + $0xb0] sm:$0xff]
        %v932 = vld [vmem:[%s279 + $0xb8] sm:$0xff]
        %v933 = vld [vmem:[%s279 + $0xc0] sm:$0xff]
        %v934 = vld [vmem:[%s279 + $0xc8] sm:$0xff]
        %v935 = vld [vmem:[%s279 + $0xd0] sm:$0xff]
        %v936 = vld [vmem:[%s279 + $0xd8] sm:$0xff]
        %v937 = vld [vmem:[%s279 + $0xe0] sm:$0xff]
        %v938 = vld [vmem:[%s279 + $0xe8] sm:$0xff]
        %v939 = vld [vmem:[%s279 + $0xf0] sm:$0xff]
        %v940 = vld [vmem:[%s279 + $0xf8] sm:$0xff]
        %v941 = vld [vmem:[%s279 + $0x100] sm:$0xff]
        %v942 = vld [vmem:[%s279 + $0x108] sm:$0xff]
        %v943 = vld [vmem:[%s279 + $0x110] sm:$0xff]
        %v944 = vld [vmem:[%s279 + $0x118] sm:$0xff]
        %v945 = vld [vmem:[%s279 + $0x120] sm:$0xff]
        %v946 = vld [vmem:[%s279 + $0x128] sm:$0xff]
        %v947 = vld [vmem:[%s279 + $0x130] sm:$0xff]
        %v948 = vld [vmem:[%s279 + $0x138] sm:$0xff]
        %v949 = vld [vmem:[%s279 + $0x140] sm:$0xff]
        %v950 = vld [vmem:[%s279 + $0x148] sm:$0xff]
        %v951 = vld [vmem:[%s279 + $0x150] sm:$0xff]
        %v952 = vld [vmem:[%s279 + $0x158] sm:$0xff]
        %v953 = vld [vmem:[%s279 + $0x160] sm:$0xff]
        %v954 = vld [vmem:[%s279 + $0x168] sm:$0xff]
        %v955 = vld [vmem:[%s279 + $0x170] sm:$0xff]
        %v956 = vld [vmem:[%s279 + $0x178] sm:$0xff]
        %v957 = vld [vmem:[%s279 + $0x180] sm:$0xff]
        %v958 = vld [vmem:[%s279 + $0x188] sm:$0xff]
        %v959 = vld [vmem:[%s279 + $0x190] sm:$0xff]
        %v960 = vld [vmem:[%s279 + $0x198] sm:$0xff]
        %v961 = vld [vmem:[%s279 + $0x1a0] sm:$0xff]
        %v962 = vld [vmem:[%s279 + $0x1a8] sm:$0xff]
        %v963 = vld [vmem:[%s279 + $0x1b0] sm:$0xff]
        %v964 = vld [vmem:[%s279 + $0x1b8] sm:$0xff]
        %v965 = vld [vmem:[%s279 + $0x1c0] sm:$0xff]
        %v966 = vld [vmem:[%s279 + $0x1c8] sm:$0xff]
        %v967 = vld [vmem:[%s279 + $0x1d0] sm:$0xff]
        %v968 = vld [vmem:[%s279 + $0x1d8] sm:$0xff]
        %v969 = vld [vmem:[%s279 + $0x1e0] sm:$0xff]
        %v970 = vld [vmem:[%s279 + $0x1e8] sm:$0xff]
        %v971 = vld [vmem:[%s279 + $0x1f0] sm:$0xff]
        %v972 = vld [vmem:[%s279 + $0x1f8] sm:$0xff]
        %v973 = vld [vmem:[%s279 + $0x200] sm:$0xff]
        %v974 = vld [vmem:[%s279 + $0x208] sm:$0xff]
        %v975 = vld [vmem:[%s279 + $0x210] sm:$0xff]
        %v976 = vld [vmem:[%s279 + $0x218] sm:$0xff]
        %v977 = vld [vmem:[%s279 + $0x220] sm:$0xff]
        %v978 = vld [vmem:[%s279 + $0x228] sm:$0xff]
        %v979 = vld [vmem:[%s279 + $0x230] sm:$0xff]
        %v980 = vld [vmem:[%s279 + $0x238] sm:$0xff]
        %v981 = vld [vmem:[%s279 + $0x240] sm:$0xff]
        %v982 = vld [vmem:[%s279 + $0x248] sm:$0xff]
        %v983 = vld [vmem:[%s279 + $0x250] sm:$0xff]
        %v984 = vld [vmem:[%s279 + $0x258] sm:$0xff]
        %v985 = vld [vmem:[%s279 + $0x260] sm:$0xff]
        %v986 = vld [vmem:[%s279 + $0x268] sm:$0xff]
        %v987 = vld [vmem:[%s279 + $0x270] sm:$0xff]
        %v988 = vld [vmem:[%s279 + $0x278] sm:$0xff]
        %v989 = vld [vmem:[%s279 + $0x280] sm:$0xff]
        %v990 = vld [vmem:[%s279 + $0x288] sm:$0xff]
        %v991 = vld [vmem:[%s279 + $0x290] sm:$0xff]
        %v992 = vld [vmem:[%s279 + $0x298] sm:$0xff]
        %v993 = vld [vmem:[%s279 + $0x2a0] sm:$0xff]
        %v994 = vld [vmem:[%s279 + $0x2a8] sm:$0xff]
        %v995 = vld [vmem:[%s279 + $0x2b0] sm:$0xff]
        %v996 = vld [vmem:[%s279 + $0x2b8] sm:$0xff]
        %v997 = vld [vmem:[%s279 + $0x2c0] sm:$0xff]
        %v998 = vld [vmem:[%s279 + $0x2c8] sm:$0xff]
        %v999 = vld [vmem:[%s279 + $0x2d0] sm:$0xff]
        %v1000 = vld [vmem:[%s279 + $0x2d8] sm:$0xff]
        %v1001 = vld [vmem:[%s279 + $0x2e0] sm:$0xff]
        %v1002 = vld [vmem:[%s279 + $0x2e8] sm:$0xff]
        %v1003 = vld [vmem:[%s279 + $0x2f0] sm:$0xff]
        %v1004 = vld [vmem:[%s279 + $0x2f8] sm:$0xff]
        %v1005 = vld [vmem:[%s279 + $0x300] sm:$0xff]
        %v1006 = vld [vmem:[%s279 + $0x308] sm:$0xff]
        %v1007 = vld [vmem:[%s279 + $0x310] sm:$0xff]
        %v1008 = vld [vmem:[%s279 + $0x318] sm:$0xff]
        %v1009 = vld [vmem:[%s279 + $0x320] sm:$0xff]
        %v1010 = vld [vmem:[%s279 + $0x328] sm:$0xff]
        %v1011 = vld [vmem:[%s279 + $0x330] sm:$0xff]
        %v1012 = vld [vmem:[%s279 + $0x338] sm:$0xff]
        %v1013 = vld [vmem:[%s279 + $0x340] sm:$0xff]
        %v1014 = vld [vmem:[%s279 + $0x348] sm:$0xff]
        %v1015 = vld [vmem:[%s279 + $0x350] sm:$0xff]
        %v1016 = vld [vmem:[%s279 + $0x358] sm:$0xff]
        %v1017 = vld [vmem:[%s279 + $0x360] sm:$0xff]
        %v1018 = vld [vmem:[%s279 + $0x368] sm:$0xff]
        %v1019 = vld [vmem:[%s279 + $0x370] sm:$0xff]
        %v1020 = vld [vmem:[%s279 + $0x378] sm:$0xff]
        %v1021 = vld [vmem:[%s279 + $0x380] sm:$0xff]
        %v1022 = vld [vmem:[%s279 + $0x388] sm:$0xff]
        %v1023 = vld [vmem:[%s279 + $0x390] sm:$0xff]
        %v1024 = vld [vmem:[%s279 + $0x398] sm:$0xff]
        %v1025 = vld [vmem:[%s279 + $0x3a0] sm:$0xff]
        %v1026 = vld [vmem:[%s279 + $0x3a8] sm:$0xff]
        %v1027 = vld [vmem:[%s279 + $0x3b0] sm:$0xff]
        %v1028 = vld [vmem:[%s279 + $0x3b8] sm:$0xff]
        %v1029 = vld [vmem:[%s279 + $0x3c0] sm:$0xff]
        %v1030 = vld [vmem:[%s279 + $0x3c8] sm:$0xff]
        %v1031 = vld [vmem:[%s279 + $0x3d0] sm:$0xff]
        %v1032 = vld [vmem:[%s279 + $0x3d8] sm:$0xff]
        %v1033 = vld [vmem:[%s279 + $0x3e0] sm:$0xff]
        %v1034 = vld [vmem:[%s279 + $0x3e8] sm:$0xff]
        %v1035 = vld [vmem:[%s279 + $0x3f0] sm:$0xff]
        %v1036 = vld [vmem:[%s279 + $0x3f8] sm:$0xff]
        %v1037 = vld [vmem:[%s279 + $0x400] sm:$0xff]
        %v1038 = vld [vmem:[%s279 + $0x408] sm:$0xff]
        %v1039 = vld [vmem:[%s279 + $0x410] sm:$0xff]
        %v1040 = vld [vmem:[%s279 + $0x418] sm:$0xff]
        %v1041 = vld [vmem:[%s279 + $0x420] sm:$0xff]
        %v1042 = vld [vmem:[%s279 + $0x428] sm:$0xff]
        %v1043 = vld [vmem:[%s279 + $0x430] sm:$0xff]
        %v1044 = vld [vmem:[%s279 + $0x438] sm:$0xff]
        %v1045 = vld [vmem:[%s279 + $0x440] sm:$0xff]
        %v1046 = vld [vmem:[%s279 + $0x448] sm:$0xff]
        %v1047 = vld [vmem:[%s279 + $0x450] sm:$0xff]
        %v1048 = vld [vmem:[%s279 + $0x458] sm:$0xff]
        %v1049 = vld [vmem:[%s279 + $0x460] sm:$0xff]
        %v1050 = vld [vmem:[%s279 + $0x468] sm:$0xff]
        %v1051 = vld [vmem:[%s279 + $0x470] sm:$0xff]
        %v1052 = vld [vmem:[%s279 + $0x478] sm:$0xff]
        %v1053 = vld [vmem:[%s279 + $0x480] sm:$0xff]
        %v1054 = vld [vmem:[%s279 + $0x488] sm:$0xff]
        %v1055 = vld [vmem:[%s279 + $0x490] sm:$0xff]
        %v1056 = vld [vmem:[%s279 + $0x498] sm:$0xff]
        %v1057 = vld [vmem:[%s279 + $0x4a0] sm:$0xff]
        %v1058 = vld [vmem:[%s279 + $0x4a8] sm:$0xff]
        %v1059 = vld [vmem:[%s279 + $0x4b0] sm:$0xff]
        %v1060 = vld [vmem:[%s279 + $0x4b8] sm:$0xff]
        %v1061 = vld [vmem:[%s279 + $0x4c0] sm:$0xff]
        %v1062 = vld [vmem:[%s279 + $0x4c8] sm:$0xff]
        %v1063 = vld [vmem:[%s279 + $0x4d0] sm:$0xff]
        %v1064 = vld [vmem:[%s279 + $0x4d8] sm:$0xff]
        %v1065 = vld [vmem:[%s279 + $0x4e0] sm:$0xff]
        %v1066 = vld [vmem:[%s279 + $0x4e8] sm:$0xff]
        %v1067 = vld [vmem:[%s279 + $0x4f0] sm:$0xff]
        %v1068 = vld [vmem:[%s279 + $0x4f8] sm:$0xff]
        %v1069 = vld [vmem:[%s279 + $0x500] sm:$0xff]
        %v1070 = vld [vmem:[%s279 + $0x508] sm:$0xff]
        %v1071 = vld [vmem:[%s279 + $0x510] sm:$0xff]
        %v1072 = vld [vmem:[%s279 + $0x518] sm:$0xff]
        %v1073 = vld [vmem:[%s279 + $0x520] sm:$0xff]
        %v1074 = vld [vmem:[%s279 + $0x528] sm:$0xff]
        %v1075 = vld [vmem:[%s279 + $0x530] sm:$0xff]
        %v1076 = vld [vmem:[%s279 + $0x538] sm:$0xff]
        %v1077 = vld [vmem:[%s279 + $0x540] sm:$0xff]
        %v1078 = vld [vmem:[%s279 + $0x548] sm:$0xff]
        %v1079 = vld [vmem:[%s279 + $0x550] sm:$0xff]
        %v1080 = vld [vmem:[%s279 + $0x558] sm:$0xff]
        %v1081 = vld [vmem:[%s279 + $0x560] sm:$0xff]
        %v1082 = vld [vmem:[%s279 + $0x568] sm:$0xff]
        %v1083 = vld [vmem:[%s279 + $0x570] sm:$0xff]
        %v1084 = vld [vmem:[%s279 + $0x578] sm:$0xff]
        %v1085 = vld [vmem:[%s279 + $0x580] sm:$0xff]
        %v1086 = vld [vmem:[%s279 + $0x588] sm:$0xff]
        %v1087 = vld [vmem:[%s279 + $0x590] sm:$0xff]
        %v1088 = vld [vmem:[%s279 + $0x598] sm:$0xff]
        %v1089 = vld [vmem:[%s279 + $0x5a0] sm:$0xff]
        %v1090 = vld [vmem:[%s279 + $0x5a8] sm:$0xff]
        %v1091 = vld [vmem:[%s279 + $0x5b0] sm:$0xff]
        %v1092 = vld [vmem:[%s279 + $0x5b8] sm:$0xff]
        %v1093 = vld [vmem:[%s279 + $0x5c0] sm:$0xff]
        %v1094 = vld [vmem:[%s279 + $0x5c8] sm:$0xff]
        %v1095 = vld [vmem:[%s279 + $0x5d0] sm:$0xff]
        %v1096 = vld [vmem:[%s279 + $0x5d8] sm:$0xff]
        %v1097 = vld [vmem:[%s279 + $0x5e0] sm:$0xff]
        %v1098 = vld [vmem:[%s279 + $0x5e8] sm:$0xff]
        %v1099 = vld [vmem:[%s279 + $0x5f0] sm:$0xff]
        %v1100 = vld [vmem:[%s279 + $0x5f8] sm:$0xff]
        %v1101 = vld [vmem:[%s279 + $0x600] sm:$0xff]
        %v1102 = vld [vmem:[%s279 + $0x608] sm:$0xff]
        %v1103 = vld [vmem:[%s279 + $0x610] sm:$0xff]
        %v1104 = vld [vmem:[%s279 + $0x618] sm:$0xff]
        %v1105 = vld [vmem:[%s279 + $0x620] sm:$0xff]
        %v1106 = vld [vmem:[%s279 + $0x628] sm:$0xff]
        %v1107 = vld [vmem:[%s279 + $0x630] sm:$0xff]
        %v1108 = vld [vmem:[%s279 + $0x638] sm:$0xff]
        %v1109 = vld [vmem:[%s279 + $0x640] sm:$0xff]
        %v1110 = vld [vmem:[%s279 + $0x648] sm:$0xff]
        %v1111 = vld [vmem:[%s279 + $0x650] sm:$0xff]
        %v1112 = vld [vmem:[%s279 + $0x658] sm:$0xff]
        %v1113 = vld [vmem:[%s279 + $0x660] sm:$0xff]
        %v1114 = vld [vmem:[%s279 + $0x668] sm:$0xff]
        %v1115 = vld [vmem:[%s279 + $0x670] sm:$0xff]
        %v1116 = vld [vmem:[%s279 + $0x678] sm:$0xff]
        %v1117 = vld [vmem:[%s279 + $0x680] sm:$0xff]
        %v1118 = vld [vmem:[%s279 + $0x688] sm:$0xff]
        %v1119 = vld [vmem:[%s279 + $0x690] sm:$0xff]
        %v1120 = vld [vmem:[%s279 + $0x698] sm:$0xff]
        %v1121 = vld [vmem:[%s279 + $0x6a0] sm:$0xff]
        %v1122 = vld [vmem:[%s279 + $0x6a8] sm:$0xff]
        %v1123 = vld [vmem:[%s279 + $0x6b0] sm:$0xff]
        %v1124 = vld [vmem:[%s279 + $0x6b8] sm:$0xff]
        %v1125 = vld [vmem:[%s279 + $0x6c0] sm:$0xff]
        %v1126 = vld [vmem:[%s279 + $0x6c8] sm:$0xff]
        %v1127 = vld [vmem:[%s279 + $0x6d0] sm:$0xff]
        %v1128 = vld [vmem:[%s279 + $0x6d8] sm:$0xff]
        %v1129 = vld [vmem:[%s279 + $0x6e0] sm:$0xff]
        %v1130 = vld [vmem:[%s279 + $0x6e8] sm:$0xff]
        %v1131 = vld [vmem:[%s279 + $0x6f0] sm:$0xff]
        %v1132 = vld [vmem:[%s279 + $0x6f8] sm:$0xff]
        %v1133 = vld [vmem:[%s279 + $0x700] sm:$0xff]
        %v1134 = vld [vmem:[%s279 + $0x708] sm:$0xff]
        %v1135 = vld [vmem:[%s279 + $0x710] sm:$0xff]
        %v1136 = vld [vmem:[%s279 + $0x718] sm:$0xff]
        %v1137 = vld [vmem:[%s279 + $0x720] sm:$0xff]
        %v1138 = vld [vmem:[%s279 + $0x728] sm:$0xff]
        %v1139 = vld [vmem:[%s279 + $0x730] sm:$0xff]
        %v1140 = vld [vmem:[%s279 + $0x738] sm:$0xff]
        %v1141 = vld [vmem:[%s279 + $0x740] sm:$0xff]
        %v1142 = vld [vmem:[%s279 + $0x748] sm:$0xff]
        %v1143 = vld [vmem:[%s279 + $0x750] sm:$0xff]
        %v1144 = vld [vmem:[%s279 + $0x758] sm:$0xff]
        %v1145 = vld [vmem:[%s279 + $0x760] sm:$0xff]
        %v1146 = vld [vmem:[%s279 + $0x768] sm:$0xff]
        %v1147 = vld [vmem:[%s279 + $0x770] sm:$0xff]
        %v1148 = vld [vmem:[%s279 + $0x778] sm:$0xff]
        %v1149 = vld [vmem:[%s279 + $0x780] sm:$0xff]
        %v1150 = vld [vmem:[%s279 + $0x788] sm:$0xff]
        %v1151 = vld [vmem:[%s279 + $0x790] sm:$0xff]
        %v1152 = vld [vmem:[%s279 + $0x798] sm:$0xff]
        %v1153 = vld [vmem:[%s279 + $0x7a0] sm:$0xff]
        %v1154 = vld [vmem:[%s279 + $0x7a8] sm:$0xff]
        %v1155 = vld [vmem:[%s279 + $0x7b0] sm:$0xff]
        %v1156 = vld [vmem:[%s279 + $0x7b8] sm:$0xff]
        %v1157 = vld [vmem:[%s279 + $0x7c0] sm:$0xff]
        %v1158 = vld [vmem:[%s279 + $0x7c8] sm:$0xff]
        %v1159 = vld [vmem:[%s279 + $0x7d0] sm:$0xff]
        %v1160 = vld [vmem:[%s279 + $0x7d8] sm:$0xff]
        %v1161 = vld [vmem:[%s279 + $0x7e0] sm:$0xff]
        %v1162 = vld [vmem:[%s279 + $0x7e8] sm:$0xff]
        %v1163 = vld [vmem:[%s279 + $0x7f0] sm:$0xff]
        %v1164 = vld [vmem:[%s279 + $0x7f8] sm:$0xff]
        %v1165 = vld [vmem:[%s279 + $0x800] sm:$0xff]
        %v1166 = vld [vmem:[%s279 + $0x808] sm:$0xff]
        %v1167 = vld [vmem:[%s279 + $0x810] sm:$0xff]
        %v1168 = vld [vmem:[%s279 + $0x818] sm:$0xff]
        %v1169 = vld [vmem:[%s279 + $0x820] sm:$0xff]
        %v1170 = vld [vmem:[%s279 + $0x828] sm:$0xff]
        %v1171 = vld [vmem:[%s279 + $0x830] sm:$0xff]
        %v1172 = vld [vmem:[%s279 + $0x838] sm:$0xff]
        %v1173 = vld [vmem:[%s279 + $0x840] sm:$0xff]
        %v1174 = vld [vmem:[%s279 + $0x848] sm:$0xff]
        %v1175 = vld [vmem:[%s279 + $0x850] sm:$0xff]
        %v1176 = vld [vmem:[%s279 + $0x858] sm:$0xff]
        %v1177 = vld [vmem:[%s279 + $0x860] sm:$0xff]
        %v1178 = vld [vmem:[%s279 + $0x868] sm:$0xff]
        %v1179 = vld [vmem:[%s279 + $0x870] sm:$0xff]
        %v1180 = vld [vmem:[%s279 + $0x878] sm:$0xff]
        %v1181 = vld [vmem:[%s279 + $0x880] sm:$0xff]
        %v1182 = vld [vmem:[%s279 + $0x888] sm:$0xff]
        %v1183 = vld [vmem:[%s279 + $0x890] sm:$0xff]
        %v1184 = vld [vmem:[%s279 + $0x898] sm:$0xff]
        %v1185 = vld [vmem:[%s279 + $0x8a0] sm:$0xff]
        %v1186 = vld [vmem:[%s279 + $0x8a8] sm:$0xff]
        %v1187 = vld [vmem:[%s279 + $0x8b0] sm:$0xff]
        %v1188 = vld [vmem:[%s279 + $0x8b8] sm:$0xff]
        %v1189 = vld [vmem:[%s279 + $0x8c0] sm:$0xff]
        %v1190 = vld [vmem:[%s279 + $0x8c8] sm:$0xff]
        %v1191 = vld [vmem:[%s279 + $0x8d0] sm:$0xff]
        %v1192 = vld [vmem:[%s279 + $0x8d8] sm:$0xff]
        %v1193 = vld [vmem:[%s279 + $0x8e0] sm:$0xff]
        %v1194 = vld [vmem:[%s279 + $0x8e8] sm:$0xff]
        %v1195 = vld [vmem:[%s279 + $0x8f0] sm:$0xff]
        %v1196 = vld [vmem:[%s279 + $0x8f8] sm:$0xff]
        %v1197 = vld [vmem:[%s279 + $0x900] sm:$0xff]
        %v1198 = vld [vmem:[%s279 + $0x908] sm:$0xff]
        %v1199 = vld [vmem:[%s279 + $0x910] sm:$0xff]
        %v1200 = vld [vmem:[%s279 + $0x918] sm:$0xff]
        %v1201 = vld [vmem:[%s279 + $0x920] sm:$0xff]
        %v1202 = vld [vmem:[%s279 + $0x928] sm:$0xff]
        %v1203 = vld [vmem:[%s279 + $0x930] sm:$0xff]
        %v1204 = vld [vmem:[%s279 + $0x938] sm:$0xff]
        %v1205 = vld [vmem:[%s279 + $0x940] sm:$0xff]
        %v1206 = vld [vmem:[%s279 + $0x948] sm:$0xff]
        %v1207 = vld [vmem:[%s279 + $0x950] sm:$0xff]
        %v1208 = vld [vmem:[%s279 + $0x958] sm:$0xff]
        %v1209 = vld [vmem:[%s279 + $0x960] sm:$0xff]
        %v1210 = vld [vmem:[%s279 + $0x968] sm:$0xff]
        %v1211 = vld [vmem:[%s279 + $0x970] sm:$0xff]
        %v1212 = vld [vmem:[%s279 + $0x978] sm:$0xff]
        %v1213 = vld [vmem:[%s279 + $0x980] sm:$0xff]
        %v1214 = vld [vmem:[%s279 + $0x988] sm:$0xff]
        %v1215 = vld [vmem:[%s279 + $0x990] sm:$0xff]
        %v1216 = vld [vmem:[%s279 + $0x998] sm:$0xff]
        %v1217 = vld [vmem:[%s279 + $0x9a0] sm:$0xff]
        %v1218 = vld [vmem:[%s279 + $0x9a8] sm:$0xff]
        %v1219 = vld [vmem:[%s279 + $0x9b0] sm:$0xff]
        %v1220 = vld [vmem:[%s279 + $0x9b8] sm:$0xff]
        %v1221 = vld [vmem:[%s279 + $0x9c0] sm:$0xff]
        %v1222 = vld [vmem:[%s279 + $0x9c8] sm:$0xff]
        %v1223 = vld [vmem:[%s279 + $0x9d0] sm:$0xff]
        %v1224 = vld [vmem:[%s279 + $0x9d8] sm:$0xff]
        %v1225 = vld [vmem:[%s279 + $0x9e0] sm:$0xff]
        %v1226 = vld [vmem:[%s279 + $0x9e8] sm:$0xff]
        %v1227 = vld [vmem:[%s279 + $0x9f0] sm:$0xff]
        %v1228 = vld [vmem:[%s279 + $0x9f8] sm:$0xff]
        %v1229 = vld [vmem:[%s279 + $0xa00] sm:$0xff]
        %v1230 = vld [vmem:[%s279 + $0xa08] sm:$0xff]
        %v1231 = vld [vmem:[%s279 + $0xa10] sm:$0xff]
        %v1232 = vld [vmem:[%s279 + $0xa18] sm:$0xff]
        %v1233 = vld [vmem:[%s279 + $0xa20] sm:$0xff]
        %v1234 = vld [vmem:[%s279 + $0xa28] sm:$0xff]
        %v1235 = vld [vmem:[%s279 + $0xa30] sm:$0xff]
        %v1236 = vld [vmem:[%s279 + $0xa38] sm:$0xff]
        %v1237 = vld [vmem:[%s279 + $0xa40] sm:$0xff]
        %v1238 = vld [vmem:[%s279 + $0xa48] sm:$0xff]
        %v1239 = vld [vmem:[%s279 + $0xa50] sm:$0xff]
        %v1240 = vld [vmem:[%s279 + $0xa58] sm:$0xff]
        %v1241 = vld [vmem:[%s279 + $0xa60] sm:$0xff]
        %v1242 = vld [vmem:[%s279 + $0xa68] sm:$0xff]
        %v1243 = vld [vmem:[%s279 + $0xa70] sm:$0xff]
        %v1244 = vld [vmem:[%s279 + $0xa78] sm:$0xff]
        %v1245 = vld [vmem:[%s279 + $0xa80] sm:$0xff]
        %v1246 = vld [vmem:[%s279 + $0xa88] sm:$0xff]
        %v1247 = vld [vmem:[%s279 + $0xa90] sm:$0xff]
        %v1248 = vld [vmem:[%s279 + $0xa98] sm:$0xff]
        %v1249 = vld [vmem:[%s279 + $0xaa0] sm:$0xff]
        %v1250 = vld [vmem:[%s279 + $0xaa8] sm:$0xff]
        %v1251 = vld [vmem:[%s279 + $0xab0] sm:$0xff]
        %v1252 = vld [vmem:[%s279 + $0xab8] sm:$0xff]
        %v1253 = vld [vmem:[%s279 + $0xac0] sm:$0xff]
        %v1254 = vld [vmem:[%s279 + $0xac8] sm:$0xff]
        %v1255 = vld [vmem:[%s279 + $0xad0] sm:$0xff]
        %v1256 = vld [vmem:[%s279 + $0xad8] sm:$0xff]
        %v1257 = vld [vmem:[%s279 + $0xae0] sm:$0xff]
        %v1258 = vld [vmem:[%s279 + $0xae8] sm:$0xff]
        %v1259 = vld [vmem:[%s279 + $0xaf0] sm:$0xff]
        %v1260 = vld [vmem:[%s279 + $0xaf8] sm:$0xff]
        %v1261 = vld [vmem:[%s279 + $0xb00] sm:$0xff]
        %v1262 = vld [vmem:[%s279 + $0xb08] sm:$0xff]
        %v1263 = vld [vmem:[%s279 + $0xb10] sm:$0xff]
        %v1264 = vld [vmem:[%s279 + $0xb18] sm:$0xff]
        %v1265 = vld [vmem:[%s279 + $0xb20] sm:$0xff]
        %v1266 = vld [vmem:[%s279 + $0xb28] sm:$0xff]
        %v1267 = vld [vmem:[%s279 + $0xb30] sm:$0xff]
        %v1268 = vld [vmem:[%s279 + $0xb38] sm:$0xff]
        %v1269 = vld [vmem:[%s279 + $0xb40] sm:$0xff]
        %v1270 = vld [vmem:[%s279 + $0xb48] sm:$0xff]
        %v1271 = vld [vmem:[%s279 + $0xb50] sm:$0xff]
        %v1272 = vld [vmem:[%s279 + $0xb58] sm:$0xff]
        %v1273 = vld [vmem:[%s279 + $0xb60] sm:$0xff]
        %v1274 = vld [vmem:[%s279 + $0xb68] sm:$0xff]
        %v1275 = vld [vmem:[%s279 + $0xb70] sm:$0xff]
        %v1276 = vld [vmem:[%s279 + $0xb78] sm:$0xff]
        %v1277 = vld [vmem:[%s279 + $0xb80] sm:$0xff]
        %v1278 = vld [vmem:[%s279 + $0xb88] sm:$0xff]
        %v1279 = vld [vmem:[%s279 + $0xb90] sm:$0xff]
        %v1280 = vld [vmem:[%s279 + $0xb98] sm:$0xff]
        %v1281 = vld [vmem:[%s279 + $0xba0] sm:$0xff]
        %v1282 = vld [vmem:[%s279 + $0xba8] sm:$0xff]
        %v1283 = vld [vmem:[%s279 + $0xbb0] sm:$0xff]
        %v1284 = vld [vmem:[%s279 + $0xbb8] sm:$0xff]
        %v1285 = vld [vmem:[%s279 + $0xbc0] sm:$0xff]
        %v1286 = vld [vmem:[%s279 + $0xbc8] sm:$0xff]
        %v1287 = vld [vmem:[%s279 + $0xbd0] sm:$0xff]
        %v1288 = vld [vmem:[%s279 + $0xbd8] sm:$0xff]
        %v1289 = vld [vmem:[%s279 + $0xbe0] sm:$0xff]
        %v1290 = vld [vmem:[%s279 + $0xbe8] sm:$0xff]
        %v1291 = vld [vmem:[%s279 + $0xbf0] sm:$0xff]
        %v1292 = vld [vmem:[%s279 + $0xbf8] sm:$0xff]
        %v1293 = vld [vmem:[%s279 + $0xc00] sm:$0xff]
        %v1294 = vld [vmem:[%s279 + $0xc08] sm:$0xff]
        %v1295 = vld [vmem:[%s279 + $0xc10] sm:$0xff]
        %v1296 = vld [vmem:[%s279 + $0xc18] sm:$0xff]
        %v1297 = vld [vmem:[%s279 + $0xc20] sm:$0xff]
        %v1298 = vld [vmem:[%s279 + $0xc28] sm:$0xff]
        %v1299 = vld [vmem:[%s279 + $0xc30] sm:$0xff]
        %v1300 = vld [vmem:[%s279 + $0xc38] sm:$0xff]
        %v1301 = vld [vmem:[%s279 + $0xc40] sm:$0xff]
        %v1302 = vld [vmem:[%s279 + $0xc48] sm:$0xff]
        %v1303 = vld [vmem:[%s279 + $0xc50] sm:$0xff]
        %v1304 = vld [vmem:[%s279 + $0xc58] sm:$0xff]
        %v1305 = vld [vmem:[%s279 + $0xc60] sm:$0xff]
        %v1306 = vld [vmem:[%s279 + $0xc68] sm:$0xff]
        %v1307 = vld [vmem:[%s279 + $0xc70] sm:$0xff]
        %v1308 = vld [vmem:[%s279 + $0xc78] sm:$0xff]
        %v1309 = vld [vmem:[%s279 + $0xc80] sm:$0xff]
        %v1310 = vld [vmem:[%s279 + $0xc88] sm:$0xff]
        %v1311 = vld [vmem:[%s279 + $0xc90] sm:$0xff]
        %v1312 = vld [vmem:[%s279 + $0xc98] sm:$0xff]
        %v1313 = vld [vmem:[%s279 + $0xca0] sm:$0xff]
        %v1314 = vld [vmem:[%s279 + $0xca8] sm:$0xff]
        %v1315 = vld [vmem:[%s279 + $0xcb0] sm:$0xff]
        %v1316 = vld [vmem:[%s279 + $0xcb8] sm:$0xff]
        %v1317 = vld [vmem:[%s279 + $0xcc0] sm:$0xff]
        %v1318 = vld [vmem:[%s279 + $0xcc8] sm:$0xff]
        %v1319 = vld [vmem:[%s279 + $0xcd0] sm:$0xff]
        %v1320 = vld [vmem:[%s279 + $0xcd8] sm:$0xff]
        %v1321 = vld [vmem:[%s279 + $0xce0] sm:$0xff]
        %v1322 = vld [vmem:[%s279 + $0xce8] sm:$0xff]
        %v1323 = vld [vmem:[%s279 + $0xcf0] sm:$0xff]
        %v1324 = vld [vmem:[%s279 + $0xcf8] sm:$0xff]
        %v1325 = vld [vmem:[%s279 + $0xd00] sm:$0xff]
        %v1326 = vld [vmem:[%s279 + $0xd08] sm:$0xff]
        %v1327 = vld [vmem:[%s279 + $0xd10] sm:$0xff]
        %v1328 = vld [vmem:[%s279 + $0xd18] sm:$0xff]
        %v1329 = vld [vmem:[%s279 + $0xd20] sm:$0xff]
        %v1330 = vld [vmem:[%s279 + $0xd28] sm:$0xff]
        %v1331 = vld [vmem:[%s279 + $0xd30] sm:$0xff]
        %v1332 = vld [vmem:[%s279 + $0xd38] sm:$0xff]
        %v1333 = vld [vmem:[%s279 + $0xd40] sm:$0xff]
        %v1334 = vld [vmem:[%s279 + $0xd48] sm:$0xff]
        %v1335 = vld [vmem:[%s279 + $0xd50] sm:$0xff]
        %v1336 = vld [vmem:[%s279 + $0xd58] sm:$0xff]
        %v1337 = vld [vmem:[%s279 + $0xd60] sm:$0xff]
        %v1338 = vld [vmem:[%s279 + $0xd68] sm:$0xff]
        %v1339 = vld [vmem:[%s279 + $0xd70] sm:$0xff]
        %v1340 = vld [vmem:[%s279 + $0xd78] sm:$0xff]
        %v1341 = vld [vmem:[%s279 + $0xd80] sm:$0xff]
        %v1342 = vld [vmem:[%s279 + $0xd88] sm:$0xff]
        %v1343 = vld [vmem:[%s279 + $0xd90] sm:$0xff]
        %v1344 = vld [vmem:[%s279 + $0xd98] sm:$0xff]
        %v1345 = vld [vmem:[%s279 + $0xda0] sm:$0xff]
        %v1346 = vld [vmem:[%s279 + $0xda8] sm:$0xff]
        %v1347 = vld [vmem:[%s279 + $0xdb0] sm:$0xff]
        %v1348 = vld [vmem:[%s279 + $0xdb8] sm:$0xff]
        %v1349 = vld [vmem:[%s279 + $0xdc0] sm:$0xff]
        %v1350 = vld [vmem:[%s279 + $0xdc8] sm:$0xff]
        %v1351 = vld [vmem:[%s279 + $0xdd0] sm:$0xff]
        %v1352 = vld [vmem:[%s279 + $0xdd8] sm:$0xff]
        %v1353 = vld [vmem:[%s279 + $0xde0] sm:$0xff]
        %v1354 = vld [vmem:[%s279 + $0xde8] sm:$0xff]
        %v1355 = vld [vmem:[%s279 + $0xdf0] sm:$0xff]
        %v1356 = vld [vmem:[%s279 + $0xdf8] sm:$0xff]
        %v1357 = vld [vmem:[%s279 + $0xe00] sm:$0xff]
        %v1358 = vld [vmem:[%s279 + $0xe08] sm:$0xff]
        %v1359 = vld [vmem:[%s279 + $0xe10] sm:$0xff]
        %v1360 = vld [vmem:[%s279 + $0xe18] sm:$0xff]
        %v1361 = vld [vmem:[%s279 + $0xe20] sm:$0xff]
        %v1362 = vld [vmem:[%s279 + $0xe28] sm:$0xff]
        %v1363 = vld [vmem:[%s279 + $0xe30] sm:$0xff]
        %v1364 = vld [vmem:[%s279 + $0xe38] sm:$0xff]
        %v1365 = vld [vmem:[%s279 + $0xe40] sm:$0xff]
        %v1366 = vld [vmem:[%s279 + $0xe48] sm:$0xff]
        %v1367 = vld [vmem:[%s279 + $0xe50] sm:$0xff]
        %v1368 = vld [vmem:[%s279 + $0xe58] sm:$0xff]
        %v1369 = vld [vmem:[%s279 + $0xe60] sm:$0xff]
        %v1370 = vld [vmem:[%s279 + $0xe68] sm:$0xff]
        %v1371 = vld [vmem:[%s279 + $0xe70] sm:$0xff]
        %v1372 = vld [vmem:[%s279 + $0xe78] sm:$0xff]
        %v1373 = vld [vmem:[%s279 + $0xe80] sm:$0xff]
        %v1374 = vld [vmem:[%s279 + $0xe88] sm:$0xff]
        %v1375 = vld [vmem:[%s279 + $0xe90] sm:$0xff]
        %v1376 = vld [vmem:[%s279 + $0xe98] sm:$0xff]
        %v1377 = vld [vmem:[%s279 + $0xea0] sm:$0xff]
        %v1378 = vld [vmem:[%s279 + $0xea8] sm:$0xff]
        %v1379 = vld [vmem:[%s279 + $0xeb0] sm:$0xff]
        %v1380 = vld [vmem:[%s279 + $0xeb8] sm:$0xff]
        %v1381 = vld [vmem:[%s279 + $0xec0] sm:$0xff]
        %v1382 = vld [vmem:[%s279 + $0xec8] sm:$0xff]
        %v1383 = vld [vmem:[%s279 + $0xed0] sm:$0xff]
        %v1384 = vld [vmem:[%s279 + $0xed8] sm:$0xff]
        %v1385 = vld [vmem:[%s279 + $0xee0] sm:$0xff]
        %v1386 = vld [vmem:[%s279 + $0xee8] sm:$0xff]
        %v1387 = vld [vmem:[%s279 + $0xef0] sm:$0xff]
        %v1388 = vld [vmem:[%s279 + $0xef8] sm:$0xff]
        %v1389 = vld [vmem:[%s279 + $0xf00] sm:$0xff]
        %v1390 = vld [vmem:[%s279 + $0xf08] sm:$0xff]
        %v1391 = vld [vmem:[%s279 + $0xf10] sm:$0xff]
        %v1392 = vld [vmem:[%s279 + $0xf18] sm:$0xff]
        %v1393 = vld [vmem:[%s279 + $0xf20] sm:$0xff]
        %v1394 = vld [vmem:[%s279 + $0xf28] sm:$0xff]
        %v1395 = vld [vmem:[%s279 + $0xf30] sm:$0xff]
        %v1396 = vld [vmem:[%s279 + $0xf38] sm:$0xff]
        %v1397 = vld [vmem:[%s279 + $0xf40] sm:$0xff]
        %v1398 = vld [vmem:[%s279 + $0xf48] sm:$0xff]
        %v1399 = vld [vmem:[%s279 + $0xf50] sm:$0xff]
        %v1400 = vld [vmem:[%s279 + $0xf58] sm:$0xff]
        %v1401 = vld [vmem:[%s279 + $0xf60] sm:$0xff]
        %v1402 = vld [vmem:[%s279 + $0xf68] sm:$0xff]
        %v1403 = vld [vmem:[%s279 + $0xf70] sm:$0xff]
        %v1404 = vld [vmem:[%s279 + $0xf78] sm:$0xff]
        %v1405 = vld [vmem:[%s279 + $0xf80] sm:$0xff]
        %v1406 = vld [vmem:[%s279 + $0xf88] sm:$0xff]
        %v1407 = vld [vmem:[%s279 + $0xf90] sm:$0xff]
        %v1408 = vld [vmem:[%s279 + $0xf98] sm:$0xff]
        %v1409 = vld [vmem:[%s279 + $0xfa0] sm:$0xff]
        %v1410 = vld [vmem:[%s279 + $0xfa8] sm:$0xff]
        %v1411 = vld [vmem:[%s279 + $0xfb0] sm:$0xff]
        %v1412 = vld [vmem:[%s279 + $0xfb8] sm:$0xff]
        %v1413 = vld [vmem:[%s279 + $0xfc0] sm:$0xff]
        %v1414 = vld [vmem:[%s279 + $0xfc8] sm:$0xff]
        %v1415 = vld [vmem:[%s279 + $0xfd0] sm:$0xff]
        %v1416 = vld [vmem:[%s279 + $0xfd8] sm:$0xff]
        %v1417 = vld [vmem:[%s279 + $0xfe0] sm:$0xff]
        %v1418 = vld [vmem:[%s279 + $0xfe8] sm:$0xff]
        %v1419 = vld [vmem:[%s279 + $0xff0] sm:$0xff]
        %v1420 = vld [vmem:[%s279 + $0xff8] sm:$0xff]
        %v1421 = vld [vmem:[%s279 + $0x1000] sm:$0xff]
        %v1422 = vld [vmem:[%s279 + $0x1008] sm:$0xff]
        %v1423 = vld [vmem:[%s279 + $0x1010] sm:$0xff]
        %v1424 = vld [vmem:[%s279 + $0x1018] sm:$0xff]
        %v1425 = vld [vmem:[%s279 + $0x1020] sm:$0xff]
        %v1426 = vld [vmem:[%s279 + $0x1028] sm:$0xff]
        %v1427 = vld [vmem:[%s279 + $0x1030] sm:$0xff]
        %v1428 = vld [vmem:[%s279 + $0x1038] sm:$0xff]
        %v1429 = vld [vmem:[%s279 + $0x1040] sm:$0xff]
        %v1430 = vld [vmem:[%s279 + $0x1048] sm:$0xff]
        %v1431 = vld [vmem:[%s279 + $0x1050] sm:$0xff]
        %v1432 = vld [vmem:[%s279 + $0x1058] sm:$0xff]
        %v1433 = vld [vmem:[%s279 + $0x1060] sm:$0xff]
        %v1434 = vld [vmem:[%s279 + $0x1068] sm:$0xff]
        %v1435 = vld [vmem:[%s279 + $0x1070] sm:$0xff]
        %v1436 = vld [vmem:[%s279 + $0x1078] sm:$0xff]
        %v1437 = vld [vmem:[%s279 + $0x1080] sm:$0xff]
        %v1438 = vld [vmem:[%s279 + $0x1088] sm:$0xff]
        %v1439 = vld [vmem:[%s279 + $0x1090] sm:$0xff]
        %v1440 = vld [vmem:[%s279 + $0x1098] sm:$0xff]
        %v1441 = vld [vmem:[%s279 + $0x10a0] sm:$0xff]
        %v1442 = vld [vmem:[%s279 + $0x10a8] sm:$0xff]
        %v1443 = vld [vmem:[%s279 + $0x10b0] sm:$0xff]
        %v1444 = vld [vmem:[%s279 + $0x10b8] sm:$0xff]
        %v1445 = vld [vmem:[%s279 + $0x10c0] sm:$0xff]
        %v1446 = vld [vmem:[%s279 + $0x10c8] sm:$0xff]
        %v1447 = vld [vmem:[%s279 + $0x10d0] sm:$0xff]
        %v1448 = vld [vmem:[%s279 + $0x10d8] sm:$0xff]
        %v1449 = vld [vmem:[%s279 + $0x10e0] sm:$0xff]
        %v1450 = vld [vmem:[%s279 + $0x10e8] sm:$0xff]
        %v1451 = vld [vmem:[%s279 + $0x10f0] sm:$0xff]
        %v1452 = vld [vmem:[%s279 + $0x10f8] sm:$0xff]
        %v1453 = vld [vmem:[%s279 + $0x1100] sm:$0xff]
        %v1454 = vld [vmem:[%s279 + $0x1108] sm:$0xff]
        %v1455 = vld [vmem:[%s279 + $0x1110] sm:$0xff]
        %v1456 = vld [vmem:[%s279 + $0x1118] sm:$0xff]
        %v1457 = vld [vmem:[%s279 + $0x1120] sm:$0xff]
        %v1458 = vld [vmem:[%s279 + $0x1128] sm:$0xff]
        %v1459 = vld [vmem:[%s279 + $0x1130] sm:$0xff]
        %v1460 = vld [vmem:[%s279 + $0x1138] sm:$0xff]
        %v1461 = vld [vmem:[%s279 + $0x1140] sm:$0xff]
        %v1462 = vld [vmem:[%s279 + $0x1148] sm:$0xff]
        %v1463 = vld [vmem:[%s279 + $0x1150] sm:$0xff]
        %v1464 = vld [vmem:[%s279 + $0x1158] sm:$0xff]
        %v1465 = vld [vmem:[%s279 + $0x1160] sm:$0xff]
        %v1466 = vld [vmem:[%s279 + $0x1168] sm:$0xff]
        %v1467 = vld [vmem:[%s279 + $0x1170] sm:$0xff]
        %v1468 = vld [vmem:[%s279 + $0x1178] sm:$0xff]
        %v1469 = vld [vmem:[%s279 + $0x1180] sm:$0xff]
        %v1470 = vld [vmem:[%s279 + $0x1188] sm:$0xff]
        %v1471 = vld [vmem:[%s279 + $0x1190] sm:$0xff]
        %v1472 = vld [vmem:[%s279 + $0x1198] sm:$0xff]
        %v1473 = vld [vmem:[%s279 + $0x11a0] sm:$0xff]
        %v1474 = vld [vmem:[%s279 + $0x11a8] sm:$0xff]
        %v1475 = vld [vmem:[%s279 + $0x11b0] sm:$0xff]
        %v1476 = vld [vmem:[%s279 + $0x11b8] sm:$0xff]
        %v1477 = vld [vmem:[%s279 + $0x11c0] sm:$0xff]
        %v1478 = vld [vmem:[%s279 + $0x11c8] sm:$0xff]
        %v1479 = vld [vmem:[%s279 + $0x11d0] sm:$0xff]
        %v1480 = vld [vmem:[%s279 + $0x11d8] sm:$0xff]
        %v1481 = vld [vmem:[%s279 + $0x11e0] sm:$0xff]
        %v1482 = vld [vmem:[%s279 + $0x11e8] sm:$0xff]
        %v1483 = vld [vmem:[%s279 + $0x11f0] sm:$0xff]
        %v1484 = vld [vmem:[%s279 + $0x11f8] sm:$0xff]
        %v1485 = vld [vmem:[%s279 + $0x1200] sm:$0xff]
        %v1486 = vld [vmem:[%s279 + $0x1208] sm:$0xff]
        %v1487 = vld [vmem:[%s279 + $0x1210] sm:$0xff]
        %v1488 = vld [vmem:[%s279 + $0x1218] sm:$0xff]
        %v1489 = vld [vmem:[%s279 + $0x1220] sm:$0xff]
        %v1490 = vld [vmem:[%s279 + $0x1228] sm:$0xff]
        %v1491 = vld [vmem:[%s279 + $0x1230] sm:$0xff]
        %v1492 = vld [vmem:[%s279 + $0x1238] sm:$0xff]
        %v1493 = vld [vmem:[%s279 + $0x1240] sm:$0xff]
        %v1494 = vld [vmem:[%s279 + $0x1248] sm:$0xff]
        %v1495 = vld [vmem:[%s279 + $0x1250] sm:$0xff]
        %v1496 = vld [vmem:[%s279 + $0x1258] sm:$0xff]
        %v1497 = vld [vmem:[%s279 + $0x1260] sm:$0xff]
        %v1498 = vld [vmem:[%s279 + $0x1268] sm:$0xff]
        %v1499 = vld [vmem:[%s279 + $0x1270] sm:$0xff]
        %v1500 = vld [vmem:[%s279 + $0x1278] sm:$0xff]
        %v1501 = vld [vmem:[%s279 + $0x1280] sm:$0xff]
        %v1502 = vld [vmem:[%s279 + $0x1288] sm:$0xff]
        %v1503 = vld [vmem:[%s279 + $0x1290] sm:$0xff]
        %v1504 = vld [vmem:[%s279 + $0x1298] sm:$0xff]
        %v1505 = vld [vmem:[%s279 + $0x12a0] sm:$0xff]
        %v1506 = vld [vmem:[%s279 + $0x12a8] sm:$0xff]
        %v1507 = vld [vmem:[%s279 + $0x12b0] sm:$0xff]
        %v1508 = vld [vmem:[%s279 + $0x12b8] sm:$0xff]
        %v1509 = vld [vmem:[%s279 + $0x12c0] sm:$0xff]
        %v1510 = vld [vmem:[%s279 + $0x12c8] sm:$0xff]
        %v1511 = vld [vmem:[%s279 + $0x12d0] sm:$0xff]
        %v1512 = vld [vmem:[%s279 + $0x12d8] sm:$0xff]
        %v1513 = vld [vmem:[%s279 + $0x12e0] sm:$0xff]
        %v1514 = vld [vmem:[%s279 + $0x12e8] sm:$0xff]
        %v1515 = vld [vmem:[%s279 + $0x12f0] sm:$0xff]
        %v1516 = vld [vmem:[%s279 + $0x12f8] sm:$0xff]
        %v1517 = vld [vmem:[%s279 + $0x1300] sm:$0xff]
        %v1518 = vld [vmem:[%s279 + $0x1308] sm:$0xff]
        %v1519 = vld [vmem:[%s279 + $0x1310] sm:$0xff]
        %v1520 = vld [vmem:[%s279 + $0x1318] sm:$0xff]
        %v1521 = vld [vmem:[%s279 + $0x1320] sm:$0xff]
        %v1522 = vld [vmem:[%s279 + $0x1328] sm:$0xff]
        %v1523 = vld [vmem:[%s279 + $0x1330] sm:$0xff]
        %v1524 = vld [vmem:[%s279 + $0x1338] sm:$0xff]
        %v1525 = vld [vmem:[%s279 + $0x1340] sm:$0xff]
        %v1526 = vld [vmem:[%s279 + $0x1348] sm:$0xff]
        %v1527 = vld [vmem:[%s279 + $0x1350] sm:$0xff]
        %v1528 = vld [vmem:[%s279 + $0x1358] sm:$0xff]
        %v1529 = vld [vmem:[%s279 + $0x1360] sm:$0xff]
        %v1530 = vld [vmem:[%s279 + $0x1368] sm:$0xff]
        %v1531 = vld [vmem:[%s279 + $0x1370] sm:$0xff]
        %v1532 = vld [vmem:[%s279 + $0x1378] sm:$0xff]
        %v1533 = vld [vmem:[%s279 + $0x1380] sm:$0xff]
        %v1534 = vld [vmem:[%s279 + $0x1388] sm:$0xff]
        %v1535 = vld [vmem:[%s279 + $0x1390] sm:$0xff]
        %v1536 = vld [vmem:[%s279 + $0x1398] sm:$0xff]
        %v1537 = vld [vmem:[%s279 + $0x13a0] sm:$0xff]
        %v1538 = vld [vmem:[%s279 + $0x13a8] sm:$0xff]
        %v1539 = vld [vmem:[%s279 + $0x13b0] sm:$0xff]
        %v1540 = vld [vmem:[%s279 + $0x13b8] sm:$0xff]
        %v1541 = vld [vmem:[%s279 + $0x13c0] sm:$0xff]
        %v1542 = vld [vmem:[%s279 + $0x13c8] sm:$0xff]
        %v1543 = vld [vmem:[%s279 + $0x13d0] sm:$0xff]
        %v1544 = vld [vmem:[%s279 + $0x13d8] sm:$0xff]
        %v1545 = vld [vmem:[%s279 + $0x13e0] sm:$0xff]
        %v1546 = vld [vmem:[%s279 + $0x13e8] sm:$0xff]
        %v1547 = vld [vmem:[%s279 + $0x13f0] sm:$0xff]
        %v1548 = vld [vmem:[%s279 + $0x13f8] sm:$0xff]
        %v1549 = vld [vmem:[%s279 + $0x1400] sm:$0xff]
        %v1550 = vld [vmem:[%s279 + $0x1408] sm:$0xff]
        %v1551 = vld [vmem:[%s279 + $0x1410] sm:$0xff]
        %v1552 = vld [vmem:[%s279 + $0x1418] sm:$0xff]
        %v1553 = vld [vmem:[%s279 + $0x1420] sm:$0xff]
        %v1554 = vld [vmem:[%s279 + $0x1428] sm:$0xff]
        %v1555 = vld [vmem:[%s279 + $0x1430] sm:$0xff]
        %v1556 = vld [vmem:[%s279 + $0x1438] sm:$0xff]
        %v1557 = vld [vmem:[%s279 + $0x1440] sm:$0xff]
        %v1558 = vld [vmem:[%s279 + $0x1448] sm:$0xff]
        %v1559 = vld [vmem:[%s279 + $0x1450] sm:$0xff]
        %v1560 = vld [vmem:[%s279 + $0x1458] sm:$0xff]
        %v1561 = vld [vmem:[%s279 + $0x1460] sm:$0xff]
        %v1562 = vld [vmem:[%s279 + $0x1468] sm:$0xff]
        %v1563 = vld [vmem:[%s279 + $0x1470] sm:$0xff]
        %v1564 = vld [vmem:[%s279 + $0x1478] sm:$0xff]
        %v1565 = vld [vmem:[%s279 + $0x1480] sm:$0xff]
        %v1566 = vld [vmem:[%s279 + $0x1488] sm:$0xff]
        %v1567 = vld [vmem:[%s279 + $0x1490] sm:$0xff]
        %v1568 = vld [vmem:[%s279 + $0x1498] sm:$0xff]
        %v1569 = vld [vmem:[%s279 + $0x14a0] sm:$0xff]
        %v1570 = vld [vmem:[%s279 + $0x14a8] sm:$0xff]
        %v1571 = vld [vmem:[%s279 + $0x14b0] sm:$0xff]
        %v1572 = vld [vmem:[%s279 + $0x14b8] sm:$0xff]
        %v1573 = vld [vmem:[%s279 + $0x14c0] sm:$0xff]
        %v1574 = vld [vmem:[%s279 + $0x14c8] sm:$0xff]
        %v1575 = vld [vmem:[%s279 + $0x14d0] sm:$0xff]
        %v1576 = vld [vmem:[%s279 + $0x14d8] sm:$0xff]
        %v1577 = vld [vmem:[%s279 + $0x14e0] sm:$0xff]
        %v1578 = vld [vmem:[%s279 + $0x14e8] sm:$0xff]
        %v1579 = vld [vmem:[%s279 + $0x14f0] sm:$0xff]
        %v1580 = vld [vmem:[%s279 + $0x14f8] sm:$0xff]
        %v1581 = vld [vmem:[%s279 + $0x1500] sm:$0xff]
        %v1582 = vld [vmem:[%s279 + $0x1508] sm:$0xff]
        %v1583 = vld [vmem:[%s279 + $0x1510] sm:$0xff]
        %v1584 = vld [vmem:[%s279 + $0x1518] sm:$0xff]
        %v1585 = vld [vmem:[%s279 + $0x1520] sm:$0xff]
        %v1586 = vld [vmem:[%s279 + $0x1528] sm:$0xff]
        %v1587 = vld [vmem:[%s279 + $0x1530] sm:$0xff]
        %v1588 = vld [vmem:[%s279 + $0x1538] sm:$0xff]
        %v1589 = vld [vmem:[%s279 + $0x1540] sm:$0xff]
        %v1590 = vld [vmem:[%s279 + $0x1548] sm:$0xff]
        %v1591 = vld [vmem:[%s279 + $0x1550] sm:$0xff]
        %v1592 = vld [vmem:[%s279 + $0x1558] sm:$0xff]
        %v1593 = vld [vmem:[%s279 + $0x1560] sm:$0xff]
        %v1594 = vld [vmem:[%s279 + $0x1568] sm:$0xff]
        %v1595 = vld [vmem:[%s279 + $0x1570] sm:$0xff]
        %v1596 = vld [vmem:[%s279 + $0x1578] sm:$0xff]
        %v1597 = vld [vmem:[%s279 + $0x1580] sm:$0xff]
        %v1598 = vld [vmem:[%s279 + $0x1588] sm:$0xff]
        %v1599 = vld [vmem:[%s279 + $0x1590] sm:$0xff]
        %v1600 = vld [vmem:[%s279 + $0x1598] sm:$0xff]
        %v1601 = vld [vmem:[%s279 + $0x15a0] sm:$0xff]
        %v1602 = vld [vmem:[%s279 + $0x15a8] sm:$0xff]
        %v1603 = vld [vmem:[%s279 + $0x15b0] sm:$0xff]
        %v1604 = vld [vmem:[%s279 + $0x15b8] sm:$0xff]
        %v1605 = vld [vmem:[%s279 + $0x15c0] sm:$0xff]
        %v1606 = vld [vmem:[%s279 + $0x15c8] sm:$0xff]
        %v1607 = vld [vmem:[%s279 + $0x15d0] sm:$0xff]
        %v1608 = vld [vmem:[%s279 + $0x15d8] sm:$0xff]
        %v1609 = vld [vmem:[%s279 + $0x15e0] sm:$0xff]
        %v1610 = vld [vmem:[%s279 + $0x15e8] sm:$0xff]
        %v1611 = vld [vmem:[%s279 + $0x15f0] sm:$0xff]
        %v1612 = vld [vmem:[%s279 + $0x15f8] sm:$0xff]
        %v1613 = vld [vmem:[%s279 + $0x1600] sm:$0xff]
        %v1614 = vld [vmem:[%s279 + $0x1608] sm:$0xff]
        %v1615 = vld [vmem:[%s279 + $0x1610] sm:$0xff]
        %v1616 = vld [vmem:[%s279 + $0x1618] sm:$0xff]
        %v1617 = vld [vmem:[%s279 + $0x1620] sm:$0xff]
        %v1618 = vld [vmem:[%s279 + $0x1628] sm:$0xff]
        %v1619 = vld [vmem:[%s279 + $0x1630] sm:$0xff]
        %v1620 = vld [vmem:[%s279 + $0x1638] sm:$0xff]
        %v1621 = vld [vmem:[%s279 + $0x1640] sm:$0xff]
        %v1622 = vld [vmem:[%s279 + $0x1648] sm:$0xff]
        %v1623 = vld [vmem:[%s279 + $0x1650] sm:$0xff]
        %v1624 = vld [vmem:[%s279 + $0x1658] sm:$0xff]
        %v1625 = vld [vmem:[%s279 + $0x1660] sm:$0xff]
        %v1626 = vld [vmem:[%s279 + $0x1668] sm:$0xff]
        %v1627 = vld [vmem:[%s279 + $0x1670] sm:$0xff]
        %v1628 = vld [vmem:[%s279 + $0x1678] sm:$0xff]
        %v1629 = vld [vmem:[%s279 + $0x1680] sm:$0xff]
        %v1630 = vld [vmem:[%s279 + $0x1688] sm:$0xff]
        %v1631 = vld [vmem:[%s279 + $0x1690] sm:$0xff]
        %v1632 = vld [vmem:[%s279 + $0x1698] sm:$0xff]
        %v1633 = vld [vmem:[%s279 + $0x16a0] sm:$0xff]
        %v1634 = vld [vmem:[%s279 + $0x16a8] sm:$0xff]
        %v1635 = vld [vmem:[%s279 + $0x16b0] sm:$0xff]
        %v1636 = vld [vmem:[%s279 + $0x16b8] sm:$0xff]
        %v1637 = vld [vmem:[%s279 + $0x16c0] sm:$0xff]
        %v1638 = vld [vmem:[%s279 + $0x16c8] sm:$0xff]
        %v1639 = vld [vmem:[%s279 + $0x16d0] sm:$0xff]
        %v1640 = vld [vmem:[%s279 + $0x16d8] sm:$0xff]
        %v1641 = vld [vmem:[%s279 + $0x16e0] sm:$0xff]
        %v1642 = vld [vmem:[%s279 + $0x16e8] sm:$0xff]
        %v1643 = vld [vmem:[%s279 + $0x16f0] sm:$0xff]
        %v1644 = vld [vmem:[%s279 + $0x16f8] sm:$0xff]
        %v1645 = vld [vmem:[%s279 + $0x1700] sm:$0xff]
        %v1646 = vld [vmem:[%s279 + $0x1708] sm:$0xff]
        %v1647 = vld [vmem:[%s279 + $0x1710] sm:$0xff]
        %v1648 = vld [vmem:[%s279 + $0x1718] sm:$0xff]
        %v1649 = vld [vmem:[%s279 + $0x1720] sm:$0xff]
        %v1650 = vld [vmem:[%s279 + $0x1728] sm:$0xff]
        %v1651 = vld [vmem:[%s279 + $0x1730] sm:$0xff]
        %v1652 = vld [vmem:[%s279 + $0x1738] sm:$0xff]
        %v1653 = vld [vmem:[%s279 + $0x1740] sm:$0xff]
        %v1654 = vld [vmem:[%s279 + $0x1748] sm:$0xff]
        %v1655 = vld [vmem:[%s279 + $0x1750] sm:$0xff]
        %v1656 = vld [vmem:[%s279 + $0x1758] sm:$0xff]
        %v1657 = vld [vmem:[%s279 + $0x1760] sm:$0xff]
        %v1658 = vld [vmem:[%s279 + $0x1768] sm:$0xff]
        %v1659 = vld [vmem:[%s279 + $0x1770] sm:$0xff]
        %v1660 = vld [vmem:[%s279 + $0x1778] sm:$0xff]
        %v1661 = vld [vmem:[%s279 + $0x1780] sm:$0xff]
        %v1662 = vld [vmem:[%s279 + $0x1788] sm:$0xff]
        %v1663 = vld [vmem:[%s279 + $0x1790] sm:$0xff]
        %v1664 = vld [vmem:[%s279 + $0x1798] sm:$0xff]
        %v1665 = vld [vmem:[%s279 + $0x17a0] sm:$0xff]
        %v1666 = vld [vmem:[%s279 + $0x17a8] sm:$0xff]
        %v1667 = vld [vmem:[%s279 + $0x17b0] sm:$0xff]
        %v1668 = vld [vmem:[%s279 + $0x17b8] sm:$0xff]
        %v1669 = vld [vmem:[%s279 + $0x17c0] sm:$0xff]
        %v1670 = vld [vmem:[%s279 + $0x17c8] sm:$0xff]
        %v1671 = vld [vmem:[%s279 + $0x17d0] sm:$0xff]
        %v1672 = vld [vmem:[%s279 + $0x17d8] sm:$0xff]
        %v1673 = vld [vmem:[%s279 + $0x17e0] sm:$0xff]
        %v1674 = vld [vmem:[%s279 + $0x17e8] sm:$0xff]
        %v1675 = vld [vmem:[%s279 + $0x17f0] sm:$0xff]
        %v1676 = vld [vmem:[%s279 + $0x17f8] sm:$0xff]
        %v1677 = vld [vmem:[%s279 + $0x1800] sm:$0xff]
        %v1678 = vld [vmem:[%s279 + $0x1808] sm:$0xff]
        %v1679 = vld [vmem:[%s279 + $0x1810] sm:$0xff]
        %v1680 = vld [vmem:[%s279 + $0x1818] sm:$0xff]
        %v1681 = vld [vmem:[%s279 + $0x1820] sm:$0xff]
        %v1682 = vld [vmem:[%s279 + $0x1828] sm:$0xff]
        %v1683 = vld [vmem:[%s279 + $0x1830] sm:$0xff]
        %v1684 = vld [vmem:[%s279 + $0x1838] sm:$0xff]
        %v1685 = vld [vmem:[%s279 + $0x1840] sm:$0xff]
        %v1686 = vld [vmem:[%s279 + $0x1848] sm:$0xff]
        %v1687 = vld [vmem:[%s279 + $0x1850] sm:$0xff]
        %v1688 = vld [vmem:[%s279 + $0x1858] sm:$0xff]
        %v1689 = vld [vmem:[%s279 + $0x1860] sm:$0xff]
        %v1690 = vld [vmem:[%s279 + $0x1868] sm:$0xff]
        %v1691 = vld [vmem:[%s279 + $0x1870] sm:$0xff]
        %v1692 = vld [vmem:[%s279 + $0x1878] sm:$0xff]
        %v1693 = vld [vmem:[%s279 + $0x1880] sm:$0xff]
        %v1694 = vld [vmem:[%s279 + $0x1888] sm:$0xff]
        %v1695 = vld [vmem:[%s279 + $0x1890] sm:$0xff]
        %v1696 = vld [vmem:[%s279 + $0x1898] sm:$0xff]
        %v1697 = vld [vmem:[%s279 + $0x18a0] sm:$0xff]
        %v1698 = vld [vmem:[%s279 + $0x18a8] sm:$0xff]
        %v1699 = vld [vmem:[%s279 + $0x18b0] sm:$0xff]
        %v1700 = vld [vmem:[%s279 + $0x18b8] sm:$0xff]
        %v1701 = vld [vmem:[%s279 + $0x18c0] sm:$0xff]
        %v1702 = vld [vmem:[%s279 + $0x18c8] sm:$0xff]
        %v1703 = vld [vmem:[%s279 + $0x18d0] sm:$0xff]
        %v1704 = vld [vmem:[%s279 + $0x18d8] sm:$0xff]
        %v1705 = vld [vmem:[%s279 + $0x18e0] sm:$0xff]
        %v1706 = vld [vmem:[%s279 + $0x18e8] sm:$0xff]
        %v1707 = vld [vmem:[%s279 + $0x18f0] sm:$0xff]
        %v1708 = vld [vmem:[%s279 + $0x18f8] sm:$0xff]
        %v1709 = vld [vmem:[%s279 + $0x1900] sm:$0xff]
        %v1710 = vld [vmem:[%s279 + $0x1908] sm:$0xff]
        %v1711 = vld [vmem:[%s279 + $0x1910] sm:$0xff]
        %v1712 = vld [vmem:[%s279 + $0x1918] sm:$0xff]
        %v1713 = vld [vmem:[%s279 + $0x1920] sm:$0xff]
        %v1714 = vld [vmem:[%s279 + $0x1928] sm:$0xff]
        %v1715 = vld [vmem:[%s279 + $0x1930] sm:$0xff]
        %v1716 = vld [vmem:[%s279 + $0x1938] sm:$0xff]
        %v1717 = vld [vmem:[%s279 + $0x1940] sm:$0xff]
        %v1718 = vld [vmem:[%s279 + $0x1948] sm:$0xff]
        %v1719 = vld [vmem:[%s279 + $0x1950] sm:$0xff]
        %v1720 = vld [vmem:[%s279 + $0x1958] sm:$0xff]
        %v1721 = vld [vmem:[%s279 + $0x1960] sm:$0xff]
        %v1722 = vld [vmem:[%s279 + $0x1968] sm:$0xff]
        %v1723 = vld [vmem:[%s279 + $0x1970] sm:$0xff]
        %v1724 = vld [vmem:[%s279 + $0x1978] sm:$0xff]
        %v1725 = vld [vmem:[%s279 + $0x1980] sm:$0xff]
        %v1726 = vld [vmem:[%s279 + $0x1988] sm:$0xff]
        %v1727 = vld [vmem:[%s279 + $0x1990] sm:$0xff]
        %v1728 = vld [vmem:[%s279 + $0x1998] sm:$0xff]
        %v1729 = vld [vmem:[%s279 + $0x19a0] sm:$0xff]
        %v1730 = vld [vmem:[%s279 + $0x19a8] sm:$0xff]
        %v1731 = vld [vmem:[%s279 + $0x19b0] sm:$0xff]
        %v1732 = vld [vmem:[%s279 + $0x19b8] sm:$0xff]
        %v1733 = vld [vmem:[%s279 + $0x19c0] sm:$0xff]
        %v1734 = vld [vmem:[%s279 + $0x19c8] sm:$0xff]
        %v1735 = vld [vmem:[%s279 + $0x19d0] sm:$0xff]
        %v1736 = vld [vmem:[%s279 + $0x19d8] sm:$0xff]
        %v1737 = vld [vmem:[%s279 + $0x19e0] sm:$0xff]
        %v1738 = vld [vmem:[%s279 + $0x19e8] sm:$0xff]
        %v1739 = vld [vmem:[%s279 + $0x19f0] sm:$0xff]
        %v1740 = vld [vmem:[%s279 + $0x19f8] sm:$0xff]
        %v1741 = vld [vmem:[%s279 + $0x1a00] sm:$0xff]
        %v1742 = vld [vmem:[%s279 + $0x1a08] sm:$0xff]
        %v1743 = vld [vmem:[%s279 + $0x1a10] sm:$0xff]
        %v1744 = vld [vmem:[%s279 + $0x1a18] sm:$0xff]
        %v1745 = vld [vmem:[%s279 + $0x1a20] sm:$0xff]
        %v1746 = vld [vmem:[%s279 + $0x1a28] sm:$0xff]
        %v1747 = vld [vmem:[%s279 + $0x1a30] sm:$0xff]
        %v1748 = vld [vmem:[%s279 + $0x1a38] sm:$0xff]
        %v1749 = vld [vmem:[%s279 + $0x1a40] sm:$0xff]
        %v1750 = vld [vmem:[%s279 + $0x1a48] sm:$0xff]
        %v1751 = vld [vmem:[%s279 + $0x1a50] sm:$0xff]
        %v1752 = vld [vmem:[%s279 + $0x1a58] sm:$0xff]
        %v1753 = vld [vmem:[%s279 + $0x1a60] sm:$0xff]
        %v1754 = vld [vmem:[%s279 + $0x1a68] sm:$0xff]
        %v1755 = vld [vmem:[%s279 + $0x1a70] sm:$0xff]
        %v1756 = vld [vmem:[%s279 + $0x1a78] sm:$0xff]
        %v1757 = vld [vmem:[%s279 + $0x1a80] sm:$0xff]
        %v1758 = vld [vmem:[%s279 + $0x1a88] sm:$0xff]
        %v1759 = vld [vmem:[%s279 + $0x1a90] sm:$0xff]
        %v1760 = vld [vmem:[%s279 + $0x1a98] sm:$0xff]
        %v1761 = vld [vmem:[%s279 + $0x1aa0] sm:$0xff]
        %v1762 = vld [vmem:[%s279 + $0x1aa8] sm:$0xff]
        %v1763 = vld [vmem:[%s279 + $0x1ab0] sm:$0xff]
        %v1764 = vld [vmem:[%s279 + $0x1ab8] sm:$0xff]
        %v1765 = vld [vmem:[%s279 + $0x1ac0] sm:$0xff]
        %v1766 = vld [vmem:[%s279 + $0x1ac8] sm:$0xff]
        %v1767 = vld [vmem:[%s279 + $0x1ad0] sm:$0xff]
        %v1768 = vld [vmem:[%s279 + $0x1ad8] sm:$0xff]
        %v1769 = vld [vmem:[%s279 + $0x1ae0] sm:$0xff]
        %v1770 = vld [vmem:[%s279 + $0x1ae8] sm:$0xff]
        %v1771 = vld [vmem:[%s279 + $0x1af0] sm:$0xff]
        %v1772 = vld [vmem:[%s279 + $0x1af8] sm:$0xff]
        %v1773 = vld [vmem:[%s279 + $0x1b00] sm:$0xff]
        %v1774 = vld [vmem:[%s279 + $0x1b08] sm:$0xff]
        %v1775 = vld [vmem:[%s279 + $0x1b10] sm:$0xff]
        %v1776 = vld [vmem:[%s279 + $0x1b18] sm:$0xff]
        %v1777 = vld [vmem:[%s279 + $0x1b20] sm:$0xff]
        %v1778 = vld [vmem:[%s279 + $0x1b28] sm:$0xff]
        %v1779 = vld [vmem:[%s279 + $0x1b30] sm:$0xff]
        %v1780 = vld [vmem:[%s279 + $0x1b38] sm:$0xff]
        %v1781 = vld [vmem:[%s279 + $0x1b40] sm:$0xff]
        %v1782 = vld [vmem:[%s279 + $0x1b48] sm:$0xff]
        %v1783 = vld [vmem:[%s279 + $0x1b50] sm:$0xff]
        %v1784 = vld [vmem:[%s279 + $0x1b58] sm:$0xff]
        %v1785 = vld [vmem:[%s279 + $0x1b60] sm:$0xff]
        %v1786 = vld [vmem:[%s279 + $0x1b68] sm:$0xff]
        %v1787 = vld [vmem:[%s279 + $0x1b70] sm:$0xff]
        %v1788 = vld [vmem:[%s279 + $0x1b78] sm:$0xff]
        %v1789 = vld [vmem:[%s279 + $0x1b80] sm:$0xff]
        %v1790 = vld [vmem:[%s279 + $0x1b88] sm:$0xff]
        %v1791 = vld [vmem:[%s279 + $0x1b90] sm:$0xff]
        %v1792 = vld [vmem:[%s279 + $0x1b98] sm:$0xff]
        %v1793 = vld [vmem:[%s279 + $0x1ba0] sm:$0xff]
        %v1794 = vld [vmem:[%s279 + $0x1ba8] sm:$0xff]
        %v1795 = vld [vmem:[%s279 + $0x1bb0] sm:$0xff]
        %v1796 = vld [vmem:[%s279 + $0x1bb8] sm:$0xff]
        %v1797 = vld [vmem:[%s279 + $0x1bc0] sm:$0xff]
        %v1798 = vld [vmem:[%s279 + $0x1bc8] sm:$0xff]
        %v1799 = vld [vmem:[%s279 + $0x1bd0] sm:$0xff]
        %v1800 = vld [vmem:[%s279 + $0x1bd8] sm:$0xff]
        %v1801 = vld [vmem:[%s279 + $0x1be0] sm:$0xff]
        %v1802 = vld [vmem:[%s279 + $0x1be8] sm:$0xff]
        %v1803 = vld [vmem:[%s279 + $0x1bf0] sm:$0xff]
        %v1804 = vld [vmem:[%s279 + $0x1bf8] sm:$0xff]
        %v1805 = vld [vmem:[%s279 + $0x1c00] sm:$0xff]
        %v1806 = vld [vmem:[%s279 + $0x1c08] sm:$0xff]
        %v1807 = vld [vmem:[%s279 + $0x1c10] sm:$0xff]
        %v1808 = vld [vmem:[%s279 + $0x1c18] sm:$0xff]
        %v1809 = vld [vmem:[%s279 + $0x1c20] sm:$0xff]
        %v1810 = vld [vmem:[%s279 + $0x1c28] sm:$0xff]
        %v1811 = vld [vmem:[%s279 + $0x1c30] sm:$0xff]
        %v1812 = vld [vmem:[%s279 + $0x1c38] sm:$0xff]
        %v1813 = vld [vmem:[%s279 + $0x1c40] sm:$0xff]
        %v1814 = vld [vmem:[%s279 + $0x1c48] sm:$0xff]
        %v1815 = vld [vmem:[%s279 + $0x1c50] sm:$0xff]
        %v1816 = vld [vmem:[%s279 + $0x1c58] sm:$0xff]
        %v1817 = vld [vmem:[%s279 + $0x1c60] sm:$0xff]
        %v1818 = vld [vmem:[%s279 + $0x1c68] sm:$0xff]
        %v1819 = vld [vmem:[%s279 + $0x1c70] sm:$0xff]
        %v1820 = vld [vmem:[%s279 + $0x1c78] sm:$0xff]
        %v1821 = vld [vmem:[%s279 + $0x1c80] sm:$0xff]
        %v1822 = vld [vmem:[%s279 + $0x1c88] sm:$0xff]
        %v1823 = vld [vmem:[%s279 + $0x1c90] sm:$0xff]
        %v1824 = vld [vmem:[%s279 + $0x1c98] sm:$0xff]
        %v1825 = vld [vmem:[%s279 + $0x1ca0] sm:$0xff]
        %v1826 = vld [vmem:[%s279 + $0x1ca8] sm:$0xff]
        %v1827 = vld [vmem:[%s279 + $0x1cb0] sm:$0xff]
        %v1828 = vld [vmem:[%s279 + $0x1cb8] sm:$0xff]
        %v1829 = vld [vmem:[%s279 + $0x1cc0] sm:$0xff]
        %v1830 = vld [vmem:[%s279 + $0x1cc8] sm:$0xff]
        %v1831 = vld [vmem:[%s279 + $0x1cd0] sm:$0xff]
        %v1832 = vld [vmem:[%s279 + $0x1cd8] sm:$0xff]
        %v1833 = vld [vmem:[%s279 + $0x1ce0] sm:$0xff]
        %v1834 = vld [vmem:[%s279 + $0x1ce8] sm:$0xff]
        %v1835 = vld [vmem:[%s279 + $0x1cf0] sm:$0xff]
        %v1836 = vld [vmem:[%s279 + $0x1cf8] sm:$0xff]
        %v1837 = vld [vmem:[%s279 + $0x1d00] sm:$0xff]
        %v1838 = vld [vmem:[%s279 + $0x1d08] sm:$0xff]
        %v1839 = vld [vmem:[%s279 + $0x1d10] sm:$0xff]
        %v1840 = vld [vmem:[%s279 + $0x1d18] sm:$0xff]
        %v1841 = vld [vmem:[%s279 + $0x1d20] sm:$0xff]
        %v1842 = vld [vmem:[%s279 + $0x1d28] sm:$0xff]
        %v1843 = vld [vmem:[%s279 + $0x1d30] sm:$0xff]
        %v1844 = vld [vmem:[%s279 + $0x1d38] sm:$0xff]
        %v1845 = vld [vmem:[%s279 + $0x1d40] sm:$0xff]
        %v1846 = vld [vmem:[%s279 + $0x1d48] sm:$0xff]
        %v1847 = vld [vmem:[%s279 + $0x1d50] sm:$0xff]
        %v1848 = vld [vmem:[%s279 + $0x1d58] sm:$0xff]
        %v1849 = vld [vmem:[%s279 + $0x1d60] sm:$0xff]
        %v1850 = vld [vmem:[%s279 + $0x1d68] sm:$0xff]
        %v1851 = vld [vmem:[%s279 + $0x1d70] sm:$0xff]
        %v1852 = vld [vmem:[%s279 + $0x1d78] sm:$0xff]
        %v1853 = vld [vmem:[%s279 + $0x1d80] sm:$0xff]
        %v1854 = vld [vmem:[%s279 + $0x1d88] sm:$0xff]
        %v1855 = vld [vmem:[%s279 + $0x1d90] sm:$0xff]
        %v1856 = vld [vmem:[%s279 + $0x1d98] sm:$0xff]
        %v1857 = vld [vmem:[%s279 + $0x1da0] sm:$0xff]
        %v1858 = vld [vmem:[%s279 + $0x1da8] sm:$0xff]
        %v1859 = vld [vmem:[%s279 + $0x1db0] sm:$0xff]
        %v1860 = vld [vmem:[%s279 + $0x1db8] sm:$0xff]
        %v1861 = vld [vmem:[%s279 + $0x1dc0] sm:$0xff]
        %v1862 = vld [vmem:[%s279 + $0x1dc8] sm:$0xff]
        %v1863 = vld [vmem:[%s279 + $0x1dd0] sm:$0xff]
        %v1864 = vld [vmem:[%s279 + $0x1dd8] sm:$0xff]
        %v1865 = vld [vmem:[%s279 + $0x1de0] sm:$0xff]
        %v1866 = vld [vmem:[%s279 + $0x1de8] sm:$0xff]
        %v1867 = vld [vmem:[%s279 + $0x1df0] sm:$0xff]
        %v1868 = vld [vmem:[%s279 + $0x1df8] sm:$0xff]
        %v1869 = vld [vmem:[%s279 + $0x1e00] sm:$0xff]
        %v1870 = vld [vmem:[%s279 + $0x1e08] sm:$0xff]
        %v1871 = vld [vmem:[%s279 + $0x1e10] sm:$0xff]
        %v1872 = vld [vmem:[%s279 + $0x1e18] sm:$0xff]
        %v1873 = vld [vmem:[%s279 + $0x1e20] sm:$0xff]
        %v1874 = vld [vmem:[%s279 + $0x1e28] sm:$0xff]
        %v1875 = vld [vmem:[%s279 + $0x1e30] sm:$0xff]
        %v1876 = vld [vmem:[%s279 + $0x1e38] sm:$0xff]
        %v1877 = vld [vmem:[%s279 + $0x1e40] sm:$0xff]
        %v1878 = vld [vmem:[%s279 + $0x1e48] sm:$0xff]
        %v1879 = vld [vmem:[%s279 + $0x1e50] sm:$0xff]
        %v1880 = vld [vmem:[%s279 + $0x1e58] sm:$0xff]
        %v1881 = vld [vmem:[%s279 + $0x1e60] sm:$0xff]
        %v1882 = vld [vmem:[%s279 + $0x1e68] sm:$0xff]
        %v1883 = vld [vmem:[%s279 + $0x1e70] sm:$0xff]
        %v1884 = vld [vmem:[%s279 + $0x1e78] sm:$0xff]
        %v1885 = vld [vmem:[%s279 + $0x1e80] sm:$0xff]
        %v1886 = vld [vmem:[%s279 + $0x1e88] sm:$0xff]
        %v1887 = vld [vmem:[%s279 + $0x1e90] sm:$0xff]
        %v1888 = vld [vmem:[%s279 + $0x1e98] sm:$0xff]
        %v1889 = vld [vmem:[%s279 + $0x1ea0] sm:$0xff]
        %v1890 = vld [vmem:[%s279 + $0x1ea8] sm:$0xff]
        %v1891 = vld [vmem:[%s279 + $0x1eb0] sm:$0xff]
        %v1892 = vld [vmem:[%s279 + $0x1eb8] sm:$0xff]
        %v1893 = vld [vmem:[%s279 + $0x1ec0] sm:$0xff]
        %v1894 = vld [vmem:[%s279 + $0x1ec8] sm:$0xff]
        %v1895 = vld [vmem:[%s279 + $0x1ed0] sm:$0xff]
        %v1896 = vld [vmem:[%s279 + $0x1ed8] sm:$0xff]
        %v1897 = vld [vmem:[%s279 + $0x1ee0] sm:$0xff]
        %v1898 = vld [vmem:[%s279 + $0x1ee8] sm:$0xff]
        %v1899 = vld [vmem:[%s279 + $0x1ef0] sm:$0xff]
        %v1900 = vld [vmem:[%s279 + $0x1ef8] sm:$0xff]
        %v1901 = vld [vmem:[%s279 + $0x1f00] sm:$0xff]
        %v1902 = vld [vmem:[%s279 + $0x1f08] sm:$0xff]
        %v1903 = vld [vmem:[%s279 + $0x1f10] sm:$0xff]
        %v1904 = vld [vmem:[%s279 + $0x1f18] sm:$0xff]
        %v1905 = vld [vmem:[%s279 + $0x1f20] sm:$0xff]
        %v1906 = vld [vmem:[%s279 + $0x1f28] sm:$0xff]
        %v1907 = vld [vmem:[%s279 + $0x1f30] sm:$0xff]
        %v1908 = vld [vmem:[%s279 + $0x1f38] sm:$0xff]
        %v1909 = vld [vmem:[%s279 + $0x1f40] sm:$0xff]
        %v1910 = vld [vmem:[%s279 + $0x1f48] sm:$0xff]
        %v1911 = vld [vmem:[%s279 + $0x1f50] sm:$0xff]
        %v1912 = vld [vmem:[%s279 + $0x1f58] sm:$0xff]
        %v1913 = vld [vmem:[%s279 + $0x1f60] sm:$0xff]
        %v1914 = vld [vmem:[%s279 + $0x1f68] sm:$0xff]
        %v1915 = vld [vmem:[%s279 + $0x1f70] sm:$0xff]
        %v1916 = vld [vmem:[%s279 + $0x1f78] sm:$0xff]
        %v1917 = vld [vmem:[%s279 + $0x1f80] sm:$0xff]
        %v1918 = vld [vmem:[%s279 + $0x1f88] sm:$0xff]
        %v1919 = vld [vmem:[%s279 + $0x1f90] sm:$0xff]
        %v1920 = vld [vmem:[%s279 + $0x1f98] sm:$0xff]
        %v1921 = vld [vmem:[%s279 + $0x1fa0] sm:$0xff]
        %v1922 = vld [vmem:[%s279 + $0x1fa8] sm:$0xff]
        %v1923 = vld [vmem:[%s279 + $0x1fb0] sm:$0xff]
        %v1924 = vld [vmem:[%s279 + $0x1fb8] sm:$0xff]
        %v1925 = vld [vmem:[%s279 + $0x1fc0] sm:$0xff]
        %v1926 = vld [vmem:[%s279 + $0x1fc8] sm:$0xff]
        %v1927 = vld [vmem:[%s279 + $0x1fd0] sm:$0xff]
        %v1928 = vld [vmem:[%s279 + $0x1fd8] sm:$0xff]
        %v1929 = vld [vmem:[%s279 + $0x1fe0] sm:$0xff]
        %v1930 = vld [vmem:[%s279 + $0x1fe8] sm:$0xff]
        %v1931 = vld [vmem:[%s279 + $0x1ff0] sm:$0xff]
        %v1932 = vld [vmem:[%s279 + $0x1ff8] sm:$0xff]
        %v1933 = vld [vmem:[%s288] sm:$0xff]
        %v1934 = vld [vmem:[%s288 + $0x8] sm:$0xff]
        %v1935 = vld [vmem:[%s288 + $0x10] sm:$0xff]
        %v1936 = vld [vmem:[%s288 + $0x18] sm:$0xff]
        %v1941 = vlaneseq
        %v1942 = vshrl.u32 %v1941, 7
        %v1943 = vsub.s32 0, %v1942
        %v1944 = vrot.slane %v1933, %v1943
        %v1945 = vlaneseq
        %v1946 = vshrl.u32 %v1945, 7
        %v1947 = vsub.s32 1, %v1946
        %v1948 = vrot.slane %v1933, %v1947
        %v1949 = vlaneseq
        %v1950 = vshrl.u32 %v1949, 7
        %v1951 = vsub.s32 2, %v1950
        %v1952 = vrot.slane %v1933, %v1951
        %v1953 = vlaneseq
        %v1954 = vshrl.u32 %v1953, 7
        %v1955 = vsub.s32 3, %v1954
        %v1956 = vrot.slane %v1933, %v1955
        %v1957 = vlaneseq
        %v1958 = vshrl.u32 %v1957, 7
        %v1959 = vsub.s32 4, %v1958
        %v1960 = vrot.slane %v1933, %v1959
        %v1961 = vlaneseq
        %v1962 = vshrl.u32 %v1961, 7
        %v1963 = vsub.s32 5, %v1962
        %v1964 = vrot.slane %v1933, %v1963
        %v1965 = vlaneseq
        %v1966 = vshrl.u32 %v1965, 7
        %v1967 = vsub.s32 6, %v1966
        %v1968 = vrot.slane %v1933, %v1967
        %v1969 = vlaneseq
        %v1970 = vshrl.u32 %v1969, 7
        %v1971 = vsub.s32 7, %v1970
        %v1972 = vrot.slane %v1933, %v1971
        %v1973 = vlaneseq
        %v1974 = vshrl.u32 %v1973, 7
        %v1975 = vsub.s32 0, %v1974
        %v1976 = vrot.slane %v1934, %v1975
        %v1977 = vlaneseq
        %v1978 = vshrl.u32 %v1977, 7
        %v1979 = vsub.s32 1, %v1978
        %v1980 = vrot.slane %v1934, %v1979
        %v1981 = vlaneseq
        %v1982 = vshrl.u32 %v1981, 7
        %v1983 = vsub.s32 2, %v1982
        %v1984 = vrot.slane %v1934, %v1983
        %v1985 = vlaneseq
        %v1986 = vshrl.u32 %v1985, 7
        %v1987 = vsub.s32 3, %v1986
        %v1988 = vrot.slane %v1934, %v1987
        %v1989 = vlaneseq
        %v1990 = vshrl.u32 %v1989, 7
        %v1991 = vsub.s32 4, %v1990
        %v1992 = vrot.slane %v1934, %v1991
        %v1993 = vlaneseq
        %v1994 = vshrl.u32 %v1993, 7
        %v1995 = vsub.s32 5, %v1994
        %v1996 = vrot.slane %v1934, %v1995
        %v1997 = vlaneseq
        %v1998 = vshrl.u32 %v1997, 7
        %v1999 = vsub.s32 6, %v1998
        %v2000 = vrot.slane %v1934, %v1999
        %v2001 = vlaneseq
        %v2002 = vshrl.u32 %v2001, 7
        %v2003 = vsub.s32 7, %v2002
        %v2004 = vrot.slane %v1934, %v2003
        %v2005 = vlaneseq
        %v2006 = vshrl.u32 %v2005, 7
        %v2007 = vsub.s32 0, %v2006
        %v2008 = vrot.slane %v1935, %v2007
        %v2009 = vlaneseq
        %v2010 = vshrl.u32 %v2009, 7
        %v2011 = vsub.s32 1, %v2010
        %v2012 = vrot.slane %v1935, %v2011
        %v2013 = vlaneseq
        %v2014 = vshrl.u32 %v2013, 7
        %v2015 = vsub.s32 2, %v2014
        %v2016 = vrot.slane %v1935, %v2015
        %v2017 = vlaneseq
        %v2018 = vshrl.u32 %v2017, 7
        %v2019 = vsub.s32 3, %v2018
        %v2020 = vrot.slane %v1935, %v2019
        %v2021 = vlaneseq
        %v2022 = vshrl.u32 %v2021, 7
        %v2023 = vsub.s32 4, %v2022
        %v2024 = vrot.slane %v1935, %v2023
        %v2025 = vlaneseq
        %v2026 = vshrl.u32 %v2025, 7
        %v2027 = vsub.s32 5, %v2026
        %v2028 = vrot.slane %v1935, %v2027
        %v2029 = vlaneseq
        %v2030 = vshrl.u32 %v2029, 7
        %v2031 = vsub.s32 6, %v2030
        %v2032 = vrot.slane %v1935, %v2031
        %v2033 = vlaneseq
        %v2034 = vshrl.u32 %v2033, 7
        %v2035 = vsub.s32 7, %v2034
        %v2036 = vrot.slane %v1935, %v2035
        %v2037 = vlaneseq
        %v2038 = vshrl.u32 %v2037, 7
        %v2039 = vsub.s32 0, %v2038
        %v2040 = vrot.slane %v1936, %v2039
        %v2041 = vlaneseq
        %v2042 = vshrl.u32 %v2041, 7
        %v2043 = vsub.s32 1, %v2042
        %v2044 = vrot.slane %v1936, %v2043
        %v2045 = vlaneseq
        %v2046 = vshrl.u32 %v2045, 7
        %v2047 = vsub.s32 2, %v2046
        %v2048 = vrot.slane %v1936, %v2047
        %v2049 = vlaneseq
        %v2050 = vshrl.u32 %v2049, 7
        %v2051 = vsub.s32 3, %v2050
        %v2052 = vrot.slane %v1936, %v2051
        %v2053 = vlaneseq
        %v2054 = vshrl.u32 %v2053, 7
        %v2055 = vsub.s32 4, %v2054
        %v2056 = vrot.slane %v1936, %v2055
        %v2057 = vlaneseq
        %v2058 = vshrl.u32 %v2057, 7
        %v2059 = vsub.s32 5, %v2058
        %v2060 = vrot.slane %v1936, %v2059
        %v2061 = vlaneseq
        %v2062 = vshrl.u32 %v2061, 7
        %v2063 = vsub.s32 6, %v2062
        %v2064 = vrot.slane %v1936, %v2063
        %v2065 = vlaneseq
        %v2066 = vshrl.u32 %v2065, 7
        %v2067 = vsub.s32 7, %v2066
        %v2068 = vrot.slane %v1936, %v2067
        %v3125 = vunpack.c.l.b16 %v909
        %v3126 = vunpack.c.h.b16 %v909
        %v3127 = vunpack.c.l.b16 %v910
        %v3128 = vunpack.c.h.b16 %v910
        %v3129 = vunpack.c.l.b16 %v911
        %v3130 = vunpack.c.h.b16 %v911
        %v3131 = vunpack.c.l.b16 %v912
        %v3132 = vunpack.c.h.b16 %v912
        %v3133 = vunpack.c.l.b16 %v913
        %v3134 = vunpack.c.h.b16 %v913
        %v3135 = vunpack.c.l.b16 %v914
        %v3136 = vunpack.c.h.b16 %v914
        %v3137 = vunpack.c.l.b16 %v915
        %v3138 = vunpack.c.h.b16 %v915
        %v3139 = vunpack.c.l.b16 %v916
        %v3140 = vunpack.c.h.b16 %v916
        %v3141 = vunpack.c.l.b16 %v917
        %v3142 = vunpack.c.h.b16 %v917
        %v3143 = vunpack.c.l.b16 %v918
        %v3144 = vunpack.c.h.b16 %v918
        %v3145 = vunpack.c.l.b16 %v919
        %v3146 = vunpack.c.h.b16 %v919
        %v3147 = vunpack.c.l.b16 %v920
        %v3148 = vunpack.c.h.b16 %v920
        %v3149 = vunpack.c.l.b16 %v921
        %v3150 = vunpack.c.h.b16 %v921
        %v3151 = vunpack.c.l.b16 %v922
        %v3152 = vunpack.c.h.b16 %v922
        %v3153 = vunpack.c.l.b16 %v923
        %v3154 = vunpack.c.h.b16 %v923
        %v3155 = vunpack.c.l.b16 %v924
        %v3156 = vunpack.c.h.b16 %v924
        %v3157 = vunpack.c.l.b16 %v925
        %v3158 = vunpack.c.h.b16 %v925
        %v3159 = vunpack.c.l.b16 %v926
        %v3160 = vunpack.c.h.b16 %v926
        %v3161 = vunpack.c.l.b16 %v927
        %v3162 = vunpack.c.h.b16 %v927
        %v3163 = vunpack.c.l.b16 %v928
        %v3164 = vunpack.c.h.b16 %v928
        %v3165 = vunpack.c.l.b16 %v929
        %v3166 = vunpack.c.h.b16 %v929
        %v3167 = vunpack.c.l.b16 %v930
        %v3168 = vunpack.c.h.b16 %v930
        %v3169 = vunpack.c.l.b16 %v931
        %v3170 = vunpack.c.h.b16 %v931
        %v3171 = vunpack.c.l.b16 %v932
        %v3172 = vunpack.c.h.b16 %v932
        %v3173 = vunpack.c.l.b16 %v933
        %v3174 = vunpack.c.h.b16 %v933
        %v3175 = vunpack.c.l.b16 %v934
        %v3176 = vunpack.c.h.b16 %v934
        %v3177 = vunpack.c.l.b16 %v935
        %v3178 = vunpack.c.h.b16 %v935
        %v3179 = vunpack.c.l.b16 %v936
        %v3180 = vunpack.c.h.b16 %v936
        %v3181 = vunpack.c.l.b16 %v937
        %v3182 = vunpack.c.h.b16 %v937
        %v3183 = vunpack.c.l.b16 %v938
        %v3184 = vunpack.c.h.b16 %v938
        %v3185 = vunpack.c.l.b16 %v939
        %v3186 = vunpack.c.h.b16 %v939
        %v3187 = vunpack.c.l.b16 %v940
        %v3188 = vunpack.c.h.b16 %v940
        %v3189 = vunpack.c.l.b16 %v941
        %v3190 = vunpack.c.h.b16 %v941
        %v3191 = vunpack.c.l.b16 %v942
        %v3192 = vunpack.c.h.b16 %v942
        %v3193 = vunpack.c.l.b16 %v943
        %v3194 = vunpack.c.h.b16 %v943
        %v3195 = vunpack.c.l.b16 %v944
        %v3196 = vunpack.c.h.b16 %v944
        %v3197 = vunpack.c.l.b16 %v945
        %v3198 = vunpack.c.h.b16 %v945
        %v3199 = vunpack.c.l.b16 %v946
        %v3200 = vunpack.c.h.b16 %v946
        %v3201 = vunpack.c.l.b16 %v947
        %v3202 = vunpack.c.h.b16 %v947
        %v3203 = vunpack.c.l.b16 %v948
        %v3204 = vunpack.c.h.b16 %v948
        %v3205 = vunpack.c.l.b16 %v949
        %v3206 = vunpack.c.h.b16 %v949
        %v3207 = vunpack.c.l.b16 %v950
        %v3208 = vunpack.c.h.b16 %v950
        %v3209 = vunpack.c.l.b16 %v951
        %v3210 = vunpack.c.h.b16 %v951
        %v3211 = vunpack.c.l.b16 %v952
        %v3212 = vunpack.c.h.b16 %v952
        %v3213 = vunpack.c.l.b16 %v953
        %v3214 = vunpack.c.h.b16 %v953
        %v3215 = vunpack.c.l.b16 %v954
        %v3216 = vunpack.c.h.b16 %v954
        %v3217 = vunpack.c.l.b16 %v955
        %v3218 = vunpack.c.h.b16 %v955
        %v3219 = vunpack.c.l.b16 %v956
        %v3220 = vunpack.c.h.b16 %v956
        %v3221 = vunpack.c.l.b16 %v957
        %v3222 = vunpack.c.h.b16 %v957
        %v3223 = vunpack.c.l.b16 %v958
        %v3224 = vunpack.c.h.b16 %v958
        %v3225 = vunpack.c.l.b16 %v959
        %v3226 = vunpack.c.h.b16 %v959
        %v3227 = vunpack.c.l.b16 %v960
        %v3228 = vunpack.c.h.b16 %v960
        %v3229 = vunpack.c.l.b16 %v961
        %v3230 = vunpack.c.h.b16 %v961
        %v3231 = vunpack.c.l.b16 %v962
        %v3232 = vunpack.c.h.b16 %v962
        %v3233 = vunpack.c.l.b16 %v963
        %v3234 = vunpack.c.h.b16 %v963
        %v3235 = vunpack.c.l.b16 %v964
        %v3236 = vunpack.c.h.b16 %v964
        %v3237 = vunpack.c.l.b16 %v965
        %v3238 = vunpack.c.h.b16 %v965
        %v3239 = vunpack.c.l.b16 %v966
        %v3240 = vunpack.c.h.b16 %v966
        %v3241 = vunpack.c.l.b16 %v967
        %v3242 = vunpack.c.h.b16 %v967
        %v3243 = vunpack.c.l.b16 %v968
        %v3244 = vunpack.c.h.b16 %v968
        %v3245 = vunpack.c.l.b16 %v969
        %v3246 = vunpack.c.h.b16 %v969
        %v3247 = vunpack.c.l.b16 %v970
        %v3248 = vunpack.c.h.b16 %v970
        %v3249 = vunpack.c.l.b16 %v971
        %v3250 = vunpack.c.h.b16 %v971
        %v3251 = vunpack.c.l.b16 %v972
        %v3252 = vunpack.c.h.b16 %v972
        %v3253 = vunpack.c.l.b16 %v973
        %v3254 = vunpack.c.h.b16 %v973
        %v3255 = vunpack.c.l.b16 %v974
        %v3256 = vunpack.c.h.b16 %v974
        %v3257 = vunpack.c.l.b16 %v975
        %v3258 = vunpack.c.h.b16 %v975
        %v3259 = vunpack.c.l.b16 %v976
        %v3260 = vunpack.c.h.b16 %v976
        %v3261 = vunpack.c.l.b16 %v977
        %v3262 = vunpack.c.h.b16 %v977
        %v3263 = vunpack.c.l.b16 %v978
        %v3264 = vunpack.c.h.b16 %v978
        %v3265 = vunpack.c.l.b16 %v979
        %v3266 = vunpack.c.h.b16 %v979
        %v3267 = vunpack.c.l.b16 %v980
        %v3268 = vunpack.c.h.b16 %v980
        %v3269 = vunpack.c.l.b16 %v981
        %v3270 = vunpack.c.h.b16 %v981
        %v3271 = vunpack.c.l.b16 %v982
        %v3272 = vunpack.c.h.b16 %v982
        %v3273 = vunpack.c.l.b16 %v983
        %v3274 = vunpack.c.h.b16 %v983
        %v3275 = vunpack.c.l.b16 %v984
        %v3276 = vunpack.c.h.b16 %v984
        %v3277 = vunpack.c.l.b16 %v985
        %v3278 = vunpack.c.h.b16 %v985
        %v3279 = vunpack.c.l.b16 %v986
        %v3280 = vunpack.c.h.b16 %v986
        %v3281 = vunpack.c.l.b16 %v987
        %v3282 = vunpack.c.h.b16 %v987
        %v3283 = vunpack.c.l.b16 %v988
        %v3284 = vunpack.c.h.b16 %v988
        %v3285 = vunpack.c.l.b16 %v989
        %v3286 = vunpack.c.h.b16 %v989
        %v3287 = vunpack.c.l.b16 %v990
        %v3288 = vunpack.c.h.b16 %v990
        %v3289 = vunpack.c.l.b16 %v991
        %v3290 = vunpack.c.h.b16 %v991
        %v3291 = vunpack.c.l.b16 %v992
        %v3292 = vunpack.c.h.b16 %v992
        %v3293 = vunpack.c.l.b16 %v993
        %v3294 = vunpack.c.h.b16 %v993
        %v3295 = vunpack.c.l.b16 %v994
        %v3296 = vunpack.c.h.b16 %v994
        %v3297 = vunpack.c.l.b16 %v995
        %v3298 = vunpack.c.h.b16 %v995
        %v3299 = vunpack.c.l.b16 %v996
        %v3300 = vunpack.c.h.b16 %v996
        %v3301 = vunpack.c.l.b16 %v997
        %v3302 = vunpack.c.h.b16 %v997
        %v3303 = vunpack.c.l.b16 %v998
        %v3304 = vunpack.c.h.b16 %v998
        %v3305 = vunpack.c.l.b16 %v999
        %v3306 = vunpack.c.h.b16 %v999
        %v3307 = vunpack.c.l.b16 %v1000
        %v3308 = vunpack.c.h.b16 %v1000
        %v3309 = vunpack.c.l.b16 %v1001
        %v3310 = vunpack.c.h.b16 %v1001
        %v3311 = vunpack.c.l.b16 %v1002
        %v3312 = vunpack.c.h.b16 %v1002
        %v3313 = vunpack.c.l.b16 %v1003
        %v3314 = vunpack.c.h.b16 %v1003
        %v3315 = vunpack.c.l.b16 %v1004
        %v3316 = vunpack.c.h.b16 %v1004
        %v3317 = vunpack.c.l.b16 %v1005
        %v3318 = vunpack.c.h.b16 %v1005
        %v3319 = vunpack.c.l.b16 %v1006
        %v3320 = vunpack.c.h.b16 %v1006
        %v3321 = vunpack.c.l.b16 %v1007
        %v3322 = vunpack.c.h.b16 %v1007
        %v3323 = vunpack.c.l.b16 %v1008
        %v3324 = vunpack.c.h.b16 %v1008
        %v3325 = vunpack.c.l.b16 %v1009
        %v3326 = vunpack.c.h.b16 %v1009
        %v3327 = vunpack.c.l.b16 %v1010
        %v3328 = vunpack.c.h.b16 %v1010
        %v3329 = vunpack.c.l.b16 %v1011
        %v3330 = vunpack.c.h.b16 %v1011
        %v3331 = vunpack.c.l.b16 %v1012
        %v3332 = vunpack.c.h.b16 %v1012
        %v3333 = vunpack.c.l.b16 %v1013
        %v3334 = vunpack.c.h.b16 %v1013
        %v3335 = vunpack.c.l.b16 %v1014
        %v3336 = vunpack.c.h.b16 %v1014
        %v3337 = vunpack.c.l.b16 %v1015
        %v3338 = vunpack.c.h.b16 %v1015
        %v3339 = vunpack.c.l.b16 %v1016
        %v3340 = vunpack.c.h.b16 %v1016
        %v3341 = vunpack.c.l.b16 %v1017
        %v3342 = vunpack.c.h.b16 %v1017
        %v3343 = vunpack.c.l.b16 %v1018
        %v3344 = vunpack.c.h.b16 %v1018
        %v3345 = vunpack.c.l.b16 %v1019
        %v3346 = vunpack.c.h.b16 %v1019
        %v3347 = vunpack.c.l.b16 %v1020
        %v3348 = vunpack.c.h.b16 %v1020
        %v3349 = vunpack.c.l.b16 %v1021
        %v3350 = vunpack.c.h.b16 %v1021
        %v3351 = vunpack.c.l.b16 %v1022
        %v3352 = vunpack.c.h.b16 %v1022
        %v3353 = vunpack.c.l.b16 %v1023
        %v3354 = vunpack.c.h.b16 %v1023
        %v3355 = vunpack.c.l.b16 %v1024
        %v3356 = vunpack.c.h.b16 %v1024
        %v3357 = vunpack.c.l.b16 %v1025
        %v3358 = vunpack.c.h.b16 %v1025
        %v3359 = vunpack.c.l.b16 %v1026
        %v3360 = vunpack.c.h.b16 %v1026
        %v3361 = vunpack.c.l.b16 %v1027
        %v3362 = vunpack.c.h.b16 %v1027
        %v3363 = vunpack.c.l.b16 %v1028
        %v3364 = vunpack.c.h.b16 %v1028
        %v3365 = vunpack.c.l.b16 %v1029
        %v3366 = vunpack.c.h.b16 %v1029
        %v3367 = vunpack.c.l.b16 %v1030
        %v3368 = vunpack.c.h.b16 %v1030
        %v3369 = vunpack.c.l.b16 %v1031
        %v3370 = vunpack.c.h.b16 %v1031
        %v3371 = vunpack.c.l.b16 %v1032
        %v3372 = vunpack.c.h.b16 %v1032
        %v3373 = vunpack.c.l.b16 %v1033
        %v3374 = vunpack.c.h.b16 %v1033
        %v3375 = vunpack.c.l.b16 %v1034
        %v3376 = vunpack.c.h.b16 %v1034
        %v3377 = vunpack.c.l.b16 %v1035
        %v3378 = vunpack.c.h.b16 %v1035
        %v3379 = vunpack.c.l.b16 %v1036
        %v3380 = vunpack.c.h.b16 %v1036
        %v3381 = vunpack.c.l.b16 %v1037
        %v3382 = vunpack.c.h.b16 %v1037
        %v3383 = vunpack.c.l.b16 %v1038
        %v3384 = vunpack.c.h.b16 %v1038
        %v3385 = vunpack.c.l.b16 %v1039
        %v3386 = vunpack.c.h.b16 %v1039
        %v3387 = vunpack.c.l.b16 %v1040
        %v3388 = vunpack.c.h.b16 %v1040
        %v3389 = vunpack.c.l.b16 %v1041
        %v3390 = vunpack.c.h.b16 %v1041
        %v3391 = vunpack.c.l.b16 %v1042
        %v3392 = vunpack.c.h.b16 %v1042
        %v3393 = vunpack.c.l.b16 %v1043
        %v3394 = vunpack.c.h.b16 %v1043
        %v3395 = vunpack.c.l.b16 %v1044
        %v3396 = vunpack.c.h.b16 %v1044
        %v3397 = vunpack.c.l.b16 %v1045
        %v3398 = vunpack.c.h.b16 %v1045
        %v3399 = vunpack.c.l.b16 %v1046
        %v3400 = vunpack.c.h.b16 %v1046
        %v3401 = vunpack.c.l.b16 %v1047
        %v3402 = vunpack.c.h.b16 %v1047
        %v3403 = vunpack.c.l.b16 %v1048
        %v3404 = vunpack.c.h.b16 %v1048
        %v3405 = vunpack.c.l.b16 %v1049
        %v3406 = vunpack.c.h.b16 %v1049
        %v3407 = vunpack.c.l.b16 %v1050
        %v3408 = vunpack.c.h.b16 %v1050
        %v3409 = vunpack.c.l.b16 %v1051
        %v3410 = vunpack.c.h.b16 %v1051
        %v3411 = vunpack.c.l.b16 %v1052
        %v3412 = vunpack.c.h.b16 %v1052
        %v3413 = vunpack.c.l.b16 %v1053
        %v3414 = vunpack.c.h.b16 %v1053
        %v3415 = vunpack.c.l.b16 %v1054
        %v3416 = vunpack.c.h.b16 %v1054
        %v3417 = vunpack.c.l.b16 %v1055
        %v3418 = vunpack.c.h.b16 %v1055
        %v3419 = vunpack.c.l.b16 %v1056
        %v3420 = vunpack.c.h.b16 %v1056
        %v3421 = vunpack.c.l.b16 %v1057
        %v3422 = vunpack.c.h.b16 %v1057
        %v3423 = vunpack.c.l.b16 %v1058
        %v3424 = vunpack.c.h.b16 %v1058
        %v3425 = vunpack.c.l.b16 %v1059
        %v3426 = vunpack.c.h.b16 %v1059
        %v3427 = vunpack.c.l.b16 %v1060
        %v3428 = vunpack.c.h.b16 %v1060
        %v3429 = vunpack.c.l.b16 %v1061
        %v3430 = vunpack.c.h.b16 %v1061
        %v3431 = vunpack.c.l.b16 %v1062
        %v3432 = vunpack.c.h.b16 %v1062
        %v3433 = vunpack.c.l.b16 %v1063
        %v3434 = vunpack.c.h.b16 %v1063
        %v3435 = vunpack.c.l.b16 %v1064
        %v3436 = vunpack.c.h.b16 %v1064
        %v3437 = vunpack.c.l.b16 %v1065
        %v3438 = vunpack.c.h.b16 %v1065
        %v3439 = vunpack.c.l.b16 %v1066
        %v3440 = vunpack.c.h.b16 %v1066
        %v3441 = vunpack.c.l.b16 %v1067
        %v3442 = vunpack.c.h.b16 %v1067
        %v3443 = vunpack.c.l.b16 %v1068
        %v3444 = vunpack.c.h.b16 %v1068
        %v3445 = vunpack.c.l.b16 %v1069
        %v3446 = vunpack.c.h.b16 %v1069
        %v3447 = vunpack.c.l.b16 %v1070
        %v3448 = vunpack.c.h.b16 %v1070
        %v3449 = vunpack.c.l.b16 %v1071
        %v3450 = vunpack.c.h.b16 %v1071
        %v3451 = vunpack.c.l.b16 %v1072
        %v3452 = vunpack.c.h.b16 %v1072
        %v3453 = vunpack.c.l.b16 %v1073
        %v3454 = vunpack.c.h.b16 %v1073
        %v3455 = vunpack.c.l.b16 %v1074
        %v3456 = vunpack.c.h.b16 %v1074
        %v3457 = vunpack.c.l.b16 %v1075
        %v3458 = vunpack.c.h.b16 %v1075
        %v3459 = vunpack.c.l.b16 %v1076
        %v3460 = vunpack.c.h.b16 %v1076
        %v3461 = vunpack.c.l.b16 %v1077
        %v3462 = vunpack.c.h.b16 %v1077
        %v3463 = vunpack.c.l.b16 %v1078
        %v3464 = vunpack.c.h.b16 %v1078
        %v3465 = vunpack.c.l.b16 %v1079
        %v3466 = vunpack.c.h.b16 %v1079
        %v3467 = vunpack.c.l.b16 %v1080
        %v3468 = vunpack.c.h.b16 %v1080
        %v3469 = vunpack.c.l.b16 %v1081
        %v3470 = vunpack.c.h.b16 %v1081
        %v3471 = vunpack.c.l.b16 %v1082
        %v3472 = vunpack.c.h.b16 %v1082
        %v3473 = vunpack.c.l.b16 %v1083
        %v3474 = vunpack.c.h.b16 %v1083
        %v3475 = vunpack.c.l.b16 %v1084
        %v3476 = vunpack.c.h.b16 %v1084
        %v3477 = vunpack.c.l.b16 %v1085
        %v3478 = vunpack.c.h.b16 %v1085
        %v3479 = vunpack.c.l.b16 %v1086
        %v3480 = vunpack.c.h.b16 %v1086
        %v3481 = vunpack.c.l.b16 %v1087
        %v3482 = vunpack.c.h.b16 %v1087
        %v3483 = vunpack.c.l.b16 %v1088
        %v3484 = vunpack.c.h.b16 %v1088
        %v3485 = vunpack.c.l.b16 %v1089
        %v3486 = vunpack.c.h.b16 %v1089
        %v3487 = vunpack.c.l.b16 %v1090
        %v3488 = vunpack.c.h.b16 %v1090
        %v3489 = vunpack.c.l.b16 %v1091
        %v3490 = vunpack.c.h.b16 %v1091
        %v3491 = vunpack.c.l.b16 %v1092
        %v3492 = vunpack.c.h.b16 %v1092
        %v3493 = vunpack.c.l.b16 %v1093
        %v3494 = vunpack.c.h.b16 %v1093
        %v3495 = vunpack.c.l.b16 %v1094
        %v3496 = vunpack.c.h.b16 %v1094
        %v3497 = vunpack.c.l.b16 %v1095
        %v3498 = vunpack.c.h.b16 %v1095
        %v3499 = vunpack.c.l.b16 %v1096
        %v3500 = vunpack.c.h.b16 %v1096
        %v3501 = vunpack.c.l.b16 %v1097
        %v3502 = vunpack.c.h.b16 %v1097
        %v3503 = vunpack.c.l.b16 %v1098
        %v3504 = vunpack.c.h.b16 %v1098
        %v3505 = vunpack.c.l.b16 %v1099
        %v3506 = vunpack.c.h.b16 %v1099
        %v3507 = vunpack.c.l.b16 %v1100
        %v3508 = vunpack.c.h.b16 %v1100
        %v3509 = vunpack.c.l.b16 %v1101
        %v3510 = vunpack.c.h.b16 %v1101
        %v3511 = vunpack.c.l.b16 %v1102
        %v3512 = vunpack.c.h.b16 %v1102
        %v3513 = vunpack.c.l.b16 %v1103
        %v3514 = vunpack.c.h.b16 %v1103
        %v3515 = vunpack.c.l.b16 %v1104
        %v3516 = vunpack.c.h.b16 %v1104
        %v3517 = vunpack.c.l.b16 %v1105
        %v3518 = vunpack.c.h.b16 %v1105
        %v3519 = vunpack.c.l.b16 %v1106
        %v3520 = vunpack.c.h.b16 %v1106
        %v3521 = vunpack.c.l.b16 %v1107
        %v3522 = vunpack.c.h.b16 %v1107
        %v3523 = vunpack.c.l.b16 %v1108
        %v3524 = vunpack.c.h.b16 %v1108
        %v3525 = vunpack.c.l.b16 %v1109
        %v3526 = vunpack.c.h.b16 %v1109
        %v3527 = vunpack.c.l.b16 %v1110
        %v3528 = vunpack.c.h.b16 %v1110
        %v3529 = vunpack.c.l.b16 %v1111
        %v3530 = vunpack.c.h.b16 %v1111
        %v3531 = vunpack.c.l.b16 %v1112
        %v3532 = vunpack.c.h.b16 %v1112
        %v3533 = vunpack.c.l.b16 %v1113
        %v3534 = vunpack.c.h.b16 %v1113
        %v3535 = vunpack.c.l.b16 %v1114
        %v3536 = vunpack.c.h.b16 %v1114
        %v3537 = vunpack.c.l.b16 %v1115
        %v3538 = vunpack.c.h.b16 %v1115
        %v3539 = vunpack.c.l.b16 %v1116
        %v3540 = vunpack.c.h.b16 %v1116
        %v3541 = vunpack.c.l.b16 %v1117
        %v3542 = vunpack.c.h.b16 %v1117
        %v3543 = vunpack.c.l.b16 %v1118
        %v3544 = vunpack.c.h.b16 %v1118
        %v3545 = vunpack.c.l.b16 %v1119
        %v3546 = vunpack.c.h.b16 %v1119
        %v3547 = vunpack.c.l.b16 %v1120
        %v3548 = vunpack.c.h.b16 %v1120
        %v3549 = vunpack.c.l.b16 %v1121
        %v3550 = vunpack.c.h.b16 %v1121
        %v3551 = vunpack.c.l.b16 %v1122
        %v3552 = vunpack.c.h.b16 %v1122
        %v3553 = vunpack.c.l.b16 %v1123
        %v3554 = vunpack.c.h.b16 %v1123
        %v3555 = vunpack.c.l.b16 %v1124
        %v3556 = vunpack.c.h.b16 %v1124
        %v3557 = vunpack.c.l.b16 %v1125
        %v3558 = vunpack.c.h.b16 %v1125
        %v3559 = vunpack.c.l.b16 %v1126
        %v3560 = vunpack.c.h.b16 %v1126
        %v3561 = vunpack.c.l.b16 %v1127
        %v3562 = vunpack.c.h.b16 %v1127
        %v3563 = vunpack.c.l.b16 %v1128
        %v3564 = vunpack.c.h.b16 %v1128
        %v3565 = vunpack.c.l.b16 %v1129
        %v3566 = vunpack.c.h.b16 %v1129
        %v3567 = vunpack.c.l.b16 %v1130
        %v3568 = vunpack.c.h.b16 %v1130
        %v3569 = vunpack.c.l.b16 %v1131
        %v3570 = vunpack.c.h.b16 %v1131
        %v3571 = vunpack.c.l.b16 %v1132
        %v3572 = vunpack.c.h.b16 %v1132
        %v3573 = vunpack.c.l.b16 %v1133
        %v3574 = vunpack.c.h.b16 %v1133
        %v3575 = vunpack.c.l.b16 %v1134
        %v3576 = vunpack.c.h.b16 %v1134
        %v3577 = vunpack.c.l.b16 %v1135
        %v3578 = vunpack.c.h.b16 %v1135
        %v3579 = vunpack.c.l.b16 %v1136
        %v3580 = vunpack.c.h.b16 %v1136
        %v3581 = vunpack.c.l.b16 %v1137
        %v3582 = vunpack.c.h.b16 %v1137
        %v3583 = vunpack.c.l.b16 %v1138
        %v3584 = vunpack.c.h.b16 %v1138
        %v3585 = vunpack.c.l.b16 %v1139
        %v3586 = vunpack.c.h.b16 %v1139
        %v3587 = vunpack.c.l.b16 %v1140
        %v3588 = vunpack.c.h.b16 %v1140
        %v3589 = vunpack.c.l.b16 %v1141
        %v3590 = vunpack.c.h.b16 %v1141
        %v3591 = vunpack.c.l.b16 %v1142
        %v3592 = vunpack.c.h.b16 %v1142
        %v3593 = vunpack.c.l.b16 %v1143
        %v3594 = vunpack.c.h.b16 %v1143
        %v3595 = vunpack.c.l.b16 %v1144
        %v3596 = vunpack.c.h.b16 %v1144
        %v3597 = vunpack.c.l.b16 %v1145
        %v3598 = vunpack.c.h.b16 %v1145
        %v3599 = vunpack.c.l.b16 %v1146
        %v3600 = vunpack.c.h.b16 %v1146
        %v3601 = vunpack.c.l.b16 %v1147
        %v3602 = vunpack.c.h.b16 %v1147
        %v3603 = vunpack.c.l.b16 %v1148
        %v3604 = vunpack.c.h.b16 %v1148
        %v3605 = vunpack.c.l.b16 %v1149
        %v3606 = vunpack.c.h.b16 %v1149
        %v3607 = vunpack.c.l.b16 %v1150
        %v3608 = vunpack.c.h.b16 %v1150
        %v3609 = vunpack.c.l.b16 %v1151
        %v3610 = vunpack.c.h.b16 %v1151
        %v3611 = vunpack.c.l.b16 %v1152
        %v3612 = vunpack.c.h.b16 %v1152
        %v3613 = vunpack.c.l.b16 %v1153
        %v3614 = vunpack.c.h.b16 %v1153
        %v3615 = vunpack.c.l.b16 %v1154
        %v3616 = vunpack.c.h.b16 %v1154
        %v3617 = vunpack.c.l.b16 %v1155
        %v3618 = vunpack.c.h.b16 %v1155
        %v3619 = vunpack.c.l.b16 %v1156
        %v3620 = vunpack.c.h.b16 %v1156
        %v3621 = vunpack.c.l.b16 %v1157
        %v3622 = vunpack.c.h.b16 %v1157
        %v3623 = vunpack.c.l.b16 %v1158
        %v3624 = vunpack.c.h.b16 %v1158
        %v3625 = vunpack.c.l.b16 %v1159
        %v3626 = vunpack.c.h.b16 %v1159
        %v3627 = vunpack.c.l.b16 %v1160
        %v3628 = vunpack.c.h.b16 %v1160
        %v3629 = vunpack.c.l.b16 %v1161
        %v3630 = vunpack.c.h.b16 %v1161
        %v3631 = vunpack.c.l.b16 %v1162
        %v3632 = vunpack.c.h.b16 %v1162
        %v3633 = vunpack.c.l.b16 %v1163
        %v3634 = vunpack.c.h.b16 %v1163
        %v3635 = vunpack.c.l.b16 %v1164
        %v3636 = vunpack.c.h.b16 %v1164
        %v3637 = vunpack.c.l.b16 %v1165
        %v3638 = vunpack.c.h.b16 %v1165
        %v3639 = vunpack.c.l.b16 %v1166
        %v3640 = vunpack.c.h.b16 %v1166
        %v3641 = vunpack.c.l.b16 %v1167
        %v3642 = vunpack.c.h.b16 %v1167
        %v3643 = vunpack.c.l.b16 %v1168
        %v3644 = vunpack.c.h.b16 %v1168
        %v3645 = vunpack.c.l.b16 %v1169
        %v3646 = vunpack.c.h.b16 %v1169
        %v3647 = vunpack.c.l.b16 %v1170
        %v3648 = vunpack.c.h.b16 %v1170
        %v3649 = vunpack.c.l.b16 %v1171
        %v3650 = vunpack.c.h.b16 %v1171
        %v3651 = vunpack.c.l.b16 %v1172
        %v3652 = vunpack.c.h.b16 %v1172
        %v3653 = vunpack.c.l.b16 %v1173
        %v3654 = vunpack.c.h.b16 %v1173
        %v3655 = vunpack.c.l.b16 %v1174
        %v3656 = vunpack.c.h.b16 %v1174
        %v3657 = vunpack.c.l.b16 %v1175
        %v3658 = vunpack.c.h.b16 %v1175
        %v3659 = vunpack.c.l.b16 %v1176
        %v3660 = vunpack.c.h.b16 %v1176
        %v3661 = vunpack.c.l.b16 %v1177
        %v3662 = vunpack.c.h.b16 %v1177
        %v3663 = vunpack.c.l.b16 %v1178
        %v3664 = vunpack.c.h.b16 %v1178
        %v3665 = vunpack.c.l.b16 %v1179
        %v3666 = vunpack.c.h.b16 %v1179
        %v3667 = vunpack.c.l.b16 %v1180
        %v3668 = vunpack.c.h.b16 %v1180
        %v3669 = vunpack.c.l.b16 %v1181
        %v3670 = vunpack.c.h.b16 %v1181
        %v3671 = vunpack.c.l.b16 %v1182
        %v3672 = vunpack.c.h.b16 %v1182
        %v3673 = vunpack.c.l.b16 %v1183
        %v3674 = vunpack.c.h.b16 %v1183
        %v3675 = vunpack.c.l.b16 %v1184
        %v3676 = vunpack.c.h.b16 %v1184
        %v3677 = vunpack.c.l.b16 %v1185
        %v3678 = vunpack.c.h.b16 %v1185
        %v3679 = vunpack.c.l.b16 %v1186
        %v3680 = vunpack.c.h.b16 %v1186
        %v3681 = vunpack.c.l.b16 %v1187
        %v3682 = vunpack.c.h.b16 %v1187
        %v3683 = vunpack.c.l.b16 %v1188
        %v3684 = vunpack.c.h.b16 %v1188
        %v3685 = vunpack.c.l.b16 %v1189
        %v3686 = vunpack.c.h.b16 %v1189
        %v3687 = vunpack.c.l.b16 %v1190
        %v3688 = vunpack.c.h.b16 %v1190
        %v3689 = vunpack.c.l.b16 %v1191
        %v3690 = vunpack.c.h.b16 %v1191
        %v3691 = vunpack.c.l.b16 %v1192
        %v3692 = vunpack.c.h.b16 %v1192
        %v3693 = vunpack.c.l.b16 %v1193
        %v3694 = vunpack.c.h.b16 %v1193
        %v3695 = vunpack.c.l.b16 %v1194
        %v3696 = vunpack.c.h.b16 %v1194
        %v3697 = vunpack.c.l.b16 %v1195
        %v3698 = vunpack.c.h.b16 %v1195
        %v3699 = vunpack.c.l.b16 %v1196
        %v3700 = vunpack.c.h.b16 %v1196
        %v3701 = vunpack.c.l.b16 %v1197
        %v3702 = vunpack.c.h.b16 %v1197
        %v3703 = vunpack.c.l.b16 %v1198
        %v3704 = vunpack.c.h.b16 %v1198
        %v3705 = vunpack.c.l.b16 %v1199
        %v3706 = vunpack.c.h.b16 %v1199
        %v3707 = vunpack.c.l.b16 %v1200
        %v3708 = vunpack.c.h.b16 %v1200
        %v3709 = vunpack.c.l.b16 %v1201
        %v3710 = vunpack.c.h.b16 %v1201
        %v3711 = vunpack.c.l.b16 %v1202
        %v3712 = vunpack.c.h.b16 %v1202
        %v3713 = vunpack.c.l.b16 %v1203
        %v3714 = vunpack.c.h.b16 %v1203
        %v3715 = vunpack.c.l.b16 %v1204
        %v3716 = vunpack.c.h.b16 %v1204
        %v3717 = vunpack.c.l.b16 %v1205
        %v3718 = vunpack.c.h.b16 %v1205
        %v3719 = vunpack.c.l.b16 %v1206
        %v3720 = vunpack.c.h.b16 %v1206
        %v3721 = vunpack.c.l.b16 %v1207
        %v3722 = vunpack.c.h.b16 %v1207
        %v3723 = vunpack.c.l.b16 %v1208
        %v3724 = vunpack.c.h.b16 %v1208
        %v3725 = vunpack.c.l.b16 %v1209
        %v3726 = vunpack.c.h.b16 %v1209
        %v3727 = vunpack.c.l.b16 %v1210
        %v3728 = vunpack.c.h.b16 %v1210
        %v3729 = vunpack.c.l.b16 %v1211
        %v3730 = vunpack.c.h.b16 %v1211
        %v3731 = vunpack.c.l.b16 %v1212
        %v3732 = vunpack.c.h.b16 %v1212
        %v3733 = vunpack.c.l.b16 %v1213
        %v3734 = vunpack.c.h.b16 %v1213
        %v3735 = vunpack.c.l.b16 %v1214
        %v3736 = vunpack.c.h.b16 %v1214
        %v3737 = vunpack.c.l.b16 %v1215
        %v3738 = vunpack.c.h.b16 %v1215
        %v3739 = vunpack.c.l.b16 %v1216
        %v3740 = vunpack.c.h.b16 %v1216
        %v3741 = vunpack.c.l.b16 %v1217
        %v3742 = vunpack.c.h.b16 %v1217
        %v3743 = vunpack.c.l.b16 %v1218
        %v3744 = vunpack.c.h.b16 %v1218
        %v3745 = vunpack.c.l.b16 %v1219
        %v3746 = vunpack.c.h.b16 %v1219
        %v3747 = vunpack.c.l.b16 %v1220
        %v3748 = vunpack.c.h.b16 %v1220
        %v3749 = vunpack.c.l.b16 %v1221
        %v3750 = vunpack.c.h.b16 %v1221
        %v3751 = vunpack.c.l.b16 %v1222
        %v3752 = vunpack.c.h.b16 %v1222
        %v3753 = vunpack.c.l.b16 %v1223
        %v3754 = vunpack.c.h.b16 %v1223
        %v3755 = vunpack.c.l.b16 %v1224
        %v3756 = vunpack.c.h.b16 %v1224
        %v3757 = vunpack.c.l.b16 %v1225
        %v3758 = vunpack.c.h.b16 %v1225
        %v3759 = vunpack.c.l.b16 %v1226
        %v3760 = vunpack.c.h.b16 %v1226
        %v3761 = vunpack.c.l.b16 %v1227
        %v3762 = vunpack.c.h.b16 %v1227
        %v3763 = vunpack.c.l.b16 %v1228
        %v3764 = vunpack.c.h.b16 %v1228
        %v3765 = vunpack.c.l.b16 %v1229
        %v3766 = vunpack.c.h.b16 %v1229
        %v3767 = vunpack.c.l.b16 %v1230
        %v3768 = vunpack.c.h.b16 %v1230
        %v3769 = vunpack.c.l.b16 %v1231
        %v3770 = vunpack.c.h.b16 %v1231
        %v3771 = vunpack.c.l.b16 %v1232
        %v3772 = vunpack.c.h.b16 %v1232
        %v3773 = vunpack.c.l.b16 %v1233
        %v3774 = vunpack.c.h.b16 %v1233
        %v3775 = vunpack.c.l.b16 %v1234
        %v3776 = vunpack.c.h.b16 %v1234
        %v3777 = vunpack.c.l.b16 %v1235
        %v3778 = vunpack.c.h.b16 %v1235
        %v3779 = vunpack.c.l.b16 %v1236
        %v3780 = vunpack.c.h.b16 %v1236
        %v3781 = vunpack.c.l.b16 %v1237
        %v3782 = vunpack.c.h.b16 %v1237
        %v3783 = vunpack.c.l.b16 %v1238
        %v3784 = vunpack.c.h.b16 %v1238
        %v3785 = vunpack.c.l.b16 %v1239
        %v3786 = vunpack.c.h.b16 %v1239
        %v3787 = vunpack.c.l.b16 %v1240
        %v3788 = vunpack.c.h.b16 %v1240
        %v3789 = vunpack.c.l.b16 %v1241
        %v3790 = vunpack.c.h.b16 %v1241
        %v3791 = vunpack.c.l.b16 %v1242
        %v3792 = vunpack.c.h.b16 %v1242
        %v3793 = vunpack.c.l.b16 %v1243
        %v3794 = vunpack.c.h.b16 %v1243
        %v3795 = vunpack.c.l.b16 %v1244
        %v3796 = vunpack.c.h.b16 %v1244
        %v3797 = vunpack.c.l.b16 %v1245
        %v3798 = vunpack.c.h.b16 %v1245
        %v3799 = vunpack.c.l.b16 %v1246
        %v3800 = vunpack.c.h.b16 %v1246
        %v3801 = vunpack.c.l.b16 %v1247
        %v3802 = vunpack.c.h.b16 %v1247
        %v3803 = vunpack.c.l.b16 %v1248
        %v3804 = vunpack.c.h.b16 %v1248
        %v3805 = vunpack.c.l.b16 %v1249
        %v3806 = vunpack.c.h.b16 %v1249
        %v3807 = vunpack.c.l.b16 %v1250
        %v3808 = vunpack.c.h.b16 %v1250
        %v3809 = vunpack.c.l.b16 %v1251
        %v3810 = vunpack.c.h.b16 %v1251
        %v3811 = vunpack.c.l.b16 %v1252
        %v3812 = vunpack.c.h.b16 %v1252
        %v3813 = vunpack.c.l.b16 %v1253
        %v3814 = vunpack.c.h.b16 %v1253
        %v3815 = vunpack.c.l.b16 %v1254
        %v3816 = vunpack.c.h.b16 %v1254
        %v3817 = vunpack.c.l.b16 %v1255
        %v3818 = vunpack.c.h.b16 %v1255
        %v3819 = vunpack.c.l.b16 %v1256
        %v3820 = vunpack.c.h.b16 %v1256
        %v3821 = vunpack.c.l.b16 %v1257
        %v3822 = vunpack.c.h.b16 %v1257
        %v3823 = vunpack.c.l.b16 %v1258
        %v3824 = vunpack.c.h.b16 %v1258
        %v3825 = vunpack.c.l.b16 %v1259
        %v3826 = vunpack.c.h.b16 %v1259
        %v3827 = vunpack.c.l.b16 %v1260
        %v3828 = vunpack.c.h.b16 %v1260
        %v3829 = vunpack.c.l.b16 %v1261
        %v3830 = vunpack.c.h.b16 %v1261
        %v3831 = vunpack.c.l.b16 %v1262
        %v3832 = vunpack.c.h.b16 %v1262
        %v3833 = vunpack.c.l.b16 %v1263
        %v3834 = vunpack.c.h.b16 %v1263
        %v3835 = vunpack.c.l.b16 %v1264
        %v3836 = vunpack.c.h.b16 %v1264
        %v3837 = vunpack.c.l.b16 %v1265
        %v3838 = vunpack.c.h.b16 %v1265
        %v3839 = vunpack.c.l.b16 %v1266
        %v3840 = vunpack.c.h.b16 %v1266
        %v3841 = vunpack.c.l.b16 %v1267
        %v3842 = vunpack.c.h.b16 %v1267
        %v3843 = vunpack.c.l.b16 %v1268
        %v3844 = vunpack.c.h.b16 %v1268
        %v3845 = vunpack.c.l.b16 %v1269
        %v3846 = vunpack.c.h.b16 %v1269
        %v3847 = vunpack.c.l.b16 %v1270
        %v3848 = vunpack.c.h.b16 %v1270
        %v3849 = vunpack.c.l.b16 %v1271
        %v3850 = vunpack.c.h.b16 %v1271
        %v3851 = vunpack.c.l.b16 %v1272
        %v3852 = vunpack.c.h.b16 %v1272
        %v3853 = vunpack.c.l.b16 %v1273
        %v3854 = vunpack.c.h.b16 %v1273
        %v3855 = vunpack.c.l.b16 %v1274
        %v3856 = vunpack.c.h.b16 %v1274
        %v3857 = vunpack.c.l.b16 %v1275
        %v3858 = vunpack.c.h.b16 %v1275
        %v3859 = vunpack.c.l.b16 %v1276
        %v3860 = vunpack.c.h.b16 %v1276
        %v3861 = vunpack.c.l.b16 %v1277
        %v3862 = vunpack.c.h.b16 %v1277
        %v3863 = vunpack.c.l.b16 %v1278
        %v3864 = vunpack.c.h.b16 %v1278
        %v3865 = vunpack.c.l.b16 %v1279
        %v3866 = vunpack.c.h.b16 %v1279
        %v3867 = vunpack.c.l.b16 %v1280
        %v3868 = vunpack.c.h.b16 %v1280
        %v3869 = vunpack.c.l.b16 %v1281
        %v3870 = vunpack.c.h.b16 %v1281
        %v3871 = vunpack.c.l.b16 %v1282
        %v3872 = vunpack.c.h.b16 %v1282
        %v3873 = vunpack.c.l.b16 %v1283
        %v3874 = vunpack.c.h.b16 %v1283
        %v3875 = vunpack.c.l.b16 %v1284
        %v3876 = vunpack.c.h.b16 %v1284
        %v3877 = vunpack.c.l.b16 %v1285
        %v3878 = vunpack.c.h.b16 %v1285
        %v3879 = vunpack.c.l.b16 %v1286
        %v3880 = vunpack.c.h.b16 %v1286
        %v3881 = vunpack.c.l.b16 %v1287
        %v3882 = vunpack.c.h.b16 %v1287
        %v3883 = vunpack.c.l.b16 %v1288
        %v3884 = vunpack.c.h.b16 %v1288
        %v3885 = vunpack.c.l.b16 %v1289
        %v3886 = vunpack.c.h.b16 %v1289
        %v3887 = vunpack.c.l.b16 %v1290
        %v3888 = vunpack.c.h.b16 %v1290
        %v3889 = vunpack.c.l.b16 %v1291
        %v3890 = vunpack.c.h.b16 %v1291
        %v3891 = vunpack.c.l.b16 %v1292
        %v3892 = vunpack.c.h.b16 %v1292
        %v3893 = vunpack.c.l.b16 %v1293
        %v3894 = vunpack.c.h.b16 %v1293
        %v3895 = vunpack.c.l.b16 %v1294
        %v3896 = vunpack.c.h.b16 %v1294
        %v3897 = vunpack.c.l.b16 %v1295
        %v3898 = vunpack.c.h.b16 %v1295
        %v3899 = vunpack.c.l.b16 %v1296
        %v3900 = vunpack.c.h.b16 %v1296
        %v3901 = vunpack.c.l.b16 %v1297
        %v3902 = vunpack.c.h.b16 %v1297
        %v3903 = vunpack.c.l.b16 %v1298
        %v3904 = vunpack.c.h.b16 %v1298
        %v3905 = vunpack.c.l.b16 %v1299
        %v3906 = vunpack.c.h.b16 %v1299
        %v3907 = vunpack.c.l.b16 %v1300
        %v3908 = vunpack.c.h.b16 %v1300
        %v3909 = vunpack.c.l.b16 %v1301
        %v3910 = vunpack.c.h.b16 %v1301
        %v3911 = vunpack.c.l.b16 %v1302
        %v3912 = vunpack.c.h.b16 %v1302
        %v3913 = vunpack.c.l.b16 %v1303
        %v3914 = vunpack.c.h.b16 %v1303
        %v3915 = vunpack.c.l.b16 %v1304
        %v3916 = vunpack.c.h.b16 %v1304
        %v3917 = vunpack.c.l.b16 %v1305
        %v3918 = vunpack.c.h.b16 %v1305
        %v3919 = vunpack.c.l.b16 %v1306
        %v3920 = vunpack.c.h.b16 %v1306
        %v3921 = vunpack.c.l.b16 %v1307
        %v3922 = vunpack.c.h.b16 %v1307
        %v3923 = vunpack.c.l.b16 %v1308
        %v3924 = vunpack.c.h.b16 %v1308
        %v3925 = vunpack.c.l.b16 %v1309
        %v3926 = vunpack.c.h.b16 %v1309
        %v3927 = vunpack.c.l.b16 %v1310
        %v3928 = vunpack.c.h.b16 %v1310
        %v3929 = vunpack.c.l.b16 %v1311
        %v3930 = vunpack.c.h.b16 %v1311
        %v3931 = vunpack.c.l.b16 %v1312
        %v3932 = vunpack.c.h.b16 %v1312
        %v3933 = vunpack.c.l.b16 %v1313
        %v3934 = vunpack.c.h.b16 %v1313
        %v3935 = vunpack.c.l.b16 %v1314
        %v3936 = vunpack.c.h.b16 %v1314
        %v3937 = vunpack.c.l.b16 %v1315
        %v3938 = vunpack.c.h.b16 %v1315
        %v3939 = vunpack.c.l.b16 %v1316
        %v3940 = vunpack.c.h.b16 %v1316
        %v3941 = vunpack.c.l.b16 %v1317
        %v3942 = vunpack.c.h.b16 %v1317
        %v3943 = vunpack.c.l.b16 %v1318
        %v3944 = vunpack.c.h.b16 %v1318
        %v3945 = vunpack.c.l.b16 %v1319
        %v3946 = vunpack.c.h.b16 %v1319
        %v3947 = vunpack.c.l.b16 %v1320
        %v3948 = vunpack.c.h.b16 %v1320
        %v3949 = vunpack.c.l.b16 %v1321
        %v3950 = vunpack.c.h.b16 %v1321
        %v3951 = vunpack.c.l.b16 %v1322
        %v3952 = vunpack.c.h.b16 %v1322
        %v3953 = vunpack.c.l.b16 %v1323
        %v3954 = vunpack.c.h.b16 %v1323
        %v3955 = vunpack.c.l.b16 %v1324
        %v3956 = vunpack.c.h.b16 %v1324
        %v3957 = vunpack.c.l.b16 %v1325
        %v3958 = vunpack.c.h.b16 %v1325
        %v3959 = vunpack.c.l.b16 %v1326
        %v3960 = vunpack.c.h.b16 %v1326
        %v3961 = vunpack.c.l.b16 %v1327
        %v3962 = vunpack.c.h.b16 %v1327
        %v3963 = vunpack.c.l.b16 %v1328
        %v3964 = vunpack.c.h.b16 %v1328
        %v3965 = vunpack.c.l.b16 %v1329
        %v3966 = vunpack.c.h.b16 %v1329
        %v3967 = vunpack.c.l.b16 %v1330
        %v3968 = vunpack.c.h.b16 %v1330
        %v3969 = vunpack.c.l.b16 %v1331
        %v3970 = vunpack.c.h.b16 %v1331
        %v3971 = vunpack.c.l.b16 %v1332
        %v3972 = vunpack.c.h.b16 %v1332
        %v3973 = vunpack.c.l.b16 %v1333
        %v3974 = vunpack.c.h.b16 %v1333
        %v3975 = vunpack.c.l.b16 %v1334
        %v3976 = vunpack.c.h.b16 %v1334
        %v3977 = vunpack.c.l.b16 %v1335
        %v3978 = vunpack.c.h.b16 %v1335
        %v3979 = vunpack.c.l.b16 %v1336
        %v3980 = vunpack.c.h.b16 %v1336
        %v3981 = vunpack.c.l.b16 %v1337
        %v3982 = vunpack.c.h.b16 %v1337
        %v3983 = vunpack.c.l.b16 %v1338
        %v3984 = vunpack.c.h.b16 %v1338
        %v3985 = vunpack.c.l.b16 %v1339
        %v3986 = vunpack.c.h.b16 %v1339
        %v3987 = vunpack.c.l.b16 %v1340
        %v3988 = vunpack.c.h.b16 %v1340
        %v3989 = vunpack.c.l.b16 %v1341
        %v3990 = vunpack.c.h.b16 %v1341
        %v3991 = vunpack.c.l.b16 %v1342
        %v3992 = vunpack.c.h.b16 %v1342
        %v3993 = vunpack.c.l.b16 %v1343
        %v3994 = vunpack.c.h.b16 %v1343
        %v3995 = vunpack.c.l.b16 %v1344
        %v3996 = vunpack.c.h.b16 %v1344
        %v3997 = vunpack.c.l.b16 %v1345
        %v3998 = vunpack.c.h.b16 %v1345
        %v3999 = vunpack.c.l.b16 %v1346
        %v4000 = vunpack.c.h.b16 %v1346
        %v4001 = vunpack.c.l.b16 %v1347
        %v4002 = vunpack.c.h.b16 %v1347
        %v4003 = vunpack.c.l.b16 %v1348
        %v4004 = vunpack.c.h.b16 %v1348
        %v4005 = vunpack.c.l.b16 %v1349
        %v4006 = vunpack.c.h.b16 %v1349
        %v4007 = vunpack.c.l.b16 %v1350
        %v4008 = vunpack.c.h.b16 %v1350
        %v4009 = vunpack.c.l.b16 %v1351
        %v4010 = vunpack.c.h.b16 %v1351
        %v4011 = vunpack.c.l.b16 %v1352
        %v4012 = vunpack.c.h.b16 %v1352
        %v4013 = vunpack.c.l.b16 %v1353
        %v4014 = vunpack.c.h.b16 %v1353
        %v4015 = vunpack.c.l.b16 %v1354
        %v4016 = vunpack.c.h.b16 %v1354
        %v4017 = vunpack.c.l.b16 %v1355
        %v4018 = vunpack.c.h.b16 %v1355
        %v4019 = vunpack.c.l.b16 %v1356
        %v4020 = vunpack.c.h.b16 %v1356
        %v4021 = vunpack.c.l.b16 %v1357
        %v4022 = vunpack.c.h.b16 %v1357
        %v4023 = vunpack.c.l.b16 %v1358
        %v4024 = vunpack.c.h.b16 %v1358
        %v4025 = vunpack.c.l.b16 %v1359
        %v4026 = vunpack.c.h.b16 %v1359
        %v4027 = vunpack.c.l.b16 %v1360
        %v4028 = vunpack.c.h.b16 %v1360
        %v4029 = vunpack.c.l.b16 %v1361
        %v4030 = vunpack.c.h.b16 %v1361
        %v4031 = vunpack.c.l.b16 %v1362
        %v4032 = vunpack.c.h.b16 %v1362
        %v4033 = vunpack.c.l.b16 %v1363
        %v4034 = vunpack.c.h.b16 %v1363
        %v4035 = vunpack.c.l.b16 %v1364
        %v4036 = vunpack.c.h.b16 %v1364
        %v4037 = vunpack.c.l.b16 %v1365
        %v4038 = vunpack.c.h.b16 %v1365
        %v4039 = vunpack.c.l.b16 %v1366
        %v4040 = vunpack.c.h.b16 %v1366
        %v4041 = vunpack.c.l.b16 %v1367
        %v4042 = vunpack.c.h.b16 %v1367
        %v4043 = vunpack.c.l.b16 %v1368
        %v4044 = vunpack.c.h.b16 %v1368
        %v4045 = vunpack.c.l.b16 %v1369
        %v4046 = vunpack.c.h.b16 %v1369
        %v4047 = vunpack.c.l.b16 %v1370
        %v4048 = vunpack.c.h.b16 %v1370
        %v4049 = vunpack.c.l.b16 %v1371
        %v4050 = vunpack.c.h.b16 %v1371
        %v4051 = vunpack.c.l.b16 %v1372
        %v4052 = vunpack.c.h.b16 %v1372
        %v4053 = vunpack.c.l.b16 %v1373
        %v4054 = vunpack.c.h.b16 %v1373
        %v4055 = vunpack.c.l.b16 %v1374
        %v4056 = vunpack.c.h.b16 %v1374
        %v4057 = vunpack.c.l.b16 %v1375
        %v4058 = vunpack.c.h.b16 %v1375
        %v4059 = vunpack.c.l.b16 %v1376
        %v4060 = vunpack.c.h.b16 %v1376
        %v4061 = vunpack.c.l.b16 %v1377
        %v4062 = vunpack.c.h.b16 %v1377
        %v4063 = vunpack.c.l.b16 %v1378
        %v4064 = vunpack.c.h.b16 %v1378
        %v4065 = vunpack.c.l.b16 %v1379
        %v4066 = vunpack.c.h.b16 %v1379
        %v4067 = vunpack.c.l.b16 %v1380
        %v4068 = vunpack.c.h.b16 %v1380
        %v4069 = vunpack.c.l.b16 %v1381
        %v4070 = vunpack.c.h.b16 %v1381
        %v4071 = vunpack.c.l.b16 %v1382
        %v4072 = vunpack.c.h.b16 %v1382
        %v4073 = vunpack.c.l.b16 %v1383
        %v4074 = vunpack.c.h.b16 %v1383
        %v4075 = vunpack.c.l.b16 %v1384
        %v4076 = vunpack.c.h.b16 %v1384
        %v4077 = vunpack.c.l.b16 %v1385
        %v4078 = vunpack.c.h.b16 %v1385
        %v4079 = vunpack.c.l.b16 %v1386
        %v4080 = vunpack.c.h.b16 %v1386
        %v4081 = vunpack.c.l.b16 %v1387
        %v4082 = vunpack.c.h.b16 %v1387
        %v4083 = vunpack.c.l.b16 %v1388
        %v4084 = vunpack.c.h.b16 %v1388
        %v4085 = vunpack.c.l.b16 %v1389
        %v4086 = vunpack.c.h.b16 %v1389
        %v4087 = vunpack.c.l.b16 %v1390
        %v4088 = vunpack.c.h.b16 %v1390
        %v4089 = vunpack.c.l.b16 %v1391
        %v4090 = vunpack.c.h.b16 %v1391
        %v4091 = vunpack.c.l.b16 %v1392
        %v4092 = vunpack.c.h.b16 %v1392
        %v4093 = vunpack.c.l.b16 %v1393
        %v4094 = vunpack.c.h.b16 %v1393
        %v4095 = vunpack.c.l.b16 %v1394
        %v4096 = vunpack.c.h.b16 %v1394
        %v4097 = vunpack.c.l.b16 %v1395
        %v4098 = vunpack.c.h.b16 %v1395
        %v4099 = vunpack.c.l.b16 %v1396
        %v4100 = vunpack.c.h.b16 %v1396
        %v4101 = vunpack.c.l.b16 %v1397
        %v4102 = vunpack.c.h.b16 %v1397
        %v4103 = vunpack.c.l.b16 %v1398
        %v4104 = vunpack.c.h.b16 %v1398
        %v4105 = vunpack.c.l.b16 %v1399
        %v4106 = vunpack.c.h.b16 %v1399
        %v4107 = vunpack.c.l.b16 %v1400
        %v4108 = vunpack.c.h.b16 %v1400
        %v4109 = vunpack.c.l.b16 %v1401
        %v4110 = vunpack.c.h.b16 %v1401
        %v4111 = vunpack.c.l.b16 %v1402
        %v4112 = vunpack.c.h.b16 %v1402
        %v4113 = vunpack.c.l.b16 %v1403
        %v4114 = vunpack.c.h.b16 %v1403
        %v4115 = vunpack.c.l.b16 %v1404
        %v4116 = vunpack.c.h.b16 %v1404
        %v4117 = vunpack.c.l.b16 %v1405
        %v4118 = vunpack.c.h.b16 %v1405
        %v4119 = vunpack.c.l.b16 %v1406
        %v4120 = vunpack.c.h.b16 %v1406
        %v4121 = vunpack.c.l.b16 %v1407
        %v4122 = vunpack.c.h.b16 %v1407
        %v4123 = vunpack.c.l.b16 %v1408
        %v4124 = vunpack.c.h.b16 %v1408
        %v4125 = vunpack.c.l.b16 %v1409
        %v4126 = vunpack.c.h.b16 %v1409
        %v4127 = vunpack.c.l.b16 %v1410
        %v4128 = vunpack.c.h.b16 %v1410
        %v4129 = vunpack.c.l.b16 %v1411
        %v4130 = vunpack.c.h.b16 %v1411
        %v4131 = vunpack.c.l.b16 %v1412
        %v4132 = vunpack.c.h.b16 %v1412
        %v4133 = vunpack.c.l.b16 %v1413
        %v4134 = vunpack.c.h.b16 %v1413
        %v4135 = vunpack.c.l.b16 %v1414
        %v4136 = vunpack.c.h.b16 %v1414
        %v4137 = vunpack.c.l.b16 %v1415
        %v4138 = vunpack.c.h.b16 %v1415
        %v4139 = vunpack.c.l.b16 %v1416
        %v4140 = vunpack.c.h.b16 %v1416
        %v4141 = vunpack.c.l.b16 %v1417
        %v4142 = vunpack.c.h.b16 %v1417
        %v4143 = vunpack.c.l.b16 %v1418
        %v4144 = vunpack.c.h.b16 %v1418
        %v4145 = vunpack.c.l.b16 %v1419
        %v4146 = vunpack.c.h.b16 %v1419
        %v4147 = vunpack.c.l.b16 %v1420
        %v4148 = vunpack.c.h.b16 %v1420
        %v4149 = vunpack.c.l.b16 %v1421
        %v4150 = vunpack.c.h.b16 %v1421
        %v4151 = vunpack.c.l.b16 %v1422
        %v4152 = vunpack.c.h.b16 %v1422
        %v4153 = vunpack.c.l.b16 %v1423
        %v4154 = vunpack.c.h.b16 %v1423
        %v4155 = vunpack.c.l.b16 %v1424
        %v4156 = vunpack.c.h.b16 %v1424
        %v4157 = vunpack.c.l.b16 %v1425
        %v4158 = vunpack.c.h.b16 %v1425
        %v4159 = vunpack.c.l.b16 %v1426
        %v4160 = vunpack.c.h.b16 %v1426
        %v4161 = vunpack.c.l.b16 %v1427
        %v4162 = vunpack.c.h.b16 %v1427
        %v4163 = vunpack.c.l.b16 %v1428
        %v4164 = vunpack.c.h.b16 %v1428
        %v4165 = vunpack.c.l.b16 %v1429
        %v4166 = vunpack.c.h.b16 %v1429
        %v4167 = vunpack.c.l.b16 %v1430
        %v4168 = vunpack.c.h.b16 %v1430
        %v4169 = vunpack.c.l.b16 %v1431
        %v4170 = vunpack.c.h.b16 %v1431
        %v4171 = vunpack.c.l.b16 %v1432
        %v4172 = vunpack.c.h.b16 %v1432
        %v4173 = vunpack.c.l.b16 %v1433
        %v4174 = vunpack.c.h.b16 %v1433
        %v4175 = vunpack.c.l.b16 %v1434
        %v4176 = vunpack.c.h.b16 %v1434
        %v4177 = vunpack.c.l.b16 %v1435
        %v4178 = vunpack.c.h.b16 %v1435
        %v4179 = vunpack.c.l.b16 %v1436
        %v4180 = vunpack.c.h.b16 %v1436
        %v4181 = vunpack.c.l.b16 %v1437
        %v4182 = vunpack.c.h.b16 %v1437
        %v4183 = vunpack.c.l.b16 %v1438
        %v4184 = vunpack.c.h.b16 %v1438
        %v4185 = vunpack.c.l.b16 %v1439
        %v4186 = vunpack.c.h.b16 %v1439
        %v4187 = vunpack.c.l.b16 %v1440
        %v4188 = vunpack.c.h.b16 %v1440
        %v4189 = vunpack.c.l.b16 %v1441
        %v4190 = vunpack.c.h.b16 %v1441
        %v4191 = vunpack.c.l.b16 %v1442
        %v4192 = vunpack.c.h.b16 %v1442
        %v4193 = vunpack.c.l.b16 %v1443
        %v4194 = vunpack.c.h.b16 %v1443
        %v4195 = vunpack.c.l.b16 %v1444
        %v4196 = vunpack.c.h.b16 %v1444
        %v4197 = vunpack.c.l.b16 %v1445
        %v4198 = vunpack.c.h.b16 %v1445
        %v4199 = vunpack.c.l.b16 %v1446
        %v4200 = vunpack.c.h.b16 %v1446
        %v4201 = vunpack.c.l.b16 %v1447
        %v4202 = vunpack.c.h.b16 %v1447
        %v4203 = vunpack.c.l.b16 %v1448
        %v4204 = vunpack.c.h.b16 %v1448
        %v4205 = vunpack.c.l.b16 %v1449
        %v4206 = vunpack.c.h.b16 %v1449
        %v4207 = vunpack.c.l.b16 %v1450
        %v4208 = vunpack.c.h.b16 %v1450
        %v4209 = vunpack.c.l.b16 %v1451
        %v4210 = vunpack.c.h.b16 %v1451
        %v4211 = vunpack.c.l.b16 %v1452
        %v4212 = vunpack.c.h.b16 %v1452
        %v4213 = vunpack.c.l.b16 %v1453
        %v4214 = vunpack.c.h.b16 %v1453
        %v4215 = vunpack.c.l.b16 %v1454
        %v4216 = vunpack.c.h.b16 %v1454
        %v4217 = vunpack.c.l.b16 %v1455
        %v4218 = vunpack.c.h.b16 %v1455
        %v4219 = vunpack.c.l.b16 %v1456
        %v4220 = vunpack.c.h.b16 %v1456
        %v4221 = vunpack.c.l.b16 %v1457
        %v4222 = vunpack.c.h.b16 %v1457
        %v4223 = vunpack.c.l.b16 %v1458
        %v4224 = vunpack.c.h.b16 %v1458
        %v4225 = vunpack.c.l.b16 %v1459
        %v4226 = vunpack.c.h.b16 %v1459
        %v4227 = vunpack.c.l.b16 %v1460
        %v4228 = vunpack.c.h.b16 %v1460
        %v4229 = vunpack.c.l.b16 %v1461
        %v4230 = vunpack.c.h.b16 %v1461
        %v4231 = vunpack.c.l.b16 %v1462
        %v4232 = vunpack.c.h.b16 %v1462
        %v4233 = vunpack.c.l.b16 %v1463
        %v4234 = vunpack.c.h.b16 %v1463
        %v4235 = vunpack.c.l.b16 %v1464
        %v4236 = vunpack.c.h.b16 %v1464
        %v4237 = vunpack.c.l.b16 %v1465
        %v4238 = vunpack.c.h.b16 %v1465
        %v4239 = vunpack.c.l.b16 %v1466
        %v4240 = vunpack.c.h.b16 %v1466
        %v4241 = vunpack.c.l.b16 %v1467
        %v4242 = vunpack.c.h.b16 %v1467
        %v4243 = vunpack.c.l.b16 %v1468
        %v4244 = vunpack.c.h.b16 %v1468
        %v4245 = vunpack.c.l.b16 %v1469
        %v4246 = vunpack.c.h.b16 %v1469
        %v4247 = vunpack.c.l.b16 %v1470
        %v4248 = vunpack.c.h.b16 %v1470
        %v4249 = vunpack.c.l.b16 %v1471
        %v4250 = vunpack.c.h.b16 %v1471
        %v4251 = vunpack.c.l.b16 %v1472
        %v4252 = vunpack.c.h.b16 %v1472
        %v4253 = vunpack.c.l.b16 %v1473
        %v4254 = vunpack.c.h.b16 %v1473
        %v4255 = vunpack.c.l.b16 %v1474
        %v4256 = vunpack.c.h.b16 %v1474
        %v4257 = vunpack.c.l.b16 %v1475
        %v4258 = vunpack.c.h.b16 %v1475
        %v4259 = vunpack.c.l.b16 %v1476
        %v4260 = vunpack.c.h.b16 %v1476
        %v4261 = vunpack.c.l.b16 %v1477
        %v4262 = vunpack.c.h.b16 %v1477
        %v4263 = vunpack.c.l.b16 %v1478
        %v4264 = vunpack.c.h.b16 %v1478
        %v4265 = vunpack.c.l.b16 %v1479
        %v4266 = vunpack.c.h.b16 %v1479
        %v4267 = vunpack.c.l.b16 %v1480
        %v4268 = vunpack.c.h.b16 %v1480
        %v4269 = vunpack.c.l.b16 %v1481
        %v4270 = vunpack.c.h.b16 %v1481
        %v4271 = vunpack.c.l.b16 %v1482
        %v4272 = vunpack.c.h.b16 %v1482
        %v4273 = vunpack.c.l.b16 %v1483
        %v4274 = vunpack.c.h.b16 %v1483
        %v4275 = vunpack.c.l.b16 %v1484
        %v4276 = vunpack.c.h.b16 %v1484
        %v4277 = vunpack.c.l.b16 %v1485
        %v4278 = vunpack.c.h.b16 %v1485
        %v4279 = vunpack.c.l.b16 %v1486
        %v4280 = vunpack.c.h.b16 %v1486
        %v4281 = vunpack.c.l.b16 %v1487
        %v4282 = vunpack.c.h.b16 %v1487
        %v4283 = vunpack.c.l.b16 %v1488
        %v4284 = vunpack.c.h.b16 %v1488
        %v4285 = vunpack.c.l.b16 %v1489
        %v4286 = vunpack.c.h.b16 %v1489
        %v4287 = vunpack.c.l.b16 %v1490
        %v4288 = vunpack.c.h.b16 %v1490
        %v4289 = vunpack.c.l.b16 %v1491
        %v4290 = vunpack.c.h.b16 %v1491
        %v4291 = vunpack.c.l.b16 %v1492
        %v4292 = vunpack.c.h.b16 %v1492
        %v4293 = vunpack.c.l.b16 %v1493
        %v4294 = vunpack.c.h.b16 %v1493
        %v4295 = vunpack.c.l.b16 %v1494
        %v4296 = vunpack.c.h.b16 %v1494
        %v4297 = vunpack.c.l.b16 %v1495
        %v4298 = vunpack.c.h.b16 %v1495
        %v4299 = vunpack.c.l.b16 %v1496
        %v4300 = vunpack.c.h.b16 %v1496
        %v4301 = vunpack.c.l.b16 %v1497
        %v4302 = vunpack.c.h.b16 %v1497
        %v4303 = vunpack.c.l.b16 %v1498
        %v4304 = vunpack.c.h.b16 %v1498
        %v4305 = vunpack.c.l.b16 %v1499
        %v4306 = vunpack.c.h.b16 %v1499
        %v4307 = vunpack.c.l.b16 %v1500
        %v4308 = vunpack.c.h.b16 %v1500
        %v4309 = vunpack.c.l.b16 %v1501
        %v4310 = vunpack.c.h.b16 %v1501
        %v4311 = vunpack.c.l.b16 %v1502
        %v4312 = vunpack.c.h.b16 %v1502
        %v4313 = vunpack.c.l.b16 %v1503
        %v4314 = vunpack.c.h.b16 %v1503
        %v4315 = vunpack.c.l.b16 %v1504
        %v4316 = vunpack.c.h.b16 %v1504
        %v4317 = vunpack.c.l.b16 %v1505
        %v4318 = vunpack.c.h.b16 %v1505
        %v4319 = vunpack.c.l.b16 %v1506
        %v4320 = vunpack.c.h.b16 %v1506
        %v4321 = vunpack.c.l.b16 %v1507
        %v4322 = vunpack.c.h.b16 %v1507
        %v4323 = vunpack.c.l.b16 %v1508
        %v4324 = vunpack.c.h.b16 %v1508
        %v4325 = vunpack.c.l.b16 %v1509
        %v4326 = vunpack.c.h.b16 %v1509
        %v4327 = vunpack.c.l.b16 %v1510
        %v4328 = vunpack.c.h.b16 %v1510
        %v4329 = vunpack.c.l.b16 %v1511
        %v4330 = vunpack.c.h.b16 %v1511
        %v4331 = vunpack.c.l.b16 %v1512
        %v4332 = vunpack.c.h.b16 %v1512
        %v4333 = vunpack.c.l.b16 %v1513
        %v4334 = vunpack.c.h.b16 %v1513
        %v4335 = vunpack.c.l.b16 %v1514
        %v4336 = vunpack.c.h.b16 %v1514
        %v4337 = vunpack.c.l.b16 %v1515
        %v4338 = vunpack.c.h.b16 %v1515
        %v4339 = vunpack.c.l.b16 %v1516
        %v4340 = vunpack.c.h.b16 %v1516
        %v4341 = vunpack.c.l.b16 %v1517
        %v4342 = vunpack.c.h.b16 %v1517
        %v4343 = vunpack.c.l.b16 %v1518
        %v4344 = vunpack.c.h.b16 %v1518
        %v4345 = vunpack.c.l.b16 %v1519
        %v4346 = vunpack.c.h.b16 %v1519
        %v4347 = vunpack.c.l.b16 %v1520
        %v4348 = vunpack.c.h.b16 %v1520
        %v4349 = vunpack.c.l.b16 %v1521
        %v4350 = vunpack.c.h.b16 %v1521
        %v4351 = vunpack.c.l.b16 %v1522
        %v4352 = vunpack.c.h.b16 %v1522
        %v4353 = vunpack.c.l.b16 %v1523
        %v4354 = vunpack.c.h.b16 %v1523
        %v4355 = vunpack.c.l.b16 %v1524
        %v4356 = vunpack.c.h.b16 %v1524
        %v4357 = vunpack.c.l.b16 %v1525
        %v4358 = vunpack.c.h.b16 %v1525
        %v4359 = vunpack.c.l.b16 %v1526
        %v4360 = vunpack.c.h.b16 %v1526
        %v4361 = vunpack.c.l.b16 %v1527
        %v4362 = vunpack.c.h.b16 %v1527
        %v4363 = vunpack.c.l.b16 %v1528
        %v4364 = vunpack.c.h.b16 %v1528
        %v4365 = vunpack.c.l.b16 %v1529
        %v4366 = vunpack.c.h.b16 %v1529
        %v4367 = vunpack.c.l.b16 %v1530
        %v4368 = vunpack.c.h.b16 %v1530
        %v4369 = vunpack.c.l.b16 %v1531
        %v4370 = vunpack.c.h.b16 %v1531
        %v4371 = vunpack.c.l.b16 %v1532
        %v4372 = vunpack.c.h.b16 %v1532
        %v4373 = vunpack.c.l.b16 %v1533
        %v4374 = vunpack.c.h.b16 %v1533
        %v4375 = vunpack.c.l.b16 %v1534
        %v4376 = vunpack.c.h.b16 %v1534
        %v4377 = vunpack.c.l.b16 %v1535
        %v4378 = vunpack.c.h.b16 %v1535
        %v4379 = vunpack.c.l.b16 %v1536
        %v4380 = vunpack.c.h.b16 %v1536
        %v4381 = vunpack.c.l.b16 %v1537
        %v4382 = vunpack.c.h.b16 %v1537
        %v4383 = vunpack.c.l.b16 %v1538
        %v4384 = vunpack.c.h.b16 %v1538
        %v4385 = vunpack.c.l.b16 %v1539
        %v4386 = vunpack.c.h.b16 %v1539
        %v4387 = vunpack.c.l.b16 %v1540
        %v4388 = vunpack.c.h.b16 %v1540
        %v4389 = vunpack.c.l.b16 %v1541
        %v4390 = vunpack.c.h.b16 %v1541
        %v4391 = vunpack.c.l.b16 %v1542
        %v4392 = vunpack.c.h.b16 %v1542
        %v4393 = vunpack.c.l.b16 %v1543
        %v4394 = vunpack.c.h.b16 %v1543
        %v4395 = vunpack.c.l.b16 %v1544
        %v4396 = vunpack.c.h.b16 %v1544
        %v4397 = vunpack.c.l.b16 %v1545
        %v4398 = vunpack.c.h.b16 %v1545
        %v4399 = vunpack.c.l.b16 %v1546
        %v4400 = vunpack.c.h.b16 %v1546
        %v4401 = vunpack.c.l.b16 %v1547
        %v4402 = vunpack.c.h.b16 %v1547
        %v4403 = vunpack.c.l.b16 %v1548
        %v4404 = vunpack.c.h.b16 %v1548
        %v4405 = vunpack.c.l.b16 %v1549
        %v4406 = vunpack.c.h.b16 %v1549
        %v4407 = vunpack.c.l.b16 %v1550
        %v4408 = vunpack.c.h.b16 %v1550
        %v4409 = vunpack.c.l.b16 %v1551
        %v4410 = vunpack.c.h.b16 %v1551
        %v4411 = vunpack.c.l.b16 %v1552
        %v4412 = vunpack.c.h.b16 %v1552
        %v4413 = vunpack.c.l.b16 %v1553
        %v4414 = vunpack.c.h.b16 %v1553
        %v4415 = vunpack.c.l.b16 %v1554
        %v4416 = vunpack.c.h.b16 %v1554
        %v4417 = vunpack.c.l.b16 %v1555
        %v4418 = vunpack.c.h.b16 %v1555
        %v4419 = vunpack.c.l.b16 %v1556
        %v4420 = vunpack.c.h.b16 %v1556
        %v4421 = vunpack.c.l.b16 %v1557
        %v4422 = vunpack.c.h.b16 %v1557
        %v4423 = vunpack.c.l.b16 %v1558
        %v4424 = vunpack.c.h.b16 %v1558
        %v4425 = vunpack.c.l.b16 %v1559
        %v4426 = vunpack.c.h.b16 %v1559
        %v4427 = vunpack.c.l.b16 %v1560
        %v4428 = vunpack.c.h.b16 %v1560
        %v4429 = vunpack.c.l.b16 %v1561
        %v4430 = vunpack.c.h.b16 %v1561
        %v4431 = vunpack.c.l.b16 %v1562
        %v4432 = vunpack.c.h.b16 %v1562
        %v4433 = vunpack.c.l.b16 %v1563
        %v4434 = vunpack.c.h.b16 %v1563
        %v4435 = vunpack.c.l.b16 %v1564
        %v4436 = vunpack.c.h.b16 %v1564
        %v4437 = vunpack.c.l.b16 %v1565
        %v4438 = vunpack.c.h.b16 %v1565
        %v4439 = vunpack.c.l.b16 %v1566
        %v4440 = vunpack.c.h.b16 %v1566
        %v4441 = vunpack.c.l.b16 %v1567
        %v4442 = vunpack.c.h.b16 %v1567
        %v4443 = vunpack.c.l.b16 %v1568
        %v4444 = vunpack.c.h.b16 %v1568
        %v4445 = vunpack.c.l.b16 %v1569
        %v4446 = vunpack.c.h.b16 %v1569
        %v4447 = vunpack.c.l.b16 %v1570
        %v4448 = vunpack.c.h.b16 %v1570
        %v4449 = vunpack.c.l.b16 %v1571
        %v4450 = vunpack.c.h.b16 %v1571
        %v4451 = vunpack.c.l.b16 %v1572
        %v4452 = vunpack.c.h.b16 %v1572
        %v4453 = vunpack.c.l.b16 %v1573
        %v4454 = vunpack.c.h.b16 %v1573
        %v4455 = vunpack.c.l.b16 %v1574
        %v4456 = vunpack.c.h.b16 %v1574
        %v4457 = vunpack.c.l.b16 %v1575
        %v4458 = vunpack.c.h.b16 %v1575
        %v4459 = vunpack.c.l.b16 %v1576
        %v4460 = vunpack.c.h.b16 %v1576
        %v4461 = vunpack.c.l.b16 %v1577
        %v4462 = vunpack.c.h.b16 %v1577
        %v4463 = vunpack.c.l.b16 %v1578
        %v4464 = vunpack.c.h.b16 %v1578
        %v4465 = vunpack.c.l.b16 %v1579
        %v4466 = vunpack.c.h.b16 %v1579
        %v4467 = vunpack.c.l.b16 %v1580
        %v4468 = vunpack.c.h.b16 %v1580
        %v4469 = vunpack.c.l.b16 %v1581
        %v4470 = vunpack.c.h.b16 %v1581
        %v4471 = vunpack.c.l.b16 %v1582
        %v4472 = vunpack.c.h.b16 %v1582
        %v4473 = vunpack.c.l.b16 %v1583
        %v4474 = vunpack.c.h.b16 %v1583
        %v4475 = vunpack.c.l.b16 %v1584
        %v4476 = vunpack.c.h.b16 %v1584
        %v4477 = vunpack.c.l.b16 %v1585
        %v4478 = vunpack.c.h.b16 %v1585
        %v4479 = vunpack.c.l.b16 %v1586
        %v4480 = vunpack.c.h.b16 %v1586
        %v4481 = vunpack.c.l.b16 %v1587
        %v4482 = vunpack.c.h.b16 %v1587
        %v4483 = vunpack.c.l.b16 %v1588
        %v4484 = vunpack.c.h.b16 %v1588
        %v4485 = vunpack.c.l.b16 %v1589
        %v4486 = vunpack.c.h.b16 %v1589
        %v4487 = vunpack.c.l.b16 %v1590
        %v4488 = vunpack.c.h.b16 %v1590
        %v4489 = vunpack.c.l.b16 %v1591
        %v4490 = vunpack.c.h.b16 %v1591
        %v4491 = vunpack.c.l.b16 %v1592
        %v4492 = vunpack.c.h.b16 %v1592
        %v4493 = vunpack.c.l.b16 %v1593
        %v4494 = vunpack.c.h.b16 %v1593
        %v4495 = vunpack.c.l.b16 %v1594
        %v4496 = vunpack.c.h.b16 %v1594
        %v4497 = vunpack.c.l.b16 %v1595
        %v4498 = vunpack.c.h.b16 %v1595
        %v4499 = vunpack.c.l.b16 %v1596
        %v4500 = vunpack.c.h.b16 %v1596
        %v4501 = vunpack.c.l.b16 %v1597
        %v4502 = vunpack.c.h.b16 %v1597
        %v4503 = vunpack.c.l.b16 %v1598
        %v4504 = vunpack.c.h.b16 %v1598
        %v4505 = vunpack.c.l.b16 %v1599
        %v4506 = vunpack.c.h.b16 %v1599
        %v4507 = vunpack.c.l.b16 %v1600
        %v4508 = vunpack.c.h.b16 %v1600
        %v4509 = vunpack.c.l.b16 %v1601
        %v4510 = vunpack.c.h.b16 %v1601
        %v4511 = vunpack.c.l.b16 %v1602
        %v4512 = vunpack.c.h.b16 %v1602
        %v4513 = vunpack.c.l.b16 %v1603
        %v4514 = vunpack.c.h.b16 %v1603
        %v4515 = vunpack.c.l.b16 %v1604
        %v4516 = vunpack.c.h.b16 %v1604
        %v4517 = vunpack.c.l.b16 %v1605
        %v4518 = vunpack.c.h.b16 %v1605
        %v4519 = vunpack.c.l.b16 %v1606
        %v4520 = vunpack.c.h.b16 %v1606
        %v4521 = vunpack.c.l.b16 %v1607
        %v4522 = vunpack.c.h.b16 %v1607
        %v4523 = vunpack.c.l.b16 %v1608
        %v4524 = vunpack.c.h.b16 %v1608
        %v4525 = vunpack.c.l.b16 %v1609
        %v4526 = vunpack.c.h.b16 %v1609
        %v4527 = vunpack.c.l.b16 %v1610
        %v4528 = vunpack.c.h.b16 %v1610
        %v4529 = vunpack.c.l.b16 %v1611
        %v4530 = vunpack.c.h.b16 %v1611
        %v4531 = vunpack.c.l.b16 %v1612
        %v4532 = vunpack.c.h.b16 %v1612
        %v4533 = vunpack.c.l.b16 %v1613
        %v4534 = vunpack.c.h.b16 %v1613
        %v4535 = vunpack.c.l.b16 %v1614
        %v4536 = vunpack.c.h.b16 %v1614
        %v4537 = vunpack.c.l.b16 %v1615
        %v4538 = vunpack.c.h.b16 %v1615
        %v4539 = vunpack.c.l.b16 %v1616
        %v4540 = vunpack.c.h.b16 %v1616
        %v4541 = vunpack.c.l.b16 %v1617
        %v4542 = vunpack.c.h.b16 %v1617
        %v4543 = vunpack.c.l.b16 %v1618
        %v4544 = vunpack.c.h.b16 %v1618
        %v4545 = vunpack.c.l.b16 %v1619
        %v4546 = vunpack.c.h.b16 %v1619
        %v4547 = vunpack.c.l.b16 %v1620
        %v4548 = vunpack.c.h.b16 %v1620
        %v4549 = vunpack.c.l.b16 %v1621
        %v4550 = vunpack.c.h.b16 %v1621
        %v4551 = vunpack.c.l.b16 %v1622
        %v4552 = vunpack.c.h.b16 %v1622
        %v4553 = vunpack.c.l.b16 %v1623
        %v4554 = vunpack.c.h.b16 %v1623
        %v4555 = vunpack.c.l.b16 %v1624
        %v4556 = vunpack.c.h.b16 %v1624
        %v4557 = vunpack.c.l.b16 %v1625
        %v4558 = vunpack.c.h.b16 %v1625
        %v4559 = vunpack.c.l.b16 %v1626
        %v4560 = vunpack.c.h.b16 %v1626
        %v4561 = vunpack.c.l.b16 %v1627
        %v4562 = vunpack.c.h.b16 %v1627
        %v4563 = vunpack.c.l.b16 %v1628
        %v4564 = vunpack.c.h.b16 %v1628
        %v4565 = vunpack.c.l.b16 %v1629
        %v4566 = vunpack.c.h.b16 %v1629
        %v4567 = vunpack.c.l.b16 %v1630
        %v4568 = vunpack.c.h.b16 %v1630
        %v4569 = vunpack.c.l.b16 %v1631
        %v4570 = vunpack.c.h.b16 %v1631
        %v4571 = vunpack.c.l.b16 %v1632
        %v4572 = vunpack.c.h.b16 %v1632
        %v4573 = vunpack.c.l.b16 %v1633
        %v4574 = vunpack.c.h.b16 %v1633
        %v4575 = vunpack.c.l.b16 %v1634
        %v4576 = vunpack.c.h.b16 %v1634
        %v4577 = vunpack.c.l.b16 %v1635
        %v4578 = vunpack.c.h.b16 %v1635
        %v4579 = vunpack.c.l.b16 %v1636
        %v4580 = vunpack.c.h.b16 %v1636
        %v4581 = vunpack.c.l.b16 %v1637
        %v4582 = vunpack.c.h.b16 %v1637
        %v4583 = vunpack.c.l.b16 %v1638
        %v4584 = vunpack.c.h.b16 %v1638
        %v4585 = vunpack.c.l.b16 %v1639
        %v4586 = vunpack.c.h.b16 %v1639
        %v4587 = vunpack.c.l.b16 %v1640
        %v4588 = vunpack.c.h.b16 %v1640
        %v4589 = vunpack.c.l.b16 %v1641
        %v4590 = vunpack.c.h.b16 %v1641
        %v4591 = vunpack.c.l.b16 %v1642
        %v4592 = vunpack.c.h.b16 %v1642
        %v4593 = vunpack.c.l.b16 %v1643
        %v4594 = vunpack.c.h.b16 %v1643
        %v4595 = vunpack.c.l.b16 %v1644
        %v4596 = vunpack.c.h.b16 %v1644
        %v4597 = vunpack.c.l.b16 %v1645
        %v4598 = vunpack.c.h.b16 %v1645
        %v4599 = vunpack.c.l.b16 %v1646
        %v4600 = vunpack.c.h.b16 %v1646
        %v4601 = vunpack.c.l.b16 %v1647
        %v4602 = vunpack.c.h.b16 %v1647
        %v4603 = vunpack.c.l.b16 %v1648
        %v4604 = vunpack.c.h.b16 %v1648
        %v4605 = vunpack.c.l.b16 %v1649
        %v4606 = vunpack.c.h.b16 %v1649
        %v4607 = vunpack.c.l.b16 %v1650
        %v4608 = vunpack.c.h.b16 %v1650
        %v4609 = vunpack.c.l.b16 %v1651
        %v4610 = vunpack.c.h.b16 %v1651
        %v4611 = vunpack.c.l.b16 %v1652
        %v4612 = vunpack.c.h.b16 %v1652
        %v4613 = vunpack.c.l.b16 %v1653
        %v4614 = vunpack.c.h.b16 %v1653
        %v4615 = vunpack.c.l.b16 %v1654
        %v4616 = vunpack.c.h.b16 %v1654
        %v4617 = vunpack.c.l.b16 %v1655
        %v4618 = vunpack.c.h.b16 %v1655
        %v4619 = vunpack.c.l.b16 %v1656
        %v4620 = vunpack.c.h.b16 %v1656
        %v4621 = vunpack.c.l.b16 %v1657
        %v4622 = vunpack.c.h.b16 %v1657
        %v4623 = vunpack.c.l.b16 %v1658
        %v4624 = vunpack.c.h.b16 %v1658
        %v4625 = vunpack.c.l.b16 %v1659
        %v4626 = vunpack.c.h.b16 %v1659
        %v4627 = vunpack.c.l.b16 %v1660
        %v4628 = vunpack.c.h.b16 %v1660
        %v4629 = vunpack.c.l.b16 %v1661
        %v4630 = vunpack.c.h.b16 %v1661
        %v4631 = vunpack.c.l.b16 %v1662
        %v4632 = vunpack.c.h.b16 %v1662
        %v4633 = vunpack.c.l.b16 %v1663
        %v4634 = vunpack.c.h.b16 %v1663
        %v4635 = vunpack.c.l.b16 %v1664
        %v4636 = vunpack.c.h.b16 %v1664
        %v4637 = vunpack.c.l.b16 %v1665
        %v4638 = vunpack.c.h.b16 %v1665
        %v4639 = vunpack.c.l.b16 %v1666
        %v4640 = vunpack.c.h.b16 %v1666
        %v4641 = vunpack.c.l.b16 %v1667
        %v4642 = vunpack.c.h.b16 %v1667
        %v4643 = vunpack.c.l.b16 %v1668
        %v4644 = vunpack.c.h.b16 %v1668
        %v4645 = vunpack.c.l.b16 %v1669
        %v4646 = vunpack.c.h.b16 %v1669
        %v4647 = vunpack.c.l.b16 %v1670
        %v4648 = vunpack.c.h.b16 %v1670
        %v4649 = vunpack.c.l.b16 %v1671
        %v4650 = vunpack.c.h.b16 %v1671
        %v4651 = vunpack.c.l.b16 %v1672
        %v4652 = vunpack.c.h.b16 %v1672
        %v4653 = vunpack.c.l.b16 %v1673
        %v4654 = vunpack.c.h.b16 %v1673
        %v4655 = vunpack.c.l.b16 %v1674
        %v4656 = vunpack.c.h.b16 %v1674
        %v4657 = vunpack.c.l.b16 %v1675
        %v4658 = vunpack.c.h.b16 %v1675
        %v4659 = vunpack.c.l.b16 %v1676
        %v4660 = vunpack.c.h.b16 %v1676
        %v4661 = vunpack.c.l.b16 %v1677
        %v4662 = vunpack.c.h.b16 %v1677
        %v4663 = vunpack.c.l.b16 %v1678
        %v4664 = vunpack.c.h.b16 %v1678
        %v4665 = vunpack.c.l.b16 %v1679
        %v4666 = vunpack.c.h.b16 %v1679
        %v4667 = vunpack.c.l.b16 %v1680
        %v4668 = vunpack.c.h.b16 %v1680
        %v4669 = vunpack.c.l.b16 %v1681
        %v4670 = vunpack.c.h.b16 %v1681
        %v4671 = vunpack.c.l.b16 %v1682
        %v4672 = vunpack.c.h.b16 %v1682
        %v4673 = vunpack.c.l.b16 %v1683
        %v4674 = vunpack.c.h.b16 %v1683
        %v4675 = vunpack.c.l.b16 %v1684
        %v4676 = vunpack.c.h.b16 %v1684
        %v4677 = vunpack.c.l.b16 %v1685
        %v4678 = vunpack.c.h.b16 %v1685
        %v4679 = vunpack.c.l.b16 %v1686
        %v4680 = vunpack.c.h.b16 %v1686
        %v4681 = vunpack.c.l.b16 %v1687
        %v4682 = vunpack.c.h.b16 %v1687
        %v4683 = vunpack.c.l.b16 %v1688
        %v4684 = vunpack.c.h.b16 %v1688
        %v4685 = vunpack.c.l.b16 %v1689
        %v4686 = vunpack.c.h.b16 %v1689
        %v4687 = vunpack.c.l.b16 %v1690
        %v4688 = vunpack.c.h.b16 %v1690
        %v4689 = vunpack.c.l.b16 %v1691
        %v4690 = vunpack.c.h.b16 %v1691
        %v4691 = vunpack.c.l.b16 %v1692
        %v4692 = vunpack.c.h.b16 %v1692
        %v4693 = vunpack.c.l.b16 %v1693
        %v4694 = vunpack.c.h.b16 %v1693
        %v4695 = vunpack.c.l.b16 %v1694
        %v4696 = vunpack.c.h.b16 %v1694
        %v4697 = vunpack.c.l.b16 %v1695
        %v4698 = vunpack.c.h.b16 %v1695
        %v4699 = vunpack.c.l.b16 %v1696
        %v4700 = vunpack.c.h.b16 %v1696
        %v4701 = vunpack.c.l.b16 %v1697
        %v4702 = vunpack.c.h.b16 %v1697
        %v4703 = vunpack.c.l.b16 %v1698
        %v4704 = vunpack.c.h.b16 %v1698
        %v4705 = vunpack.c.l.b16 %v1699
        %v4706 = vunpack.c.h.b16 %v1699
        %v4707 = vunpack.c.l.b16 %v1700
        %v4708 = vunpack.c.h.b16 %v1700
        %v4709 = vunpack.c.l.b16 %v1701
        %v4710 = vunpack.c.h.b16 %v1701
        %v4711 = vunpack.c.l.b16 %v1702
        %v4712 = vunpack.c.h.b16 %v1702
        %v4713 = vunpack.c.l.b16 %v1703
        %v4714 = vunpack.c.h.b16 %v1703
        %v4715 = vunpack.c.l.b16 %v1704
        %v4716 = vunpack.c.h.b16 %v1704
        %v4717 = vunpack.c.l.b16 %v1705
        %v4718 = vunpack.c.h.b16 %v1705
        %v4719 = vunpack.c.l.b16 %v1706
        %v4720 = vunpack.c.h.b16 %v1706
        %v4721 = vunpack.c.l.b16 %v1707
        %v4722 = vunpack.c.h.b16 %v1707
        %v4723 = vunpack.c.l.b16 %v1708
        %v4724 = vunpack.c.h.b16 %v1708
        %v4725 = vunpack.c.l.b16 %v1709
        %v4726 = vunpack.c.h.b16 %v1709
        %v4727 = vunpack.c.l.b16 %v1710
        %v4728 = vunpack.c.h.b16 %v1710
        %v4729 = vunpack.c.l.b16 %v1711
        %v4730 = vunpack.c.h.b16 %v1711
        %v4731 = vunpack.c.l.b16 %v1712
        %v4732 = vunpack.c.h.b16 %v1712
        %v4733 = vunpack.c.l.b16 %v1713
        %v4734 = vunpack.c.h.b16 %v1713
        %v4735 = vunpack.c.l.b16 %v1714
        %v4736 = vunpack.c.h.b16 %v1714
        %v4737 = vunpack.c.l.b16 %v1715
        %v4738 = vunpack.c.h.b16 %v1715
        %v4739 = vunpack.c.l.b16 %v1716
        %v4740 = vunpack.c.h.b16 %v1716
        %v4741 = vunpack.c.l.b16 %v1717
        %v4742 = vunpack.c.h.b16 %v1717
        %v4743 = vunpack.c.l.b16 %v1718
        %v4744 = vunpack.c.h.b16 %v1718
        %v4745 = vunpack.c.l.b16 %v1719
        %v4746 = vunpack.c.h.b16 %v1719
        %v4747 = vunpack.c.l.b16 %v1720
        %v4748 = vunpack.c.h.b16 %v1720
        %v4749 = vunpack.c.l.b16 %v1721
        %v4750 = vunpack.c.h.b16 %v1721
        %v4751 = vunpack.c.l.b16 %v1722
        %v4752 = vunpack.c.h.b16 %v1722
        %v4753 = vunpack.c.l.b16 %v1723
        %v4754 = vunpack.c.h.b16 %v1723
        %v4755 = vunpack.c.l.b16 %v1724
        %v4756 = vunpack.c.h.b16 %v1724
        %v4757 = vunpack.c.l.b16 %v1725
        %v4758 = vunpack.c.h.b16 %v1725
        %v4759 = vunpack.c.l.b16 %v1726
        %v4760 = vunpack.c.h.b16 %v1726
        %v4761 = vunpack.c.l.b16 %v1727
        %v4762 = vunpack.c.h.b16 %v1727
        %v4763 = vunpack.c.l.b16 %v1728
        %v4764 = vunpack.c.h.b16 %v1728
        %v4765 = vunpack.c.l.b16 %v1729
        %v4766 = vunpack.c.h.b16 %v1729
        %v4767 = vunpack.c.l.b16 %v1730
        %v4768 = vunpack.c.h.b16 %v1730
        %v4769 = vunpack.c.l.b16 %v1731
        %v4770 = vunpack.c.h.b16 %v1731
        %v4771 = vunpack.c.l.b16 %v1732
        %v4772 = vunpack.c.h.b16 %v1732
        %v4773 = vunpack.c.l.b16 %v1733
        %v4774 = vunpack.c.h.b16 %v1733
        %v4775 = vunpack.c.l.b16 %v1734
        %v4776 = vunpack.c.h.b16 %v1734
        %v4777 = vunpack.c.l.b16 %v1735
        %v4778 = vunpack.c.h.b16 %v1735
        %v4779 = vunpack.c.l.b16 %v1736
        %v4780 = vunpack.c.h.b16 %v1736
        %v4781 = vunpack.c.l.b16 %v1737
        %v4782 = vunpack.c.h.b16 %v1737
        %v4783 = vunpack.c.l.b16 %v1738
        %v4784 = vunpack.c.h.b16 %v1738
        %v4785 = vunpack.c.l.b16 %v1739
        %v4786 = vunpack.c.h.b16 %v1739
        %v4787 = vunpack.c.l.b16 %v1740
        %v4788 = vunpack.c.h.b16 %v1740
        %v4789 = vunpack.c.l.b16 %v1741
        %v4790 = vunpack.c.h.b16 %v1741
        %v4791 = vunpack.c.l.b16 %v1742
        %v4792 = vunpack.c.h.b16 %v1742
        %v4793 = vunpack.c.l.b16 %v1743
        %v4794 = vunpack.c.h.b16 %v1743
        %v4795 = vunpack.c.l.b16 %v1744
        %v4796 = vunpack.c.h.b16 %v1744
        %v4797 = vunpack.c.l.b16 %v1745
        %v4798 = vunpack.c.h.b16 %v1745
        %v4799 = vunpack.c.l.b16 %v1746
        %v4800 = vunpack.c.h.b16 %v1746
        %v4801 = vunpack.c.l.b16 %v1747
        %v4802 = vunpack.c.h.b16 %v1747
        %v4803 = vunpack.c.l.b16 %v1748
        %v4804 = vunpack.c.h.b16 %v1748
        %v4805 = vunpack.c.l.b16 %v1749
        %v4806 = vunpack.c.h.b16 %v1749
        %v4807 = vunpack.c.l.b16 %v1750
        %v4808 = vunpack.c.h.b16 %v1750
        %v4809 = vunpack.c.l.b16 %v1751
        %v4810 = vunpack.c.h.b16 %v1751
        %v4811 = vunpack.c.l.b16 %v1752
        %v4812 = vunpack.c.h.b16 %v1752
        %v4813 = vunpack.c.l.b16 %v1753
        %v4814 = vunpack.c.h.b16 %v1753
        %v4815 = vunpack.c.l.b16 %v1754
        %v4816 = vunpack.c.h.b16 %v1754
        %v4817 = vunpack.c.l.b16 %v1755
        %v4818 = vunpack.c.h.b16 %v1755
        %v4819 = vunpack.c.l.b16 %v1756
        %v4820 = vunpack.c.h.b16 %v1756
        %v4821 = vunpack.c.l.b16 %v1757
        %v4822 = vunpack.c.h.b16 %v1757
        %v4823 = vunpack.c.l.b16 %v1758
        %v4824 = vunpack.c.h.b16 %v1758
        %v4825 = vunpack.c.l.b16 %v1759
        %v4826 = vunpack.c.h.b16 %v1759
        %v4827 = vunpack.c.l.b16 %v1760
        %v4828 = vunpack.c.h.b16 %v1760
        %v4829 = vunpack.c.l.b16 %v1761
        %v4830 = vunpack.c.h.b16 %v1761
        %v4831 = vunpack.c.l.b16 %v1762
        %v4832 = vunpack.c.h.b16 %v1762
        %v4833 = vunpack.c.l.b16 %v1763
        %v4834 = vunpack.c.h.b16 %v1763
        %v4835 = vunpack.c.l.b16 %v1764
        %v4836 = vunpack.c.h.b16 %v1764
        %v4837 = vunpack.c.l.b16 %v1765
        %v4838 = vunpack.c.h.b16 %v1765
        %v4839 = vunpack.c.l.b16 %v1766
        %v4840 = vunpack.c.h.b16 %v1766
        %v4841 = vunpack.c.l.b16 %v1767
        %v4842 = vunpack.c.h.b16 %v1767
        %v4843 = vunpack.c.l.b16 %v1768
        %v4844 = vunpack.c.h.b16 %v1768
        %v4845 = vunpack.c.l.b16 %v1769
        %v4846 = vunpack.c.h.b16 %v1769
        %v4847 = vunpack.c.l.b16 %v1770
        %v4848 = vunpack.c.h.b16 %v1770
        %v4849 = vunpack.c.l.b16 %v1771
        %v4850 = vunpack.c.h.b16 %v1771
        %v4851 = vunpack.c.l.b16 %v1772
        %v4852 = vunpack.c.h.b16 %v1772
        %v4853 = vunpack.c.l.b16 %v1773
        %v4854 = vunpack.c.h.b16 %v1773
        %v4855 = vunpack.c.l.b16 %v1774
        %v4856 = vunpack.c.h.b16 %v1774
        %v4857 = vunpack.c.l.b16 %v1775
        %v4858 = vunpack.c.h.b16 %v1775
        %v4859 = vunpack.c.l.b16 %v1776
        %v4860 = vunpack.c.h.b16 %v1776
        %v4861 = vunpack.c.l.b16 %v1777
        %v4862 = vunpack.c.h.b16 %v1777
        %v4863 = vunpack.c.l.b16 %v1778
        %v4864 = vunpack.c.h.b16 %v1778
        %v4865 = vunpack.c.l.b16 %v1779
        %v4866 = vunpack.c.h.b16 %v1779
        %v4867 = vunpack.c.l.b16 %v1780
        %v4868 = vunpack.c.h.b16 %v1780
        %v4869 = vunpack.c.l.b16 %v1781
        %v4870 = vunpack.c.h.b16 %v1781
        %v4871 = vunpack.c.l.b16 %v1782
        %v4872 = vunpack.c.h.b16 %v1782
        %v4873 = vunpack.c.l.b16 %v1783
        %v4874 = vunpack.c.h.b16 %v1783
        %v4875 = vunpack.c.l.b16 %v1784
        %v4876 = vunpack.c.h.b16 %v1784
        %v4877 = vunpack.c.l.b16 %v1785
        %v4878 = vunpack.c.h.b16 %v1785
        %v4879 = vunpack.c.l.b16 %v1786
        %v4880 = vunpack.c.h.b16 %v1786
        %v4881 = vunpack.c.l.b16 %v1787
        %v4882 = vunpack.c.h.b16 %v1787
        %v4883 = vunpack.c.l.b16 %v1788
        %v4884 = vunpack.c.h.b16 %v1788
        %v4885 = vunpack.c.l.b16 %v1789
        %v4886 = vunpack.c.h.b16 %v1789
        %v4887 = vunpack.c.l.b16 %v1790
        %v4888 = vunpack.c.h.b16 %v1790
        %v4889 = vunpack.c.l.b16 %v1791
        %v4890 = vunpack.c.h.b16 %v1791
        %v4891 = vunpack.c.l.b16 %v1792
        %v4892 = vunpack.c.h.b16 %v1792
        %v4893 = vunpack.c.l.b16 %v1793
        %v4894 = vunpack.c.h.b16 %v1793
        %v4895 = vunpack.c.l.b16 %v1794
        %v4896 = vunpack.c.h.b16 %v1794
        %v4897 = vunpack.c.l.b16 %v1795
        %v4898 = vunpack.c.h.b16 %v1795
        %v4899 = vunpack.c.l.b16 %v1796
        %v4900 = vunpack.c.h.b16 %v1796
        %v4901 = vunpack.c.l.b16 %v1797
        %v4902 = vunpack.c.h.b16 %v1797
        %v4903 = vunpack.c.l.b16 %v1798
        %v4904 = vunpack.c.h.b16 %v1798
        %v4905 = vunpack.c.l.b16 %v1799
        %v4906 = vunpack.c.h.b16 %v1799
        %v4907 = vunpack.c.l.b16 %v1800
        %v4908 = vunpack.c.h.b16 %v1800
        %v4909 = vunpack.c.l.b16 %v1801
        %v4910 = vunpack.c.h.b16 %v1801
        %v4911 = vunpack.c.l.b16 %v1802
        %v4912 = vunpack.c.h.b16 %v1802
        %v4913 = vunpack.c.l.b16 %v1803
        %v4914 = vunpack.c.h.b16 %v1803
        %v4915 = vunpack.c.l.b16 %v1804
        %v4916 = vunpack.c.h.b16 %v1804
        %v4917 = vunpack.c.l.b16 %v1805
        %v4918 = vunpack.c.h.b16 %v1805
        %v4919 = vunpack.c.l.b16 %v1806
        %v4920 = vunpack.c.h.b16 %v1806
        %v4921 = vunpack.c.l.b16 %v1807
        %v4922 = vunpack.c.h.b16 %v1807
        %v4923 = vunpack.c.l.b16 %v1808
        %v4924 = vunpack.c.h.b16 %v1808
        %v4925 = vunpack.c.l.b16 %v1809
        %v4926 = vunpack.c.h.b16 %v1809
        %v4927 = vunpack.c.l.b16 %v1810
        %v4928 = vunpack.c.h.b16 %v1810
        %v4929 = vunpack.c.l.b16 %v1811
        %v4930 = vunpack.c.h.b16 %v1811
        %v4931 = vunpack.c.l.b16 %v1812
        %v4932 = vunpack.c.h.b16 %v1812
        %v4933 = vunpack.c.l.b16 %v1813
        %v4934 = vunpack.c.h.b16 %v1813
        %v4935 = vunpack.c.l.b16 %v1814
        %v4936 = vunpack.c.h.b16 %v1814
        %v4937 = vunpack.c.l.b16 %v1815
        %v4938 = vunpack.c.h.b16 %v1815
        %v4939 = vunpack.c.l.b16 %v1816
        %v4940 = vunpack.c.h.b16 %v1816
        %v4941 = vunpack.c.l.b16 %v1817
        %v4942 = vunpack.c.h.b16 %v1817
        %v4943 = vunpack.c.l.b16 %v1818
        %v4944 = vunpack.c.h.b16 %v1818
        %v4945 = vunpack.c.l.b16 %v1819
        %v4946 = vunpack.c.h.b16 %v1819
        %v4947 = vunpack.c.l.b16 %v1820
        %v4948 = vunpack.c.h.b16 %v1820
        %v4949 = vunpack.c.l.b16 %v1821
        %v4950 = vunpack.c.h.b16 %v1821
        %v4951 = vunpack.c.l.b16 %v1822
        %v4952 = vunpack.c.h.b16 %v1822
        %v4953 = vunpack.c.l.b16 %v1823
        %v4954 = vunpack.c.h.b16 %v1823
        %v4955 = vunpack.c.l.b16 %v1824
        %v4956 = vunpack.c.h.b16 %v1824
        %v4957 = vunpack.c.l.b16 %v1825
        %v4958 = vunpack.c.h.b16 %v1825
        %v4959 = vunpack.c.l.b16 %v1826
        %v4960 = vunpack.c.h.b16 %v1826
        %v4961 = vunpack.c.l.b16 %v1827
        %v4962 = vunpack.c.h.b16 %v1827
        %v4963 = vunpack.c.l.b16 %v1828
        %v4964 = vunpack.c.h.b16 %v1828
        %v4965 = vunpack.c.l.b16 %v1829
        %v4966 = vunpack.c.h.b16 %v1829
        %v4967 = vunpack.c.l.b16 %v1830
        %v4968 = vunpack.c.h.b16 %v1830
        %v4969 = vunpack.c.l.b16 %v1831
        %v4970 = vunpack.c.h.b16 %v1831
        %v4971 = vunpack.c.l.b16 %v1832
        %v4972 = vunpack.c.h.b16 %v1832
        %v4973 = vunpack.c.l.b16 %v1833
        %v4974 = vunpack.c.h.b16 %v1833
        %v4975 = vunpack.c.l.b16 %v1834
        %v4976 = vunpack.c.h.b16 %v1834
        %v4977 = vunpack.c.l.b16 %v1835
        %v4978 = vunpack.c.h.b16 %v1835
        %v4979 = vunpack.c.l.b16 %v1836
        %v4980 = vunpack.c.h.b16 %v1836
        %v4981 = vunpack.c.l.b16 %v1837
        %v4982 = vunpack.c.h.b16 %v1837
        %v4983 = vunpack.c.l.b16 %v1838
        %v4984 = vunpack.c.h.b16 %v1838
        %v4985 = vunpack.c.l.b16 %v1839
        %v4986 = vunpack.c.h.b16 %v1839
        %v4987 = vunpack.c.l.b16 %v1840
        %v4988 = vunpack.c.h.b16 %v1840
        %v4989 = vunpack.c.l.b16 %v1841
        %v4990 = vunpack.c.h.b16 %v1841
        %v4991 = vunpack.c.l.b16 %v1842
        %v4992 = vunpack.c.h.b16 %v1842
        %v4993 = vunpack.c.l.b16 %v1843
        %v4994 = vunpack.c.h.b16 %v1843
        %v4995 = vunpack.c.l.b16 %v1844
        %v4996 = vunpack.c.h.b16 %v1844
        %v4997 = vunpack.c.l.b16 %v1845
        %v4998 = vunpack.c.h.b16 %v1845
        %v4999 = vunpack.c.l.b16 %v1846
        %v5000 = vunpack.c.h.b16 %v1846
        %v5001 = vunpack.c.l.b16 %v1847
        %v5002 = vunpack.c.h.b16 %v1847
        %v5003 = vunpack.c.l.b16 %v1848
        %v5004 = vunpack.c.h.b16 %v1848
        %v5005 = vunpack.c.l.b16 %v1849
        %v5006 = vunpack.c.h.b16 %v1849
        %v5007 = vunpack.c.l.b16 %v1850
        %v5008 = vunpack.c.h.b16 %v1850
        %v5009 = vunpack.c.l.b16 %v1851
        %v5010 = vunpack.c.h.b16 %v1851
        %v5011 = vunpack.c.l.b16 %v1852
        %v5012 = vunpack.c.h.b16 %v1852
        %v5013 = vunpack.c.l.b16 %v1853
        %v5014 = vunpack.c.h.b16 %v1853
        %v5015 = vunpack.c.l.b16 %v1854
        %v5016 = vunpack.c.h.b16 %v1854
        %v5017 = vunpack.c.l.b16 %v1855
        %v5018 = vunpack.c.h.b16 %v1855
        %v5019 = vunpack.c.l.b16 %v1856
        %v5020 = vunpack.c.h.b16 %v1856
        %v5021 = vunpack.c.l.b16 %v1857
        %v5022 = vunpack.c.h.b16 %v1857
        %v5023 = vunpack.c.l.b16 %v1858
        %v5024 = vunpack.c.h.b16 %v1858
        %v5025 = vunpack.c.l.b16 %v1859
        %v5026 = vunpack.c.h.b16 %v1859
        %v5027 = vunpack.c.l.b16 %v1860
        %v5028 = vunpack.c.h.b16 %v1860
        %v5029 = vunpack.c.l.b16 %v1861
        %v5030 = vunpack.c.h.b16 %v1861
        %v5031 = vunpack.c.l.b16 %v1862
        %v5032 = vunpack.c.h.b16 %v1862
        %v5033 = vunpack.c.l.b16 %v1863
        %v5034 = vunpack.c.h.b16 %v1863
        %v5035 = vunpack.c.l.b16 %v1864
        %v5036 = vunpack.c.h.b16 %v1864
        %v5037 = vunpack.c.l.b16 %v1865
        %v5038 = vunpack.c.h.b16 %v1865
        %v5039 = vunpack.c.l.b16 %v1866
        %v5040 = vunpack.c.h.b16 %v1866
        %v5041 = vunpack.c.l.b16 %v1867
        %v5042 = vunpack.c.h.b16 %v1867
        %v5043 = vunpack.c.l.b16 %v1868
        %v5044 = vunpack.c.h.b16 %v1868
        %v5045 = vunpack.c.l.b16 %v1869
        %v5046 = vunpack.c.h.b16 %v1869
        %v5047 = vunpack.c.l.b16 %v1870
        %v5048 = vunpack.c.h.b16 %v1870
        %v5049 = vunpack.c.l.b16 %v1871
        %v5050 = vunpack.c.h.b16 %v1871
        %v5051 = vunpack.c.l.b16 %v1872
        %v5052 = vunpack.c.h.b16 %v1872
        %v5053 = vunpack.c.l.b16 %v1873
        %v5054 = vunpack.c.h.b16 %v1873
        %v5055 = vunpack.c.l.b16 %v1874
        %v5056 = vunpack.c.h.b16 %v1874
        %v5057 = vunpack.c.l.b16 %v1875
        %v5058 = vunpack.c.h.b16 %v1875
        %v5059 = vunpack.c.l.b16 %v1876
        %v5060 = vunpack.c.h.b16 %v1876
        %v5061 = vunpack.c.l.b16 %v1877
        %v5062 = vunpack.c.h.b16 %v1877
        %v5063 = vunpack.c.l.b16 %v1878
        %v5064 = vunpack.c.h.b16 %v1878
        %v5065 = vunpack.c.l.b16 %v1879
        %v5066 = vunpack.c.h.b16 %v1879
        %v5067 = vunpack.c.l.b16 %v1880
        %v5068 = vunpack.c.h.b16 %v1880
        %v5069 = vunpack.c.l.b16 %v1881
        %v5070 = vunpack.c.h.b16 %v1881
        %v5071 = vunpack.c.l.b16 %v1882
        %v5072 = vunpack.c.h.b16 %v1882
        %v5073 = vunpack.c.l.b16 %v1883
        %v5074 = vunpack.c.h.b16 %v1883
        %v5075 = vunpack.c.l.b16 %v1884
        %v5076 = vunpack.c.h.b16 %v1884
        %v5077 = vunpack.c.l.b16 %v1885
        %v5078 = vunpack.c.h.b16 %v1885
        %v5079 = vunpack.c.l.b16 %v1886
        %v5080 = vunpack.c.h.b16 %v1886
        %v5081 = vunpack.c.l.b16 %v1887
        %v5082 = vunpack.c.h.b16 %v1887
        %v5083 = vunpack.c.l.b16 %v1888
        %v5084 = vunpack.c.h.b16 %v1888
        %v5085 = vunpack.c.l.b16 %v1889
        %v5086 = vunpack.c.h.b16 %v1889
        %v5087 = vunpack.c.l.b16 %v1890
        %v5088 = vunpack.c.h.b16 %v1890
        %v5089 = vunpack.c.l.b16 %v1891
        %v5090 = vunpack.c.h.b16 %v1891
        %v5091 = vunpack.c.l.b16 %v1892
        %v5092 = vunpack.c.h.b16 %v1892
        %v5093 = vunpack.c.l.b16 %v1893
        %v5094 = vunpack.c.h.b16 %v1893
        %v5095 = vunpack.c.l.b16 %v1894
        %v5096 = vunpack.c.h.b16 %v1894
        %v5097 = vunpack.c.l.b16 %v1895
        %v5098 = vunpack.c.h.b16 %v1895
        %v5099 = vunpack.c.l.b16 %v1896
        %v5100 = vunpack.c.h.b16 %v1896
        %v5101 = vunpack.c.l.b16 %v1897
        %v5102 = vunpack.c.h.b16 %v1897
        %v5103 = vunpack.c.l.b16 %v1898
        %v5104 = vunpack.c.h.b16 %v1898
        %v5105 = vunpack.c.l.b16 %v1899
        %v5106 = vunpack.c.h.b16 %v1899
        %v5107 = vunpack.c.l.b16 %v1900
        %v5108 = vunpack.c.h.b16 %v1900
        %v5109 = vunpack.c.l.b16 %v1901
        %v5110 = vunpack.c.h.b16 %v1901
        %v5111 = vunpack.c.l.b16 %v1902
        %v5112 = vunpack.c.h.b16 %v1902
        %v5113 = vunpack.c.l.b16 %v1903
        %v5114 = vunpack.c.h.b16 %v1903
        %v5115 = vunpack.c.l.b16 %v1904
        %v5116 = vunpack.c.h.b16 %v1904
        %v5117 = vunpack.c.l.b16 %v1905
        %v5118 = vunpack.c.h.b16 %v1905
        %v5119 = vunpack.c.l.b16 %v1906
        %v5120 = vunpack.c.h.b16 %v1906
        %v5121 = vunpack.c.l.b16 %v1907
        %v5122 = vunpack.c.h.b16 %v1907
        %v5123 = vunpack.c.l.b16 %v1908
        %v5124 = vunpack.c.h.b16 %v1908
        %v5125 = vunpack.c.l.b16 %v1909
        %v5126 = vunpack.c.h.b16 %v1909
        %v5127 = vunpack.c.l.b16 %v1910
        %v5128 = vunpack.c.h.b16 %v1910
        %v5129 = vunpack.c.l.b16 %v1911
        %v5130 = vunpack.c.h.b16 %v1911
        %v5131 = vunpack.c.l.b16 %v1912
        %v5132 = vunpack.c.h.b16 %v1912
        %v5133 = vunpack.c.l.b16 %v1913
        %v5134 = vunpack.c.h.b16 %v1913
        %v5135 = vunpack.c.l.b16 %v1914
        %v5136 = vunpack.c.h.b16 %v1914
        %v5137 = vunpack.c.l.b16 %v1915
        %v5138 = vunpack.c.h.b16 %v1915
        %v5139 = vunpack.c.l.b16 %v1916
        %v5140 = vunpack.c.h.b16 %v1916
        %v5141 = vunpack.c.l.b16 %v1917
        %v5142 = vunpack.c.h.b16 %v1917
        %v5143 = vunpack.c.l.b16 %v1918
        %v5144 = vunpack.c.h.b16 %v1918
        %v5145 = vunpack.c.l.b16 %v1919
        %v5146 = vunpack.c.h.b16 %v1919
        %v5147 = vunpack.c.l.b16 %v1920
        %v5148 = vunpack.c.h.b16 %v1920
        %v5149 = vunpack.c.l.b16 %v1921
        %v5150 = vunpack.c.h.b16 %v1921
        %v5151 = vunpack.c.l.b16 %v1922
        %v5152 = vunpack.c.h.b16 %v1922
        %v5153 = vunpack.c.l.b16 %v1923
        %v5154 = vunpack.c.h.b16 %v1923
        %v5155 = vunpack.c.l.b16 %v1924
        %v5156 = vunpack.c.h.b16 %v1924
        %v5157 = vunpack.c.l.b16 %v1925
        %v5158 = vunpack.c.h.b16 %v1925
        %v5159 = vunpack.c.l.b16 %v1926
        %v5160 = vunpack.c.h.b16 %v1926
        %v5161 = vunpack.c.l.b16 %v1927
        %v5162 = vunpack.c.h.b16 %v1927
        %v5163 = vunpack.c.l.b16 %v1928
        %v5164 = vunpack.c.h.b16 %v1928
        %v5165 = vunpack.c.l.b16 %v1929
        %v5166 = vunpack.c.h.b16 %v1929
        %v5167 = vunpack.c.l.b16 %v1930
        %v5168 = vunpack.c.h.b16 %v1930
        %v5169 = vunpack.c.l.b16 %v1931
        %v5170 = vunpack.c.h.b16 %v1931
        %v5171 = vunpack.c.l.b16 %v1932
        %v5172 = vunpack.c.h.b16 %v1932
        %v5173 = vpack.c.b16 %v3157, %v3125
        %v5174 = vpack.c.b16 %v3158, %v3126
        %v5175 = vpack.c.b16 %v3159, %v3127
        %v5176 = vpack.c.b16 %v3160, %v3128
        %v5177 = vpack.c.b16 %v3161, %v3129
        %v5178 = vpack.c.b16 %v3162, %v3130
        %v5179 = vpack.c.b16 %v3163, %v3131
        %v5180 = vpack.c.b16 %v3164, %v3132
        %v5181 = vpack.c.b16 %v3165, %v3133
        %v5182 = vpack.c.b16 %v3166, %v3134
        %v5183 = vpack.c.b16 %v3167, %v3135
        %v5184 = vpack.c.b16 %v3168, %v3136
        %v5185 = vpack.c.b16 %v3169, %v3137
        %v5186 = vpack.c.b16 %v3170, %v3138
        %v5187 = vpack.c.b16 %v3171, %v3139
        %v5188 = vpack.c.b16 %v3172, %v3140
        %v5189 = vpack.c.b16 %v3173, %v3141
        %v5190 = vpack.c.b16 %v3174, %v3142
        %v5191 = vpack.c.b16 %v3175, %v3143
        %v5192 = vpack.c.b16 %v3176, %v3144
        %v5193 = vpack.c.b16 %v3177, %v3145
        %v5194 = vpack.c.b16 %v3178, %v3146
        %v5195 = vpack.c.b16 %v3179, %v3147
        %v5196 = vpack.c.b16 %v3180, %v3148
        %v5197 = vpack.c.b16 %v3181, %v3149
        %v5198 = vpack.c.b16 %v3182, %v3150
        %v5199 = vpack.c.b16 %v3183, %v3151
        %v5200 = vpack.c.b16 %v3184, %v3152
        %v5201 = vpack.c.b16 %v3185, %v3153
        %v5202 = vpack.c.b16 %v3186, %v3154
        %v5203 = vpack.c.b16 %v3187, %v3155
        %v5204 = vpack.c.b16 %v3188, %v3156
        %v5205 = vpack.c.b16 %v3221, %v3189
        %v5206 = vpack.c.b16 %v3222, %v3190
        %v5207 = vpack.c.b16 %v3223, %v3191
        %v5208 = vpack.c.b16 %v3224, %v3192
        %v5209 = vpack.c.b16 %v3225, %v3193
        %v5210 = vpack.c.b16 %v3226, %v3194
        %v5211 = vpack.c.b16 %v3227, %v3195
        %v5212 = vpack.c.b16 %v3228, %v3196
        %v5213 = vpack.c.b16 %v3229, %v3197
        %v5214 = vpack.c.b16 %v3230, %v3198
        %v5215 = vpack.c.b16 %v3231, %v3199
        %v5216 = vpack.c.b16 %v3232, %v3200
        %v5217 = vpack.c.b16 %v3233, %v3201
        %v5218 = vpack.c.b16 %v3234, %v3202
        %v5219 = vpack.c.b16 %v3235, %v3203
        %v5220 = vpack.c.b16 %v3236, %v3204
        %v5221 = vpack.c.b16 %v3237, %v3205
        %v5222 = vpack.c.b16 %v3238, %v3206
        %v5223 = vpack.c.b16 %v3239, %v3207
        %v5224 = vpack.c.b16 %v3240, %v3208
        %v5225 = vpack.c.b16 %v3241, %v3209
        %v5226 = vpack.c.b16 %v3242, %v3210
        %v5227 = vpack.c.b16 %v3243, %v3211
        %v5228 = vpack.c.b16 %v3244, %v3212
        %v5229 = vpack.c.b16 %v3245, %v3213
        %v5230 = vpack.c.b16 %v3246, %v3214
        %v5231 = vpack.c.b16 %v3247, %v3215
        %v5232 = vpack.c.b16 %v3248, %v3216
        %v5233 = vpack.c.b16 %v3249, %v3217
        %v5234 = vpack.c.b16 %v3250, %v3218
        %v5235 = vpack.c.b16 %v3251, %v3219
        %v5236 = vpack.c.b16 %v3252, %v3220
        %v5237 = vpack.c.b16 %v3285, %v3253
        %v5238 = vpack.c.b16 %v3286, %v3254
        %v5239 = vpack.c.b16 %v3287, %v3255
        %v5240 = vpack.c.b16 %v3288, %v3256
        %v5241 = vpack.c.b16 %v3289, %v3257
        %v5242 = vpack.c.b16 %v3290, %v3258
        %v5243 = vpack.c.b16 %v3291, %v3259
        %v5244 = vpack.c.b16 %v3292, %v3260
        %v5245 = vpack.c.b16 %v3293, %v3261
        %v5246 = vpack.c.b16 %v3294, %v3262
        %v5247 = vpack.c.b16 %v3295, %v3263
        %v5248 = vpack.c.b16 %v3296, %v3264
        %v5249 = vpack.c.b16 %v3297, %v3265
        %v5250 = vpack.c.b16 %v3298, %v3266
        %v5251 = vpack.c.b16 %v3299, %v3267
        %v5252 = vpack.c.b16 %v3300, %v3268
        %v5253 = vpack.c.b16 %v3301, %v3269
        %v5254 = vpack.c.b16 %v3302, %v3270
        %v5255 = vpack.c.b16 %v3303, %v3271
        %v5256 = vpack.c.b16 %v3304, %v3272
        %v5257 = vpack.c.b16 %v3305, %v3273
        %v5258 = vpack.c.b16 %v3306, %v3274
        %v5259 = vpack.c.b16 %v3307, %v3275
        %v5260 = vpack.c.b16 %v3308, %v3276
        %v5261 = vpack.c.b16 %v3309, %v3277
        %v5262 = vpack.c.b16 %v3310, %v3278
        %v5263 = vpack.c.b16 %v3311, %v3279
        %v5264 = vpack.c.b16 %v3312, %v3280
        %v5265 = vpack.c.b16 %v3313, %v3281
        %v5266 = vpack.c.b16 %v3314, %v3282
        %v5267 = vpack.c.b16 %v3315, %v3283
        %v5268 = vpack.c.b16 %v3316, %v3284
        %v5269 = vpack.c.b16 %v3349, %v3317
        %v5270 = vpack.c.b16 %v3350, %v3318
        %v5271 = vpack.c.b16 %v3351, %v3319
        %v5272 = vpack.c.b16 %v3352, %v3320
        %v5273 = vpack.c.b16 %v3353, %v3321
        %v5274 = vpack.c.b16 %v3354, %v3322
        %v5275 = vpack.c.b16 %v3355, %v3323
        %v5276 = vpack.c.b16 %v3356, %v3324
        %v5277 = vpack.c.b16 %v3357, %v3325
        %v5278 = vpack.c.b16 %v3358, %v3326
        %v5279 = vpack.c.b16 %v3359, %v3327
        %v5280 = vpack.c.b16 %v3360, %v3328
        %v5281 = vpack.c.b16 %v3361, %v3329
        %v5282 = vpack.c.b16 %v3362, %v3330
        %v5283 = vpack.c.b16 %v3363, %v3331
        %v5284 = vpack.c.b16 %v3364, %v3332
        %v5285 = vpack.c.b16 %v3365, %v3333
        %v5286 = vpack.c.b16 %v3366, %v3334
        %v5287 = vpack.c.b16 %v3367, %v3335
        %v5288 = vpack.c.b16 %v3368, %v3336
        %v5289 = vpack.c.b16 %v3369, %v3337
        %v5290 = vpack.c.b16 %v3370, %v3338
        %v5291 = vpack.c.b16 %v3371, %v3339
        %v5292 = vpack.c.b16 %v3372, %v3340
        %v5293 = vpack.c.b16 %v3373, %v3341
        %v5294 = vpack.c.b16 %v3374, %v3342
        %v5295 = vpack.c.b16 %v3375, %v3343
        %v5296 = vpack.c.b16 %v3376, %v3344
        %v5297 = vpack.c.b16 %v3377, %v3345
        %v5298 = vpack.c.b16 %v3378, %v3346
        %v5299 = vpack.c.b16 %v3379, %v3347
        %v5300 = vpack.c.b16 %v3380, %v3348
        %v5301 = vpack.c.b16 %v3413, %v3381
        %v5302 = vpack.c.b16 %v3414, %v3382
        %v5303 = vpack.c.b16 %v3415, %v3383
        %v5304 = vpack.c.b16 %v3416, %v3384
        %v5305 = vpack.c.b16 %v3417, %v3385
        %v5306 = vpack.c.b16 %v3418, %v3386
        %v5307 = vpack.c.b16 %v3419, %v3387
        %v5308 = vpack.c.b16 %v3420, %v3388
        %v5309 = vpack.c.b16 %v3421, %v3389
        %v5310 = vpack.c.b16 %v3422, %v3390
        %v5311 = vpack.c.b16 %v3423, %v3391
        %v5312 = vpack.c.b16 %v3424, %v3392
        %v5313 = vpack.c.b16 %v3425, %v3393
        %v5314 = vpack.c.b16 %v3426, %v3394
        %v5315 = vpack.c.b16 %v3427, %v3395
        %v5316 = vpack.c.b16 %v3428, %v3396
        %v5317 = vpack.c.b16 %v3429, %v3397
        %v5318 = vpack.c.b16 %v3430, %v3398
        %v5319 = vpack.c.b16 %v3431, %v3399
        %v5320 = vpack.c.b16 %v3432, %v3400
        %v5321 = vpack.c.b16 %v3433, %v3401
        %v5322 = vpack.c.b16 %v3434, %v3402
        %v5323 = vpack.c.b16 %v3435, %v3403
        %v5324 = vpack.c.b16 %v3436, %v3404
        %v5325 = vpack.c.b16 %v3437, %v3405
        %v5326 = vpack.c.b16 %v3438, %v3406
        %v5327 = vpack.c.b16 %v3439, %v3407
        %v5328 = vpack.c.b16 %v3440, %v3408
        %v5329 = vpack.c.b16 %v3441, %v3409
        %v5330 = vpack.c.b16 %v3442, %v3410
        %v5331 = vpack.c.b16 %v3443, %v3411
        %v5332 = vpack.c.b16 %v3444, %v3412
        %v5333 = vpack.c.b16 %v3477, %v3445
        %v5334 = vpack.c.b16 %v3478, %v3446
        %v5335 = vpack.c.b16 %v3479, %v3447
        %v5336 = vpack.c.b16 %v3480, %v3448
        %v5337 = vpack.c.b16 %v3481, %v3449
        %v5338 = vpack.c.b16 %v3482, %v3450
        %v5339 = vpack.c.b16 %v3483, %v3451
        %v5340 = vpack.c.b16 %v3484, %v3452
        %v5341 = vpack.c.b16 %v3485, %v3453
        %v5342 = vpack.c.b16 %v3486, %v3454
        %v5343 = vpack.c.b16 %v3487, %v3455
        %v5344 = vpack.c.b16 %v3488, %v3456
        %v5345 = vpack.c.b16 %v3489, %v3457
        %v5346 = vpack.c.b16 %v3490, %v3458
        %v5347 = vpack.c.b16 %v3491, %v3459
        %v5348 = vpack.c.b16 %v3492, %v3460
        %v5349 = vpack.c.b16 %v3493, %v3461
        %v5350 = vpack.c.b16 %v3494, %v3462
        %v5351 = vpack.c.b16 %v3495, %v3463
        %v5352 = vpack.c.b16 %v3496, %v3464
        %v5353 = vpack.c.b16 %v3497, %v3465
        %v5354 = vpack.c.b16 %v3498, %v3466
        %v5355 = vpack.c.b16 %v3499, %v3467
        %v5356 = vpack.c.b16 %v3500, %v3468
        %v5357 = vpack.c.b16 %v3501, %v3469
        %v5358 = vpack.c.b16 %v3502, %v3470
        %v5359 = vpack.c.b16 %v3503, %v3471
        %v5360 = vpack.c.b16 %v3504, %v3472
        %v5361 = vpack.c.b16 %v3505, %v3473
        %v5362 = vpack.c.b16 %v3506, %v3474
        %v5363 = vpack.c.b16 %v3507, %v3475
        %v5364 = vpack.c.b16 %v3508, %v3476
        %v5365 = vpack.c.b16 %v3541, %v3509
        %v5366 = vpack.c.b16 %v3542, %v3510
        %v5367 = vpack.c.b16 %v3543, %v3511
        %v5368 = vpack.c.b16 %v3544, %v3512
        %v5369 = vpack.c.b16 %v3545, %v3513
        %v5370 = vpack.c.b16 %v3546, %v3514
        %v5371 = vpack.c.b16 %v3547, %v3515
        %v5372 = vpack.c.b16 %v3548, %v3516
        %v5373 = vpack.c.b16 %v3549, %v3517
        %v5374 = vpack.c.b16 %v3550, %v3518
        %v5375 = vpack.c.b16 %v3551, %v3519
        %v5376 = vpack.c.b16 %v3552, %v3520
        %v5377 = vpack.c.b16 %v3553, %v3521
        %v5378 = vpack.c.b16 %v3554, %v3522
        %v5379 = vpack.c.b16 %v3555, %v3523
        %v5380 = vpack.c.b16 %v3556, %v3524
        %v5381 = vpack.c.b16 %v3557, %v3525
        %v5382 = vpack.c.b16 %v3558, %v3526
        %v5383 = vpack.c.b16 %v3559, %v3527
        %v5384 = vpack.c.b16 %v3560, %v3528
        %v5385 = vpack.c.b16 %v3561, %v3529
        %v5386 = vpack.c.b16 %v3562, %v3530
        %v5387 = vpack.c.b16 %v3563, %v3531
        %v5388 = vpack.c.b16 %v3564, %v3532
        %v5389 = vpack.c.b16 %v3565, %v3533
        %v5390 = vpack.c.b16 %v3566, %v3534
        %v5391 = vpack.c.b16 %v3567, %v3535
        %v5392 = vpack.c.b16 %v3568, %v3536
        %v5393 = vpack.c.b16 %v3569, %v3537
        %v5394 = vpack.c.b16 %v3570, %v3538
        %v5395 = vpack.c.b16 %v3571, %v3539
        %v5396 = vpack.c.b16 %v3572, %v3540
        %v5397 = vpack.c.b16 %v3605, %v3573
        %v5398 = vpack.c.b16 %v3606, %v3574
        %v5399 = vpack.c.b16 %v3607, %v3575
        %v5400 = vpack.c.b16 %v3608, %v3576
        %v5401 = vpack.c.b16 %v3609, %v3577
        %v5402 = vpack.c.b16 %v3610, %v3578
        %v5403 = vpack.c.b16 %v3611, %v3579
        %v5404 = vpack.c.b16 %v3612, %v3580
        %v5405 = vpack.c.b16 %v3613, %v3581
        %v5406 = vpack.c.b16 %v3614, %v3582
        %v5407 = vpack.c.b16 %v3615, %v3583
        %v5408 = vpack.c.b16 %v3616, %v3584
        %v5409 = vpack.c.b16 %v3617, %v3585
        %v5410 = vpack.c.b16 %v3618, %v3586
        %v5411 = vpack.c.b16 %v3619, %v3587
        %v5412 = vpack.c.b16 %v3620, %v3588
        %v5413 = vpack.c.b16 %v3621, %v3589
        %v5414 = vpack.c.b16 %v3622, %v3590
        %v5415 = vpack.c.b16 %v3623, %v3591
        %v5416 = vpack.c.b16 %v3624, %v3592
        %v5417 = vpack.c.b16 %v3625, %v3593
        %v5418 = vpack.c.b16 %v3626, %v3594
        %v5419 = vpack.c.b16 %v3627, %v3595
        %v5420 = vpack.c.b16 %v3628, %v3596
        %v5421 = vpack.c.b16 %v3629, %v3597
        %v5422 = vpack.c.b16 %v3630, %v3598
        %v5423 = vpack.c.b16 %v3631, %v3599
        %v5424 = vpack.c.b16 %v3632, %v3600
        %v5425 = vpack.c.b16 %v3633, %v3601
        %v5426 = vpack.c.b16 %v3634, %v3602
        %v5427 = vpack.c.b16 %v3635, %v3603
        %v5428 = vpack.c.b16 %v3636, %v3604
        %v5429 = vpack.c.b16 %v3669, %v3637
        %v5430 = vpack.c.b16 %v3670, %v3638
        %v5431 = vpack.c.b16 %v3671, %v3639
        %v5432 = vpack.c.b16 %v3672, %v3640
        %v5433 = vpack.c.b16 %v3673, %v3641
        %v5434 = vpack.c.b16 %v3674, %v3642
        %v5435 = vpack.c.b16 %v3675, %v3643
        %v5436 = vpack.c.b16 %v3676, %v3644
        %v5437 = vpack.c.b16 %v3677, %v3645
        %v5438 = vpack.c.b16 %v3678, %v3646
        %v5439 = vpack.c.b16 %v3679, %v3647
        %v5440 = vpack.c.b16 %v3680, %v3648
        %v5441 = vpack.c.b16 %v3681, %v3649
        %v5442 = vpack.c.b16 %v3682, %v3650
        %v5443 = vpack.c.b16 %v3683, %v3651
        %v5444 = vpack.c.b16 %v3684, %v3652
        %v5445 = vpack.c.b16 %v3685, %v3653
        %v5446 = vpack.c.b16 %v3686, %v3654
        %v5447 = vpack.c.b16 %v3687, %v3655
        %v5448 = vpack.c.b16 %v3688, %v3656
        %v5449 = vpack.c.b16 %v3689, %v3657
        %v5450 = vpack.c.b16 %v3690, %v3658
        %v5451 = vpack.c.b16 %v3691, %v3659
        %v5452 = vpack.c.b16 %v3692, %v3660
        %v5453 = vpack.c.b16 %v3693, %v3661
        %v5454 = vpack.c.b16 %v3694, %v3662
        %v5455 = vpack.c.b16 %v3695, %v3663
        %v5456 = vpack.c.b16 %v3696, %v3664
        %v5457 = vpack.c.b16 %v3697, %v3665
        %v5458 = vpack.c.b16 %v3698, %v3666
        %v5459 = vpack.c.b16 %v3699, %v3667
        %v5460 = vpack.c.b16 %v3700, %v3668
        %v5461 = vpack.c.b16 %v3733, %v3701
        %v5462 = vpack.c.b16 %v3734, %v3702
        %v5463 = vpack.c.b16 %v3735, %v3703
        %v5464 = vpack.c.b16 %v3736, %v3704
        %v5465 = vpack.c.b16 %v3737, %v3705
        %v5466 = vpack.c.b16 %v3738, %v3706
        %v5467 = vpack.c.b16 %v3739, %v3707
        %v5468 = vpack.c.b16 %v3740, %v3708
        %v5469 = vpack.c.b16 %v3741, %v3709
        %v5470 = vpack.c.b16 %v3742, %v3710
        %v5471 = vpack.c.b16 %v3743, %v3711
        %v5472 = vpack.c.b16 %v3744, %v3712
        %v5473 = vpack.c.b16 %v3745, %v3713
        %v5474 = vpack.c.b16 %v3746, %v3714
        %v5475 = vpack.c.b16 %v3747, %v3715
        %v5476 = vpack.c.b16 %v3748, %v3716
        %v5477 = vpack.c.b16 %v3749, %v3717
        %v5478 = vpack.c.b16 %v3750, %v3718
        %v5479 = vpack.c.b16 %v3751, %v3719
        %v5480 = vpack.c.b16 %v3752, %v3720
        %v5481 = vpack.c.b16 %v3753, %v3721
        %v5482 = vpack.c.b16 %v3754, %v3722
        %v5483 = vpack.c.b16 %v3755, %v3723
        %v5484 = vpack.c.b16 %v3756, %v3724
        %v5485 = vpack.c.b16 %v3757, %v3725
        %v5486 = vpack.c.b16 %v3758, %v3726
        %v5487 = vpack.c.b16 %v3759, %v3727
        %v5488 = vpack.c.b16 %v3760, %v3728
        %v5489 = vpack.c.b16 %v3761, %v3729
        %v5490 = vpack.c.b16 %v3762, %v3730
        %v5491 = vpack.c.b16 %v3763, %v3731
        %v5492 = vpack.c.b16 %v3764, %v3732
        %v5493 = vpack.c.b16 %v3797, %v3765
        %v5494 = vpack.c.b16 %v3798, %v3766
        %v5495 = vpack.c.b16 %v3799, %v3767
        %v5496 = vpack.c.b16 %v3800, %v3768
        %v5497 = vpack.c.b16 %v3801, %v3769
        %v5498 = vpack.c.b16 %v3802, %v3770
        %v5499 = vpack.c.b16 %v3803, %v3771
        %v5500 = vpack.c.b16 %v3804, %v3772
        %v5501 = vpack.c.b16 %v3805, %v3773
        %v5502 = vpack.c.b16 %v3806, %v3774
        %v5503 = vpack.c.b16 %v3807, %v3775
        %v5504 = vpack.c.b16 %v3808, %v3776
        %v5505 = vpack.c.b16 %v3809, %v3777
        %v5506 = vpack.c.b16 %v3810, %v3778
        %v5507 = vpack.c.b16 %v3811, %v3779
        %v5508 = vpack.c.b16 %v3812, %v3780
        %v5509 = vpack.c.b16 %v3813, %v3781
        %v5510 = vpack.c.b16 %v3814, %v3782
        %v5511 = vpack.c.b16 %v3815, %v3783
        %v5512 = vpack.c.b16 %v3816, %v3784
        %v5513 = vpack.c.b16 %v3817, %v3785
        %v5514 = vpack.c.b16 %v3818, %v3786
        %v5515 = vpack.c.b16 %v3819, %v3787
        %v5516 = vpack.c.b16 %v3820, %v3788
        %v5517 = vpack.c.b16 %v3821, %v3789
        %v5518 = vpack.c.b16 %v3822, %v3790
        %v5519 = vpack.c.b16 %v3823, %v3791
        %v5520 = vpack.c.b16 %v3824, %v3792
        %v5521 = vpack.c.b16 %v3825, %v3793
        %v5522 = vpack.c.b16 %v3826, %v3794
        %v5523 = vpack.c.b16 %v3827, %v3795
        %v5524 = vpack.c.b16 %v3828, %v3796
        %v5525 = vpack.c.b16 %v3861, %v3829
        %v5526 = vpack.c.b16 %v3862, %v3830
        %v5527 = vpack.c.b16 %v3863, %v3831
        %v5528 = vpack.c.b16 %v3864, %v3832
        %v5529 = vpack.c.b16 %v3865, %v3833
        %v5530 = vpack.c.b16 %v3866, %v3834
        %v5531 = vpack.c.b16 %v3867, %v3835
        %v5532 = vpack.c.b16 %v3868, %v3836
        %v5533 = vpack.c.b16 %v3869, %v3837
        %v5534 = vpack.c.b16 %v3870, %v3838
        %v5535 = vpack.c.b16 %v3871, %v3839
        %v5536 = vpack.c.b16 %v3872, %v3840
        %v5537 = vpack.c.b16 %v3873, %v3841
        %v5538 = vpack.c.b16 %v3874, %v3842
        %v5539 = vpack.c.b16 %v3875, %v3843
        %v5540 = vpack.c.b16 %v3876, %v3844
        %v5541 = vpack.c.b16 %v3877, %v3845
        %v5542 = vpack.c.b16 %v3878, %v3846
        %v5543 = vpack.c.b16 %v3879, %v3847
        %v5544 = vpack.c.b16 %v3880, %v3848
        %v5545 = vpack.c.b16 %v3881, %v3849
        %v5546 = vpack.c.b16 %v3882, %v3850
        %v5547 = vpack.c.b16 %v3883, %v3851
        %v5548 = vpack.c.b16 %v3884, %v3852
        %v5549 = vpack.c.b16 %v3885, %v3853
        %v5550 = vpack.c.b16 %v3886, %v3854
        %v5551 = vpack.c.b16 %v3887, %v3855
        %v5552 = vpack.c.b16 %v3888, %v3856
        %v5553 = vpack.c.b16 %v3889, %v3857
        %v5554 = vpack.c.b16 %v3890, %v3858
        %v5555 = vpack.c.b16 %v3891, %v3859
        %v5556 = vpack.c.b16 %v3892, %v3860
        %v5557 = vpack.c.b16 %v3925, %v3893
        %v5558 = vpack.c.b16 %v3926, %v3894
        %v5559 = vpack.c.b16 %v3927, %v3895
        %v5560 = vpack.c.b16 %v3928, %v3896
        %v5561 = vpack.c.b16 %v3929, %v3897
        %v5562 = vpack.c.b16 %v3930, %v3898
        %v5563 = vpack.c.b16 %v3931, %v3899
        %v5564 = vpack.c.b16 %v3932, %v3900
        %v5565 = vpack.c.b16 %v3933, %v3901
        %v5566 = vpack.c.b16 %v3934, %v3902
        %v5567 = vpack.c.b16 %v3935, %v3903
        %v5568 = vpack.c.b16 %v3936, %v3904
        %v5569 = vpack.c.b16 %v3937, %v3905
        %v5570 = vpack.c.b16 %v3938, %v3906
        %v5571 = vpack.c.b16 %v3939, %v3907
        %v5572 = vpack.c.b16 %v3940, %v3908
        %v5573 = vpack.c.b16 %v3941, %v3909
        %v5574 = vpack.c.b16 %v3942, %v3910
        %v5575 = vpack.c.b16 %v3943, %v3911
        %v5576 = vpack.c.b16 %v3944, %v3912
        %v5577 = vpack.c.b16 %v3945, %v3913
        %v5578 = vpack.c.b16 %v3946, %v3914
        %v5579 = vpack.c.b16 %v3947, %v3915
        %v5580 = vpack.c.b16 %v3948, %v3916
        %v5581 = vpack.c.b16 %v3949, %v3917
        %v5582 = vpack.c.b16 %v3950, %v3918
        %v5583 = vpack.c.b16 %v3951, %v3919
        %v5584 = vpack.c.b16 %v3952, %v3920
        %v5585 = vpack.c.b16 %v3953, %v3921
        %v5586 = vpack.c.b16 %v3954, %v3922
        %v5587 = vpack.c.b16 %v3955, %v3923
        %v5588 = vpack.c.b16 %v3956, %v3924
        %v5589 = vpack.c.b16 %v3989, %v3957
        %v5590 = vpack.c.b16 %v3990, %v3958
        %v5591 = vpack.c.b16 %v3991, %v3959
        %v5592 = vpack.c.b16 %v3992, %v3960
        %v5593 = vpack.c.b16 %v3993, %v3961
        %v5594 = vpack.c.b16 %v3994, %v3962
        %v5595 = vpack.c.b16 %v3995, %v3963
        %v5596 = vpack.c.b16 %v3996, %v3964
        %v5597 = vpack.c.b16 %v3997, %v3965
        %v5598 = vpack.c.b16 %v3998, %v3966
        %v5599 = vpack.c.b16 %v3999, %v3967
        %v5600 = vpack.c.b16 %v4000, %v3968
        %v5601 = vpack.c.b16 %v4001, %v3969
        %v5602 = vpack.c.b16 %v4002, %v3970
        %v5603 = vpack.c.b16 %v4003, %v3971
        %v5604 = vpack.c.b16 %v4004, %v3972
        %v5605 = vpack.c.b16 %v4005, %v3973
        %v5606 = vpack.c.b16 %v4006, %v3974
        %v5607 = vpack.c.b16 %v4007, %v3975
        %v5608 = vpack.c.b16 %v4008, %v3976
        %v5609 = vpack.c.b16 %v4009, %v3977
        %v5610 = vpack.c.b16 %v4010, %v3978
        %v5611 = vpack.c.b16 %v4011, %v3979
        %v5612 = vpack.c.b16 %v4012, %v3980
        %v5613 = vpack.c.b16 %v4013, %v3981
        %v5614 = vpack.c.b16 %v4014, %v3982
        %v5615 = vpack.c.b16 %v4015, %v3983
        %v5616 = vpack.c.b16 %v4016, %v3984
        %v5617 = vpack.c.b16 %v4017, %v3985
        %v5618 = vpack.c.b16 %v4018, %v3986
        %v5619 = vpack.c.b16 %v4019, %v3987
        %v5620 = vpack.c.b16 %v4020, %v3988
        %v5621 = vpack.c.b16 %v4053, %v4021
        %v5622 = vpack.c.b16 %v4054, %v4022
        %v5623 = vpack.c.b16 %v4055, %v4023
        %v5624 = vpack.c.b16 %v4056, %v4024
        %v5625 = vpack.c.b16 %v4057, %v4025
        %v5626 = vpack.c.b16 %v4058, %v4026
        %v5627 = vpack.c.b16 %v4059, %v4027
        %v5628 = vpack.c.b16 %v4060, %v4028
        %v5629 = vpack.c.b16 %v4061, %v4029
        %v5630 = vpack.c.b16 %v4062, %v4030
        %v5631 = vpack.c.b16 %v4063, %v4031
        %v5632 = vpack.c.b16 %v4064, %v4032
        %v5633 = vpack.c.b16 %v4065, %v4033
        %v5634 = vpack.c.b16 %v4066, %v4034
        %v5635 = vpack.c.b16 %v4067, %v4035
        %v5636 = vpack.c.b16 %v4068, %v4036
        %v5637 = vpack.c.b16 %v4069, %v4037
        %v5638 = vpack.c.b16 %v4070, %v4038
        %v5639 = vpack.c.b16 %v4071, %v4039
        %v5640 = vpack.c.b16 %v4072, %v4040
        %v5641 = vpack.c.b16 %v4073, %v4041
        %v5642 = vpack.c.b16 %v4074, %v4042
        %v5643 = vpack.c.b16 %v4075, %v4043
        %v5644 = vpack.c.b16 %v4076, %v4044
        %v5645 = vpack.c.b16 %v4077, %v4045
        %v5646 = vpack.c.b16 %v4078, %v4046
        %v5647 = vpack.c.b16 %v4079, %v4047
        %v5648 = vpack.c.b16 %v4080, %v4048
        %v5649 = vpack.c.b16 %v4081, %v4049
        %v5650 = vpack.c.b16 %v4082, %v4050
        %v5651 = vpack.c.b16 %v4083, %v4051
        %v5652 = vpack.c.b16 %v4084, %v4052
        %v5653 = vpack.c.b16 %v4117, %v4085
        %v5654 = vpack.c.b16 %v4118, %v4086
        %v5655 = vpack.c.b16 %v4119, %v4087
        %v5656 = vpack.c.b16 %v4120, %v4088
        %v5657 = vpack.c.b16 %v4121, %v4089
        %v5658 = vpack.c.b16 %v4122, %v4090
        %v5659 = vpack.c.b16 %v4123, %v4091
        %v5660 = vpack.c.b16 %v4124, %v4092
        %v5661 = vpack.c.b16 %v4125, %v4093
        %v5662 = vpack.c.b16 %v4126, %v4094
        %v5663 = vpack.c.b16 %v4127, %v4095
        %v5664 = vpack.c.b16 %v4128, %v4096
        %v5665 = vpack.c.b16 %v4129, %v4097
        %v5666 = vpack.c.b16 %v4130, %v4098
        %v5667 = vpack.c.b16 %v4131, %v4099
        %v5668 = vpack.c.b16 %v4132, %v4100
        %v5669 = vpack.c.b16 %v4133, %v4101
        %v5670 = vpack.c.b16 %v4134, %v4102
        %v5671 = vpack.c.b16 %v4135, %v4103
        %v5672 = vpack.c.b16 %v4136, %v4104
        %v5673 = vpack.c.b16 %v4137, %v4105
        %v5674 = vpack.c.b16 %v4138, %v4106
        %v5675 = vpack.c.b16 %v4139, %v4107
        %v5676 = vpack.c.b16 %v4140, %v4108
        %v5677 = vpack.c.b16 %v4141, %v4109
        %v5678 = vpack.c.b16 %v4142, %v4110
        %v5679 = vpack.c.b16 %v4143, %v4111
        %v5680 = vpack.c.b16 %v4144, %v4112
        %v5681 = vpack.c.b16 %v4145, %v4113
        %v5682 = vpack.c.b16 %v4146, %v4114
        %v5683 = vpack.c.b16 %v4147, %v4115
        %v5684 = vpack.c.b16 %v4148, %v4116
        %v5685 = vpack.c.b16 %v4181, %v4149
        %v5686 = vpack.c.b16 %v4182, %v4150
        %v5687 = vpack.c.b16 %v4183, %v4151
        %v5688 = vpack.c.b16 %v4184, %v4152
        %v5689 = vpack.c.b16 %v4185, %v4153
        %v5690 = vpack.c.b16 %v4186, %v4154
        %v5691 = vpack.c.b16 %v4187, %v4155
        %v5692 = vpack.c.b16 %v4188, %v4156
        %v5693 = vpack.c.b16 %v4189, %v4157
        %v5694 = vpack.c.b16 %v4190, %v4158
        %v5695 = vpack.c.b16 %v4191, %v4159
        %v5696 = vpack.c.b16 %v4192, %v4160
        %v5697 = vpack.c.b16 %v4193, %v4161
        %v5698 = vpack.c.b16 %v4194, %v4162
        %v5699 = vpack.c.b16 %v4195, %v4163
        %v5700 = vpack.c.b16 %v4196, %v4164
        %v5701 = vpack.c.b16 %v4197, %v4165
        %v5702 = vpack.c.b16 %v4198, %v4166
        %v5703 = vpack.c.b16 %v4199, %v4167
        %v5704 = vpack.c.b16 %v4200, %v4168
        %v5705 = vpack.c.b16 %v4201, %v4169
        %v5706 = vpack.c.b16 %v4202, %v4170
        %v5707 = vpack.c.b16 %v4203, %v4171
        %v5708 = vpack.c.b16 %v4204, %v4172
        %v5709 = vpack.c.b16 %v4205, %v4173
        %v5710 = vpack.c.b16 %v4206, %v4174
        %v5711 = vpack.c.b16 %v4207, %v4175
        %v5712 = vpack.c.b16 %v4208, %v4176
        %v5713 = vpack.c.b16 %v4209, %v4177
        %v5714 = vpack.c.b16 %v4210, %v4178
        %v5715 = vpack.c.b16 %v4211, %v4179
        %v5716 = vpack.c.b16 %v4212, %v4180
        %v5717 = vpack.c.b16 %v4245, %v4213
        %v5718 = vpack.c.b16 %v4246, %v4214
        %v5719 = vpack.c.b16 %v4247, %v4215
        %v5720 = vpack.c.b16 %v4248, %v4216
        %v5721 = vpack.c.b16 %v4249, %v4217
        %v5722 = vpack.c.b16 %v4250, %v4218
        %v5723 = vpack.c.b16 %v4251, %v4219
        %v5724 = vpack.c.b16 %v4252, %v4220
        %v5725 = vpack.c.b16 %v4253, %v4221
        %v5726 = vpack.c.b16 %v4254, %v4222
        %v5727 = vpack.c.b16 %v4255, %v4223
        %v5728 = vpack.c.b16 %v4256, %v4224
        %v5729 = vpack.c.b16 %v4257, %v4225
        %v5730 = vpack.c.b16 %v4258, %v4226
        %v5731 = vpack.c.b16 %v4259, %v4227
        %v5732 = vpack.c.b16 %v4260, %v4228
        %v5733 = vpack.c.b16 %v4261, %v4229
        %v5734 = vpack.c.b16 %v4262, %v4230
        %v5735 = vpack.c.b16 %v4263, %v4231
        %v5736 = vpack.c.b16 %v4264, %v4232
        %v5737 = vpack.c.b16 %v4265, %v4233
        %v5738 = vpack.c.b16 %v4266, %v4234
        %v5739 = vpack.c.b16 %v4267, %v4235
        %v5740 = vpack.c.b16 %v4268, %v4236
        %v5741 = vpack.c.b16 %v4269, %v4237
        %v5742 = vpack.c.b16 %v4270, %v4238
        %v5743 = vpack.c.b16 %v4271, %v4239
        %v5744 = vpack.c.b16 %v4272, %v4240
        %v5745 = vpack.c.b16 %v4273, %v4241
        %v5746 = vpack.c.b16 %v4274, %v4242
        %v5747 = vpack.c.b16 %v4275, %v4243
        %v5748 = vpack.c.b16 %v4276, %v4244
        %v5749 = vpack.c.b16 %v4309, %v4277
        %v5750 = vpack.c.b16 %v4310, %v4278
        %v5751 = vpack.c.b16 %v4311, %v4279
        %v5752 = vpack.c.b16 %v4312, %v4280
        %v5753 = vpack.c.b16 %v4313, %v4281
        %v5754 = vpack.c.b16 %v4314, %v4282
        %v5755 = vpack.c.b16 %v4315, %v4283
        %v5756 = vpack.c.b16 %v4316, %v4284
        %v5757 = vpack.c.b16 %v4317, %v4285
        %v5758 = vpack.c.b16 %v4318, %v4286
        %v5759 = vpack.c.b16 %v4319, %v4287
        %v5760 = vpack.c.b16 %v4320, %v4288
        %v5761 = vpack.c.b16 %v4321, %v4289
        %v5762 = vpack.c.b16 %v4322, %v4290
        %v5763 = vpack.c.b16 %v4323, %v4291
        %v5764 = vpack.c.b16 %v4324, %v4292
        %v5765 = vpack.c.b16 %v4325, %v4293
        %v5766 = vpack.c.b16 %v4326, %v4294
        %v5767 = vpack.c.b16 %v4327, %v4295
        %v5768 = vpack.c.b16 %v4328, %v4296
        %v5769 = vpack.c.b16 %v4329, %v4297
        %v5770 = vpack.c.b16 %v4330, %v4298
        %v5771 = vpack.c.b16 %v4331, %v4299
        %v5772 = vpack.c.b16 %v4332, %v4300
        %v5773 = vpack.c.b16 %v4333, %v4301
        %v5774 = vpack.c.b16 %v4334, %v4302
        %v5775 = vpack.c.b16 %v4335, %v4303
        %v5776 = vpack.c.b16 %v4336, %v4304
        %v5777 = vpack.c.b16 %v4337, %v4305
        %v5778 = vpack.c.b16 %v4338, %v4306
        %v5779 = vpack.c.b16 %v4339, %v4307
        %v5780 = vpack.c.b16 %v4340, %v4308
        %v5781 = vpack.c.b16 %v4373, %v4341
        %v5782 = vpack.c.b16 %v4374, %v4342
        %v5783 = vpack.c.b16 %v4375, %v4343
        %v5784 = vpack.c.b16 %v4376, %v4344
        %v5785 = vpack.c.b16 %v4377, %v4345
        %v5786 = vpack.c.b16 %v4378, %v4346
        %v5787 = vpack.c.b16 %v4379, %v4347
        %v5788 = vpack.c.b16 %v4380, %v4348
        %v5789 = vpack.c.b16 %v4381, %v4349
        %v5790 = vpack.c.b16 %v4382, %v4350
        %v5791 = vpack.c.b16 %v4383, %v4351
        %v5792 = vpack.c.b16 %v4384, %v4352
        %v5793 = vpack.c.b16 %v4385, %v4353
        %v5794 = vpack.c.b16 %v4386, %v4354
        %v5795 = vpack.c.b16 %v4387, %v4355
        %v5796 = vpack.c.b16 %v4388, %v4356
        %v5797 = vpack.c.b16 %v4389, %v4357
        %v5798 = vpack.c.b16 %v4390, %v4358
        %v5799 = vpack.c.b16 %v4391, %v4359
        %v5800 = vpack.c.b16 %v4392, %v4360
        %v5801 = vpack.c.b16 %v4393, %v4361
        %v5802 = vpack.c.b16 %v4394, %v4362
        %v5803 = vpack.c.b16 %v4395, %v4363
        %v5804 = vpack.c.b16 %v4396, %v4364
        %v5805 = vpack.c.b16 %v4397, %v4365
        %v5806 = vpack.c.b16 %v4398, %v4366
        %v5807 = vpack.c.b16 %v4399, %v4367
        %v5808 = vpack.c.b16 %v4400, %v4368
        %v5809 = vpack.c.b16 %v4401, %v4369
        %v5810 = vpack.c.b16 %v4402, %v4370
        %v5811 = vpack.c.b16 %v4403, %v4371
        %v5812 = vpack.c.b16 %v4404, %v4372
        %v5813 = vpack.c.b16 %v4437, %v4405
        %v5814 = vpack.c.b16 %v4438, %v4406
        %v5815 = vpack.c.b16 %v4439, %v4407
        %v5816 = vpack.c.b16 %v4440, %v4408
        %v5817 = vpack.c.b16 %v4441, %v4409
        %v5818 = vpack.c.b16 %v4442, %v4410
        %v5819 = vpack.c.b16 %v4443, %v4411
        %v5820 = vpack.c.b16 %v4444, %v4412
        %v5821 = vpack.c.b16 %v4445, %v4413
        %v5822 = vpack.c.b16 %v4446, %v4414
        %v5823 = vpack.c.b16 %v4447, %v4415
        %v5824 = vpack.c.b16 %v4448, %v4416
        %v5825 = vpack.c.b16 %v4449, %v4417
        %v5826 = vpack.c.b16 %v4450, %v4418
        %v5827 = vpack.c.b16 %v4451, %v4419
        %v5828 = vpack.c.b16 %v4452, %v4420
        %v5829 = vpack.c.b16 %v4453, %v4421
        %v5830 = vpack.c.b16 %v4454, %v4422
        %v5831 = vpack.c.b16 %v4455, %v4423
        %v5832 = vpack.c.b16 %v4456, %v4424
        %v5833 = vpack.c.b16 %v4457, %v4425
        %v5834 = vpack.c.b16 %v4458, %v4426
        %v5835 = vpack.c.b16 %v4459, %v4427
        %v5836 = vpack.c.b16 %v4460, %v4428
        %v5837 = vpack.c.b16 %v4461, %v4429
        %v5838 = vpack.c.b16 %v4462, %v4430
        %v5839 = vpack.c.b16 %v4463, %v4431
        %v5840 = vpack.c.b16 %v4464, %v4432
        %v5841 = vpack.c.b16 %v4465, %v4433
        %v5842 = vpack.c.b16 %v4466, %v4434
        %v5843 = vpack.c.b16 %v4467, %v4435
        %v5844 = vpack.c.b16 %v4468, %v4436
        %v5845 = vpack.c.b16 %v4501, %v4469
        %v5846 = vpack.c.b16 %v4502, %v4470
        %v5847 = vpack.c.b16 %v4503, %v4471
        %v5848 = vpack.c.b16 %v4504, %v4472
        %v5849 = vpack.c.b16 %v4505, %v4473
        %v5850 = vpack.c.b16 %v4506, %v4474
        %v5851 = vpack.c.b16 %v4507, %v4475
        %v5852 = vpack.c.b16 %v4508, %v4476
        %v5853 = vpack.c.b16 %v4509, %v4477
        %v5854 = vpack.c.b16 %v4510, %v4478
        %v5855 = vpack.c.b16 %v4511, %v4479
        %v5856 = vpack.c.b16 %v4512, %v4480
        %v5857 = vpack.c.b16 %v4513, %v4481
        %v5858 = vpack.c.b16 %v4514, %v4482
        %v5859 = vpack.c.b16 %v4515, %v4483
        %v5860 = vpack.c.b16 %v4516, %v4484
        %v5861 = vpack.c.b16 %v4517, %v4485
        %v5862 = vpack.c.b16 %v4518, %v4486
        %v5863 = vpack.c.b16 %v4519, %v4487
        %v5864 = vpack.c.b16 %v4520, %v4488
        %v5865 = vpack.c.b16 %v4521, %v4489
        %v5866 = vpack.c.b16 %v4522, %v4490
        %v5867 = vpack.c.b16 %v4523, %v4491
        %v5868 = vpack.c.b16 %v4524, %v4492
        %v5869 = vpack.c.b16 %v4525, %v4493
        %v5870 = vpack.c.b16 %v4526, %v4494
        %v5871 = vpack.c.b16 %v4527, %v4495
        %v5872 = vpack.c.b16 %v4528, %v4496
        %v5873 = vpack.c.b16 %v4529, %v4497
        %v5874 = vpack.c.b16 %v4530, %v4498
        %v5875 = vpack.c.b16 %v4531, %v4499
        %v5876 = vpack.c.b16 %v4532, %v4500
        %v5877 = vpack.c.b16 %v4565, %v4533
        %v5878 = vpack.c.b16 %v4566, %v4534
        %v5879 = vpack.c.b16 %v4567, %v4535
        %v5880 = vpack.c.b16 %v4568, %v4536
        %v5881 = vpack.c.b16 %v4569, %v4537
        %v5882 = vpack.c.b16 %v4570, %v4538
        %v5883 = vpack.c.b16 %v4571, %v4539
        %v5884 = vpack.c.b16 %v4572, %v4540
        %v5885 = vpack.c.b16 %v4573, %v4541
        %v5886 = vpack.c.b16 %v4574, %v4542
        %v5887 = vpack.c.b16 %v4575, %v4543
        %v5888 = vpack.c.b16 %v4576, %v4544
        %v5889 = vpack.c.b16 %v4577, %v4545
        %v5890 = vpack.c.b16 %v4578, %v4546
        %v5891 = vpack.c.b16 %v4579, %v4547
        %v5892 = vpack.c.b16 %v4580, %v4548
        %v5893 = vpack.c.b16 %v4581, %v4549
        %v5894 = vpack.c.b16 %v4582, %v4550
        %v5895 = vpack.c.b16 %v4583, %v4551
        %v5896 = vpack.c.b16 %v4584, %v4552
        %v5897 = vpack.c.b16 %v4585, %v4553
        %v5898 = vpack.c.b16 %v4586, %v4554
        %v5899 = vpack.c.b16 %v4587, %v4555
        %v5900 = vpack.c.b16 %v4588, %v4556
        %v5901 = vpack.c.b16 %v4589, %v4557
        %v5902 = vpack.c.b16 %v4590, %v4558
        %v5903 = vpack.c.b16 %v4591, %v4559
        %v5904 = vpack.c.b16 %v4592, %v4560
        %v5905 = vpack.c.b16 %v4593, %v4561
        %v5906 = vpack.c.b16 %v4594, %v4562
        %v5907 = vpack.c.b16 %v4595, %v4563
        %v5908 = vpack.c.b16 %v4596, %v4564
        %v5909 = vpack.c.b16 %v4629, %v4597
        %v5910 = vpack.c.b16 %v4630, %v4598
        %v5911 = vpack.c.b16 %v4631, %v4599
        %v5912 = vpack.c.b16 %v4632, %v4600
        %v5913 = vpack.c.b16 %v4633, %v4601
        %v5914 = vpack.c.b16 %v4634, %v4602
        %v5915 = vpack.c.b16 %v4635, %v4603
        %v5916 = vpack.c.b16 %v4636, %v4604
        %v5917 = vpack.c.b16 %v4637, %v4605
        %v5918 = vpack.c.b16 %v4638, %v4606
        %v5919 = vpack.c.b16 %v4639, %v4607
        %v5920 = vpack.c.b16 %v4640, %v4608
        %v5921 = vpack.c.b16 %v4641, %v4609
        %v5922 = vpack.c.b16 %v4642, %v4610
        %v5923 = vpack.c.b16 %v4643, %v4611
        %v5924 = vpack.c.b16 %v4644, %v4612
        %v5925 = vpack.c.b16 %v4645, %v4613
        %v5926 = vpack.c.b16 %v4646, %v4614
        %v5927 = vpack.c.b16 %v4647, %v4615
        %v5928 = vpack.c.b16 %v4648, %v4616
        %v5929 = vpack.c.b16 %v4649, %v4617
        %v5930 = vpack.c.b16 %v4650, %v4618
        %v5931 = vpack.c.b16 %v4651, %v4619
        %v5932 = vpack.c.b16 %v4652, %v4620
        %v5933 = vpack.c.b16 %v4653, %v4621
        %v5934 = vpack.c.b16 %v4654, %v4622
        %v5935 = vpack.c.b16 %v4655, %v4623
        %v5936 = vpack.c.b16 %v4656, %v4624
        %v5937 = vpack.c.b16 %v4657, %v4625
        %v5938 = vpack.c.b16 %v4658, %v4626
        %v5939 = vpack.c.b16 %v4659, %v4627
        %v5940 = vpack.c.b16 %v4660, %v4628
        %v5941 = vpack.c.b16 %v4693, %v4661
        %v5942 = vpack.c.b16 %v4694, %v4662
        %v5943 = vpack.c.b16 %v4695, %v4663
        %v5944 = vpack.c.b16 %v4696, %v4664
        %v5945 = vpack.c.b16 %v4697, %v4665
        %v5946 = vpack.c.b16 %v4698, %v4666
        %v5947 = vpack.c.b16 %v4699, %v4667
        %v5948 = vpack.c.b16 %v4700, %v4668
        %v5949 = vpack.c.b16 %v4701, %v4669
        %v5950 = vpack.c.b16 %v4702, %v4670
        %v5951 = vpack.c.b16 %v4703, %v4671
        %v5952 = vpack.c.b16 %v4704, %v4672
        %v5953 = vpack.c.b16 %v4705, %v4673
        %v5954 = vpack.c.b16 %v4706, %v4674
        %v5955 = vpack.c.b16 %v4707, %v4675
        %v5956 = vpack.c.b16 %v4708, %v4676
        %v5957 = vpack.c.b16 %v4709, %v4677
        %v5958 = vpack.c.b16 %v4710, %v4678
        %v5959 = vpack.c.b16 %v4711, %v4679
        %v5960 = vpack.c.b16 %v4712, %v4680
        %v5961 = vpack.c.b16 %v4713, %v4681
        %v5962 = vpack.c.b16 %v4714, %v4682
        %v5963 = vpack.c.b16 %v4715, %v4683
        %v5964 = vpack.c.b16 %v4716, %v4684
        %v5965 = vpack.c.b16 %v4717, %v4685
        %v5966 = vpack.c.b16 %v4718, %v4686
        %v5967 = vpack.c.b16 %v4719, %v4687
        %v5968 = vpack.c.b16 %v4720, %v4688
        %v5969 = vpack.c.b16 %v4721, %v4689
        %v5970 = vpack.c.b16 %v4722, %v4690
        %v5971 = vpack.c.b16 %v4723, %v4691
        %v5972 = vpack.c.b16 %v4724, %v4692
        %v5973 = vpack.c.b16 %v4757, %v4725
        %v5974 = vpack.c.b16 %v4758, %v4726
        %v5975 = vpack.c.b16 %v4759, %v4727
        %v5976 = vpack.c.b16 %v4760, %v4728
        %v5977 = vpack.c.b16 %v4761, %v4729
        %v5978 = vpack.c.b16 %v4762, %v4730
        %v5979 = vpack.c.b16 %v4763, %v4731
        %v5980 = vpack.c.b16 %v4764, %v4732
        %v5981 = vpack.c.b16 %v4765, %v4733
        %v5982 = vpack.c.b16 %v4766, %v4734
        %v5983 = vpack.c.b16 %v4767, %v4735
        %v5984 = vpack.c.b16 %v4768, %v4736
        %v5985 = vpack.c.b16 %v4769, %v4737
        %v5986 = vpack.c.b16 %v4770, %v4738
        %v5987 = vpack.c.b16 %v4771, %v4739
        %v5988 = vpack.c.b16 %v4772, %v4740
        %v5989 = vpack.c.b16 %v4773, %v4741
        %v5990 = vpack.c.b16 %v4774, %v4742
        %v5991 = vpack.c.b16 %v4775, %v4743
        %v5992 = vpack.c.b16 %v4776, %v4744
        %v5993 = vpack.c.b16 %v4777, %v4745
        %v5994 = vpack.c.b16 %v4778, %v4746
        %v5995 = vpack.c.b16 %v4779, %v4747
        %v5996 = vpack.c.b16 %v4780, %v4748
        %v5997 = vpack.c.b16 %v4781, %v4749
        %v5998 = vpack.c.b16 %v4782, %v4750
        %v5999 = vpack.c.b16 %v4783, %v4751
        %v6000 = vpack.c.b16 %v4784, %v4752
        %v6001 = vpack.c.b16 %v4785, %v4753
        %v6002 = vpack.c.b16 %v4786, %v4754
        %v6003 = vpack.c.b16 %v4787, %v4755
        %v6004 = vpack.c.b16 %v4788, %v4756
        %v6005 = vpack.c.b16 %v4821, %v4789
        %v6006 = vpack.c.b16 %v4822, %v4790
        %v6007 = vpack.c.b16 %v4823, %v4791
        %v6008 = vpack.c.b16 %v4824, %v4792
        %v6009 = vpack.c.b16 %v4825, %v4793
        %v6010 = vpack.c.b16 %v4826, %v4794
        %v6011 = vpack.c.b16 %v4827, %v4795
        %v6012 = vpack.c.b16 %v4828, %v4796
        %v6013 = vpack.c.b16 %v4829, %v4797
        %v6014 = vpack.c.b16 %v4830, %v4798
        %v6015 = vpack.c.b16 %v4831, %v4799
        %v6016 = vpack.c.b16 %v4832, %v4800
        %v6017 = vpack.c.b16 %v4833, %v4801
        %v6018 = vpack.c.b16 %v4834, %v4802
        %v6019 = vpack.c.b16 %v4835, %v4803
        %v6020 = vpack.c.b16 %v4836, %v4804
        %v6021 = vpack.c.b16 %v4837, %v4805
        %v6022 = vpack.c.b16 %v4838, %v4806
        %v6023 = vpack.c.b16 %v4839, %v4807
        %v6024 = vpack.c.b16 %v4840, %v4808
        %v6025 = vpack.c.b16 %v4841, %v4809
        %v6026 = vpack.c.b16 %v4842, %v4810
        %v6027 = vpack.c.b16 %v4843, %v4811
        %v6028 = vpack.c.b16 %v4844, %v4812
        %v6029 = vpack.c.b16 %v4845, %v4813
        %v6030 = vpack.c.b16 %v4846, %v4814
        %v6031 = vpack.c.b16 %v4847, %v4815
        %v6032 = vpack.c.b16 %v4848, %v4816
        %v6033 = vpack.c.b16 %v4849, %v4817
        %v6034 = vpack.c.b16 %v4850, %v4818
        %v6035 = vpack.c.b16 %v4851, %v4819
        %v6036 = vpack.c.b16 %v4852, %v4820
        %v6037 = vpack.c.b16 %v4885, %v4853
        %v6038 = vpack.c.b16 %v4886, %v4854
        %v6039 = vpack.c.b16 %v4887, %v4855
        %v6040 = vpack.c.b16 %v4888, %v4856
        %v6041 = vpack.c.b16 %v4889, %v4857
        %v6042 = vpack.c.b16 %v4890, %v4858
        %v6043 = vpack.c.b16 %v4891, %v4859
        %v6044 = vpack.c.b16 %v4892, %v4860
        %v6045 = vpack.c.b16 %v4893, %v4861
        %v6046 = vpack.c.b16 %v4894, %v4862
        %v6047 = vpack.c.b16 %v4895, %v4863
        %v6048 = vpack.c.b16 %v4896, %v4864
        %v6049 = vpack.c.b16 %v4897, %v4865
        %v6050 = vpack.c.b16 %v4898, %v4866
        %v6051 = vpack.c.b16 %v4899, %v4867
        %v6052 = vpack.c.b16 %v4900, %v4868
        %v6053 = vpack.c.b16 %v4901, %v4869
        %v6054 = vpack.c.b16 %v4902, %v4870
        %v6055 = vpack.c.b16 %v4903, %v4871
        %v6056 = vpack.c.b16 %v4904, %v4872
        %v6057 = vpack.c.b16 %v4905, %v4873
        %v6058 = vpack.c.b16 %v4906, %v4874
        %v6059 = vpack.c.b16 %v4907, %v4875
        %v6060 = vpack.c.b16 %v4908, %v4876
        %v6061 = vpack.c.b16 %v4909, %v4877
        %v6062 = vpack.c.b16 %v4910, %v4878
        %v6063 = vpack.c.b16 %v4911, %v4879
        %v6064 = vpack.c.b16 %v4912, %v4880
        %v6065 = vpack.c.b16 %v4913, %v4881
        %v6066 = vpack.c.b16 %v4914, %v4882
        %v6067 = vpack.c.b16 %v4915, %v4883
        %v6068 = vpack.c.b16 %v4916, %v4884
        %v6069 = vpack.c.b16 %v4949, %v4917
        %v6070 = vpack.c.b16 %v4950, %v4918
        %v6071 = vpack.c.b16 %v4951, %v4919
        %v6072 = vpack.c.b16 %v4952, %v4920
        %v6073 = vpack.c.b16 %v4953, %v4921
        %v6074 = vpack.c.b16 %v4954, %v4922
        %v6075 = vpack.c.b16 %v4955, %v4923
        %v6076 = vpack.c.b16 %v4956, %v4924
        %v6077 = vpack.c.b16 %v4957, %v4925
        %v6078 = vpack.c.b16 %v4958, %v4926
        %v6079 = vpack.c.b16 %v4959, %v4927
        %v6080 = vpack.c.b16 %v4960, %v4928
        %v6081 = vpack.c.b16 %v4961, %v4929
        %v6082 = vpack.c.b16 %v4962, %v4930
        %v6083 = vpack.c.b16 %v4963, %v4931
        %v6084 = vpack.c.b16 %v4964, %v4932
        %v6085 = vpack.c.b16 %v4965, %v4933
        %v6086 = vpack.c.b16 %v4966, %v4934
        %v6087 = vpack.c.b16 %v4967, %v4935
        %v6088 = vpack.c.b16 %v4968, %v4936
        %v6089 = vpack.c.b16 %v4969, %v4937
        %v6090 = vpack.c.b16 %v4970, %v4938
        %v6091 = vpack.c.b16 %v4971, %v4939
        %v6092 = vpack.c.b16 %v4972, %v4940
        %v6093 = vpack.c.b16 %v4973, %v4941
        %v6094 = vpack.c.b16 %v4974, %v4942
        %v6095 = vpack.c.b16 %v4975, %v4943
        %v6096 = vpack.c.b16 %v4976, %v4944
        %v6097 = vpack.c.b16 %v4977, %v4945
        %v6098 = vpack.c.b16 %v4978, %v4946
        %v6099 = vpack.c.b16 %v4979, %v4947
        %v6100 = vpack.c.b16 %v4980, %v4948
        %v6101 = vpack.c.b16 %v5013, %v4981
        %v6102 = vpack.c.b16 %v5014, %v4982
        %v6103 = vpack.c.b16 %v5015, %v4983
        %v6104 = vpack.c.b16 %v5016, %v4984
        %v6105 = vpack.c.b16 %v5017, %v4985
        %v6106 = vpack.c.b16 %v5018, %v4986
        %v6107 = vpack.c.b16 %v5019, %v4987
        %v6108 = vpack.c.b16 %v5020, %v4988
        %v6109 = vpack.c.b16 %v5021, %v4989
        %v6110 = vpack.c.b16 %v5022, %v4990
        %v6111 = vpack.c.b16 %v5023, %v4991
        %v6112 = vpack.c.b16 %v5024, %v4992
        %v6113 = vpack.c.b16 %v5025, %v4993
        %v6114 = vpack.c.b16 %v5026, %v4994
        %v6115 = vpack.c.b16 %v5027, %v4995
        %v6116 = vpack.c.b16 %v5028, %v4996
        %v6117 = vpack.c.b16 %v5029, %v4997
        %v6118 = vpack.c.b16 %v5030, %v4998
        %v6119 = vpack.c.b16 %v5031, %v4999
        %v6120 = vpack.c.b16 %v5032, %v5000
        %v6121 = vpack.c.b16 %v5033, %v5001
        %v6122 = vpack.c.b16 %v5034, %v5002
        %v6123 = vpack.c.b16 %v5035, %v5003
        %v6124 = vpack.c.b16 %v5036, %v5004
        %v6125 = vpack.c.b16 %v5037, %v5005
        %v6126 = vpack.c.b16 %v5038, %v5006
        %v6127 = vpack.c.b16 %v5039, %v5007
        %v6128 = vpack.c.b16 %v5040, %v5008
        %v6129 = vpack.c.b16 %v5041, %v5009
        %v6130 = vpack.c.b16 %v5042, %v5010
        %v6131 = vpack.c.b16 %v5043, %v5011
        %v6132 = vpack.c.b16 %v5044, %v5012
        %v6133 = vpack.c.b16 %v5077, %v5045
        %v6134 = vpack.c.b16 %v5078, %v5046
        %v6135 = vpack.c.b16 %v5079, %v5047
        %v6136 = vpack.c.b16 %v5080, %v5048
        %v6137 = vpack.c.b16 %v5081, %v5049
        %v6138 = vpack.c.b16 %v5082, %v5050
        %v6139 = vpack.c.b16 %v5083, %v5051
        %v6140 = vpack.c.b16 %v5084, %v5052
        %v6141 = vpack.c.b16 %v5085, %v5053
        %v6142 = vpack.c.b16 %v5086, %v5054
        %v6143 = vpack.c.b16 %v5087, %v5055
        %v6144 = vpack.c.b16 %v5088, %v5056
        %v6145 = vpack.c.b16 %v5089, %v5057
        %v6146 = vpack.c.b16 %v5090, %v5058
        %v6147 = vpack.c.b16 %v5091, %v5059
        %v6148 = vpack.c.b16 %v5092, %v5060
        %v6149 = vpack.c.b16 %v5093, %v5061
        %v6150 = vpack.c.b16 %v5094, %v5062
        %v6151 = vpack.c.b16 %v5095, %v5063
        %v6152 = vpack.c.b16 %v5096, %v5064
        %v6153 = vpack.c.b16 %v5097, %v5065
        %v6154 = vpack.c.b16 %v5098, %v5066
        %v6155 = vpack.c.b16 %v5099, %v5067
        %v6156 = vpack.c.b16 %v5100, %v5068
        %v6157 = vpack.c.b16 %v5101, %v5069
        %v6158 = vpack.c.b16 %v5102, %v5070
        %v6159 = vpack.c.b16 %v5103, %v5071
        %v6160 = vpack.c.b16 %v5104, %v5072
        %v6161 = vpack.c.b16 %v5105, %v5073
        %v6162 = vpack.c.b16 %v5106, %v5074
        %v6163 = vpack.c.b16 %v5107, %v5075
        %v6164 = vpack.c.b16 %v5108, %v5076
        %v6165 = vpack.c.b16 %v5141, %v5109
        %v6166 = vpack.c.b16 %v5142, %v5110
        %v6167 = vpack.c.b16 %v5143, %v5111
        %v6168 = vpack.c.b16 %v5144, %v5112
        %v6169 = vpack.c.b16 %v5145, %v5113
        %v6170 = vpack.c.b16 %v5146, %v5114
        %v6171 = vpack.c.b16 %v5147, %v5115
        %v6172 = vpack.c.b16 %v5148, %v5116
        %v6173 = vpack.c.b16 %v5149, %v5117
        %v6174 = vpack.c.b16 %v5150, %v5118
        %v6175 = vpack.c.b16 %v5151, %v5119
        %v6176 = vpack.c.b16 %v5152, %v5120
        %v6177 = vpack.c.b16 %v5153, %v5121
        %v6178 = vpack.c.b16 %v5154, %v5122
        %v6179 = vpack.c.b16 %v5155, %v5123
        %v6180 = vpack.c.b16 %v5156, %v5124
        %v6181 = vpack.c.b16 %v5157, %v5125
        %v6182 = vpack.c.b16 %v5158, %v5126
        %v6183 = vpack.c.b16 %v5159, %v5127
        %v6184 = vpack.c.b16 %v5160, %v5128
        %v6185 = vpack.c.b16 %v5161, %v5129
        %v6186 = vpack.c.b16 %v5162, %v5130
        %v6187 = vpack.c.b16 %v5163, %v5131
        %v6188 = vpack.c.b16 %v5164, %v5132
        %v6189 = vpack.c.b16 %v5165, %v5133
        %v6190 = vpack.c.b16 %v5166, %v5134
        %v6191 = vpack.c.b16 %v5167, %v5135
        %v6192 = vpack.c.b16 %v5168, %v5136
        %v6193 = vpack.c.b16 %v5169, %v5137
        %v6194 = vpack.c.b16 %v5170, %v5138
        %v6195 = vpack.c.b16 %v5171, %v5139
        %v6196 = vpack.c.b16 %v5172, %v5140
        %7221 = vmatprep.subr.bf16.mxu0 %v5398
        %7222 = vmatpush1.bf16.msra.mxu0 %v5397
        %7223 = vmatprep.subr.bf16.mxu0 %v5366
        %7224 = vmatpush1.bf16.msra.mxu0 %v5365
        %7225 = vmatprep.subr.bf16.mxu0 %v5334
        %7226 = vmatpush1.bf16.msra.mxu0 %v5333
        %7227 = vmatprep.subr.bf16.mxu0 %v5302
        %7228 = vmatpush1.bf16.msra.mxu0 %v5301
        %7229 = vmatprep.subr.bf16.mxu0 %v5270
        %7230 = vmatpush1.bf16.msra.mxu0 %v5269
        %7231 = vmatprep.subr.bf16.mxu0 %v5238
        %7232 = vmatpush1.bf16.msra.mxu0 %v5237
        %7233 = vmatprep.subr.bf16.mxu0 %v5206
        %7234 = vmatpush1.bf16.msra.mxu0 %v5205
        %7235 = vmatprep.subr.bf16.mxu0 %v5174
        %7236 = vmatpush1.bf16.msra.mxu0 %v5173
        %7237 = vmatprep.subr.bf16.mxu0 %v5654
        %7238 = vmatpush2.bf16.msra.mxu0 %v5653
        %7239 = vmatprep.subr.bf16.mxu0 %v5622
        %7240 = vmatpush2.bf16.msra.mxu0 %v5621
        %7241 = vmatprep.subr.bf16.mxu0 %v5590
        %7242 = vmatpush2.bf16.msra.mxu0 %v5589
        %7243 = vmatprep.subr.bf16.mxu0 %v5558
        %7244 = vmatpush2.bf16.msra.mxu0 %v5557
        %7245 = vmatprep.subr.bf16.mxu0 %v5526
        %7246 = vmatpush2.bf16.msra.mxu0 %v5525
        %7247 = vmatprep.subr.bf16.mxu0 %v5494
        %7248 = vmatpush2.bf16.msra.mxu0 %v5493
        %7249 = vmatprep.subr.bf16.mxu0 %v5462
        %7250 = vmatpush2.bf16.msra.mxu0 %v5461
        %7251 = vmatprep.subr.bf16.mxu0 %v5430
        %7252 = vmatpush2.bf16.msra.mxu0 %v5429
        %7253 = vmatprep.mubr.bf16.mxu0 %v906
        %7254 = vmatmul.mubr.bf16.gmra.mxu0 %v905
        %v7255 = vpop.f32.mrf.mxu0
        %v7256 = vadd.f32 %v1944, %v7255
        %v7257 = vpop.f32.mrf.mxu0
        %v7258 = vadd.f32 %v1948, %v7257
        %v7259 = vpop.f32.mrf.mxu0
        %v7260 = vpop.f32.mrf.mxu0
        %7261 = vdwg.mxu0
        %7262 = vmatprep.subr.bf16.mxu0 %v5910
        %7263 = vmatpush1.bf16.msra.mxu0 %v5909
        %7264 = vmatprep.subr.bf16.mxu0 %v5878
        %7265 = vmatpush1.bf16.msra.mxu0 %v5877
        %7266 = vmatprep.subr.bf16.mxu0 %v5846
        %7267 = vmatpush1.bf16.msra.mxu0 %v5845
        %7268 = vmatprep.subr.bf16.mxu0 %v5814
        %7269 = vmatpush1.bf16.msra.mxu0 %v5813
        %7270 = vmatprep.subr.bf16.mxu0 %v5782
        %7271 = vmatpush1.bf16.msra.mxu0 %v5781
        %7272 = vmatprep.subr.bf16.mxu0 %v5750
        %7273 = vmatpush1.bf16.msra.mxu0 %v5749
        %7274 = vmatprep.subr.bf16.mxu0 %v5718
        %7275 = vmatpush1.bf16.msra.mxu0 %v5717
        %7276 = vmatprep.subr.bf16.mxu0 %v5686
        %7277 = vmatpush1.bf16.msra.mxu0 %v5685
        %7278 = vmatprep.subr.bf16.mxu0 %v6166
        %7279 = vmatpush2.bf16.msra.mxu0 %v6165
        %7280 = vmatprep.subr.bf16.mxu0 %v6134
        %7281 = vmatpush2.bf16.msra.mxu0 %v6133
        %7282 = vmatprep.subr.bf16.mxu0 %v6102
        %7283 = vmatpush2.bf16.msra.mxu0 %v6101
        %7284 = vmatprep.subr.bf16.mxu0 %v6070
        %7285 = vmatpush2.bf16.msra.mxu0 %v6069
        %7286 = vmatprep.subr.bf16.mxu0 %v6038
        %7287 = vmatpush2.bf16.msra.mxu0 %v6037
        %7288 = vmatprep.subr.bf16.mxu0 %v6006
        %7289 = vmatpush2.bf16.msra.mxu0 %v6005
        %7290 = vmatprep.subr.bf16.mxu0 %v5974
        %7291 = vmatpush2.bf16.msra.mxu0 %v5973
        %7292 = vmatprep.subr.bf16.mxu0 %v5942
        %7293 = vmatpush2.bf16.msra.mxu0 %v5941
        %7294 = vmatprep.mubr.bf16.mxu0 %v908
        %7295 = vmatmul.mubr.bf16.gmra.mxu0 %v907
        %v7296 = vpop.f32.mrf.mxu0
        %v7297 = vadd.f32 %v7256, %v7296
        %v7298 = vpop.f32.mrf.mxu0
        %v7299 = vadd.f32 %v7258, %v7298
        %v7300 = vpop.f32.mrf.mxu0
        %v7301 = vpop.f32.mrf.mxu0
        %7302 = vdwg.mxu0
        %7303 = vmatprep.subr.bf16.mxu0 %v5400
        %7304 = vmatpush1.bf16.msra.mxu0 %v5399
        %7305 = vmatprep.subr.bf16.mxu0 %v5368
        %7306 = vmatpush1.bf16.msra.mxu0 %v5367
        %7307 = vmatprep.subr.bf16.mxu0 %v5336
        %7308 = vmatpush1.bf16.msra.mxu0 %v5335
        %7309 = vmatprep.subr.bf16.mxu0 %v5304
        %7310 = vmatpush1.bf16.msra.mxu0 %v5303
        %7311 = vmatprep.subr.bf16.mxu0 %v5272
        %7312 = vmatpush1.bf16.msra.mxu0 %v5271
        %7313 = vmatprep.subr.bf16.mxu0 %v5240
        %7314 = vmatpush1.bf16.msra.mxu0 %v5239
        %7315 = vmatprep.subr.bf16.mxu0 %v5208
        %7316 = vmatpush1.bf16.msra.mxu0 %v5207
        %7317 = vmatprep.subr.bf16.mxu0 %v5176
        %7318 = vmatpush1.bf16.msra.mxu0 %v5175
        %7319 = vmatprep.subr.bf16.mxu0 %v5656
        %7320 = vmatpush2.bf16.msra.mxu0 %v5655
        %7321 = vmatprep.subr.bf16.mxu0 %v5624
        %7322 = vmatpush2.bf16.msra.mxu0 %v5623
        %7323 = vmatprep.subr.bf16.mxu0 %v5592
        %7324 = vmatpush2.bf16.msra.mxu0 %v5591
        %7325 = vmatprep.subr.bf16.mxu0 %v5560
        %7326 = vmatpush2.bf16.msra.mxu0 %v5559
        %7327 = vmatprep.subr.bf16.mxu0 %v5528
        %7328 = vmatpush2.bf16.msra.mxu0 %v5527
        %7329 = vmatprep.subr.bf16.mxu0 %v5496
        %7330 = vmatpush2.bf16.msra.mxu0 %v5495
        %7331 = vmatprep.subr.bf16.mxu0 %v5464
        %7332 = vmatpush2.bf16.msra.mxu0 %v5463
        %7333 = vmatprep.subr.bf16.mxu0 %v5432
        %7334 = vmatpush2.bf16.msra.mxu0 %v5431
        %7335 = vmatprep.mubr.bf16.mxu0 %v906
        %7336 = vmatmul.mubr.bf16.gmra.mxu0 %v905
        %v7337 = vpop.f32.mrf.mxu0
        %v7338 = vadd.f32 %v1952, %v7337
        %v7339 = vpop.f32.mrf.mxu0
        %v7340 = vadd.f32 %v1956, %v7339
        %v7341 = vpop.f32.mrf.mxu0
        %v7342 = vpop.f32.mrf.mxu0
        %7343 = vdwg.mxu0
        %7344 = vmatprep.subr.bf16.mxu0 %v5912
        %7345 = vmatpush1.bf16.msra.mxu0 %v5911
        %7346 = vmatprep.subr.bf16.mxu0 %v5880
        %7347 = vmatpush1.bf16.msra.mxu0 %v5879
        %7348 = vmatprep.subr.bf16.mxu0 %v5848
        %7349 = vmatpush1.bf16.msra.mxu0 %v5847
        %7350 = vmatprep.subr.bf16.mxu0 %v5816
        %7351 = vmatpush1.bf16.msra.mxu0 %v5815
        %7352 = vmatprep.subr.bf16.mxu0 %v5784
        %7353 = vmatpush1.bf16.msra.mxu0 %v5783
        %7354 = vmatprep.subr.bf16.mxu0 %v5752
        %7355 = vmatpush1.bf16.msra.mxu0 %v5751
        %7356 = vmatprep.subr.bf16.mxu0 %v5720
        %7357 = vmatpush1.bf16.msra.mxu0 %v5719
        %7358 = vmatprep.subr.bf16.mxu0 %v5688
        %7359 = vmatpush1.bf16.msra.mxu0 %v5687
        %7360 = vmatprep.subr.bf16.mxu0 %v6168
        %7361 = vmatpush2.bf16.msra.mxu0 %v6167
        %7362 = vmatprep.subr.bf16.mxu0 %v6136
        %7363 = vmatpush2.bf16.msra.mxu0 %v6135
        %7364 = vmatprep.subr.bf16.mxu0 %v6104
        %7365 = vmatpush2.bf16.msra.mxu0 %v6103
        %7366 = vmatprep.subr.bf16.mxu0 %v6072
        %7367 = vmatpush2.bf16.msra.mxu0 %v6071
        %7368 = vmatprep.subr.bf16.mxu0 %v6040
        %7369 = vmatpush2.bf16.msra.mxu0 %v6039
        %7370 = vmatprep.subr.bf16.mxu0 %v6008
        %7371 = vmatpush2.bf16.msra.mxu0 %v6007
        %7372 = vmatprep.subr.bf16.mxu0 %v5976
        %7373 = vmatpush2.bf16.msra.mxu0 %v5975
        %7374 = vmatprep.subr.bf16.mxu0 %v5944
        %7375 = vmatpush2.bf16.msra.mxu0 %v5943
        %7376 = vmatprep.mubr.bf16.mxu0 %v908
        %7377 = vmatmul.mubr.bf16.gmra.mxu0 %v907
        %v7378 = vpop.f32.mrf.mxu0
        %v7379 = vadd.f32 %v7338, %v7378
        %v7380 = vpop.f32.mrf.mxu0
        %v7381 = vadd.f32 %v7340, %v7380
        %v7382 = vpop.f32.mrf.mxu0
        %v7383 = vpop.f32.mrf.mxu0
        %7384 = vdwg.mxu0
        %7385 = vmatprep.subr.bf16.mxu0 %v5402
        %7386 = vmatpush1.bf16.msra.mxu0 %v5401
        %7387 = vmatprep.subr.bf16.mxu0 %v5370
        %7388 = vmatpush1.bf16.msra.mxu0 %v5369
        %7389 = vmatprep.subr.bf16.mxu0 %v5338
        %7390 = vmatpush1.bf16.msra.mxu0 %v5337
        %7391 = vmatprep.subr.bf16.mxu0 %v5306
        %7392 = vmatpush1.bf16.msra.mxu0 %v5305
        %7393 = vmatprep.subr.bf16.mxu0 %v5274
        %7394 = vmatpush1.bf16.msra.mxu0 %v5273
        %7395 = vmatprep.subr.bf16.mxu0 %v5242
        %7396 = vmatpush1.bf16.msra.mxu0 %v5241
        %7397 = vmatprep.subr.bf16.mxu0 %v5210
        %7398 = vmatpush1.bf16.msra.mxu0 %v5209
        %7399 = vmatprep.subr.bf16.mxu0 %v5178
        %7400 = vmatpush1.bf16.msra.mxu0 %v5177
        %7401 = vmatprep.subr.bf16.mxu0 %v5658
        %7402 = vmatpush2.bf16.msra.mxu0 %v5657
        %7403 = vmatprep.subr.bf16.mxu0 %v5626
        %7404 = vmatpush2.bf16.msra.mxu0 %v5625
        %7405 = vmatprep.subr.bf16.mxu0 %v5594
        %7406 = vmatpush2.bf16.msra.mxu0 %v5593
        %7407 = vmatprep.subr.bf16.mxu0 %v5562
        %7408 = vmatpush2.bf16.msra.mxu0 %v5561
        %7409 = vmatprep.subr.bf16.mxu0 %v5530
        %7410 = vmatpush2.bf16.msra.mxu0 %v5529
        %7411 = vmatprep.subr.bf16.mxu0 %v5498
        %7412 = vmatpush2.bf16.msra.mxu0 %v5497
        %7413 = vmatprep.subr.bf16.mxu0 %v5466
        %7414 = vmatpush2.bf16.msra.mxu0 %v5465
        %7415 = vmatprep.subr.bf16.mxu0 %v5434
        %7416 = vmatpush2.bf16.msra.mxu0 %v5433
        %7417 = vmatprep.mubr.bf16.mxu0 %v906
        %7418 = vmatmul.mubr.bf16.gmra.mxu0 %v905
        %v7419 = vpop.f32.mrf.mxu0
        %v7420 = vadd.f32 %v1960, %v7419
        %v7421 = vpop.f32.mrf.mxu0
        %v7422 = vadd.f32 %v1964, %v7421
        %v7423 = vpop.f32.mrf.mxu0
        %v7424 = vpop.f32.mrf.mxu0
        %7425 = vdwg.mxu0
        %7426 = vmatprep.subr.bf16.mxu0 %v5914
        %7427 = vmatpush1.bf16.msra.mxu0 %v5913
        %7428 = vmatprep.subr.bf16.mxu0 %v5882
        %7429 = vmatpush1.bf16.msra.mxu0 %v5881
        %7430 = vmatprep.subr.bf16.mxu0 %v5850
        %7431 = vmatpush1.bf16.msra.mxu0 %v5849
        %7432 = vmatprep.subr.bf16.mxu0 %v5818
        %7433 = vmatpush1.bf16.msra.mxu0 %v5817
        %7434 = vmatprep.subr.bf16.mxu0 %v5786
        %7435 = vmatpush1.bf16.msra.mxu0 %v5785
        %7436 = vmatprep.subr.bf16.mxu0 %v5754
        %7437 = vmatpush1.bf16.msra.mxu0 %v5753
        %7438 = vmatprep.subr.bf16.mxu0 %v5722
        %7439 = vmatpush1.bf16.msra.mxu0 %v5721
        %7440 = vmatprep.subr.bf16.mxu0 %v5690
        %7441 = vmatpush1.bf16.msra.mxu0 %v5689
        %7442 = vmatprep.subr.bf16.mxu0 %v6170
        %7443 = vmatpush2.bf16.msra.mxu0 %v6169
        %7444 = vmatprep.subr.bf16.mxu0 %v6138
        %7445 = vmatpush2.bf16.msra.mxu0 %v6137
        %7446 = vmatprep.subr.bf16.mxu0 %v6106
        %7447 = vmatpush2.bf16.msra.mxu0 %v6105
        %7448 = vmatprep.subr.bf16.mxu0 %v6074
        %7449 = vmatpush2.bf16.msra.mxu0 %v6073
        %7450 = vmatprep.subr.bf16.mxu0 %v6042
        %7451 = vmatpush2.bf16.msra.mxu0 %v6041
        %7452 = vmatprep.subr.bf16.mxu0 %v6010
        %7453 = vmatpush2.bf16.msra.mxu0 %v6009
        %7454 = vmatprep.subr.bf16.mxu0 %v5978
        %7455 = vmatpush2.bf16.msra.mxu0 %v5977
        %7456 = vmatprep.subr.bf16.mxu0 %v5946
        %7457 = vmatpush2.bf16.msra.mxu0 %v5945
        %7458 = vmatprep.mubr.bf16.mxu0 %v908
        %7459 = vmatmul.mubr.bf16.gmra.mxu0 %v907
        %v7460 = vpop.f32.mrf.mxu0
        %v7461 = vadd.f32 %v7420, %v7460
        %v7462 = vpop.f32.mrf.mxu0
        %v7463 = vadd.f32 %v7422, %v7462
        %v7464 = vpop.f32.mrf.mxu0
        %v7465 = vpop.f32.mrf.mxu0
        %7466 = vdwg.mxu0
        %7467 = vmatprep.subr.bf16.mxu0 %v5404
        %7468 = vmatpush1.bf16.msra.mxu0 %v5403
        %7469 = vmatprep.subr.bf16.mxu0 %v5372
        %7470 = vmatpush1.bf16.msra.mxu0 %v5371
        %7471 = vmatprep.subr.bf16.mxu0 %v5340
        %7472 = vmatpush1.bf16.msra.mxu0 %v5339
        %7473 = vmatprep.subr.bf16.mxu0 %v5308
        %7474 = vmatpush1.bf16.msra.mxu0 %v5307
        %7475 = vmatprep.subr.bf16.mxu0 %v5276
        %7476 = vmatpush1.bf16.msra.mxu0 %v5275
        %7477 = vmatprep.subr.bf16.mxu0 %v5244
        %7478 = vmatpush1.bf16.msra.mxu0 %v5243
        %7479 = vmatprep.subr.bf16.mxu0 %v5212
        %7480 = vmatpush1.bf16.msra.mxu0 %v5211
        %7481 = vmatprep.subr.bf16.mxu0 %v5180
        %7482 = vmatpush1.bf16.msra.mxu0 %v5179
        %7483 = vmatprep.subr.bf16.mxu0 %v5660
        %7484 = vmatpush2.bf16.msra.mxu0 %v5659
        %7485 = vmatprep.subr.bf16.mxu0 %v5628
        %7486 = vmatpush2.bf16.msra.mxu0 %v5627
        %7487 = vmatprep.subr.bf16.mxu0 %v5596
        %7488 = vmatpush2.bf16.msra.mxu0 %v5595
        %7489 = vmatprep.subr.bf16.mxu0 %v5564
        %7490 = vmatpush2.bf16.msra.mxu0 %v5563
        %7491 = vmatprep.subr.bf16.mxu0 %v5532
        %7492 = vmatpush2.bf16.msra.mxu0 %v5531
        %7493 = vmatprep.subr.bf16.mxu0 %v5500
        %7494 = vmatpush2.bf16.msra.mxu0 %v5499
        %7495 = vmatprep.subr.bf16.mxu0 %v5468
        %7496 = vmatpush2.bf16.msra.mxu0 %v5467
        %7497 = vmatprep.subr.bf16.mxu0 %v5436
        %7498 = vmatpush2.bf16.msra.mxu0 %v5435
        %7499 = vmatprep.mubr.bf16.mxu0 %v906
        %7500 = vmatmul.mubr.bf16.gmra.mxu0 %v905
        %v7501 = vpop.f32.mrf.mxu0
        %v7502 = vadd.f32 %v1968, %v7501
        %v7503 = vpop.f32.mrf.mxu0
        %v7504 = vadd.f32 %v1972, %v7503
        %v7505 = vpop.f32.mrf.mxu0
        %v7506 = vpop.f32.mrf.mxu0
        %7507 = vdwg.mxu0
        %7508 = vmatprep.subr.bf16.mxu0 %v5916
        %7509 = vmatpush1.bf16.msra.mxu0 %v5915
        %7510 = vmatprep.subr.bf16.mxu0 %v5884
        %7511 = vmatpush1.bf16.msra.mxu0 %v5883
        %7512 = vmatprep.subr.bf16.mxu0 %v5852
        %7513 = vmatpush1.bf16.msra.mxu0 %v5851
        %7514 = vmatprep.subr.bf16.mxu0 %v5820
        %7515 = vmatpush1.bf16.msra.mxu0 %v5819
        %7516 = vmatprep.subr.bf16.mxu0 %v5788
        %7517 = vmatpush1.bf16.msra.mxu0 %v5787
        %7518 = vmatprep.subr.bf16.mxu0 %v5756
        %7519 = vmatpush1.bf16.msra.mxu0 %v5755
        %7520 = vmatprep.subr.bf16.mxu0 %v5724
        %7521 = vmatpush1.bf16.msra.mxu0 %v5723
        %7522 = vmatprep.subr.bf16.mxu0 %v5692
        %7523 = vmatpush1.bf16.msra.mxu0 %v5691
        %7524 = vmatprep.subr.bf16.mxu0 %v6172
        %7525 = vmatpush2.bf16.msra.mxu0 %v6171
        %7526 = vmatprep.subr.bf16.mxu0 %v6140
        %7527 = vmatpush2.bf16.msra.mxu0 %v6139
        %7528 = vmatprep.subr.bf16.mxu0 %v6108
        %7529 = vmatpush2.bf16.msra.mxu0 %v6107
        %7530 = vmatprep.subr.bf16.mxu0 %v6076
        %7531 = vmatpush2.bf16.msra.mxu0 %v6075
        %7532 = vmatprep.subr.bf16.mxu0 %v6044
        %7533 = vmatpush2.bf16.msra.mxu0 %v6043
        %7534 = vmatprep.subr.bf16.mxu0 %v6012
        %7535 = vmatpush2.bf16.msra.mxu0 %v6011
        %7536 = vmatprep.subr.bf16.mxu0 %v5980
        %7537 = vmatpush2.bf16.msra.mxu0 %v5979
        %7538 = vmatprep.subr.bf16.mxu0 %v5948
        %7539 = vmatpush2.bf16.msra.mxu0 %v5947
        %7540 = vmatprep.mubr.bf16.mxu0 %v908
        %7541 = vmatmul.mubr.bf16.gmra.mxu0 %v907
        %v7542 = vpop.f32.mrf.mxu0
        %v7543 = vadd.f32 %v7502, %v7542
        %v7544 = vpop.f32.mrf.mxu0
        %v7545 = vadd.f32 %v7504, %v7544
        %v7546 = vpop.f32.mrf.mxu0
        %v7547 = vpop.f32.mrf.mxu0
        %7548 = vdwg.mxu0
        %7549 = vmatprep.subr.bf16.mxu0 %v5406
        %7550 = vmatpush1.bf16.msra.mxu0 %v5405
        %7551 = vmatprep.subr.bf16.mxu0 %v5374
        %7552 = vmatpush1.bf16.msra.mxu0 %v5373
        %7553 = vmatprep.subr.bf16.mxu0 %v5342
        %7554 = vmatpush1.bf16.msra.mxu0 %v5341
        %7555 = vmatprep.subr.bf16.mxu0 %v5310
        %7556 = vmatpush1.bf16.msra.mxu0 %v5309
        %7557 = vmatprep.subr.bf16.mxu0 %v5278
        %7558 = vmatpush1.bf16.msra.mxu0 %v5277
        %7559 = vmatprep.subr.bf16.mxu0 %v5246
        %7560 = vmatpush1.bf16.msra.mxu0 %v5245
        %7561 = vmatprep.subr.bf16.mxu0 %v5214
        %7562 = vmatpush1.bf16.msra.mxu0 %v5213
        %7563 = vmatprep.subr.bf16.mxu0 %v5182
        %7564 = vmatpush1.bf16.msra.mxu0 %v5181
        %7565 = vmatprep.subr.bf16.mxu0 %v5662
        %7566 = vmatpush2.bf16.msra.mxu0 %v5661
        %7567 = vmatprep.subr.bf16.mxu0 %v5630
        %7568 = vmatpush2.bf16.msra.mxu0 %v5629
        %7569 = vmatprep.subr.bf16.mxu0 %v5598
        %7570 = vmatpush2.bf16.msra.mxu0 %v5597
        %7571 = vmatprep.subr.bf16.mxu0 %v5566
        %7572 = vmatpush2.bf16.msra.mxu0 %v5565
        %7573 = vmatprep.subr.bf16.mxu0 %v5534
        %7574 = vmatpush2.bf16.msra.mxu0 %v5533
        %7575 = vmatprep.subr.bf16.mxu0 %v5502
        %7576 = vmatpush2.bf16.msra.mxu0 %v5501
        %7577 = vmatprep.subr.bf16.mxu0 %v5470
        %7578 = vmatpush2.bf16.msra.mxu0 %v5469
        %7579 = vmatprep.subr.bf16.mxu0 %v5438
        %7580 = vmatpush2.bf16.msra.mxu0 %v5437
        %7581 = vmatprep.mubr.bf16.mxu0 %v906
        %7582 = vmatmul.mubr.bf16.gmra.mxu0 %v905
        %v7583 = vpop.f32.mrf.mxu0
        %v7584 = vadd.f32 %v1976, %v7583
        %v7585 = vpop.f32.mrf.mxu0
        %v7586 = vadd.f32 %v1980, %v7585
        %v7587 = vpop.f32.mrf.mxu0
        %v7588 = vpop.f32.mrf.mxu0
        %7589 = vdwg.mxu0
        %7590 = vmatprep.subr.bf16.mxu0 %v5918
        %7591 = vmatpush1.bf16.msra.mxu0 %v5917
        %7592 = vmatprep.subr.bf16.mxu0 %v5886
        %7593 = vmatpush1.bf16.msra.mxu0 %v5885
        %7594 = vmatprep.subr.bf16.mxu0 %v5854
        %7595 = vmatpush1.bf16.msra.mxu0 %v5853
        %7596 = vmatprep.subr.bf16.mxu0 %v5822
        %7597 = vmatpush1.bf16.msra.mxu0 %v5821
        %7598 = vmatprep.subr.bf16.mxu0 %v5790
        %7599 = vmatpush1.bf16.msra.mxu0 %v5789
        %7600 = vmatprep.subr.bf16.mxu0 %v5758
        %7601 = vmatpush1.bf16.msra.mxu0 %v5757
        %7602 = vmatprep.subr.bf16.mxu0 %v5726
        %7603 = vmatpush1.bf16.msra.mxu0 %v5725
        %7604 = vmatprep.subr.bf16.mxu0 %v5694
        %7605 = vmatpush1.bf16.msra.mxu0 %v5693
        %7606 = vmatprep.subr.bf16.mxu0 %v6174
        %7607 = vmatpush2.bf16.msra.mxu0 %v6173
        %7608 = vmatprep.subr.bf16.mxu0 %v6142
        %7609 = vmatpush2.bf16.msra.mxu0 %v6141
        %7610 = vmatprep.subr.bf16.mxu0 %v6110
        %7611 = vmatpush2.bf16.msra.mxu0 %v6109
        %7612 = vmatprep.subr.bf16.mxu0 %v6078
        %7613 = vmatpush2.bf16.msra.mxu0 %v6077
        %7614 = vmatprep.subr.bf16.mxu0 %v6046
        %7615 = vmatpush2.bf16.msra.mxu0 %v6045
        %7616 = vmatprep.subr.bf16.mxu0 %v6014
        %7617 = vmatpush2.bf16.msra.mxu0 %v6013
        %7618 = vmatprep.subr.bf16.mxu0 %v5982
        %7619 = vmatpush2.bf16.msra.mxu0 %v5981
        %7620 = vmatprep.subr.bf16.mxu0 %v5950
        %7621 = vmatpush2.bf16.msra.mxu0 %v5949
        %7622 = vmatprep.mubr.bf16.mxu0 %v908
        %7623 = vmatmul.mubr.bf16.gmra.mxu0 %v907
        %v7624 = vpop.f32.mrf.mxu0
        %v7625 = vadd.f32 %v7584, %v7624
        %v7626 = vpop.f32.mrf.mxu0
        %v7627 = vadd.f32 %v7586, %v7626
        %v7628 = vpop.f32.mrf.mxu0
        %v7629 = vpop.f32.mrf.mxu0
        %7630 = vdwg.mxu0
        %7631 = vmatprep.subr.bf16.mxu0 %v5408
        %7632 = vmatpush1.bf16.msra.mxu0 %v5407
        %7633 = vmatprep.subr.bf16.mxu0 %v5376
        %7634 = vmatpush1.bf16.msra.mxu0 %v5375
        %7635 = vmatprep.subr.bf16.mxu0 %v5344
        %7636 = vmatpush1.bf16.msra.mxu0 %v5343
        %7637 = vmatprep.subr.bf16.mxu0 %v5312
        %7638 = vmatpush1.bf16.msra.mxu0 %v5311
        %7639 = vmatprep.subr.bf16.mxu0 %v5280
        %7640 = vmatpush1.bf16.msra.mxu0 %v5279
        %7641 = vmatprep.subr.bf16.mxu0 %v5248
        %7642 = vmatpush1.bf16.msra.mxu0 %v5247
        %7643 = vmatprep.subr.bf16.mxu0 %v5216
        %7644 = vmatpush1.bf16.msra.mxu0 %v5215
        %7645 = vmatprep.subr.bf16.mxu0 %v5184
        %7646 = vmatpush1.bf16.msra.mxu0 %v5183
        %7647 = vmatprep.subr.bf16.mxu0 %v5664
        %7648 = vmatpush2.bf16.msra.mxu0 %v5663
        %7649 = vmatprep.subr.bf16.mxu0 %v5632
        %7650 = vmatpush2.bf16.msra.mxu0 %v5631
        %7651 = vmatprep.subr.bf16.mxu0 %v5600
        %7652 = vmatpush2.bf16.msra.mxu0 %v5599
        %7653 = vmatprep.subr.bf16.mxu0 %v5568
        %7654 = vmatpush2.bf16.msra.mxu0 %v5567
        %7655 = vmatprep.subr.bf16.mxu0 %v5536
        %7656 = vmatpush2.bf16.msra.mxu0 %v5535
        %7657 = vmatprep.subr.bf16.mxu0 %v5504
        %7658 = vmatpush2.bf16.msra.mxu0 %v5503
        %7659 = vmatprep.subr.bf16.mxu0 %v5472
        %7660 = vmatpush2.bf16.msra.mxu0 %v5471
        %7661 = vmatprep.subr.bf16.mxu0 %v5440
        %7662 = vmatpush2.bf16.msra.mxu0 %v5439
        %7663 = vmatprep.mubr.bf16.mxu0 %v906
        %7664 = vmatmul.mubr.bf16.gmra.mxu0 %v905
        %v7665 = vpop.f32.mrf.mxu0
        %v7666 = vadd.f32 %v1984, %v7665
        %v7667 = vpop.f32.mrf.mxu0
        %v7668 = vadd.f32 %v1988, %v7667
        %v7669 = vpop.f32.mrf.mxu0
        %v7670 = vpop.f32.mrf.mxu0
        %7671 = vdwg.mxu0
        %7672 = vmatprep.subr.bf16.mxu0 %v5920
        %7673 = vmatpush1.bf16.msra.mxu0 %v5919
        %7674 = vmatprep.subr.bf16.mxu0 %v5888
        %7675 = vmatpush1.bf16.msra.mxu0 %v5887
        %7676 = vmatprep.subr.bf16.mxu0 %v5856
        %7677 = vmatpush1.bf16.msra.mxu0 %v5855
        %7678 = vmatprep.subr.bf16.mxu0 %v5824
        %7679 = vmatpush1.bf16.msra.mxu0 %v5823
        %7680 = vmatprep.subr.bf16.mxu0 %v5792
        %7681 = vmatpush1.bf16.msra.mxu0 %v5791
        %7682 = vmatprep.subr.bf16.mxu0 %v5760
        %7683 = vmatpush1.bf16.msra.mxu0 %v5759
        %7684 = vmatprep.subr.bf16.mxu0 %v5728
        %7685 = vmatpush1.bf16.msra.mxu0 %v5727
        %7686 = vmatprep.subr.bf16.mxu0 %v5696
        %7687 = vmatpush1.bf16.msra.mxu0 %v5695
        %7688 = vmatprep.subr.bf16.mxu0 %v6176
        %7689 = vmatpush2.bf16.msra.mxu0 %v6175
        %7690 = vmatprep.subr.bf16.mxu0 %v6144
        %7691 = vmatpush2.bf16.msra.mxu0 %v6143
        %7692 = vmatprep.subr.bf16.mxu0 %v6112
        %7693 = vmatpush2.bf16.msra.mxu0 %v6111
        %7694 = vmatprep.subr.bf16.mxu0 %v6080
        %7695 = vmatpush2.bf16.msra.mxu0 %v6079
        %7696 = vmatprep.subr.bf16.mxu0 %v6048
        %7697 = vmatpush2.bf16.msra.mxu0 %v6047
        %7698 = vmatprep.subr.bf16.mxu0 %v6016
        %7699 = vmatpush2.bf16.msra.mxu0 %v6015
        %7700 = vmatprep.subr.bf16.mxu0 %v5984
        %7701 = vmatpush2.bf16.msra.mxu0 %v5983
        %7702 = vmatprep.subr.bf16.mxu0 %v5952
        %7703 = vmatpush2.bf16.msra.mxu0 %v5951
        %7704 = vmatprep.mubr.bf16.mxu0 %v908
        %7705 = vmatmul.mubr.bf16.gmra.mxu0 %v907
        %v7706 = vpop.f32.mrf.mxu0
        %v7707 = vadd.f32 %v7666, %v7706
        %v7708 = vpop.f32.mrf.mxu0
        %v7709 = vadd.f32 %v7668, %v7708
        %v7710 = vpop.f32.mrf.mxu0
        %v7711 = vpop.f32.mrf.mxu0
        %7712 = vdwg.mxu0
        %7713 = vmatprep.subr.bf16.mxu0 %v5410
        %7714 = vmatpush1.bf16.msra.mxu0 %v5409
        %7715 = vmatprep.subr.bf16.mxu0 %v5378
        %7716 = vmatpush1.bf16.msra.mxu0 %v5377
        %7717 = vmatprep.subr.bf16.mxu0 %v5346
        %7718 = vmatpush1.bf16.msra.mxu0 %v5345
        %7719 = vmatprep.subr.bf16.mxu0 %v5314
        %7720 = vmatpush1.bf16.msra.mxu0 %v5313
        %7721 = vmatprep.subr.bf16.mxu0 %v5282
        %7722 = vmatpush1.bf16.msra.mxu0 %v5281
        %7723 = vmatprep.subr.bf16.mxu0 %v5250
        %7724 = vmatpush1.bf16.msra.mxu0 %v5249
        %7725 = vmatprep.subr.bf16.mxu0 %v5218
        %7726 = vmatpush1.bf16.msra.mxu0 %v5217
        %7727 = vmatprep.subr.bf16.mxu0 %v5186
        %7728 = vmatpush1.bf16.msra.mxu0 %v5185
        %7729 = vmatprep.subr.bf16.mxu0 %v5666
        %7730 = vmatpush2.bf16.msra.mxu0 %v5665
        %7731 = vmatprep.subr.bf16.mxu0 %v5634
        %7732 = vmatpush2.bf16.msra.mxu0 %v5633
        %7733 = vmatprep.subr.bf16.mxu0 %v5602
        %7734 = vmatpush2.bf16.msra.mxu0 %v5601
        %7735 = vmatprep.subr.bf16.mxu0 %v5570
        %7736 = vmatpush2.bf16.msra.mxu0 %v5569
        %7737 = vmatprep.subr.bf16.mxu0 %v5538
        %7738 = vmatpush2.bf16.msra.mxu0 %v5537
        %7739 = vmatprep.subr.bf16.mxu0 %v5506
        %7740 = vmatpush2.bf16.msra.mxu0 %v5505
        %7741 = vmatprep.subr.bf16.mxu0 %v5474
        %7742 = vmatpush2.bf16.msra.mxu0 %v5473
        %7743 = vmatprep.subr.bf16.mxu0 %v5442
        %7744 = vmatpush2.bf16.msra.mxu0 %v5441
        %7745 = vmatprep.mubr.bf16.mxu0 %v906
        %7746 = vmatmul.mubr.bf16.gmra.mxu0 %v905
        %v7747 = vpop.f32.mrf.mxu0
        %v7748 = vadd.f32 %v1992, %v7747
        %v7749 = vpop.f32.mrf.mxu0
        %v7750 = vadd.f32 %v1996, %v7749
        %v7751 = vpop.f32.mrf.mxu0
        %v7752 = vpop.f32.mrf.mxu0
        %7753 = vdwg.mxu0
        %7754 = vmatprep.subr.bf16.mxu0 %v5922
        %7755 = vmatpush1.bf16.msra.mxu0 %v5921
        %7756 = vmatprep.subr.bf16.mxu0 %v5890
        %7757 = vmatpush1.bf16.msra.mxu0 %v5889
        %7758 = vmatprep.subr.bf16.mxu0 %v5858
        %7759 = vmatpush1.bf16.msra.mxu0 %v5857
        %7760 = vmatprep.subr.bf16.mxu0 %v5826
        %7761 = vmatpush1.bf16.msra.mxu0 %v5825
        %7762 = vmatprep.subr.bf16.mxu0 %v5794
        %7763 = vmatpush1.bf16.msra.mxu0 %v5793
        %7764 = vmatprep.subr.bf16.mxu0 %v5762
        %7765 = vmatpush1.bf16.msra.mxu0 %v5761
        %7766 = vmatprep.subr.bf16.mxu0 %v5730
        %7767 = vmatpush1.bf16.msra.mxu0 %v5729
        %7768 = vmatprep.subr.bf16.mxu0 %v5698
        %7769 = vmatpush1.bf16.msra.mxu0 %v5697
        %7770 = vmatprep.subr.bf16.mxu0 %v6178
        %7771 = vmatpush2.bf16.msra.mxu0 %v6177
        %7772 = vmatprep.subr.bf16.mxu0 %v6146
        %7773 = vmatpush2.bf16.msra.mxu0 %v6145
        %7774 = vmatprep.subr.bf16.mxu0 %v6114
        %7775 = vmatpush2.bf16.msra.mxu0 %v6113
        %7776 = vmatprep.subr.bf16.mxu0 %v6082
        %7777 = vmatpush2.bf16.msra.mxu0 %v6081
        %7778 = vmatprep.subr.bf16.mxu0 %v6050
        %7779 = vmatpush2.bf16.msra.mxu0 %v6049
        %7780 = vmatprep.subr.bf16.mxu0 %v6018
        %7781 = vmatpush2.bf16.msra.mxu0 %v6017
        %7782 = vmatprep.subr.bf16.mxu0 %v5986
        %7783 = vmatpush2.bf16.msra.mxu0 %v5985
        %7784 = vmatprep.subr.bf16.mxu0 %v5954
        %7785 = vmatpush2.bf16.msra.mxu0 %v5953
        %7786 = vmatprep.mubr.bf16.mxu0 %v908
        %7787 = vmatmul.mubr.bf16.gmra.mxu0 %v907
        %v7788 = vpop.f32.mrf.mxu0
        %v7789 = vadd.f32 %v7748, %v7788
        %v7790 = vpop.f32.mrf.mxu0
        %v7791 = vadd.f32 %v7750, %v7790
        %v7792 = vpop.f32.mrf.mxu0
        %v7793 = vpop.f32.mrf.mxu0
        %7794 = vdwg.mxu0
        %7795 = vmatprep.subr.bf16.mxu0 %v5412
        %7796 = vmatpush1.bf16.msra.mxu0 %v5411
        %7797 = vmatprep.subr.bf16.mxu0 %v5380
        %7798 = vmatpush1.bf16.msra.mxu0 %v5379
        %7799 = vmatprep.subr.bf16.mxu0 %v5348
        %7800 = vmatpush1.bf16.msra.mxu0 %v5347
        %7801 = vmatprep.subr.bf16.mxu0 %v5316
        %7802 = vmatpush1.bf16.msra.mxu0 %v5315
        %7803 = vmatprep.subr.bf16.mxu0 %v5284
        %7804 = vmatpush1.bf16.msra.mxu0 %v5283
        %7805 = vmatprep.subr.bf16.mxu0 %v5252
        %7806 = vmatpush1.bf16.msra.mxu0 %v5251
        %7807 = vmatprep.subr.bf16.mxu0 %v5220
        %7808 = vmatpush1.bf16.msra.mxu0 %v5219
        %7809 = vmatprep.subr.bf16.mxu0 %v5188
        %7810 = vmatpush1.bf16.msra.mxu0 %v5187
        %7811 = vmatprep.subr.bf16.mxu0 %v5668
        %7812 = vmatpush2.bf16.msra.mxu0 %v5667
        %7813 = vmatprep.subr.bf16.mxu0 %v5636
        %7814 = vmatpush2.bf16.msra.mxu0 %v5635
        %7815 = vmatprep.subr.bf16.mxu0 %v5604
        %7816 = vmatpush2.bf16.msra.mxu0 %v5603
        %7817 = vmatprep.subr.bf16.mxu0 %v5572
        %7818 = vmatpush2.bf16.msra.mxu0 %v5571
        %7819 = vmatprep.subr.bf16.mxu0 %v5540
        %7820 = vmatpush2.bf16.msra.mxu0 %v5539
        %7821 = vmatprep.subr.bf16.mxu0 %v5508
        %7822 = vmatpush2.bf16.msra.mxu0 %v5507
        %7823 = vmatprep.subr.bf16.mxu0 %v5476
        %7824 = vmatpush2.bf16.msra.mxu0 %v5475
        %7825 = vmatprep.subr.bf16.mxu0 %v5444
        %7826 = vmatpush2.bf16.msra.mxu0 %v5443
        %7827 = vmatprep.mubr.bf16.mxu0 %v906
        %7828 = vmatmul.mubr.bf16.gmra.mxu0 %v905
        %v7829 = vpop.f32.mrf.mxu0
        %v7830 = vadd.f32 %v2000, %v7829
        %v7831 = vpop.f32.mrf.mxu0
        %v7832 = vadd.f32 %v2004, %v7831
        %v7833 = vpop.f32.mrf.mxu0
        %v7834 = vpop.f32.mrf.mxu0
        %7835 = vdwg.mxu0
        %7836 = vmatprep.subr.bf16.mxu0 %v5924
        %7837 = vmatpush1.bf16.msra.mxu0 %v5923
        %7838 = vmatprep.subr.bf16.mxu0 %v5892
        %7839 = vmatpush1.bf16.msra.mxu0 %v5891
        %7840 = vmatprep.subr.bf16.mxu0 %v5860
        %7841 = vmatpush1.bf16.msra.mxu0 %v5859
        %7842 = vmatprep.subr.bf16.mxu0 %v5828
        %7843 = vmatpush1.bf16.msra.mxu0 %v5827
        %7844 = vmatprep.subr.bf16.mxu0 %v5796
        %7845 = vmatpush1.bf16.msra.mxu0 %v5795
        %7846 = vmatprep.subr.bf16.mxu0 %v5764
        %7847 = vmatpush1.bf16.msra.mxu0 %v5763
        %7848 = vmatprep.subr.bf16.mxu0 %v5732
        %7849 = vmatpush1.bf16.msra.mxu0 %v5731
        %7850 = vmatprep.subr.bf16.mxu0 %v5700
        %7851 = vmatpush1.bf16.msra.mxu0 %v5699
        %7852 = vmatprep.subr.bf16.mxu0 %v6180
        %7853 = vmatpush2.bf16.msra.mxu0 %v6179
        %7854 = vmatprep.subr.bf16.mxu0 %v6148
        %7855 = vmatpush2.bf16.msra.mxu0 %v6147
        %7856 = vmatprep.subr.bf16.mxu0 %v6116
        %7857 = vmatpush2.bf16.msra.mxu0 %v6115
        %7858 = vmatprep.subr.bf16.mxu0 %v6084
        %7859 = vmatpush2.bf16.msra.mxu0 %v6083
        %7860 = vmatprep.subr.bf16.mxu0 %v6052
        %7861 = vmatpush2.bf16.msra.mxu0 %v6051
        %7862 = vmatprep.subr.bf16.mxu0 %v6020
        %7863 = vmatpush2.bf16.msra.mxu0 %v6019
        %7864 = vmatprep.subr.bf16.mxu0 %v5988
        %7865 = vmatpush2.bf16.msra.mxu0 %v5987
        %7866 = vmatprep.subr.bf16.mxu0 %v5956
        %7867 = vmatpush2.bf16.msra.mxu0 %v5955
        %7868 = vmatprep.mubr.bf16.mxu0 %v908
        %7869 = vmatmul.mubr.bf16.gmra.mxu0 %v907
        %v7870 = vpop.f32.mrf.mxu0
        %v7871 = vadd.f32 %v7830, %v7870
        %v7872 = vpop.f32.mrf.mxu0
        %v7873 = vadd.f32 %v7832, %v7872
        %v7874 = vpop.f32.mrf.mxu0
        %v7875 = vpop.f32.mrf.mxu0
        %7876 = vdwg.mxu0
        %7877 = vmatprep.subr.bf16.mxu0 %v5414
        %7878 = vmatpush1.bf16.msra.mxu0 %v5413
        %7879 = vmatprep.subr.bf16.mxu0 %v5382
        %7880 = vmatpush1.bf16.msra.mxu0 %v5381
        %7881 = vmatprep.subr.bf16.mxu0 %v5350
        %7882 = vmatpush1.bf16.msra.mxu0 %v5349
        %7883 = vmatprep.subr.bf16.mxu0 %v5318
        %7884 = vmatpush1.bf16.msra.mxu0 %v5317
        %7885 = vmatprep.subr.bf16.mxu0 %v5286
        %7886 = vmatpush1.bf16.msra.mxu0 %v5285
        %7887 = vmatprep.subr.bf16.mxu0 %v5254
        %7888 = vmatpush1.bf16.msra.mxu0 %v5253
        %7889 = vmatprep.subr.bf16.mxu0 %v5222
        %7890 = vmatpush1.bf16.msra.mxu0 %v5221
        %7891 = vmatprep.subr.bf16.mxu0 %v5190
        %7892 = vmatpush1.bf16.msra.mxu0 %v5189
        %7893 = vmatprep.subr.bf16.mxu0 %v5670
        %7894 = vmatpush2.bf16.msra.mxu0 %v5669
        %7895 = vmatprep.subr.bf16.mxu0 %v5638
        %7896 = vmatpush2.bf16.msra.mxu0 %v5637
        %7897 = vmatprep.subr.bf16.mxu0 %v5606
        %7898 = vmatpush2.bf16.msra.mxu0 %v5605
        %7899 = vmatprep.subr.bf16.mxu0 %v5574
        %7900 = vmatpush2.bf16.msra.mxu0 %v5573
        %7901 = vmatprep.subr.bf16.mxu0 %v5542
        %7902 = vmatpush2.bf16.msra.mxu0 %v5541
        %7903 = vmatprep.subr.bf16.mxu0 %v5510
        %7904 = vmatpush2.bf16.msra.mxu0 %v5509
        %7905 = vmatprep.subr.bf16.mxu0 %v5478
        %7906 = vmatpush2.bf16.msra.mxu0 %v5477
        %7907 = vmatprep.subr.bf16.mxu0 %v5446
        %7908 = vmatpush2.bf16.msra.mxu0 %v5445
        %7909 = vmatprep.mubr.bf16.mxu0 %v906
        %7910 = vmatmul.mubr.bf16.gmra.mxu0 %v905
        %v7911 = vpop.f32.mrf.mxu0
        %v7912 = vadd.f32 %v2008, %v7911
        %v7913 = vpop.f32.mrf.mxu0
        %v7914 = vadd.f32 %v2012, %v7913
        %v7915 = vpop.f32.mrf.mxu0
        %v7916 = vpop.f32.mrf.mxu0
        %7917 = vdwg.mxu0
        %7918 = vmatprep.subr.bf16.mxu0 %v5926
        %7919 = vmatpush1.bf16.msra.mxu0 %v5925
        %7920 = vmatprep.subr.bf16.mxu0 %v5894
        %7921 = vmatpush1.bf16.msra.mxu0 %v5893
        %7922 = vmatprep.subr.bf16.mxu0 %v5862
        %7923 = vmatpush1.bf16.msra.mxu0 %v5861
        %7924 = vmatprep.subr.bf16.mxu0 %v5830
        %7925 = vmatpush1.bf16.msra.mxu0 %v5829
        %7926 = vmatprep.subr.bf16.mxu0 %v5798
        %7927 = vmatpush1.bf16.msra.mxu0 %v5797
        %7928 = vmatprep.subr.bf16.mxu0 %v5766
        %7929 = vmatpush1.bf16.msra.mxu0 %v5765
        %7930 = vmatprep.subr.bf16.mxu0 %v5734
        %7931 = vmatpush1.bf16.msra.mxu0 %v5733
        %7932 = vmatprep.subr.bf16.mxu0 %v5702
        %7933 = vmatpush1.bf16.msra.mxu0 %v5701
        %7934 = vmatprep.subr.bf16.mxu0 %v6182
        %7935 = vmatpush2.bf16.msra.mxu0 %v6181
        %7936 = vmatprep.subr.bf16.mxu0 %v6150
        %7937 = vmatpush2.bf16.msra.mxu0 %v6149
        %7938 = vmatprep.subr.bf16.mxu0 %v6118
        %7939 = vmatpush2.bf16.msra.mxu0 %v6117
        %7940 = vmatprep.subr.bf16.mxu0 %v6086
        %7941 = vmatpush2.bf16.msra.mxu0 %v6085
        %7942 = vmatprep.subr.bf16.mxu0 %v6054
        %7943 = vmatpush2.bf16.msra.mxu0 %v6053
        %7944 = vmatprep.subr.bf16.mxu0 %v6022
        %7945 = vmatpush2.bf16.msra.mxu0 %v6021
        %7946 = vmatprep.subr.bf16.mxu0 %v5990
        %7947 = vmatpush2.bf16.msra.mxu0 %v5989
        %7948 = vmatprep.subr.bf16.mxu0 %v5958
        %7949 = vmatpush2.bf16.msra.mxu0 %v5957
        %7950 = vmatprep.mubr.bf16.mxu0 %v908
        %7951 = vmatmul.mubr.bf16.gmra.mxu0 %v907
        %v7952 = vpop.f32.mrf.mxu0
        %v7953 = vadd.f32 %v7912, %v7952
        %v7954 = vpop.f32.mrf.mxu0
        %v7955 = vadd.f32 %v7914, %v7954
        %v7956 = vpop.f32.mrf.mxu0
        %v7957 = vpop.f32.mrf.mxu0
        %7958 = vdwg.mxu0
        %7959 = vmatprep.subr.bf16.mxu0 %v5416
        %7960 = vmatpush1.bf16.msra.mxu0 %v5415
        %7961 = vmatprep.subr.bf16.mxu0 %v5384
        %7962 = vmatpush1.bf16.msra.mxu0 %v5383
        %7963 = vmatprep.subr.bf16.mxu0 %v5352
        %7964 = vmatpush1.bf16.msra.mxu0 %v5351
        %7965 = vmatprep.subr.bf16.mxu0 %v5320
        %7966 = vmatpush1.bf16.msra.mxu0 %v5319
        %7967 = vmatprep.subr.bf16.mxu0 %v5288
        %7968 = vmatpush1.bf16.msra.mxu0 %v5287
        %7969 = vmatprep.subr.bf16.mxu0 %v5256
        %7970 = vmatpush1.bf16.msra.mxu0 %v5255
        %7971 = vmatprep.subr.bf16.mxu0 %v5224
        %7972 = vmatpush1.bf16.msra.mxu0 %v5223
        %7973 = vmatprep.subr.bf16.mxu0 %v5192
        %7974 = vmatpush1.bf16.msra.mxu0 %v5191
        %7975 = vmatprep.subr.bf16.mxu0 %v5672
        %7976 = vmatpush2.bf16.msra.mxu0 %v5671
        %7977 = vmatprep.subr.bf16.mxu0 %v5640
        %7978 = vmatpush2.bf16.msra.mxu0 %v5639
        %7979 = vmatprep.subr.bf16.mxu0 %v5608
        %7980 = vmatpush2.bf16.msra.mxu0 %v5607
        %7981 = vmatprep.subr.bf16.mxu0 %v5576
        %7982 = vmatpush2.bf16.msra.mxu0 %v5575
        %7983 = vmatprep.subr.bf16.mxu0 %v5544
        %7984 = vmatpush2.bf16.msra.mxu0 %v5543
        %7985 = vmatprep.subr.bf16.mxu0 %v5512
        %7986 = vmatpush2.bf16.msra.mxu0 %v5511
        %7987 = vmatprep.subr.bf16.mxu0 %v5480
        %7988 = vmatpush2.bf16.msra.mxu0 %v5479
        %7989 = vmatprep.subr.bf16.mxu0 %v5448
        %7990 = vmatpush2.bf16.msra.mxu0 %v5447
        %7991 = vmatprep.mubr.bf16.mxu0 %v906
        %7992 = vmatmul.mubr.bf16.gmra.mxu0 %v905
        %v7993 = vpop.f32.mrf.mxu0
        %v7994 = vadd.f32 %v2016, %v7993
        %v7995 = vpop.f32.mrf.mxu0
        %v7996 = vadd.f32 %v2020, %v7995
        %v7997 = vpop.f32.mrf.mxu0
        %v7998 = vpop.f32.mrf.mxu0
        %7999 = vdwg.mxu0
        %8000 = vmatprep.subr.bf16.mxu0 %v5928
        %8001 = vmatpush1.bf16.msra.mxu0 %v5927
        %8002 = vmatprep.subr.bf16.mxu0 %v5896
        %8003 = vmatpush1.bf16.msra.mxu0 %v5895
        %8004 = vmatprep.subr.bf16.mxu0 %v5864
        %8005 = vmatpush1.bf16.msra.mxu0 %v5863
        %8006 = vmatprep.subr.bf16.mxu0 %v5832
        %8007 = vmatpush1.bf16.msra.mxu0 %v5831
        %8008 = vmatprep.subr.bf16.mxu0 %v5800
        %8009 = vmatpush1.bf16.msra.mxu0 %v5799
        %8010 = vmatprep.subr.bf16.mxu0 %v5768
        %8011 = vmatpush1.bf16.msra.mxu0 %v5767
        %8012 = vmatprep.subr.bf16.mxu0 %v5736
        %8013 = vmatpush1.bf16.msra.mxu0 %v5735
        %8014 = vmatprep.subr.bf16.mxu0 %v5704
        %8015 = vmatpush1.bf16.msra.mxu0 %v5703
        %8016 = vmatprep.subr.bf16.mxu0 %v6184
        %8017 = vmatpush2.bf16.msra.mxu0 %v6183
        %8018 = vmatprep.subr.bf16.mxu0 %v6152
        %8019 = vmatpush2.bf16.msra.mxu0 %v6151
        %8020 = vmatprep.subr.bf16.mxu0 %v6120
        %8021 = vmatpush2.bf16.msra.mxu0 %v6119
        %8022 = vmatprep.subr.bf16.mxu0 %v6088
        %8023 = vmatpush2.bf16.msra.mxu0 %v6087
        %8024 = vmatprep.subr.bf16.mxu0 %v6056
        %8025 = vmatpush2.bf16.msra.mxu0 %v6055
        %8026 = vmatprep.subr.bf16.mxu0 %v6024
        %8027 = vmatpush2.bf16.msra.mxu0 %v6023
        %8028 = vmatprep.subr.bf16.mxu0 %v5992
        %8029 = vmatpush2.bf16.msra.mxu0 %v5991
        %8030 = vmatprep.subr.bf16.mxu0 %v5960
        %8031 = vmatpush2.bf16.msra.mxu0 %v5959
        %8032 = vmatprep.mubr.bf16.mxu0 %v908
        %8033 = vmatmul.mubr.bf16.gmra.mxu0 %v907
        %v8034 = vpop.f32.mrf.mxu0
        %v8035 = vadd.f32 %v7994, %v8034
        %v8036 = vpop.f32.mrf.mxu0
        %v8037 = vadd.f32 %v7996, %v8036
        %v8038 = vpop.f32.mrf.mxu0
        %v8039 = vpop.f32.mrf.mxu0
        %8040 = vdwg.mxu0
        %8041 = vmatprep.subr.bf16.mxu0 %v5418
        %8042 = vmatpush1.bf16.msra.mxu0 %v5417
        %8043 = vmatprep.subr.bf16.mxu0 %v5386
        %8044 = vmatpush1.bf16.msra.mxu0 %v5385
        %8045 = vmatprep.subr.bf16.mxu0 %v5354
        %8046 = vmatpush1.bf16.msra.mxu0 %v5353
        %8047 = vmatprep.subr.bf16.mxu0 %v5322
        %8048 = vmatpush1.bf16.msra.mxu0 %v5321
        %8049 = vmatprep.subr.bf16.mxu0 %v5290
        %8050 = vmatpush1.bf16.msra.mxu0 %v5289
        %8051 = vmatprep.subr.bf16.mxu0 %v5258
        %8052 = vmatpush1.bf16.msra.mxu0 %v5257
        %8053 = vmatprep.subr.bf16.mxu0 %v5226
        %8054 = vmatpush1.bf16.msra.mxu0 %v5225
        %8055 = vmatprep.subr.bf16.mxu0 %v5194
        %8056 = vmatpush1.bf16.msra.mxu0 %v5193
        %8057 = vmatprep.subr.bf16.mxu0 %v5674
        %8058 = vmatpush2.bf16.msra.mxu0 %v5673
        %8059 = vmatprep.subr.bf16.mxu0 %v5642
        %8060 = vmatpush2.bf16.msra.mxu0 %v5641
        %8061 = vmatprep.subr.bf16.mxu0 %v5610
        %8062 = vmatpush2.bf16.msra.mxu0 %v5609
        %8063 = vmatprep.subr.bf16.mxu0 %v5578
        %8064 = vmatpush2.bf16.msra.mxu0 %v5577
        %8065 = vmatprep.subr.bf16.mxu0 %v5546
        %8066 = vmatpush2.bf16.msra.mxu0 %v5545
        %8067 = vmatprep.subr.bf16.mxu0 %v5514
        %8068 = vmatpush2.bf16.msra.mxu0 %v5513
        %8069 = vmatprep.subr.bf16.mxu0 %v5482
        %8070 = vmatpush2.bf16.msra.mxu0 %v5481
        %8071 = vmatprep.subr.bf16.mxu0 %v5450
        %8072 = vmatpush2.bf16.msra.mxu0 %v5449
        %8073 = vmatprep.mubr.bf16.mxu0 %v906
        %8074 = vmatmul.mubr.bf16.gmra.mxu0 %v905
        %v8075 = vpop.f32.mrf.mxu0
        %v8076 = vadd.f32 %v2024, %v8075
        %v8077 = vpop.f32.mrf.mxu0
        %v8078 = vadd.f32 %v2028, %v8077
        %v8079 = vpop.f32.mrf.mxu0
        %v8080 = vpop.f32.mrf.mxu0
        %8081 = vdwg.mxu0
        %8082 = vmatprep.subr.bf16.mxu0 %v5930
        %8083 = vmatpush1.bf16.msra.mxu0 %v5929
        %8084 = vmatprep.subr.bf16.mxu0 %v5898
        %8085 = vmatpush1.bf16.msra.mxu0 %v5897
        %8086 = vmatprep.subr.bf16.mxu0 %v5866
        %8087 = vmatpush1.bf16.msra.mxu0 %v5865
        %8088 = vmatprep.subr.bf16.mxu0 %v5834
        %8089 = vmatpush1.bf16.msra.mxu0 %v5833
        %8090 = vmatprep.subr.bf16.mxu0 %v5802
        %8091 = vmatpush1.bf16.msra.mxu0 %v5801
        %8092 = vmatprep.subr.bf16.mxu0 %v5770
        %8093 = vmatpush1.bf16.msra.mxu0 %v5769
        %8094 = vmatprep.subr.bf16.mxu0 %v5738
        %8095 = vmatpush1.bf16.msra.mxu0 %v5737
        %8096 = vmatprep.subr.bf16.mxu0 %v5706
        %8097 = vmatpush1.bf16.msra.mxu0 %v5705
        %8098 = vmatprep.subr.bf16.mxu0 %v6186
        %8099 = vmatpush2.bf16.msra.mxu0 %v6185
        %8100 = vmatprep.subr.bf16.mxu0 %v6154
        %8101 = vmatpush2.bf16.msra.mxu0 %v6153
        %8102 = vmatprep.subr.bf16.mxu0 %v6122
        %8103 = vmatpush2.bf16.msra.mxu0 %v6121
        %8104 = vmatprep.subr.bf16.mxu0 %v6090
        %8105 = vmatpush2.bf16.msra.mxu0 %v6089
        %8106 = vmatprep.subr.bf16.mxu0 %v6058
        %8107 = vmatpush2.bf16.msra.mxu0 %v6057
        %8108 = vmatprep.subr.bf16.mxu0 %v6026
        %8109 = vmatpush2.bf16.msra.mxu0 %v6025
        %8110 = vmatprep.subr.bf16.mxu0 %v5994
        %8111 = vmatpush2.bf16.msra.mxu0 %v5993
        %8112 = vmatprep.subr.bf16.mxu0 %v5962
        %8113 = vmatpush2.bf16.msra.mxu0 %v5961
        %8114 = vmatprep.mubr.bf16.mxu0 %v908
        %8115 = vmatmul.mubr.bf16.gmra.mxu0 %v907
        %v8116 = vpop.f32.mrf.mxu0
        %v8117 = vadd.f32 %v8076, %v8116
        %v8118 = vpop.f32.mrf.mxu0
        %v8119 = vadd.f32 %v8078, %v8118
        %v8120 = vpop.f32.mrf.mxu0
        %v8121 = vpop.f32.mrf.mxu0
        %8122 = vdwg.mxu0
        %8123 = vmatprep.subr.bf16.mxu0 %v5420
        %8124 = vmatpush1.bf16.msra.mxu0 %v5419
        %8125 = vmatprep.subr.bf16.mxu0 %v5388
        %8126 = vmatpush1.bf16.msra.mxu0 %v5387
        %8127 = vmatprep.subr.bf16.mxu0 %v5356
        %8128 = vmatpush1.bf16.msra.mxu0 %v5355
        %8129 = vmatprep.subr.bf16.mxu0 %v5324
        %8130 = vmatpush1.bf16.msra.mxu0 %v5323
        %8131 = vmatprep.subr.bf16.mxu0 %v5292
        %8132 = vmatpush1.bf16.msra.mxu0 %v5291
        %8133 = vmatprep.subr.bf16.mxu0 %v5260
        %8134 = vmatpush1.bf16.msra.mxu0 %v5259
        %8135 = vmatprep.subr.bf16.mxu0 %v5228
        %8136 = vmatpush1.bf16.msra.mxu0 %v5227
        %8137 = vmatprep.subr.bf16.mxu0 %v5196
        %8138 = vmatpush1.bf16.msra.mxu0 %v5195
        %8139 = vmatprep.subr.bf16.mxu0 %v5676
        %8140 = vmatpush2.bf16.msra.mxu0 %v5675
        %8141 = vmatprep.subr.bf16.mxu0 %v5644
        %8142 = vmatpush2.bf16.msra.mxu0 %v5643
        %8143 = vmatprep.subr.bf16.mxu0 %v5612
        %8144 = vmatpush2.bf16.msra.mxu0 %v5611
        %8145 = vmatprep.subr.bf16.mxu0 %v5580
        %8146 = vmatpush2.bf16.msra.mxu0 %v5579
        %8147 = vmatprep.subr.bf16.mxu0 %v5548
        %8148 = vmatpush2.bf16.msra.mxu0 %v5547
        %8149 = vmatprep.subr.bf16.mxu0 %v5516
        %8150 = vmatpush2.bf16.msra.mxu0 %v5515
        %8151 = vmatprep.subr.bf16.mxu0 %v5484
        %8152 = vmatpush2.bf16.msra.mxu0 %v5483
        %8153 = vmatprep.subr.bf16.mxu0 %v5452
        %8154 = vmatpush2.bf16.msra.mxu0 %v5451
        %8155 = vmatprep.mubr.bf16.mxu0 %v906
        %8156 = vmatmul.mubr.bf16.gmra.mxu0 %v905
        %v8157 = vpop.f32.mrf.mxu0
        %v8158 = vadd.f32 %v2032, %v8157
        %v8159 = vpop.f32.mrf.mxu0
        %v8160 = vadd.f32 %v2036, %v8159
        %v8161 = vpop.f32.mrf.mxu0
        %v8162 = vpop.f32.mrf.mxu0
        %8163 = vdwg.mxu0
        %8164 = vmatprep.subr.bf16.mxu0 %v5932
        %8165 = vmatpush1.bf16.msra.mxu0 %v5931
        %8166 = vmatprep.subr.bf16.mxu0 %v5900
        %8167 = vmatpush1.bf16.msra.mxu0 %v5899
        %8168 = vmatprep.subr.bf16.mxu0 %v5868
        %8169 = vmatpush1.bf16.msra.mxu0 %v5867
        %8170 = vmatprep.subr.bf16.mxu0 %v5836
        %8171 = vmatpush1.bf16.msra.mxu0 %v5835
        %8172 = vmatprep.subr.bf16.mxu0 %v5804
        %8173 = vmatpush1.bf16.msra.mxu0 %v5803
        %8174 = vmatprep.subr.bf16.mxu0 %v5772
        %8175 = vmatpush1.bf16.msra.mxu0 %v5771
        %8176 = vmatprep.subr.bf16.mxu0 %v5740
        %8177 = vmatpush1.bf16.msra.mxu0 %v5739
        %8178 = vmatprep.subr.bf16.mxu0 %v5708
        %8179 = vmatpush1.bf16.msra.mxu0 %v5707
        %8180 = vmatprep.subr.bf16.mxu0 %v6188
        %8181 = vmatpush2.bf16.msra.mxu0 %v6187
        %8182 = vmatprep.subr.bf16.mxu0 %v6156
        %8183 = vmatpush2.bf16.msra.mxu0 %v6155
        %8184 = vmatprep.subr.bf16.mxu0 %v6124
        %8185 = vmatpush2.bf16.msra.mxu0 %v6123
        %8186 = vmatprep.subr.bf16.mxu0 %v6092
        %8187 = vmatpush2.bf16.msra.mxu0 %v6091
        %8188 = vmatprep.subr.bf16.mxu0 %v6060
        %8189 = vmatpush2.bf16.msra.mxu0 %v6059
        %8190 = vmatprep.subr.bf16.mxu0 %v6028
        %8191 = vmatpush2.bf16.msra.mxu0 %v6027
        %8192 = vmatprep.subr.bf16.mxu0 %v5996
        %8193 = vmatpush2.bf16.msra.mxu0 %v5995
        %8194 = vmatprep.subr.bf16.mxu0 %v5964
        %8195 = vmatpush2.bf16.msra.mxu0 %v5963
        %8196 = vmatprep.mubr.bf16.mxu0 %v908
        %8197 = vmatmul.mubr.bf16.gmra.mxu0 %v907
        %v8198 = vpop.f32.mrf.mxu0
        %v8199 = vadd.f32 %v8158, %v8198
        %v8200 = vpop.f32.mrf.mxu0
        %v8201 = vadd.f32 %v8160, %v8200
        %v8202 = vpop.f32.mrf.mxu0
        %v8203 = vpop.f32.mrf.mxu0
        %8204 = vdwg.mxu0
        %8205 = vmatprep.subr.bf16.mxu0 %v5422
        %8206 = vmatpush1.bf16.msra.mxu0 %v5421
        %8207 = vmatprep.subr.bf16.mxu0 %v5390
        %8208 = vmatpush1.bf16.msra.mxu0 %v5389
        %8209 = vmatprep.subr.bf16.mxu0 %v5358
        %8210 = vmatpush1.bf16.msra.mxu0 %v5357
        %8211 = vmatprep.subr.bf16.mxu0 %v5326
        %8212 = vmatpush1.bf16.msra.mxu0 %v5325
        %8213 = vmatprep.subr.bf16.mxu0 %v5294
        %8214 = vmatpush1.bf16.msra.mxu0 %v5293
        %8215 = vmatprep.subr.bf16.mxu0 %v5262
        %8216 = vmatpush1.bf16.msra.mxu0 %v5261
        %8217 = vmatprep.subr.bf16.mxu0 %v5230
        %8218 = vmatpush1.bf16.msra.mxu0 %v5229
        %8219 = vmatprep.subr.bf16.mxu0 %v5198
        %8220 = vmatpush1.bf16.msra.mxu0 %v5197
        %8221 = vmatprep.subr.bf16.mxu0 %v5678
        %8222 = vmatpush2.bf16.msra.mxu0 %v5677
        %8223 = vmatprep.subr.bf16.mxu0 %v5646
        %8224 = vmatpush2.bf16.msra.mxu0 %v5645
        %8225 = vmatprep.subr.bf16.mxu0 %v5614
        %8226 = vmatpush2.bf16.msra.mxu0 %v5613
        %8227 = vmatprep.subr.bf16.mxu0 %v5582
        %8228 = vmatpush2.bf16.msra.mxu0 %v5581
        %8229 = vmatprep.subr.bf16.mxu0 %v5550
        %8230 = vmatpush2.bf16.msra.mxu0 %v5549
        %8231 = vmatprep.subr.bf16.mxu0 %v5518
        %8232 = vmatpush2.bf16.msra.mxu0 %v5517
        %8233 = vmatprep.subr.bf16.mxu0 %v5486
        %8234 = vmatpush2.bf16.msra.mxu0 %v5485
        %8235 = vmatprep.subr.bf16.mxu0 %v5454
        %8236 = vmatpush2.bf16.msra.mxu0 %v5453
        %8237 = vmatprep.mubr.bf16.mxu0 %v906
        %8238 = vmatmul.mubr.bf16.gmra.mxu0 %v905
        %v8239 = vpop.f32.mrf.mxu0
        %v8240 = vadd.f32 %v2040, %v8239
        %v8241 = vpop.f32.mrf.mxu0
        %v8242 = vadd.f32 %v2044, %v8241
        %v8243 = vpop.f32.mrf.mxu0
        %v8244 = vpop.f32.mrf.mxu0
        %8245 = vdwg.mxu0
        %8246 = vmatprep.subr.bf16.mxu0 %v5934
        %8247 = vmatpush1.bf16.msra.mxu0 %v5933
        %8248 = vmatprep.subr.bf16.mxu0 %v5902
        %8249 = vmatpush1.bf16.msra.mxu0 %v5901
        %8250 = vmatprep.subr.bf16.mxu0 %v5870
        %8251 = vmatpush1.bf16.msra.mxu0 %v5869
        %8252 = vmatprep.subr.bf16.mxu0 %v5838
        %8253 = vmatpush1.bf16.msra.mxu0 %v5837
        %8254 = vmatprep.subr.bf16.mxu0 %v5806
        %8255 = vmatpush1.bf16.msra.mxu0 %v5805
        %8256 = vmatprep.subr.bf16.mxu0 %v5774
        %8257 = vmatpush1.bf16.msra.mxu0 %v5773
        %8258 = vmatprep.subr.bf16.mxu0 %v5742
        %8259 = vmatpush1.bf16.msra.mxu0 %v5741
        %8260 = vmatprep.subr.bf16.mxu0 %v5710
        %8261 = vmatpush1.bf16.msra.mxu0 %v5709
        %8262 = vmatprep.subr.bf16.mxu0 %v6190
        %8263 = vmatpush2.bf16.msra.mxu0 %v6189
        %8264 = vmatprep.subr.bf16.mxu0 %v6158
        %8265 = vmatpush2.bf16.msra.mxu0 %v6157
        %8266 = vmatprep.subr.bf16.mxu0 %v6126
        %8267 = vmatpush2.bf16.msra.mxu0 %v6125
        %8268 = vmatprep.subr.bf16.mxu0 %v6094
        %8269 = vmatpush2.bf16.msra.mxu0 %v6093
        %8270 = vmatprep.subr.bf16.mxu0 %v6062
        %8271 = vmatpush2.bf16.msra.mxu0 %v6061
        %8272 = vmatprep.subr.bf16.mxu0 %v6030
        %8273 = vmatpush2.bf16.msra.mxu0 %v6029
        %8274 = vmatprep.subr.bf16.mxu0 %v5998
        %8275 = vmatpush2.bf16.msra.mxu0 %v5997
        %8276 = vmatprep.subr.bf16.mxu0 %v5966
        %8277 = vmatpush2.bf16.msra.mxu0 %v5965
        %8278 = vmatprep.mubr.bf16.mxu0 %v908
        %8279 = vmatmul.mubr.bf16.gmra.mxu0 %v907
        %v8280 = vpop.f32.mrf.mxu0
        %v8281 = vadd.f32 %v8240, %v8280
        %v8282 = vpop.f32.mrf.mxu0
        %v8283 = vadd.f32 %v8242, %v8282
        %v8284 = vpop.f32.mrf.mxu0
        %v8285 = vpop.f32.mrf.mxu0
        %8286 = vdwg.mxu0
        %8287 = vmatprep.subr.bf16.mxu0 %v5424
        %8288 = vmatpush1.bf16.msra.mxu0 %v5423
        %8289 = vmatprep.subr.bf16.mxu0 %v5392
        %8290 = vmatpush1.bf16.msra.mxu0 %v5391
        %8291 = vmatprep.subr.bf16.mxu0 %v5360
        %8292 = vmatpush1.bf16.msra.mxu0 %v5359
        %8293 = vmatprep.subr.bf16.mxu0 %v5328
        %8294 = vmatpush1.bf16.msra.mxu0 %v5327
        %8295 = vmatprep.subr.bf16.mxu0 %v5296
        %8296 = vmatpush1.bf16.msra.mxu0 %v5295
        %8297 = vmatprep.subr.bf16.mxu0 %v5264
        %8298 = vmatpush1.bf16.msra.mxu0 %v5263
        %8299 = vmatprep.subr.bf16.mxu0 %v5232
        %8300 = vmatpush1.bf16.msra.mxu0 %v5231
        %8301 = vmatprep.subr.bf16.mxu0 %v5200
        %8302 = vmatpush1.bf16.msra.mxu0 %v5199
        %8303 = vmatprep.subr.bf16.mxu0 %v5680
        %8304 = vmatpush2.bf16.msra.mxu0 %v5679
        %8305 = vmatprep.subr.bf16.mxu0 %v5648
        %8306 = vmatpush2.bf16.msra.mxu0 %v5647
        %8307 = vmatprep.subr.bf16.mxu0 %v5616
        %8308 = vmatpush2.bf16.msra.mxu0 %v5615
        %8309 = vmatprep.subr.bf16.mxu0 %v5584
        %8310 = vmatpush2.bf16.msra.mxu0 %v5583
        %8311 = vmatprep.subr.bf16.mxu0 %v5552
        %8312 = vmatpush2.bf16.msra.mxu0 %v5551
        %8313 = vmatprep.subr.bf16.mxu0 %v5520
        %8314 = vmatpush2.bf16.msra.mxu0 %v5519
        %8315 = vmatprep.subr.bf16.mxu0 %v5488
        %8316 = vmatpush2.bf16.msra.mxu0 %v5487
        %8317 = vmatprep.subr.bf16.mxu0 %v5456
        %8318 = vmatpush2.bf16.msra.mxu0 %v5455
        %8319 = vmatprep.mubr.bf16.mxu0 %v906
        %8320 = vmatmul.mubr.bf16.gmra.mxu0 %v905
        %v8321 = vpop.f32.mrf.mxu0
        %v8322 = vadd.f32 %v2048, %v8321
        %v8323 = vpop.f32.mrf.mxu0
        %v8324 = vadd.f32 %v2052, %v8323
        %v8325 = vpop.f32.mrf.mxu0
        %v8326 = vpop.f32.mrf.mxu0
        %8327 = vdwg.mxu0
        %8328 = vmatprep.subr.bf16.mxu0 %v5936
        %8329 = vmatpush1.bf16.msra.mxu0 %v5935
        %8330 = vmatprep.subr.bf16.mxu0 %v5904
        %8331 = vmatpush1.bf16.msra.mxu0 %v5903
        %8332 = vmatprep.subr.bf16.mxu0 %v5872
        %8333 = vmatpush1.bf16.msra.mxu0 %v5871
        %8334 = vmatprep.subr.bf16.mxu0 %v5840
        %8335 = vmatpush1.bf16.msra.mxu0 %v5839
        %8336 = vmatprep.subr.bf16.mxu0 %v5808
        %8337 = vmatpush1.bf16.msra.mxu0 %v5807
        %8338 = vmatprep.subr.bf16.mxu0 %v5776
        %8339 = vmatpush1.bf16.msra.mxu0 %v5775
        %8340 = vmatprep.subr.bf16.mxu0 %v5744
        %8341 = vmatpush1.bf16.msra.mxu0 %v5743
        %8342 = vmatprep.subr.bf16.mxu0 %v5712
        %8343 = vmatpush1.bf16.msra.mxu0 %v5711
        %8344 = vmatprep.subr.bf16.mxu0 %v6192
        %8345 = vmatpush2.bf16.msra.mxu0 %v6191
        %8346 = vmatprep.subr.bf16.mxu0 %v6160
        %8347 = vmatpush2.bf16.msra.mxu0 %v6159
        %8348 = vmatprep.subr.bf16.mxu0 %v6128
        %8349 = vmatpush2.bf16.msra.mxu0 %v6127
        %8350 = vmatprep.subr.bf16.mxu0 %v6096
        %8351 = vmatpush2.bf16.msra.mxu0 %v6095
        %8352 = vmatprep.subr.bf16.mxu0 %v6064
        %8353 = vmatpush2.bf16.msra.mxu0 %v6063
        %8354 = vmatprep.subr.bf16.mxu0 %v6032
        %8355 = vmatpush2.bf16.msra.mxu0 %v6031
        %8356 = vmatprep.subr.bf16.mxu0 %v6000
        %8357 = vmatpush2.bf16.msra.mxu0 %v5999
        %8358 = vmatprep.subr.bf16.mxu0 %v5968
        %8359 = vmatpush2.bf16.msra.mxu0 %v5967
        %8360 = vmatprep.mubr.bf16.mxu0 %v908
        %8361 = vmatmul.mubr.bf16.gmra.mxu0 %v907
        %v8362 = vpop.f32.mrf.mxu0
        %v8363 = vadd.f32 %v8322, %v8362
        %v8364 = vpop.f32.mrf.mxu0
        %v8365 = vadd.f32 %v8324, %v8364
        %v8366 = vpop.f32.mrf.mxu0
        %v8367 = vpop.f32.mrf.mxu0
        %8368 = vdwg.mxu0
        %8369 = vmatprep.subr.bf16.mxu0 %v5426
        %8370 = vmatpush1.bf16.msra.mxu0 %v5425
        %8371 = vmatprep.subr.bf16.mxu0 %v5394
        %8372 = vmatpush1.bf16.msra.mxu0 %v5393
        %8373 = vmatprep.subr.bf16.mxu0 %v5362
        %8374 = vmatpush1.bf16.msra.mxu0 %v5361
        %8375 = vmatprep.subr.bf16.mxu0 %v5330
        %8376 = vmatpush1.bf16.msra.mxu0 %v5329
        %8377 = vmatprep.subr.bf16.mxu0 %v5298
        %8378 = vmatpush1.bf16.msra.mxu0 %v5297
        %8379 = vmatprep.subr.bf16.mxu0 %v5266
        %8380 = vmatpush1.bf16.msra.mxu0 %v5265
        %8381 = vmatprep.subr.bf16.mxu0 %v5234
        %8382 = vmatpush1.bf16.msra.mxu0 %v5233
        %8383 = vmatprep.subr.bf16.mxu0 %v5202
        %8384 = vmatpush1.bf16.msra.mxu0 %v5201
        %8385 = vmatprep.subr.bf16.mxu0 %v5682
        %8386 = vmatpush2.bf16.msra.mxu0 %v5681
        %8387 = vmatprep.subr.bf16.mxu0 %v5650
        %8388 = vmatpush2.bf16.msra.mxu0 %v5649
        %8389 = vmatprep.subr.bf16.mxu0 %v5618
        %8390 = vmatpush2.bf16.msra.mxu0 %v5617
        %8391 = vmatprep.subr.bf16.mxu0 %v5586
        %8392 = vmatpush2.bf16.msra.mxu0 %v5585
        %8393 = vmatprep.subr.bf16.mxu0 %v5554
        %8394 = vmatpush2.bf16.msra.mxu0 %v5553
        %8395 = vmatprep.subr.bf16.mxu0 %v5522
        %8396 = vmatpush2.bf16.msra.mxu0 %v5521
        %8397 = vmatprep.subr.bf16.mxu0 %v5490
        %8398 = vmatpush2.bf16.msra.mxu0 %v5489
        %8399 = vmatprep.subr.bf16.mxu0 %v5458
        %8400 = vmatpush2.bf16.msra.mxu0 %v5457
        %8401 = vmatprep.mubr.bf16.mxu0 %v906
        %8402 = vmatmul.mubr.bf16.gmra.mxu0 %v905
        %v8403 = vpop.f32.mrf.mxu0
        %v8404 = vadd.f32 %v2056, %v8403
        %v8405 = vpop.f32.mrf.mxu0
        %v8406 = vadd.f32 %v2060, %v8405
        %v8407 = vpop.f32.mrf.mxu0
        %v8408 = vpop.f32.mrf.mxu0
        %8409 = vdwg.mxu0
        %8410 = vmatprep.subr.bf16.mxu0 %v5938
        %8411 = vmatpush1.bf16.msra.mxu0 %v5937
        %8412 = vmatprep.subr.bf16.mxu0 %v5906
        %8413 = vmatpush1.bf16.msra.mxu0 %v5905
        %8414 = vmatprep.subr.bf16.mxu0 %v5874
        %8415 = vmatpush1.bf16.msra.mxu0 %v5873
        %8416 = vmatprep.subr.bf16.mxu0 %v5842
        %8417 = vmatpush1.bf16.msra.mxu0 %v5841
        %8418 = vmatprep.subr.bf16.mxu0 %v5810
        %8419 = vmatpush1.bf16.msra.mxu0 %v5809
        %8420 = vmatprep.subr.bf16.mxu0 %v5778
        %8421 = vmatpush1.bf16.msra.mxu0 %v5777
        %8422 = vmatprep.subr.bf16.mxu0 %v5746
        %8423 = vmatpush1.bf16.msra.mxu0 %v5745
        %8424 = vmatprep.subr.bf16.mxu0 %v5714
        %8425 = vmatpush1.bf16.msra.mxu0 %v5713
        %8426 = vmatprep.subr.bf16.mxu0 %v6194
        %8427 = vmatpush2.bf16.msra.mxu0 %v6193
        %8428 = vmatprep.subr.bf16.mxu0 %v6162
        %8429 = vmatpush2.bf16.msra.mxu0 %v6161
        %8430 = vmatprep.subr.bf16.mxu0 %v6130
        %8431 = vmatpush2.bf16.msra.mxu0 %v6129
        %8432 = vmatprep.subr.bf16.mxu0 %v6098
        %8433 = vmatpush2.bf16.msra.mxu0 %v6097
        %8434 = vmatprep.subr.bf16.mxu0 %v6066
        %8435 = vmatpush2.bf16.msra.mxu0 %v6065
        %8436 = vmatprep.subr.bf16.mxu0 %v6034
        %8437 = vmatpush2.bf16.msra.mxu0 %v6033
        %8438 = vmatprep.subr.bf16.mxu0 %v6002
        %8439 = vmatpush2.bf16.msra.mxu0 %v6001
        %8440 = vmatprep.subr.bf16.mxu0 %v5970
        %8441 = vmatpush2.bf16.msra.mxu0 %v5969
        %8442 = vmatprep.mubr.bf16.mxu0 %v908
        %8443 = vmatmul.mubr.bf16.gmra.mxu0 %v907
        %v8444 = vpop.f32.mrf.mxu0
        %v8445 = vadd.f32 %v8404, %v8444
        %v8446 = vpop.f32.mrf.mxu0
        %v8447 = vadd.f32 %v8406, %v8446
        %v8448 = vpop.f32.mrf.mxu0
        %v8449 = vpop.f32.mrf.mxu0
        %8450 = vdwg.mxu0
        %8451 = vmatprep.subr.bf16.mxu0 %v5428
        %8452 = vmatpush1.bf16.msra.mxu0 %v5427
        %8453 = vmatprep.subr.bf16.mxu0 %v5396
        %8454 = vmatpush1.bf16.msra.mxu0 %v5395
        %8455 = vmatprep.subr.bf16.mxu0 %v5364
        %8456 = vmatpush1.bf16.msra.mxu0 %v5363
        %8457 = vmatprep.subr.bf16.mxu0 %v5332
        %8458 = vmatpush1.bf16.msra.mxu0 %v5331
        %8459 = vmatprep.subr.bf16.mxu0 %v5300
        %8460 = vmatpush1.bf16.msra.mxu0 %v5299
        %8461 = vmatprep.subr.bf16.mxu0 %v5268
        %8462 = vmatpush1.bf16.msra.mxu0 %v5267
        %8463 = vmatprep.subr.bf16.mxu0 %v5236
        %8464 = vmatpush1.bf16.msra.mxu0 %v5235
        %8465 = vmatprep.subr.bf16.mxu0 %v5204
        %8466 = vmatpush1.bf16.msra.mxu0 %v5203
        %8467 = vmatprep.subr.bf16.mxu0 %v5684
        %8468 = vmatpush2.bf16.msra.mxu0 %v5683
        %8469 = vmatprep.subr.bf16.mxu0 %v5652
        %8470 = vmatpush2.bf16.msra.mxu0 %v5651
        %8471 = vmatprep.subr.bf16.mxu0 %v5620
        %8472 = vmatpush2.bf16.msra.mxu0 %v5619
        %8473 = vmatprep.subr.bf16.mxu0 %v5588
        %8474 = vmatpush2.bf16.msra.mxu0 %v5587
        %8475 = vmatprep.subr.bf16.mxu0 %v5556
        %8476 = vmatpush2.bf16.msra.mxu0 %v5555
        %8477 = vmatprep.subr.bf16.mxu0 %v5524
        %8478 = vmatpush2.bf16.msra.mxu0 %v5523
        %8479 = vmatprep.subr.bf16.mxu0 %v5492
        %8480 = vmatpush2.bf16.msra.mxu0 %v5491
        %8481 = vmatprep.subr.bf16.mxu0 %v5460
        %8482 = vmatpush2.bf16.msra.mxu0 %v5459
        %8483 = vmatprep.mubr.bf16.mxu0 %v906
        %8484 = vmatmul.mubr.bf16.gmra.mxu0 %v905
        %v8485 = vpop.f32.mrf.mxu0
        %v8486 = vadd.f32 %v2064, %v8485
        %v8487 = vpop.f32.mrf.mxu0
        %v8488 = vadd.f32 %v2068, %v8487
        %v8489 = vpop.f32.mrf.mxu0
        %v8490 = vpop.f32.mrf.mxu0
        %8491 = vdwg.mxu0
        %8492 = vmatprep.subr.bf16.mxu0 %v5940
        %8493 = vmatpush1.bf16.msra.mxu0 %v5939
        %8494 = vmatprep.subr.bf16.mxu0 %v5908
        %8495 = vmatpush1.bf16.msra.mxu0 %v5907
        %8496 = vmatprep.subr.bf16.mxu0 %v5876
        %8497 = vmatpush1.bf16.msra.mxu0 %v5875
        %8498 = vmatprep.subr.bf16.mxu0 %v5844
        %8499 = vmatpush1.bf16.msra.mxu0 %v5843
        %8500 = vmatprep.subr.bf16.mxu0 %v5812
        %8501 = vmatpush1.bf16.msra.mxu0 %v5811
        %8502 = vmatprep.subr.bf16.mxu0 %v5780
        %8503 = vmatpush1.bf16.msra.mxu0 %v5779
        %8504 = vmatprep.subr.bf16.mxu0 %v5748
        %8505 = vmatpush1.bf16.msra.mxu0 %v5747
        %8506 = vmatprep.subr.bf16.mxu0 %v5716
        %8507 = vmatpush1.bf16.msra.mxu0 %v5715
        %8508 = vmatprep.subr.bf16.mxu0 %v6196
        %8509 = vmatpush2.bf16.msra.mxu0 %v6195
        %8510 = vmatprep.subr.bf16.mxu0 %v6164
        %8511 = vmatpush2.bf16.msra.mxu0 %v6163
        %8512 = vmatprep.subr.bf16.mxu0 %v6132
        %8513 = vmatpush2.bf16.msra.mxu0 %v6131
        %8514 = vmatprep.subr.bf16.mxu0 %v6100
        %8515 = vmatpush2.bf16.msra.mxu0 %v6099
        %8516 = vmatprep.subr.bf16.mxu0 %v6068
        %8517 = vmatpush2.bf16.msra.mxu0 %v6067
        %8518 = vmatprep.subr.bf16.mxu0 %v6036
        %8519 = vmatpush2.bf16.msra.mxu0 %v6035
        %8520 = vmatprep.subr.bf16.mxu0 %v6004
        %8521 = vmatpush2.bf16.msra.mxu0 %v6003
        %8522 = vmatprep.subr.bf16.mxu0 %v5972
        %8523 = vmatpush2.bf16.msra.mxu0 %v5971
        %8524 = vmatprep.mubr.bf16.mxu0 %v908
        %8525 = vmatmul.mubr.bf16.gmra.mxu0 %v907
        %v8526 = vpop.f32.mrf.mxu0
        %v8527 = vadd.f32 %v8486, %v8526
        %v8528 = vpop.f32.mrf.mxu0
        %v8529 = vadd.f32 %v8488, %v8528
        %v8530 = vpop.f32.mrf.mxu0
        %v8531 = vpop.f32.mrf.mxu0
        %8532 = vdwg.mxu0
        %v8565 = vcombine.low %v7297, %v7299
        %v8566 = vcombine.low %v7379, %v7381
        %v8568 = vunpack.c.l.s4 1983009808
        %v8569 = vunpack.c.0.s8 %v8568
        %v8570 = vlaneseq
        %v8571 = vshrl.u32 %v8570, 7
        %v8572 = vsub.s32 %v8569, %v8571
        %v8573 = vrot.slane %v8565, %v8572
        %v8575 = vunpack.c.l.s4 1983009808
        %v8576 = vunpack.c.0.s8 %v8575
        %v8577 = vlaneseq
        %v8578 = vshrl.u32 %v8577, 7
        %v8579 = vsub.s32 %v8576, %v8578
        %v8580 = vrot.slane %v8566, %v8579
        %v8581 = vcombine.low %v8573, %v8580
        %v8582 = vcombine.low %v7461, %v7463
        %v8583 = vcombine.low %v7543, %v7545
        %v8585 = vunpack.c.l.s4 1983009808
        %v8586 = vunpack.c.0.s8 %v8585
        %v8587 = vlaneseq
        %v8588 = vshrl.u32 %v8587, 7
        %v8589 = vsub.s32 %v8586, %v8588
        %v8590 = vrot.slane %v8582, %v8589
        %v8592 = vunpack.c.l.s4 1983009808
        %v8593 = vunpack.c.0.s8 %v8592
        %v8594 = vlaneseq
        %v8595 = vshrl.u32 %v8594, 7
        %v8596 = vsub.s32 %v8593, %v8595
        %v8597 = vrot.slane %v8583, %v8596
        %v8598 = vcombine.low %v8590, %v8597
        %v8599 = vcombine.low %v7625, %v7627
        %v8600 = vcombine.low %v7707, %v7709
        %v8602 = vunpack.c.l.s4 1983009808
        %v8603 = vunpack.c.0.s8 %v8602
        %v8604 = vlaneseq
        %v8605 = vshrl.u32 %v8604, 7
        %v8606 = vsub.s32 %v8603, %v8605
        %v8607 = vrot.slane %v8599, %v8606
        %v8609 = vunpack.c.l.s4 1983009808
        %v8610 = vunpack.c.0.s8 %v8609
        %v8611 = vlaneseq
        %v8612 = vshrl.u32 %v8611, 7
        %v8613 = vsub.s32 %v8610, %v8612
        %v8614 = vrot.slane %v8600, %v8613
        %v8615 = vcombine.low %v8607, %v8614
        %v8616 = vcombine.low %v7789, %v7791
        %v8617 = vcombine.low %v7871, %v7873
        %v8619 = vunpack.c.l.s4 1983009808
        %v8620 = vunpack.c.0.s8 %v8619
        %v8621 = vlaneseq
        %v8622 = vshrl.u32 %v8621, 7
        %v8623 = vsub.s32 %v8620, %v8622
        %v8624 = vrot.slane %v8616, %v8623
        %v8626 = vunpack.c.l.s4 1983009808
        %v8627 = vunpack.c.0.s8 %v8626
        %v8628 = vlaneseq
        %v8629 = vshrl.u32 %v8628, 7
        %v8630 = vsub.s32 %v8627, %v8629
        %v8631 = vrot.slane %v8617, %v8630
        %v8632 = vcombine.low %v8624, %v8631
        %v8633 = vcombine.low %v7953, %v7955
        %v8634 = vcombine.low %v8035, %v8037
        %v8636 = vunpack.c.l.s4 1983009808
        %v8637 = vunpack.c.0.s8 %v8636
        %v8638 = vlaneseq
        %v8639 = vshrl.u32 %v8638, 7
        %v8640 = vsub.s32 %v8637, %v8639
        %v8641 = vrot.slane %v8633, %v8640
        %v8643 = vunpack.c.l.s4 1983009808
        %v8644 = vunpack.c.0.s8 %v8643
        %v8645 = vlaneseq
        %v8646 = vshrl.u32 %v8645, 7
        %v8647 = vsub.s32 %v8644, %v8646
        %v8648 = vrot.slane %v8634, %v8647
        %v8649 = vcombine.low %v8641, %v8648
        %v8650 = vcombine.low %v8117, %v8119
        %v8651 = vcombine.low %v8199, %v8201
        %v8653 = vunpack.c.l.s4 1983009808
        %v8654 = vunpack.c.0.s8 %v8653
        %v8655 = vlaneseq
        %v8656 = vshrl.u32 %v8655, 7
        %v8657 = vsub.s32 %v8654, %v8656
        %v8658 = vrot.slane %v8650, %v8657
        %v8660 = vunpack.c.l.s4 1983009808
        %v8661 = vunpack.c.0.s8 %v8660
        %v8662 = vlaneseq
        %v8663 = vshrl.u32 %v8662, 7
        %v8664 = vsub.s32 %v8661, %v8663
        %v8665 = vrot.slane %v8651, %v8664
        %v8666 = vcombine.low %v8658, %v8665
        %v8667 = vcombine.low %v8281, %v8283
        %v8668 = vcombine.low %v8363, %v8365
        %v8670 = vunpack.c.l.s4 1983009808
        %v8671 = vunpack.c.0.s8 %v8670
        %v8672 = vlaneseq
        %v8673 = vshrl.u32 %v8672, 7
        %v8674 = vsub.s32 %v8671, %v8673
        %v8675 = vrot.slane %v8667, %v8674
        %v8677 = vunpack.c.l.s4 1983009808
        %v8678 = vunpack.c.0.s8 %v8677
        %v8679 = vlaneseq
        %v8680 = vshrl.u32 %v8679, 7
        %v8681 = vsub.s32 %v8678, %v8680
        %v8682 = vrot.slane %v8668, %v8681
        %v8683 = vcombine.low %v8675, %v8682
        %v8684 = vcombine.low %v8445, %v8447
        %v8685 = vcombine.low %v8527, %v8529
        %v8687 = vunpack.c.l.s4 1983009808
        %v8688 = vunpack.c.0.s8 %v8687
        %v8689 = vlaneseq
        %v8690 = vshrl.u32 %v8689, 7
        %v8691 = vsub.s32 %v8688, %v8690
        %v8692 = vrot.slane %v8684, %v8691
        %v8694 = vunpack.c.l.s4 1983009808
        %v8695 = vunpack.c.0.s8 %v8694
        %v8696 = vlaneseq
        %v8697 = vshrl.u32 %v8696, 7
        %v8698 = vsub.s32 %v8695, %v8697
        %v8699 = vrot.slane %v8685, %v8698
        %v8700 = vcombine.low %v8692, %v8699
        %8709 = vst [vmem:[%s319] sm:$0xff] %v8581
        %8710 = vst [vmem:[%s319 + $0x8] sm:$0xff] %v8598
        %8711 = vst [vmem:[%s319 + $0x10] sm:$0xff] %v8615
        %8712 = vst [vmem:[%s319 + $0x18] sm:$0xff] %v8632
        %8713 = vst [vmem:[%s319 + $0x20] sm:$0xff] %v8649
        %8714 = vst [vmem:[%s319 + $0x28] sm:$0xff] %v8666
        %8715 = vst [vmem:[%s319 + $0x30] sm:$0xff] %v8683
        %8716 = vst [vmem:[%s319 + $0x38] sm:$0xff] %v8700
        %s8717 = sand.u32 %s147, 1
        %s8718 = scalar_lea.sflag [#allocation4], %s8717
        %s8719 = sand.u32 %s147, 1
        %s8720 = smul.addr %s8719, 64
        %s8721 = scalar_lea.vmem [#allocation11], %s8720
        // Predicated region
        $region61: #{tpu_custom_call.1} parent=39 // pred_check
          %p8722 = pneg %p157
        $region62: #{tpu_custom_call.1} parent=39 // pred_check_branch
          %8724 = sbr.rel (%p8722) target = $region64
        $region63: #{tpu_custom_call.1} parent=39 // pred_region
          %s8725 = smul.u32 32, %s24
          %s8727 = ssub.s32 1024, 1024
          %8728 = vsyncadd %s8718, %s8727
          %s8729 = smul.addr %s8725, 32
          %s8730 = scalar_lea.hbm %s5, %s8729
          %s8732 = sshll.u32 %s8721, 4
          %s8733 = int_to_ptr.vmem [resolvable:$true] %s8732
          %8735 = dma.vmem_to_hbm [thread:$0]  %s8733, 1024, %s8730, %s8718
        $region64: #{tpu_custom_call.1} parent=39 // pred_fallthru
          _
      $region40: #{tpu_custom_call.1} parent=5 // pred_fallthru
        _
      %p8736 = scmp.le.s32.totalorder 2, %s19
      // Predicated region
      $region65: #{tpu_custom_call.1} parent=5 // pred_check
        %p8737 = pneg %p8736
      $region66: #{tpu_custom_call.1} parent=5 // pred_check_branch
        %8739 = sbr.rel (%p8737) target = $region68
      $region67: #{tpu_custom_call.1} parent=5 // pred_region
        %s8740 = ssub.s32 %s19, 2
        // Predicated region
        $region69: #{tpu_custom_call.1} parent=67 // pred_check
          %p8741 = pneg %p163
        $region70: #{tpu_custom_call.1} parent=67 // pred_check_branch
          %8743 = sbr.rel (%p8741) target = $region72
        $region71: #{tpu_custom_call.1} parent=67 // pred_region
          %s8744 = sand.u32 %s148, 1
          %s8745 = scalar_lea.sflag [#allocation4], %s8744
          %s8746 = sand.u32 %s148, 1
          %s8747 = smul.addr %s8746, 64
          %s8748 = scalar_lea.vmem [#allocation11], %s8747
          %8749 = dma.done %s8745, 1024
        $region72: #{tpu_custom_call.1} parent=67 // pred_fallthru
          _
      $region68: #{tpu_custom_call.1} parent=5 // pred_fallthru
        _
    $region6: #{tpu_custom_call.1} parent=1 // loop_footer
      %s23 = sadd.s32 1, %s19
    $region7: #{tpu_custom_call.1} parent=1 // loop_footer_branch
      %18 = sbr.rel target = $region3
    $region8: #{tpu_custom_call.1} parent=1 // loop_exit
      _
    %8750 = vsyncpa [#allocation3], 1
    %s8751 = scalar_lea.sflag [#allocation3], 1
    %8752 = vsyncpa %s8751, 1
    %8753 = vsyncpa [#allocation6], 1
    %8754 = vsyncpa [#allocation9], 1
    %s8755 = scalar_lea.sflag [#allocation9], 1
    %8756 = vsyncpa %s8755, 1
    %8757 = vsyncpa [#allocation4], 1
    %s8758 = scalar_lea.sflag [#allocation4], 1
    %8759 = vsyncpa %s8758, 1

</llo_original>
